<compile_context>
chip_gen: v7x
topology: tpu7x:2x2x1
jax: 0.10.0
libtpu: 0.0.40
codegen_flags: <defaults>
</compile_context>

<pallas_src>
import jax
import jax.numpy as jnp
from jax.experimental import pallas as pl
from jax.experimental.pallas import tpu as pltpu

NHIDDEN = 512  # forced by FC(640, nhidden): 640 = nhidden + 128


def _relu(x):
    return jnp.maximum(x, 0.0)


def _round_up(x, m):
    return (x + m - 1) // m * m


def graphical_model_kernel(
    s_ref, r_ref, o_ref,
    wf_cmp_ref, bf_ref, wg_cmpr_ref, bg_ref,
    wc1r_ref, bc1r_ref, wc2r_ref, bc2r_ref, wc3r_ref, bc3r_ref,
    wc1_ref, bc1_ref, wc2_ref, bc2_ref, wc3_ref, bc3_ref,
    wcmp_e_ref, bcmp_ref, wcmpr_e_ref, bcmpr_ref,
    outs_ref, outr_ref, outo_ref,
):
    nh = NHIDDEN
    tb = s_ref.shape[0]

    # Activations arrive in bf16 (halved HBM traffic); elementwise math in f32.
    s_bf = s_ref[...]
    r_bf = r_ref[...]
    o_bf = o_ref[...]

    def mm(x_bf, w_bf):
        return jnp.dot(x_bf, w_bf, preferred_element_type=jnp.float32)

    # ---- f on [s;o] and the compress[:, :nh] term: one wide (512,1024) dot.
    so_stack_bf = jnp.concatenate([s_bf, o_bf], axis=0)              # (2*tb, nh) bf16
    so_wide = mm(so_stack_bf, wf_cmp_ref[...])                       # (2*tb, 2*nh) f32
    fso = _relu(so_wide[:, 0:nh] + bf_ref[...])                      # f(s); f(o)
    so_term = so_wide[:, nh:2 * nh]                                  # [s;o] @ Wcmp[:nh]

    s_new_bf = (s_bf * fso[0:tb, :]).astype(jnp.bfloat16)            # s_feature * f(s)
    o_new_bf = (o_bf * fso[tb:2 * tb, :]).astype(jnp.bfloat16)       # o_feature * f(o)

    # ---- relation branch: conv1_r(cat[s_new, r, o_new]) as one K=3*nh dot.
    cat_r_bf = jnp.concatenate([s_new_bf, r_bf, o_new_bf], axis=1)   # (tb, 3*nh) bf16
    e_r = _relu(mm(cat_r_bf, wc1r_ref[...]) + bc1r_ref[...])         # (tb, nh)
    e_r = _relu(mm(e_r.astype(jnp.bfloat16), wc2r_ref[...]) + bc2r_ref[...])   # (tb, 256)
    e_r = _relu(mm(e_r.astype(jnp.bfloat16), wc3r_ref[...]) + bc3r_ref[...])   # (tb, 128)

    # ---- g on r and the compress_r[:, :nh] term: one wide (512,1024) dot.
    r_wide = mm(r_bf, wg_cmpr_ref[...])                              # (tb, 2*nh) f32
    g_r = _relu(r_wide[:, 0:nh] + bg_ref[...])
    r_cmpr_term = r_wide[:, nh:2 * nh]                               # r @ Wcmpr[:nh]

    # compress_r(cat[r, e_r]) -- concat folded into a weight split.
    out_r = _relu(r_cmpr_term
                  + mm(e_r.astype(jnp.bfloat16), wcmpr_e_ref[...])
                  + bcmpr_ref[...])

    # ---- subject/object branch: conv1(cat[s, r_new, o]) as one K=3*nh dot.
    r_new_bf = (r_bf * g_r).astype(jnp.bfloat16)                     # r_feature * g(r)
    cat_bf = jnp.concatenate([s_bf, r_new_bf, o_bf], axis=1)         # (tb, 3*nh) bf16
    e = _relu(mm(cat_bf, wc1_ref[...]) + bc1_ref[...])               # (tb, nh)
    e = _relu(mm(e.astype(jnp.bfloat16), wc2_ref[...]) + bc2_ref[...])         # (tb, 256)
    e = _relu(mm(e.astype(jnp.bfloat16), wc3_ref[...]) + bc3_ref[...])         # (tb, 128)

    # compress(cat[s, e]) / compress(cat[o, e]): shared (e @ Wcmp[nh:] + bias)
    # computed once; the s/o term came from the stacked wide dot above.
    base = mm(e.astype(jnp.bfloat16), wcmp_e_ref[...]) + bcmp_ref[...]
    out_s = _relu(so_term[0:tb, :] + base)
    out_o = _relu(so_term[tb:2 * tb, :] + base)

    outs_ref[...] = out_s.astype(outs_ref.dtype)
    outr_ref[...] = out_r.astype(outr_ref.dtype)
    outo_ref[...] = out_o.astype(outo_ref.dtype)


def graphical_model(s_feature, r_feature, o_feature, params, *, tile_b=512):
    """Pallas-call wrapper.

    `params` is the flat tuple of (in, out) weights and (1, out) biases in the
    order (wf, bf, wg, bg, wc1r, bc1r, wc2r, bc2r, wc3r, bc3r, wc1, bc1,
    wc2, bc2, wc3, bc3, wcmp, bcmp, wcmpr, bcmpr).
    """
    B = s_feature.shape[0]
    nh = NHIDDEN
    bf16, f32 = jnp.bfloat16, jnp.float32

    (wf, bf, wg, bg, wc1r, bc1r, wc2r, bc2r, wc3r, bc3r,
     wc1, bc1, wc2, bc2, wc3, bc3, wcmp, bcmp, wcmpr, bcmpr) = params

    # Stack shared-LHS weight pairs along N (zero runtime cost, done here once)
    # and cast all weights to bf16 for the MXU; biases stay f32.
    wf_cmp = jnp.concatenate([wf, wcmp[0:nh, :]], axis=1).astype(bf16)     # (nh, 2*nh)
    wg_cmpr = jnp.concatenate([wg, wcmpr[0:nh, :]], axis=1).astype(bf16)   # (nh, 2*nh)
    wcmp_e = wcmp[nh:nh + 128, :].astype(bf16)                             # (128, nh)
    wcmpr_e = wcmpr[nh:nh + 128, :].astype(bf16)                           # (128, nh)

    kparams = (
        wf_cmp, bf.astype(f32), wg_cmpr, bg.astype(f32),
        wc1r.astype(bf16), bc1r.astype(f32),
        wc2r.astype(bf16), bc2r.astype(f32),
        wc3r.astype(bf16), bc3r.astype(f32),
        wc1.astype(bf16), bc1.astype(f32),
        wc2.astype(bf16), bc2.astype(f32),
        wc3.astype(bf16), bc3.astype(f32),
        wcmp_e, bcmp.astype(f32), wcmpr_e, bcmpr.astype(f32),
    )

    # Batch tiling: multiples of 16 (bf16 sublane packing).  Default tile is
    # large (128 MiB VMEM parts); clamp to the batch, and split into >=2 grid
    # steps when the batch is big enough so the "parallel" axis can shard
    # across v7x's two TensorCores.
    b_aligned = _round_up(max(B, 1), 16)
    tile_b = _round_up(min(int(tile_b), b_aligned), 16)
    if b_aligned <= tile_b and b_aligned >= 32:
        tile_b = _round_up((b_aligned + 1) // 2, 16)
    B_pad = _round_up(B, tile_b)
    grid = (B_pad // tile_b,)

    # Activation HBM I/O in bf16 (inputs); outputs stay f32.
    pad = ((0, B_pad - B), (0, 0))
    s_in = jnp.pad(s_feature, pad).astype(bf16)
    r_in = jnp.pad(r_feature, pad).astype(bf16)
    o_in = jnp.pad(o_feature, pad).astype(bf16)

    act_spec = pl.BlockSpec((tile_b, nh), lambda i: (i, 0))
    out_spec = pl.BlockSpec((tile_b, nh), lambda i: (i, 0))
    # Weights/biases: full-array block, constant index_map, single-buffered
    # (they never change across grid steps, so no double buffer needed).
    param_specs = [
        pl.BlockSpec(p.shape, lambda i: (0, 0), pipeline_mode=pl.Buffered(1))
        for p in kparams
    ]
    in_specs = [act_spec, act_spec, act_spec] + param_specs

    # Cost estimate (helps XLA schedule the custom call).
    macs_per_row = (
        2 * nh * (2 * nh)      # [s;o] x [Wf | Wcmp[:nh]]
        + nh * (2 * nh)        # r x [Wg | Wcmpr[:nh]]
        + 2 * (3 * nh) * nh    # conv1_r + conv1
        + 2 * nh * 256         # conv2_r + conv2
        + 2 * 256 * 128        # conv3_r + conv3
        + 2 * 128 * nh         # e_r x Wcmpr[nh:], e x Wcmp[nh:]
    )
    param_bytes = sum(int(p.size) * p.dtype.itemsize for p in kparams)
    io_bytes = 3 * B_pad * nh * 2 + 3 * B_pad * nh * 4
    cost = pl.CostEstimate(
        flops=2 * B_pad * macs_per_row,
        transcendentals=0,
        bytes_accessed=param_bytes + io_bytes,
    )

    # VMEM budget: single-buffered params + double-buffered activation tiles
    # + headroom for in-kernel intermediates.  Stays under v7x's 64 MiB.
    act_tile_bytes = 3 * tile_b * nh * 2 + 3 * tile_b * nh * 4
    vmem_limit = min(param_bytes + 2 * act_tile_bytes + 24 * 1024 * 1024,
                     56 * 1024 * 1024)

    fn = pl.pallas_call(
        graphical_model_kernel,
        out_shape=tuple(jax.ShapeDtypeStruct((B_pad, nh), jnp.float32) for _ in range(3)),
        grid=grid,
        in_specs=in_specs,
        out_specs=(out_spec, out_spec, out_spec),
        compiler_params=pltpu.CompilerParams(
            dimension_semantics=("parallel",),
            vmem_limit_bytes=int(vmem_limit),
        ),
        cost_estimate=cost,
    )
    out_s, out_r, out_o = fn(s_in, r_in, o_in, *kparams)
    return out_s[:B], out_r[:B], out_o[:B]


def _init_params(key):
    """Deterministic synthetic parameters. Weights stored as (in, out), biases as (1, out)."""
    nh = NHIDDEN
    layer_shapes = [
        ("wf", nh, nh), ("wg", nh, nh),
        ("wc1r", 3 * nh, nh), ("wc2r", nh, 256), ("wc3r", 256, 128),
        ("wc1", 3 * nh, nh), ("wc2", nh, 256), ("wc3", 256, 128),
        ("wcmp", nh + 128, nh), ("wcmpr", nh + 128, nh),
    ]
    params = {}
    keys = jax.random.split(key, 2 * len(layer_shapes))
    for i, (name, fin, fout) in enumerate(layer_shapes):
        scale = 1.0 / jnp.sqrt(jnp.float32(fin))
        params[name] = scale * jax.random.normal(keys[2 * i], (fin, fout), jnp.float32)
        params["b" + name[1:]] = scale * jax.random.normal(keys[2 * i + 1], (1, fout), jnp.float32)
    order = ["wf", "bf", "wg", "bg",
             "wc1r", "bc1r", "wc2r", "bc2r", "wc3r", "bc3r",
             "wc1", "bc1", "wc2", "bc2", "wc3", "bc3",
             "wcmp", "bcmp", "wcmpr", "bcmpr"]
    return tuple(params[n] for n in order), params


def _reference(s_feat, r_feat, o_feat, p):
    """Pure-JAX reference reproducing the PyTorch forward (eval mode) with the
    same numerics as the kernel: bf16 activations/matmul operands, f32 accumulation."""
    q = lambda x: x.astype(jnp.bfloat16).astype(jnp.float32)
    s_feat, r_feat, o_feat = q(s_feat), q(r_feat), q(o_feat)

    def mm(x, w):
        return jnp.dot(x.astype(jnp.bfloat16), w.astype(jnp.bfloat16),
                       preferred_element_type=jnp.float32)

    def fc(x, w, b):
        return jnp.maximum(mm(x, w) + b, 0.0)

    s = fc(s_feat, p["wf"], p["bf"])
    o = fc(o_feat, p["wf"], p["bf"])
    s_new, o_new = s_feat * s, o_feat * o

    cat_r = jnp.concatenate([s_new, r_feat, o_new], axis=1)
    e_r = fc(fc(fc(cat_r, p["wc1r"], p["bc1r"]), p["wc2r"], p["bc2r"]), p["wc3r"], p["bc3r"])
    out_r = fc(jnp.concatenate([r_feat, e_r], axis=1), p["wcmpr"], p["bcmpr"])

    r = fc(r_feat, p["wg"], p["bg"])
    r_new = r_feat * r
    cat = jnp.concatenate([s_feat, r_new, o_feat], axis=1)
    e = fc(fc(fc(cat, p["wc1"], p["bc1"]), p["wc2"], p["bc2"]), p["wc3"], p["bc3"])
    out_s = fc(jnp.concatenate([s_feat, e], axis=1), p["wcmp"], p["bcmp"])
    out_o = fc(jnp.concatenate([o_feat, e], axis=1), p["wcmp"], p["bcmp"])
    return out_s, out_r, out_o


if __name__ == "__main__":
    B = 2
    key = jax.random.PRNGKey(0)
    k_s, k_r, k_o, k_p = jax.random.split(key, 4)
    s_feature = jax.random.normal(k_s, (B, NHIDDEN), jnp.float32)
    r_feature = jax.random.normal(k_r, (B, NHIDDEN), jnp.float32)
    o_feature = jax.random.normal(k_o, (B, NHIDDEN), jnp.float32)

    flat_params, named_params = _init_params(k_p)

    out_s, out_r, out_o = graphical_model(s_feature, r_feature, o_feature, flat_params)
    jax.block_until_ready((out_s, out_r, out_o))

    ref_s, ref_r, ref_o = _reference(s_feature, r_feature, o_feature, named_params)
    for got, want in ((out_s, ref_s), (out_r, ref_r), (out_o, ref_o)):
        if got.shape != want.shape:
            raise AssertionError("Pallas kernel output shape mismatch vs JAX reference")
        if not jnp.allclose(got, want, rtol=2e-2, atol=2e-2):
            raise AssertionError("Pallas kernel output mismatch vs JAX reference")

    print("KERNEL_OK")
</pallas_src>

<mosaic_0001>
module attributes {stable_mosaic.version = 11 : i64} {
  func.func @graphical_model_kernel(%arg0: i32, %arg1: memref<16x512xbf16, #tpu.memory_space<vmem>>, %arg2: memref<16x512xbf16, #tpu.memory_space<vmem>>, %arg3: memref<16x512xbf16, #tpu.memory_space<vmem>>, %arg4: memref<512x1024xbf16, #tpu.memory_space<vmem>>, %arg5: memref<1x512xf32, #tpu.memory_space<vmem>>, %arg6: memref<512x1024xbf16, #tpu.memory_space<vmem>>, %arg7: memref<1x512xf32, #tpu.memory_space<vmem>>, %arg8: memref<1536x512xbf16, #tpu.memory_space<vmem>>, %arg9: memref<1x512xf32, #tpu.memory_space<vmem>>, %arg10: memref<512x256xbf16, #tpu.memory_space<vmem>>, %arg11: memref<1x256xf32, #tpu.memory_space<vmem>>, %arg12: memref<256x128xbf16, #tpu.memory_space<vmem>>, %arg13: memref<1x128xf32, #tpu.memory_space<vmem>>, %arg14: memref<1536x512xbf16, #tpu.memory_space<vmem>>, %arg15: memref<1x512xf32, #tpu.memory_space<vmem>>, %arg16: memref<512x256xbf16, #tpu.memory_space<vmem>>, %arg17: memref<1x256xf32, #tpu.memory_space<vmem>>, %arg18: memref<256x128xbf16, #tpu.memory_space<vmem>>, %arg19: memref<1x128xf32, #tpu.memory_space<vmem>>, %arg20: memref<128x512xbf16, #tpu.memory_space<vmem>>, %arg21: memref<1x512xf32, #tpu.memory_space<vmem>>, %arg22: memref<128x512xbf16, #tpu.memory_space<vmem>>, %arg23: memref<1x512xf32, #tpu.memory_space<vmem>>, %arg24: memref<16x512xf32, #tpu.memory_space<vmem>>, %arg25: memref<16x512xf32, #tpu.memory_space<vmem>>, %arg26: memref<16x512xf32, #tpu.memory_space<vmem>>) attributes {dimension_semantics = [#tpu.dimension_semantics<parallel>], iteration_bounds = array<i64: 1>, scalar_prefetch = 0 : i64, scratch_operands = 0 : i64, tpu.core_type = #tpu.core_type<tc>, window_params = [{transform_indices = @transform_0, window_bounds = array<i64: 16, 512>}, {transform_indices = @transform_1, window_bounds = array<i64: 16, 512>}, {transform_indices = @transform_2, window_bounds = array<i64: 16, 512>}, {pipeline_mode = #tpu.pipeline_mode<synchronous>, transform_indices = @transform_3, window_bounds = array<i64: 512, 1024>}, {pipeline_mode = #tpu.pipeline_mode<synchronous>, transform_indices = @transform_4, window_bounds = array<i64: 1, 512>}, {pipeline_mode = #tpu.pipeline_mode<synchronous>, transform_indices = @transform_5, window_bounds = array<i64: 512, 1024>}, {pipeline_mode = #tpu.pipeline_mode<synchronous>, transform_indices = @transform_6, window_bounds = array<i64: 1, 512>}, {pipeline_mode = #tpu.pipeline_mode<synchronous>, transform_indices = @transform_7, window_bounds = array<i64: 1536, 512>}, {pipeline_mode = #tpu.pipeline_mode<synchronous>, transform_indices = @transform_8, window_bounds = array<i64: 1, 512>}, {pipeline_mode = #tpu.pipeline_mode<synchronous>, transform_indices = @transform_9, window_bounds = array<i64: 512, 256>}, {pipeline_mode = #tpu.pipeline_mode<synchronous>, transform_indices = @transform_10, window_bounds = array<i64: 1, 256>}, {pipeline_mode = #tpu.pipeline_mode<synchronous>, transform_indices = @transform_11, window_bounds = array<i64: 256, 128>}, {pipeline_mode = #tpu.pipeline_mode<synchronous>, transform_indices = @transform_12, window_bounds = array<i64: 1, 128>}, {pipeline_mode = #tpu.pipeline_mode<synchronous>, transform_indices = @transform_13, window_bounds = array<i64: 1536, 512>}, {pipeline_mode = #tpu.pipeline_mode<synchronous>, transform_indices = @transform_14, window_bounds = array<i64: 1, 512>}, {pipeline_mode = #tpu.pipeline_mode<synchronous>, transform_indices = @transform_15, window_bounds = array<i64: 512, 256>}, {pipeline_mode = #tpu.pipeline_mode<synchronous>, transform_indices = @transform_16, window_bounds = array<i64: 1, 256>}, {pipeline_mode = #tpu.pipeline_mode<synchronous>, transform_indices = @transform_17, window_bounds = array<i64: 256, 128>}, {pipeline_mode = #tpu.pipeline_mode<synchronous>, transform_indices = @transform_18, window_bounds = array<i64: 1, 128>}, {pipeline_mode = #tpu.pipeline_mode<synchronous>, transform_indices = @transform_19, window_bounds = array<i64: 128, 512>}, {pipeline_mode = #tpu.pipeline_mode<synchronous>, transform_indices = @transform_20, window_bounds = array<i64: 1, 512>}, {pipeline_mode = #tpu.pipeline_mode<synchronous>, transform_indices = @transform_21, window_bounds = array<i64: 128, 512>}, {pipeline_mode = #tpu.pipeline_mode<synchronous>, transform_indices = @transform_22, window_bounds = array<i64: 1, 512>}, {transform_indices = @transform_23, window_bounds = array<i64: 16, 512>}, {transform_indices = @transform_24, window_bounds = array<i64: 16, 512>}, {transform_indices = @transform_25, window_bounds = array<i64: 16, 512>}]} {
    %c0 = arith.constant 0 : index
    %c0_0 = arith.constant 0 : index
    %0 = vector.load %arg1[%c0, %c0_0] : memref<16x512xbf16, #tpu.memory_space<vmem>>, vector<16x512xbf16>
    %c0_1 = arith.constant 0 : index
    %c0_2 = arith.constant 0 : index
    %1 = vector.load %arg2[%c0_1, %c0_2] : memref<16x512xbf16, #tpu.memory_space<vmem>>, vector<16x512xbf16>
    %c0_3 = arith.constant 0 : index
    %c0_4 = arith.constant 0 : index
    %2 = vector.load %arg3[%c0_3, %c0_4] : memref<16x512xbf16, #tpu.memory_space<vmem>>, vector<16x512xbf16>
    %3 = tpu.concatenate %0, %2 in 0 : vector<16x512xbf16>, vector<16x512xbf16> -> vector<32x512xbf16>
    %c0_5 = arith.constant 0 : index
    %c0_6 = arith.constant 0 : index
    %4 = vector.load %arg4[%c0_5, %c0_6] : memref<512x1024xbf16, #tpu.memory_space<vmem>>, vector<512x1024xbf16>
    %cst = arith.constant dense<0.000000e+00> : vector<32x1024xf32>
    %5 = tpu.matmul %3, %4, %cst {dimension_numbers = #tpu.dot_dimension_numbers<[1], [0], [0], [1], [0, 0, 1, 1], [], []>} : vector<32x512xbf16>, vector<512x1024xbf16>, vector<32x1024xf32> -> vector<32x1024xf32>
    %6 = vector.extract_strided_slice %5 {offsets = [0, 0], sizes = [32, 512], strides = [1, 1]} : vector<32x1024xf32> to vector<32x512xf32>
    %c0_7 = arith.constant 0 : index
    %c0_8 = arith.constant 0 : index
    %7 = vector.load %arg5[%c0_7, %c0_8] : memref<1x512xf32, #tpu.memory_space<vmem>>, vector<1x512xf32>
    %8 = vector.broadcast %7 : vector<1x512xf32> to vector<32x512xf32>
    %9 = arith.addf %6, %8 : vector<32x512xf32>
    %cst_9 = arith.constant 0.000000e+00 : f32
    %10 = vector.broadcast %cst_9 : f32 to vector<32x512xf32>
    %11 = arith.maximumf %9, %10 : vector<32x512xf32>
    %12 = vector.extract_strided_slice %5 {offsets = [0, 512], sizes = [32, 512], strides = [1, 1]} : vector<32x1024xf32> to vector<32x512xf32>
    %13 = vector.extract_strided_slice %11 {offsets = [0, 0], sizes = [16, 512], strides = [1, 1]} : vector<32x512xf32> to vector<16x512xf32>
    %14 = arith.extf %0 : vector<16x512xbf16> to vector<16x512xf32>
    %15 = arith.mulf %14, %13 : vector<16x512xf32>
    %16 = arith.truncf %15 : vector<16x512xf32> to vector<16x512xbf16>
    %17 = vector.extract_strided_slice %11 {offsets = [16, 0], sizes = [16, 512], strides = [1, 1]} : vector<32x512xf32> to vector<16x512xf32>
    %18 = arith.extf %2 : vector<16x512xbf16> to vector<16x512xf32>
    %19 = arith.mulf %18, %17 : vector<16x512xf32>
    %20 = arith.truncf %19 : vector<16x512xf32> to vector<16x512xbf16>
    %21 = tpu.concatenate %16, %1, %20 in 1 : vector<16x512xbf16>, vector<16x512xbf16>, vector<16x512xbf16> -> vector<16x1536xbf16>
    %c0_10 = arith.constant 0 : index
    %c0_11 = arith.constant 0 : index
    %22 = vector.load %arg8[%c0_10, %c0_11] : memref<1536x512xbf16, #tpu.memory_space<vmem>>, vector<1536x512xbf16>
    %cst_12 = arith.constant dense<0.000000e+00> : vector<16x512xf32>
    %23 = tpu.matmul %21, %22, %cst_12 {dimension_numbers = #tpu.dot_dimension_numbers<[1], [0], [0], [1], [0, 0, 1, 1], [], []>} : vector<16x1536xbf16>, vector<1536x512xbf16>, vector<16x512xf32> -> vector<16x512xf32>
    %c0_13 = arith.constant 0 : index
    %c0_14 = arith.constant 0 : index
    %24 = vector.load %arg9[%c0_13, %c0_14] : memref<1x512xf32, #tpu.memory_space<vmem>>, vector<1x512xf32>
    %25 = vector.broadcast %24 : vector<1x512xf32> to vector<16x512xf32>
    %26 = arith.addf %23, %25 : vector<16x512xf32>
    %cst_15 = arith.constant 0.000000e+00 : f32
    %27 = vector.broadcast %cst_15 : f32 to vector<16x512xf32>
    %28 = arith.maximumf %26, %27 : vector<16x512xf32>
    %29 = arith.truncf %28 : vector<16x512xf32> to vector<16x512xbf16>
    %c0_16 = arith.constant 0 : index
    %c0_17 = arith.constant 0 : index
    %30 = vector.load %arg10[%c0_16, %c0_17] : memref<512x256xbf16, #tpu.memory_space<vmem>>, vector<512x256xbf16>
    %cst_18 = arith.constant dense<0.000000e+00> : vector<16x256xf32>
    %31 = tpu.matmul %29, %30, %cst_18 {dimension_numbers = #tpu.dot_dimension_numbers<[1], [0], [0], [1], [0, 0, 1, 1], [], []>} : vector<16x512xbf16>, vector<512x256xbf16>, vector<16x256xf32> -> vector<16x256xf32>
    %c0_19 = arith.constant 0 : index
    %c0_20 = arith.constant 0 : index
    %32 = vector.load %arg11[%c0_19, %c0_20] : memref<1x256xf32, #tpu.memory_space<vmem>>, vector<1x256xf32>
    %33 = vector.broadcast %32 : vector<1x256xf32> to vector<16x256xf32>
    %34 = arith.addf %31, %33 : vector<16x256xf32>
    %cst_21 = arith.constant 0.000000e+00 : f32
    %35 = vector.broadcast %cst_21 : f32 to vector<16x256xf32>
    %36 = arith.maximumf %34, %35 : vector<16x256xf32>
    %37 = arith.truncf %36 : vector<16x256xf32> to vector<16x256xbf16>
    %c0_22 = arith.constant 0 : index
    %c0_23 = arith.constant 0 : index
    %38 = vector.load %arg12[%c0_22, %c0_23] : memref<256x128xbf16, #tpu.memory_space<vmem>>, vector<256x128xbf16>
    %cst_24 = arith.constant dense<0.000000e+00> : vector<16x128xf32>
    %39 = tpu.matmul %37, %38, %cst_24 {dimension_numbers = #tpu.dot_dimension_numbers<[1], [0], [0], [1], [0, 0, 1, 1], [], []>} : vector<16x256xbf16>, vector<256x128xbf16>, vector<16x128xf32> -> vector<16x128xf32>
    %c0_25 = arith.constant 0 : index
    %c0_26 = arith.constant 0 : index
    %40 = vector.load %arg13[%c0_25, %c0_26] : memref<1x128xf32, #tpu.memory_space<vmem>>, vector<1x128xf32>
    %41 = vector.broadcast %40 : vector<1x128xf32> to vector<16x128xf32>
    %42 = arith.addf %39, %41 : vector<16x128xf32>
    %cst_27 = arith.constant 0.000000e+00 : f32
    %43 = vector.broadcast %cst_27 : f32 to vector<16x128xf32>
    %44 = arith.maximumf %42, %43 : vector<16x128xf32>
    %c0_28 = arith.constant 0 : index
    %c0_29 = arith.constant 0 : index
    %45 = vector.load %arg6[%c0_28, %c0_29] : memref<512x1024xbf16, #tpu.memory_space<vmem>>, vector<512x1024xbf16>
    %cst_30 = arith.constant dense<0.000000e+00> : vector<16x1024xf32>
    %46 = tpu.matmul %1, %45, %cst_30 {dimension_numbers = #tpu.dot_dimension_numbers<[1], [0], [0], [1], [0, 0, 1, 1], [], []>} : vector<16x512xbf16>, vector<512x1024xbf16>, vector<16x1024xf32> -> vector<16x1024xf32>
    %47 = vector.extract_strided_slice %46 {offsets = [0, 0], sizes = [16, 512], strides = [1, 1]} : vector<16x1024xf32> to vector<16x512xf32>
    %c0_31 = arith.constant 0 : index
    %c0_32 = arith.constant 0 : index
    %48 = vector.load %arg7[%c0_31, %c0_32] : memref<1x512xf32, #tpu.memory_space<vmem>>, vector<1x512xf32>
    %49 = vector.broadcast %48 : vector<1x512xf32> to vector<16x512xf32>
    %50 = arith.addf %47, %49 : vector<16x512xf32>
    %cst_33 = arith.constant 0.000000e+00 : f32
    %51 = vector.broadcast %cst_33 : f32 to vector<16x512xf32>
    %52 = arith.maximumf %50, %51 : vector<16x512xf32>
    %53 = vector.extract_strided_slice %46 {offsets = [0, 512], sizes = [16, 512], strides = [1, 1]} : vector<16x1024xf32> to vector<16x512xf32>
    %54 = arith.truncf %44 : vector<16x128xf32> to vector<16x128xbf16>
    %c0_34 = arith.constant 0 : index
    %c0_35 = arith.constant 0 : index
    %55 = vector.load %arg22[%c0_34, %c0_35] : memref<128x512xbf16, #tpu.memory_space<vmem>>, vector<128x512xbf16>
    %cst_36 = arith.constant dense<0.000000e+00> : vector<16x512xf32>
    %56 = tpu.matmul %54, %55, %cst_36 {dimension_numbers = #tpu.dot_dimension_numbers<[1], [0], [0], [1], [0, 0, 1, 1], [], []>} : vector<16x128xbf16>, vector<128x512xbf16>, vector<16x512xf32> -> vector<16x512xf32>
    %57 = arith.addf %53, %56 : vector<16x512xf32>
    %c0_37 = arith.constant 0 : index
    %c0_38 = arith.constant 0 : index
    %58 = vector.load %arg23[%c0_37, %c0_38] : memref<1x512xf32, #tpu.memory_space<vmem>>, vector<1x512xf32>
    %59 = vector.broadcast %58 : vector<1x512xf32> to vector<16x512xf32>
    %60 = arith.addf %57, %59 : vector<16x512xf32>
    %cst_39 = arith.constant 0.000000e+00 : f32
    %61 = vector.broadcast %cst_39 : f32 to vector<16x512xf32>
    %62 = arith.maximumf %60, %61 : vector<16x512xf32>
    %63 = arith.extf %1 : vector<16x512xbf16> to vector<16x512xf32>
    %64 = arith.mulf %63, %52 : vector<16x512xf32>
    %65 = arith.truncf %64 : vector<16x512xf32> to vector<16x512xbf16>
    %66 = tpu.concatenate %0, %65, %2 in 1 : vector<16x512xbf16>, vector<16x512xbf16>, vector<16x512xbf16> -> vector<16x1536xbf16>
    %c0_40 = arith.constant 0 : index
    %c0_41 = arith.constant 0 : index
    %67 = vector.load %arg14[%c0_40, %c0_41] : memref<1536x512xbf16, #tpu.memory_space<vmem>>, vector<1536x512xbf16>
    %cst_42 = arith.constant dense<0.000000e+00> : vector<16x512xf32>
    %68 = tpu.matmul %66, %67, %cst_42 {dimension_numbers = #tpu.dot_dimension_numbers<[1], [0], [0], [1], [0, 0, 1, 1], [], []>} : vector<16x1536xbf16>, vector<1536x512xbf16>, vector<16x512xf32> -> vector<16x512xf32>
    %c0_43 = arith.constant 0 : index
    %c0_44 = arith.constant 0 : index
    %69 = vector.load %arg15[%c0_43, %c0_44] : memref<1x512xf32, #tpu.memory_space<vmem>>, vector<1x512xf32>
    %70 = vector.broadcast %69 : vector<1x512xf32> to vector<16x512xf32>
    %71 = arith.addf %68, %70 : vector<16x512xf32>
    %cst_45 = arith.constant 0.000000e+00 : f32
    %72 = vector.broadcast %cst_45 : f32 to vector<16x512xf32>
    %73 = arith.maximumf %71, %72 : vector<16x512xf32>
    %74 = arith.truncf %73 : vector<16x512xf32> to vector<16x512xbf16>
    %c0_46 = arith.constant 0 : index
    %c0_47 = arith.constant 0 : index
    %75 = vector.load %arg16[%c0_46, %c0_47] : memref<512x256xbf16, #tpu.memory_space<vmem>>, vector<512x256xbf16>
    %cst_48 = arith.constant dense<0.000000e+00> : vector<16x256xf32>
    %76 = tpu.matmul %74, %75, %cst_48 {dimension_numbers = #tpu.dot_dimension_numbers<[1], [0], [0], [1], [0, 0, 1, 1], [], []>} : vector<16x512xbf16>, vector<512x256xbf16>, vector<16x256xf32> -> vector<16x256xf32>
    %c0_49 = arith.constant 0 : index
    %c0_50 = arith.constant 0 : index
    %77 = vector.load %arg17[%c0_49, %c0_50] : memref<1x256xf32, #tpu.memory_space<vmem>>, vector<1x256xf32>
    %78 = vector.broadcast %77 : vector<1x256xf32> to vector<16x256xf32>
    %79 = arith.addf %76, %78 : vector<16x256xf32>
    %cst_51 = arith.constant 0.000000e+00 : f32
    %80 = vector.broadcast %cst_51 : f32 to vector<16x256xf32>
    %81 = arith.maximumf %79, %80 : vector<16x256xf32>
    %82 = arith.truncf %81 : vector<16x256xf32> to vector<16x256xbf16>
    %c0_52 = arith.constant 0 : index
    %c0_53 = arith.constant 0 : index
    %83 = vector.load %arg18[%c0_52, %c0_53] : memref<256x128xbf16, #tpu.memory_space<vmem>>, vector<256x128xbf16>
    %cst_54 = arith.constant dense<0.000000e+00> : vector<16x128xf32>
    %84 = tpu.matmul %82, %83, %cst_54 {dimension_numbers = #tpu.dot_dimension_numbers<[1], [0], [0], [1], [0, 0, 1, 1], [], []>} : vector<16x256xbf16>, vector<256x128xbf16>, vector<16x128xf32> -> vector<16x128xf32>
    %c0_55 = arith.constant 0 : index
    %c0_56 = arith.constant 0 : index
    %85 = vector.load %arg19[%c0_55, %c0_56] : memref<1x128xf32, #tpu.memory_space<vmem>>, vector<1x128xf32>
    %86 = vector.broadcast %85 : vector<1x128xf32> to vector<16x128xf32>
    %87 = arith.addf %84, %86 : vector<16x128xf32>
    %cst_57 = arith.constant 0.000000e+00 : f32
    %88 = vector.broadcast %cst_57 : f32 to vector<16x128xf32>
    %89 = arith.maximumf %87, %88 : vector<16x128xf32>
    %90 = arith.truncf %89 : vector<16x128xf32> to vector<16x128xbf16>
    %c0_58 = arith.constant 0 : index
    %c0_59 = arith.constant 0 : index
    %91 = vector.load %arg20[%c0_58, %c0_59] : memref<128x512xbf16, #tpu.memory_space<vmem>>, vector<128x512xbf16>
    %cst_60 = arith.constant dense<0.000000e+00> : vector<16x512xf32>
    %92 = tpu.matmul %90, %91, %cst_60 {dimension_numbers = #tpu.dot_dimension_numbers<[1], [0], [0], [1], [0, 0, 1, 1], [], []>} : vector<16x128xbf16>, vector<128x512xbf16>, vector<16x512xf32> -> vector<16x512xf32>
    %c0_61 = arith.constant 0 : index
    %c0_62 = arith.constant 0 : index
    %93 = vector.load %arg21[%c0_61, %c0_62] : memref<1x512xf32, #tpu.memory_space<vmem>>, vector<1x512xf32>
    %94 = vector.broadcast %93 : vector<1x512xf32> to vector<16x512xf32>
    %95 = arith.addf %92, %94 : vector<16x512xf32>
    %96 = vector.extract_strided_slice %12 {offsets = [0, 0], sizes = [16, 512], strides = [1, 1]} : vector<32x512xf32> to vector<16x512xf32>
    %97 = arith.addf %96, %95 : vector<16x512xf32>
    %cst_63 = arith.constant 0.000000e+00 : f32
    %98 = vector.broadcast %cst_63 : f32 to vector<16x512xf32>
    %99 = arith.maximumf %97, %98 : vector<16x512xf32>
    %100 = vector.extract_strided_slice %12 {offsets = [16, 0], sizes = [16, 512], strides = [1, 1]} : vector<32x512xf32> to vector<16x512xf32>
    %101 = arith.addf %100, %95 : vector<16x512xf32>
    %cst_64 = arith.constant 0.000000e+00 : f32
    %102 = vector.broadcast %cst_64 : f32 to vector<16x512xf32>
    %103 = arith.maximumf %101, %102 : vector<16x512xf32>
    %c0_65 = arith.constant 0 : index
    %c0_66 = arith.constant 0 : index
    %104 = vector.load %arg24[%c0_65, %c0_66] : memref<16x512xf32, #tpu.memory_space<vmem>>, vector<16x512xf32>
    tpu.vector_store %arg24[%c0_65, %c0_66], %99 {strides = array<i32>} : memref<16x512xf32, #tpu.memory_space<vmem>>, vector<16x512xf32>,
    %c0_67 = arith.constant 0 : index
    %c0_68 = arith.constant 0 : index
    %105 = vector.load %arg25[%c0_67, %c0_68] : memref<16x512xf32, #tpu.memory_space<vmem>>, vector<16x512xf32>
    tpu.vector_store %arg25[%c0_67, %c0_68], %62 {strides = array<i32>} : memref<16x512xf32, #tpu.memory_space<vmem>>, vector<16x512xf32>,
    %c0_69 = arith.constant 0 : index
    %c0_70 = arith.constant 0 : index
    %106 = vector.load %arg26[%c0_69, %c0_70] : memref<16x512xf32, #tpu.memory_space<vmem>>, vector<16x512xf32>
    tpu.vector_store %arg26[%c0_69, %c0_70], %103 {strides = array<i32>} : memref<16x512xf32, #tpu.memory_space<vmem>>, vector<16x512xf32>,
    return
  }
  func.func @transform_0(%arg0: i32) -> (i32, i32) {
    %c0_i32 = arith.constant 0 : i32
    %c0_i32_0 = arith.constant 0 : i32
    return %arg0, %c0_i32 : i32, i32
  }
  func.func @transform_1(%arg0: i32) -> (i32, i32) {
    %c0_i32 = arith.constant 0 : i32
    %c0_i32_0 = arith.constant 0 : i32
    return %arg0, %c0_i32 : i32, i32
  }
  func.func @transform_2(%arg0: i32) -> (i32, i32) {
    %c0_i32 = arith.constant 0 : i32
    %c0_i32_0 = arith.constant 0 : i32
    return %arg0, %c0_i32 : i32, i32
  }
  func.func @transform_3(%arg0: i32) -> (i32, i32) {
    %c0_i32 = arith.constant 0 : i32
    %c0_i32_0 = arith.constant 0 : i32
    %c0_i32_1 = arith.constant 0 : i32
    return %c0_i32, %c0_i32_0 : i32, i32
  }
  func.func @transform_4(%arg0: i32) -> (i32, i32) {
    %c0_i32 = arith.constant 0 : i32
    %c0_i32_0 = arith.constant 0 : i32
    %c0_i32_1 = arith.constant 0 : i32
    return %c0_i32, %c0_i32_0 : i32, i32
  }
  func.func @transform_5(%arg0: i32) -> (i32, i32) {
    %c0_i32 = arith.constant 0 : i32
    %c0_i32_0 = arith.constant 0 : i32
    %c0_i32_1 = arith.constant 0 : i32
    return %c0_i32, %c0_i32_0 : i32, i32
  }
  func.func @transform_6(%arg0: i32) -> (i32, i32) {
    %c0_i32 = arith.constant 0 : i32
    %c0_i32_0 = arith.constant 0 : i32
    %c0_i32_1 = arith.constant 0 : i32
    return %c0_i32, %c0_i32_0 : i32, i32
  }
  func.func @transform_7(%arg0: i32) -> (i32, i32) {
    %c0_i32 = arith.constant 0 : i32
    %c0_i32_0 = arith.constant 0 : i32
    %c0_i32_1 = arith.constant 0 : i32
    return %c0_i32, %c0_i32_0 : i32, i32
  }
  func.func @transform_8(%arg0: i32) -> (i32, i32) {
    %c0_i32 = arith.constant 0 : i32
    %c0_i32_0 = arith.constant 0 : i32
    %c0_i32_1 = arith.constant 0 : i32
    return %c0_i32, %c0_i32_0 : i32, i32
  }
  func.func @transform_9(%arg0: i32) -> (i32, i32) {
    %c0_i32 = arith.constant 0 : i32
    %c0_i32_0 = arith.constant 0 : i32
    %c0_i32_1 = arith.constant 0 : i32
    return %c0_i32, %c0_i32_0 : i32, i32
  }
  func.func @transform_10(%arg0: i32) -> (i32, i32) {
    %c0_i32 = arith.constant 0 : i32
    %c0_i32_0 = arith.constant 0 : i32
    %c0_i32_1 = arith.constant 0 : i32
    return %c0_i32, %c0_i32_0 : i32, i32
  }
  func.func @transform_11(%arg0: i32) -> (i32, i32) {
    %c0_i32 = arith.constant 0 : i32
    %c0_i32_0 = arith.constant 0 : i32
    %c0_i32_1 = arith.constant 0 : i32
    return %c0_i32, %c0_i32_0 : i32, i32
  }
  func.func @transform_12(%arg0: i32) -> (i32, i32) {
    %c0_i32 = arith.constant 0 : i32
    %c0_i32_0 = arith.constant 0 : i32
    %c0_i32_1 = arith.constant 0 : i32
    return %c0_i32, %c0_i32_0 : i32, i32
  }
  func.func @transform_13(%arg0: i32) -> (i32, i32) {
    %c0_i32 = arith.constant 0 : i32
    %c0_i32_0 = arith.constant 0 : i32
    %c0_i32_1 = arith.constant 0 : i32
    return %c0_i32, %c0_i32_0 : i32, i32
  }
  func.func @transform_14(%arg0: i32) -> (i32, i32) {
    %c0_i32 = arith.constant 0 : i32
    %c0_i32_0 = arith.constant 0 : i32
    %c0_i32_1 = arith.constant 0 : i32
    return %c0_i32, %c0_i32_0 : i32, i32
  }
  func.func @transform_15(%arg0: i32) -> (i32, i32) {
    %c0_i32 = arith.constant 0 : i32
    %c0_i32_0 = arith.constant 0 : i32
    %c0_i32_1 = arith.constant 0 : i32
    return %c0_i32, %c0_i32_0 : i32, i32
  }
  func.func @transform_16(%arg0: i32) -> (i32, i32) {
    %c0_i32 = arith.constant 0 : i32
    %c0_i32_0 = arith.constant 0 : i32
    %c0_i32_1 = arith.constant 0 : i32
    return %c0_i32, %c0_i32_0 : i32, i32
  }
  func.func @transform_17(%arg0: i32) -> (i32, i32) {
    %c0_i32 = arith.constant 0 : i32
    %c0_i32_0 = arith.constant 0 : i32
    %c0_i32_1 = arith.constant 0 : i32
    return %c0_i32, %c0_i32_0 : i32, i32
  }
  func.func @transform_18(%arg0: i32) -> (i32, i32) {
    %c0_i32 = arith.constant 0 : i32
    %c0_i32_0 = arith.constant 0 : i32
    %c0_i32_1 = arith.constant 0 : i32
    return %c0_i32, %c0_i32_0 : i32, i32
  }
  func.func @transform_19(%arg0: i32) -> (i32, i32) {
    %c0_i32 = arith.constant 0 : i32
    %c0_i32_0 = arith.constant 0 : i32
    %c0_i32_1 = arith.constant 0 : i32
    return %c0_i32, %c0_i32_0 : i32, i32
  }
  func.func @transform_20(%arg0: i32) -> (i32, i32) {
    %c0_i32 = arith.constant 0 : i32
    %c0_i32_0 = arith.constant 0 : i32
    %c0_i32_1 = arith.constant 0 : i32
    return %c0_i32, %c0_i32_0 : i32, i32
  }
  func.func @transform_21(%arg0: i32) -> (i32, i32) {
    %c0_i32 = arith.constant 0 : i32
    %c0_i32_0 = arith.constant 0 : i32
    %c0_i32_1 = arith.constant 0 : i32
    return %c0_i32, %c0_i32_0 : i32, i32
  }
  func.func @transform_22(%arg0: i32) -> (i32, i32) {
    %c0_i32 = arith.constant 0 : i32
    %c0_i32_0 = arith.constant 0 : i32
    %c0_i32_1 = arith.constant 0 : i32
    return %c0_i32, %c0_i32_0 : i32, i32
  }
  func.func @transform_23(%arg0: i32) -> (i32, i32) {
    %c0_i32 = arith.constant 0 : i32
    %c0_i32_0 = arith.constant 0 : i32
    return %arg0, %c0_i32 : i32, i32
  }
  func.func @transform_24(%arg0: i32) -> (i32, i32) {
    %c0_i32 = arith.constant 0 : i32
    %c0_i32_0 = arith.constant 0 : i32
    return %arg0, %c0_i32 : i32, i32
  }
  func.func @transform_25(%arg0: i32) -> (i32, i32) {
    %c0_i32 = arith.constant 0 : i32
    %c0_i32_0 = arith.constant 0 : i32
    return %arg0, %c0_i32 : i32, i32
  }
}

</mosaic_0001>

<llo_original>
// kernel: tpu_custom_call.1
$region0: #{tpu_custom_call.1}
  #allocation0 [shape = 'u32[]', space=smem, size = 0x4, offset = 0x4, fixed_abs, tag = 'smem constant byte address 0x4 - core index']
  #allocation1 [shape = 'u32[144,128]{1,0:T(1,128)}', space=vmem, size = 0x12000, scoped, tag = 'internal scratch']
  %s0 = inlined_call_operand.hbm [shape: bf16[16,512], index: 0, kind: input, shape index: {}]
  %s1 = inlined_call_operand.hbm [shape: bf16[16,512], index: 1, kind: input, shape index: {}]
  %s2 = inlined_call_operand.hbm [shape: bf16[16,512], index: 2, kind: input, shape index: {}]
  %s3 = inlined_call_operand.hbm [shape: bf16[512,1024], index: 3, kind: input, shape index: {}]
  %s4 = inlined_call_operand.hbm [shape: f32[1,512], index: 4, kind: input, shape index: {}]
  %s5 = inlined_call_operand.hbm [shape: bf16[512,1024], index: 5, kind: input, shape index: {}]
  %s6 = inlined_call_operand.hbm [shape: f32[1,512], index: 6, kind: input, shape index: {}]
  %s7 = inlined_call_operand.hbm [shape: bf16[1536,512], index: 7, kind: input, shape index: {}]
  %s8 = inlined_call_operand.hbm [shape: f32[1,512], index: 8, kind: input, shape index: {}]
  %s9 = inlined_call_operand.hbm [shape: bf16[512,256], index: 9, kind: input, shape index: {}]
  %s10 = inlined_call_operand.hbm [shape: f32[1,256], index: 10, kind: input, shape index: {}]
  %s11 = inlined_call_operand.hbm [shape: bf16[256,128], index: 11, kind: input, shape index: {}]
  %s12 = inlined_call_operand.hbm [shape: f32[1,128], index: 12, kind: input, shape index: {}]
  %s13 = inlined_call_operand.hbm [shape: bf16[1536,512], index: 13, kind: input, shape index: {}]
  %s14 = inlined_call_operand.hbm [shape: f32[1,512], index: 14, kind: input, shape index: {}]
  %s15 = inlined_call_operand.hbm [shape: bf16[512,256], index: 15, kind: input, shape index: {}]
  %s16 = inlined_call_operand.hbm [shape: f32[1,256], index: 16, kind: input, shape index: {}]
  %s17 = inlined_call_operand.hbm [shape: bf16[256,128], index: 17, kind: input, shape index: {}]
  %s18 = inlined_call_operand.hbm [shape: f32[1,128], index: 18, kind: input, shape index: {}]
  %s19 = inlined_call_operand.hbm [shape: bf16[128,512], index: 19, kind: input, shape index: {}]
  %s20 = inlined_call_operand.hbm [shape: f32[1,512], index: 20, kind: input, shape index: {}]
  %s21 = inlined_call_operand.hbm [shape: bf16[128,512], index: 21, kind: input, shape index: {}]
  %s22 = inlined_call_operand.hbm [shape: f32[1,512], index: 22, kind: input, shape index: {}]
  %s23 = inlined_call_operand.hbm [shape: f32[16,512], index: 23, kind: output, shape index: {0}]
  %s24 = inlined_call_operand.hbm [shape: f32[16,512], index: 24, kind: output, shape index: {1}]
  %s25 = inlined_call_operand.hbm [shape: f32[16,512], index: 25, kind: output, shape index: {2}]
  %26 = xla_tuple %s23, %s24, %s25
  %s27 = sld [smem:[#allocation0]]
  $region210: #{tpu_custom_call.1} parent=0
    _
  %s29 = ssub.s32 1, %s27
  %s30 = scalar_select 0, %s29, %s27
  $region1: #{tpu_custom_call.1} parent=0
    #allocation2 [shape = 'u8[16384]{0}', space=vmem, size = 0x4000, scoped, tag = 'input window, operand 0, single buffered']
    #allocation3 [shape = 's32[1]{0}', space=sflag, size = 0x4, scoped, tag = 'scoped memory for tpu_custom_call.1']
    #allocation4 [shape = 's32[1]{0}', space=sflag, size = 0x4, scoped, tag = 'scoped memory for tpu_custom_call.1']
    #allocation5 [shape = 'u8[16384]{0}', space=vmem, size = 0x4000, scoped, tag = 'input window, operand 1, single buffered']
    #allocation6 [shape = 's32[1]{0}', space=sflag, size = 0x4, scoped, tag = 'scoped memory for tpu_custom_call.1']
    #allocation7 [shape = 'u8[16384]{0}', space=vmem, size = 0x4000, scoped, tag = 'input window, operand 2, single buffered']
    #allocation8 [shape = 'u8[1048576]{0}', space=vmem, size = 0x100000, scoped, tag = 'input window, operand 3, single buffered']
    #allocation9 [shape = 's32[1]{0}', space=sflag, size = 0x4, scoped, tag = 'scoped memory for tpu_custom_call.1']
    #allocation10 [shape = 'u8[2048]{0}', space=vmem, size = 0x800, scoped, tag = 'input window, operand 4, single buffered']
    #allocation11 [shape = 'u8[1048576]{0}', space=vmem, size = 0x100000, scoped, tag = 'input window, operand 5, single buffered']
    #allocation12 [shape = 's32[1]{0}', space=sflag, size = 0x4, scoped, tag = 'scoped memory for tpu_custom_call.1']
    #allocation13 [shape = 'u8[2048]{0}', space=vmem, size = 0x800, scoped, tag = 'input window, operand 6, single buffered']
    #allocation14 [shape = 'u8[1572864]{0}', space=vmem, size = 0x180000, scoped, tag = 'input window, operand 7, single buffered']
    #allocation15 [shape = 's32[1]{0}', space=sflag, size = 0x4, scoped, tag = 'scoped memory for tpu_custom_call.1']
    #allocation16 [shape = 'u8[2048]{0}', space=vmem, size = 0x800, scoped, tag = 'input window, operand 8, single buffered']
    #allocation17 [shape = 'u8[262144]{0}', space=vmem, size = 0x40000, scoped, tag = 'input window, operand 9, single buffered']
    #allocation18 [shape = 's32[1]{0}', space=sflag, size = 0x4, scoped, tag = 'scoped memory for tpu_custom_call.1']
    #allocation19 [shape = 'u8[1024]{0}', space=vmem, size = 0x400, scoped, tag = 'input window, operand 10, single buffered']
    #allocation20 [shape = 'u8[65536]{0}', space=vmem, size = 0x10000, scoped, tag = 'input window, operand 11, single buffered']
    #allocation21 [shape = 's32[1]{0}', space=sflag, size = 0x4, scoped, tag = 'scoped memory for tpu_custom_call.1']
    #allocation22 [shape = 'u8[512]{0}', space=vmem, size = 0x400, scoped, tag = 'input window, operand 12, single buffered']
    #allocation23 [shape = 'u8[1572864]{0}', space=vmem, size = 0x180000, scoped, tag = 'input window, operand 13, single buffered']
    #allocation24 [shape = 's32[1]{0}', space=sflag, size = 0x4, scoped, tag = 'scoped memory for tpu_custom_call.1']
    #allocation25 [shape = 'u8[2048]{0}', space=vmem, size = 0x800, scoped, tag = 'input window, operand 14, single buffered']
    #allocation26 [shape = 'u8[262144]{0}', space=vmem, size = 0x40000, scoped, tag = 'input window, operand 15, single buffered']
    #allocation27 [shape = 's32[1]{0}', space=sflag, size = 0x4, scoped, tag = 'scoped memory for tpu_custom_call.1']
    #allocation28 [shape = 'u8[1024]{0}', space=vmem, size = 0x400, scoped, tag = 'input window, operand 16, single buffered']
    #allocation29 [shape = 'u8[65536]{0}', space=vmem, size = 0x10000, scoped, tag = 'input window, operand 17, single buffered']
    #allocation30 [shape = 's32[1]{0}', space=sflag, size = 0x4, scoped, tag = 'scoped memory for tpu_custom_call.1']
    #allocation31 [shape = 'u8[512]{0}', space=vmem, size = 0x400, scoped, tag = 'input window, operand 18, single buffered']
    #allocation32 [shape = 'u8[131072]{0}', space=vmem, size = 0x20000, scoped, tag = 'input window, operand 19, single buffered']
    #allocation33 [shape = 's32[1]{0}', space=sflag, size = 0x4, scoped, tag = 'scoped memory for tpu_custom_call.1']
    #allocation34 [shape = 'u8[2048]{0}', space=vmem, size = 0x800, scoped, tag = 'input window, operand 20, single buffered']
    #allocation35 [shape = 'u8[131072]{0}', space=vmem, size = 0x20000, scoped, tag = 'input window, operand 21, single buffered']
    #allocation36 [shape = 's32[1]{0}', space=sflag, size = 0x4, scoped, tag = 'scoped memory for tpu_custom_call.1']
    #allocation37 [shape = 'u8[2048]{0}', space=vmem, size = 0x800, scoped, tag = 'input window, operand 22, single buffered']
    #allocation38 [shape = 'u8[32768]{0}', space=vmem, size = 0x8000, scoped, tag = 'output window, operand 0, single buffered']
    #allocation39 [shape = 'u8[32768]{0}', space=vmem, size = 0x8000, scoped, tag = 'output window, operand 1, single buffered']
    #allocation40 [shape = 's32[1]{0}', space=sflag, size = 0x4, scoped, tag = 'scoped memory for tpu_custom_call.1']
    #allocation41 [shape = 'u8[32768]{0}', space=vmem, size = 0x8000, scoped, tag = 'output window, operand 2, single buffered']
    %31 = vsyncpa [#allocation3], 0
    %32 = vsyncpa [#allocation6], 0
    %33 = vsyncpa [#allocation9], 0
    %34 = vsyncpa [#allocation12], 0
    %35 = vsyncpa [#allocation15], 0
    %36 = vsyncpa [#allocation18], 0
    %37 = vsyncpa [#allocation21], 0
    %38 = vsyncpa [#allocation24], 0
    %39 = vsyncpa [#allocation27], 0
    %40 = vsyncpa [#allocation30], 0
    %41 = vsyncpa [#allocation33], 0
    %42 = vsyncpa [#allocation36], 0
    %43 = vsyncpa [#allocation4], 0
    %44 = vsyncpa [#allocation40], 0
    // Predicated region
    $region2: #{tpu_custom_call.1} parent=1 // pred_check
      _
    $region3: #{tpu_custom_call.1} parent=1 // pred_check_branch
      %46 = sbr.rel (0) target = $region5
    $region4: #{tpu_custom_call.1} parent=1 // pred_region
      %s48 = ssub.s32 512, 512
      %49 = vsyncadd [#allocation3], %s48
      %s50 = sshll.u32 [#allocation2], 4
      %s51 = int_to_ptr.vmem [resolvable:$true] %s50
      %56 = dma.hbm_to_vmem [thread:$0]  %s0, 512, %s51, [#allocation3], 256, 256, 16
    $region5: #{tpu_custom_call.1} parent=1 // pred_fallthru
      _
    // Predicated region
    $region6: #{tpu_custom_call.1} parent=1 // pred_check
      _
    $region7: #{tpu_custom_call.1} parent=1 // pred_check_branch
      %58 = sbr.rel (0) target = $region9
    $region8: #{tpu_custom_call.1} parent=1 // pred_region
      %s60 = ssub.s32 512, 512
      %61 = vsyncadd [#allocation6], %s60
      %s62 = sshll.u32 [#allocation5], 4
      %s63 = int_to_ptr.vmem [resolvable:$true] %s62
      %68 = dma.hbm_to_vmem [thread:$0]  %s1, 512, %s63, [#allocation6], 256, 256, 16
    $region9: #{tpu_custom_call.1} parent=1 // pred_fallthru
      _
    // Predicated region
    $region10: #{tpu_custom_call.1} parent=1 // pred_check
      _
    $region11: #{tpu_custom_call.1} parent=1 // pred_check_branch
      %70 = sbr.rel (0) target = $region13
    $region12: #{tpu_custom_call.1} parent=1 // pred_region
      %s72 = ssub.s32 512, 512
      %73 = vsyncadd [#allocation6], %s72
      %s74 = sshll.u32 [#allocation7], 4
      %s75 = int_to_ptr.vmem [resolvable:$true] %s74
      %80 = dma.hbm_to_vmem [thread:$0]  %s2, 512, %s75, [#allocation6], 256, 256, 16
    $region13: #{tpu_custom_call.1} parent=1 // pred_fallthru
      _
    // Predicated region
    $region14: #{tpu_custom_call.1} parent=1 // pred_check
      _
    $region15: #{tpu_custom_call.1} parent=1 // pred_check_branch
      %82 = sbr.rel (0) target = $region17
    $region16: #{tpu_custom_call.1} parent=1 // pred_region
      %s84 = ssub.s32 32768, 32768
      %85 = vsyncadd [#allocation9], %s84
      %s86 = sshll.u32 [#allocation8], 4
      %s87 = int_to_ptr.vmem [resolvable:$true] %s86
      %92 = dma.hbm_to_vmem [thread:$0]  %s3, 32768, %s87, [#allocation9], 512, 512, 32
    $region17: #{tpu_custom_call.1} parent=1 // pred_fallthru
      _
    // Predicated region
    $region18: #{tpu_custom_call.1} parent=1 // pred_check
      _
    $region19: #{tpu_custom_call.1} parent=1 // pred_check_branch
      %94 = sbr.rel (0) target = $region21
    $region20: #{tpu_custom_call.1} parent=1 // pred_region
      %s96 = ssub.s32 64, 64
      %97 = vsyncadd [#allocation9], %s96
      %s99 = sshll.u32 [#allocation10], 4
      %s100 = int_to_ptr.vmem [resolvable:$true] %s99
      %102 = dma.hbm_to_vmem [thread:$0]  %s4, 64, %s100, [#allocation9]
    $region21: #{tpu_custom_call.1} parent=1 // pred_fallthru
      _
    // Predicated region
    $region22: #{tpu_custom_call.1} parent=1 // pred_check
      _
    $region23: #{tpu_custom_call.1} parent=1 // pred_check_branch
      %104 = sbr.rel (0) target = $region25
    $region24: #{tpu_custom_call.1} parent=1 // pred_region
      %s106 = ssub.s32 32768, 32768
      %107 = vsyncadd [#allocation12], %s106
      %s108 = sshll.u32 [#allocation11], 4
      %s109 = int_to_ptr.vmem [resolvable:$true] %s108
      %114 = dma.hbm_to_vmem [thread:$0]  %s5, 32768, %s109, [#allocation12], 512, 512, 32
    $region25: #{tpu_custom_call.1} parent=1 // pred_fallthru
      _
    // Predicated region
    $region26: #{tpu_custom_call.1} parent=1 // pred_check
      _
    $region27: #{tpu_custom_call.1} parent=1 // pred_check_branch
      %116 = sbr.rel (0) target = $region29
    $region28: #{tpu_custom_call.1} parent=1 // pred_region
      %s118 = ssub.s32 64, 64
      %119 = vsyncadd [#allocation12], %s118
      %s121 = sshll.u32 [#allocation13], 4
      %s122 = int_to_ptr.vmem [resolvable:$true] %s121
      %124 = dma.hbm_to_vmem [thread:$0]  %s6, 64, %s122, [#allocation12]
    $region29: #{tpu_custom_call.1} parent=1 // pred_fallthru
      _
    // Predicated region
    $region30: #{tpu_custom_call.1} parent=1 // pred_check
      _
    $region31: #{tpu_custom_call.1} parent=1 // pred_check_branch
      %126 = sbr.rel (0) target = $region33
    $region32: #{tpu_custom_call.1} parent=1 // pred_region
      %s128 = ssub.s32 49152, 49152
      %129 = vsyncadd [#allocation15], %s128
      %s130 = sshll.u32 [#allocation14], 4
      %s131 = int_to_ptr.vmem [resolvable:$true] %s130
      %136 = dma.hbm_to_vmem [thread:$0]  %s7, 49152, %s131, [#allocation15], 256, 256, 16
    $region33: #{tpu_custom_call.1} parent=1 // pred_fallthru
      _
    // Predicated region
    $region34: #{tpu_custom_call.1} parent=1 // pred_check
      _
    $region35: #{tpu_custom_call.1} parent=1 // pred_check_branch
      %138 = sbr.rel (0) target = $region37
    $region36: #{tpu_custom_call.1} parent=1 // pred_region
      %s140 = ssub.s32 64, 64
      %141 = vsyncadd [#allocation15], %s140
      %s143 = sshll.u32 [#allocation16], 4
      %s144 = int_to_ptr.vmem [resolvable:$true] %s143
      %146 = dma.hbm_to_vmem [thread:$0]  %s8, 64, %s144, [#allocation15]
    $region37: #{tpu_custom_call.1} parent=1 // pred_fallthru
      _
    // Predicated region
    $region38: #{tpu_custom_call.1} parent=1 // pred_check
      _
    $region39: #{tpu_custom_call.1} parent=1 // pred_check_branch
      %148 = sbr.rel (0) target = $region41
    $region40: #{tpu_custom_call.1} parent=1 // pred_region
      %s150 = ssub.s32 8192, 8192
      %151 = vsyncadd [#allocation18], %s150
      %s152 = sshll.u32 [#allocation17], 4
      %s153 = int_to_ptr.vmem [resolvable:$true] %s152
      %158 = dma.hbm_to_vmem [thread:$0]  %s9, 8192, %s153, [#allocation18], 128, 128, 8
    $region41: #{tpu_custom_call.1} parent=1 // pred_fallthru
      _
    // Predicated region
    $region42: #{tpu_custom_call.1} parent=1 // pred_check
      _
    $region43: #{tpu_custom_call.1} parent=1 // pred_check_branch
      %160 = sbr.rel (0) target = $region45
    $region44: #{tpu_custom_call.1} parent=1 // pred_region
      %s162 = ssub.s32 32, 32
      %163 = vsyncadd [#allocation18], %s162
      %s165 = sshll.u32 [#allocation19], 4
      %s166 = int_to_ptr.vmem [resolvable:$true] %s165
      %168 = dma.hbm_to_vmem [thread:$0]  %s10, 32, %s166, [#allocation18]
    $region45: #{tpu_custom_call.1} parent=1 // pred_fallthru
      _
    // Predicated region
    $region46: #{tpu_custom_call.1} parent=1 // pred_check
      _
    $region47: #{tpu_custom_call.1} parent=1 // pred_check_branch
      %170 = sbr.rel (0) target = $region49
    $region48: #{tpu_custom_call.1} parent=1 // pred_region
      %s172 = ssub.s32 2048, 2048
      %173 = vsyncadd [#allocation21], %s172
      %s174 = sshll.u32 [#allocation20], 4
      %s175 = int_to_ptr.vmem [resolvable:$true] %s174
      %180 = dma.hbm_to_vmem [thread:$0]  %s11, 2048, %s175, [#allocation21], 64, 64, 4
    $region49: #{tpu_custom_call.1} parent=1 // pred_fallthru
      _
    // Predicated region
    $region50: #{tpu_custom_call.1} parent=1 // pred_check
      _
    $region51: #{tpu_custom_call.1} parent=1 // pred_check_branch
      %182 = sbr.rel (0) target = $region53
    $region52: #{tpu_custom_call.1} parent=1 // pred_region
      %s184 = ssub.s32 16, 16
      %185 = vsyncadd [#allocation21], %s184
      %s187 = sshll.u32 [#allocation22], 4
      %s188 = int_to_ptr.vmem [resolvable:$true] %s187
      %190 = dma.hbm_to_vmem [thread:$0]  %s12, 16, %s188, [#allocation21]
    $region53: #{tpu_custom_call.1} parent=1 // pred_fallthru
      _
    // Predicated region
    $region54: #{tpu_custom_call.1} parent=1 // pred_check
      _
    $region55: #{tpu_custom_call.1} parent=1 // pred_check_branch
      %192 = sbr.rel (0) target = $region57
    $region56: #{tpu_custom_call.1} parent=1 // pred_region
      %s194 = ssub.s32 49152, 49152
      %195 = vsyncadd [#allocation24], %s194
      %s196 = sshll.u32 [#allocation23], 4
      %s197 = int_to_ptr.vmem [resolvable:$true] %s196
      %202 = dma.hbm_to_vmem [thread:$0]  %s13, 49152, %s197, [#allocation24], 256, 256, 16
    $region57: #{tpu_custom_call.1} parent=1 // pred_fallthru
      _
    // Predicated region
    $region58: #{tpu_custom_call.1} parent=1 // pred_check
      _
    $region59: #{tpu_custom_call.1} parent=1 // pred_check_branch
      %204 = sbr.rel (0) target = $region61
    $region60: #{tpu_custom_call.1} parent=1 // pred_region
      %s206 = ssub.s32 64, 64
      %207 = vsyncadd [#allocation24], %s206
      %s209 = sshll.u32 [#allocation25], 4
      %s210 = int_to_ptr.vmem [resolvable:$true] %s209
      %212 = dma.hbm_to_vmem [thread:$0]  %s14, 64, %s210, [#allocation24]
    $region61: #{tpu_custom_call.1} parent=1 // pred_fallthru
      _
    // Predicated region
    $region62: #{tpu_custom_call.1} parent=1 // pred_check
      _
    $region63: #{tpu_custom_call.1} parent=1 // pred_check_branch
      %214 = sbr.rel (0) target = $region65
    $region64: #{tpu_custom_call.1} parent=1 // pred_region
      %s216 = ssub.s32 8192, 8192
      %217 = vsyncadd [#allocation27], %s216
      %s218 = sshll.u32 [#allocation26], 4
      %s219 = int_to_ptr.vmem [resolvable:$true] %s218
      %224 = dma.hbm_to_vmem [thread:$0]  %s15, 8192, %s219, [#allocation27], 128, 128, 8
    $region65: #{tpu_custom_call.1} parent=1 // pred_fallthru
      _
    // Predicated region
    $region66: #{tpu_custom_call.1} parent=1 // pred_check
      _
    $region67: #{tpu_custom_call.1} parent=1 // pred_check_branch
      %226 = sbr.rel (0) target = $region69
    $region68: #{tpu_custom_call.1} parent=1 // pred_region
      %s228 = ssub.s32 32, 32
      %229 = vsyncadd [#allocation27], %s228
      %s231 = sshll.u32 [#allocation28], 4
      %s232 = int_to_ptr.vmem [resolvable:$true] %s231
      %234 = dma.hbm_to_vmem [thread:$0]  %s16, 32, %s232, [#allocation27]
    $region69: #{tpu_custom_call.1} parent=1 // pred_fallthru
      _
    // Predicated region
    $region70: #{tpu_custom_call.1} parent=1 // pred_check
      _
    $region71: #{tpu_custom_call.1} parent=1 // pred_check_branch
      %236 = sbr.rel (0) target = $region73
    $region72: #{tpu_custom_call.1} parent=1 // pred_region
      %s238 = ssub.s32 2048, 2048
      %239 = vsyncadd [#allocation30], %s238
      %s240 = sshll.u32 [#allocation29], 4
      %s241 = int_to_ptr.vmem [resolvable:$true] %s240
      %246 = dma.hbm_to_vmem [thread:$0]  %s17, 2048, %s241, [#allocation30], 64, 64, 4
    $region73: #{tpu_custom_call.1} parent=1 // pred_fallthru
      _
    // Predicated region
    $region74: #{tpu_custom_call.1} parent=1 // pred_check
      _
    $region75: #{tpu_custom_call.1} parent=1 // pred_check_branch
      %248 = sbr.rel (0) target = $region77
    $region76: #{tpu_custom_call.1} parent=1 // pred_region
      %s250 = ssub.s32 16, 16
      %251 = vsyncadd [#allocation30], %s250
      %s253 = sshll.u32 [#allocation31], 4
      %s254 = int_to_ptr.vmem [resolvable:$true] %s253
      %256 = dma.hbm_to_vmem [thread:$0]  %s18, 16, %s254, [#allocation30]
    $region77: #{tpu_custom_call.1} parent=1 // pred_fallthru
      _
    // Predicated region
    $region78: #{tpu_custom_call.1} parent=1 // pred_check
      _
    $region79: #{tpu_custom_call.1} parent=1 // pred_check_branch
      %258 = sbr.rel (0) target = $region81
    $region80: #{tpu_custom_call.1} parent=1 // pred_region
      %s260 = ssub.s32 4096, 4096
      %261 = vsyncadd [#allocation33], %s260
      %s262 = sshll.u32 [#allocation32], 4
      %s263 = int_to_ptr.vmem [resolvable:$true] %s262
      %268 = dma.hbm_to_vmem [thread:$0]  %s19, 4096, %s263, [#allocation33], 256, 256, 16
    $region81: #{tpu_custom_call.1} parent=1 // pred_fallthru
      _
    // Predicated region
    $region82: #{tpu_custom_call.1} parent=1 // pred_check
      _
    $region83: #{tpu_custom_call.1} parent=1 // pred_check_branch
      %270 = sbr.rel (0) target = $region85
    $region84: #{tpu_custom_call.1} parent=1 // pred_region
      %s272 = ssub.s32 64, 64
      %273 = vsyncadd [#allocation33], %s272
      %s275 = sshll.u32 [#allocation34], 4
      %s276 = int_to_ptr.vmem [resolvable:$true] %s275
      %278 = dma.hbm_to_vmem [thread:$0]  %s20, 64, %s276, [#allocation33]
    $region85: #{tpu_custom_call.1} parent=1 // pred_fallthru
      _
    // Predicated region
    $region86: #{tpu_custom_call.1} parent=1 // pred_check
      _
    $region87: #{tpu_custom_call.1} parent=1 // pred_check_branch
      %280 = sbr.rel (0) target = $region89
    $region88: #{tpu_custom_call.1} parent=1 // pred_region
      %s282 = ssub.s32 4096, 4096
      %283 = vsyncadd [#allocation36], %s282
      %s284 = sshll.u32 [#allocation35], 4
      %s285 = int_to_ptr.vmem [resolvable:$true] %s284
      %290 = dma.hbm_to_vmem [thread:$0]  %s21, 4096, %s285, [#allocation36], 256, 256, 16
    $region89: #{tpu_custom_call.1} parent=1 // pred_fallthru
      _
    // Predicated region
    $region90: #{tpu_custom_call.1} parent=1 // pred_check
      _
    $region91: #{tpu_custom_call.1} parent=1 // pred_check_branch
      %292 = sbr.rel (0) target = $region93
    $region92: #{tpu_custom_call.1} parent=1 // pred_region
      %s294 = ssub.s32 64, 64
      %295 = vsyncadd [#allocation36], %s294
      %s297 = sshll.u32 [#allocation37], 4
      %s298 = int_to_ptr.vmem [resolvable:$true] %s297
      %300 = dma.hbm_to_vmem [thread:$0]  %s22, 64, %s298, [#allocation36]
    $region93: #{tpu_custom_call.1} parent=1 // pred_fallthru
      _
    // Predicated region
    $region94: #{tpu_custom_call.1} parent=1 // pred_check
      _
    $region95: #{tpu_custom_call.1} parent=1 // pred_check_branch
      %302 = sbr.rel (0) target = $region97
    $region96: #{tpu_custom_call.1} parent=1 // pred_region
      %303 = dma.done [#allocation3], 512
    $region97: #{tpu_custom_call.1} parent=1 // pred_fallthru
      _
    // Predicated region
    $region98: #{tpu_custom_call.1} parent=1 // pred_check
      _
    $region99: #{tpu_custom_call.1} parent=1 // pred_check_branch
      %305 = sbr.rel (0) target = $region101
    $region100: #{tpu_custom_call.1} parent=1 // pred_region
      %306 = dma.done [#allocation6], 512
    $region101: #{tpu_custom_call.1} parent=1 // pred_fallthru
      _
    // Predicated region
    $region102: #{tpu_custom_call.1} parent=1 // pred_check
      _
    $region103: #{tpu_custom_call.1} parent=1 // pred_check_branch
      %308 = sbr.rel (0) target = $region105
    $region104: #{tpu_custom_call.1} parent=1 // pred_region
      %309 = dma.done [#allocation6], 512
    $region105: #{tpu_custom_call.1} parent=1 // pred_fallthru
      _
    // Predicated region
    $region106: #{tpu_custom_call.1} parent=1 // pred_check
      _
    $region107: #{tpu_custom_call.1} parent=1 // pred_check_branch
      %311 = sbr.rel (0) target = $region109
    $region108: #{tpu_custom_call.1} parent=1 // pred_region
      %312 = dma.done [#allocation9], 32768
    $region109: #{tpu_custom_call.1} parent=1 // pred_fallthru
      _
    // Predicated region
    $region110: #{tpu_custom_call.1} parent=1 // pred_check
      _
    $region111: #{tpu_custom_call.1} parent=1 // pred_check_branch
      %314 = sbr.rel (0) target = $region113
    $region112: #{tpu_custom_call.1} parent=1 // pred_region
      %315 = dma.done [#allocation9], 64
    $region113: #{tpu_custom_call.1} parent=1 // pred_fallthru
      _
    // Predicated region
    $region114: #{tpu_custom_call.1} parent=1 // pred_check
      _
    $region115: #{tpu_custom_call.1} parent=1 // pred_check_branch
      %317 = sbr.rel (0) target = $region117
    $region116: #{tpu_custom_call.1} parent=1 // pred_region
      %318 = dma.done [#allocation12], 32768
    $region117: #{tpu_custom_call.1} parent=1 // pred_fallthru
      _
    // Predicated region
    $region118: #{tpu_custom_call.1} parent=1 // pred_check
      _
    $region119: #{tpu_custom_call.1} parent=1 // pred_check_branch
      %320 = sbr.rel (0) target = $region121
    $region120: #{tpu_custom_call.1} parent=1 // pred_region
      %321 = dma.done [#allocation12], 64
    $region121: #{tpu_custom_call.1} parent=1 // pred_fallthru
      _
    // Predicated region
    $region122: #{tpu_custom_call.1} parent=1 // pred_check
      _
    $region123: #{tpu_custom_call.1} parent=1 // pred_check_branch
      %323 = sbr.rel (0) target = $region125
    $region124: #{tpu_custom_call.1} parent=1 // pred_region
      %324 = dma.done [#allocation15], 49152
    $region125: #{tpu_custom_call.1} parent=1 // pred_fallthru
      _
    // Predicated region
    $region126: #{tpu_custom_call.1} parent=1 // pred_check
      _
    $region127: #{tpu_custom_call.1} parent=1 // pred_check_branch
      %326 = sbr.rel (0) target = $region129
    $region128: #{tpu_custom_call.1} parent=1 // pred_region
      %327 = dma.done [#allocation15], 64
    $region129: #{tpu_custom_call.1} parent=1 // pred_fallthru
      _
    // Predicated region
    $region130: #{tpu_custom_call.1} parent=1 // pred_check
      _
    $region131: #{tpu_custom_call.1} parent=1 // pred_check_branch
      %329 = sbr.rel (0) target = $region133
    $region132: #{tpu_custom_call.1} parent=1 // pred_region
      %330 = dma.done [#allocation18], 8192
    $region133: #{tpu_custom_call.1} parent=1 // pred_fallthru
      _
    // Predicated region
    $region134: #{tpu_custom_call.1} parent=1 // pred_check
      _
    $region135: #{tpu_custom_call.1} parent=1 // pred_check_branch
      %332 = sbr.rel (0) target = $region137
    $region136: #{tpu_custom_call.1} parent=1 // pred_region
      %333 = dma.done [#allocation18], 32
    $region137: #{tpu_custom_call.1} parent=1 // pred_fallthru
      _
    // Predicated region
    $region138: #{tpu_custom_call.1} parent=1 // pred_check
      _
    $region139: #{tpu_custom_call.1} parent=1 // pred_check_branch
      %335 = sbr.rel (0) target = $region141
    $region140: #{tpu_custom_call.1} parent=1 // pred_region
      %336 = dma.done [#allocation21], 2048
    $region141: #{tpu_custom_call.1} parent=1 // pred_fallthru
      _
    // Predicated region
    $region142: #{tpu_custom_call.1} parent=1 // pred_check
      _
    $region143: #{tpu_custom_call.1} parent=1 // pred_check_branch
      %338 = sbr.rel (0) target = $region145
    $region144: #{tpu_custom_call.1} parent=1 // pred_region
      %339 = dma.done [#allocation21], 16
    $region145: #{tpu_custom_call.1} parent=1 // pred_fallthru
      _
    // Predicated region
    $region146: #{tpu_custom_call.1} parent=1 // pred_check
      _
    $region147: #{tpu_custom_call.1} parent=1 // pred_check_branch
      %341 = sbr.rel (0) target = $region149
    $region148: #{tpu_custom_call.1} parent=1 // pred_region
      %342 = dma.done [#allocation24], 49152
    $region149: #{tpu_custom_call.1} parent=1 // pred_fallthru
      _
    // Predicated region
    $region150: #{tpu_custom_call.1} parent=1 // pred_check
      _
    $region151: #{tpu_custom_call.1} parent=1 // pred_check_branch
      %344 = sbr.rel (0) target = $region153
    $region152: #{tpu_custom_call.1} parent=1 // pred_region
      %345 = dma.done [#allocation24], 64
    $region153: #{tpu_custom_call.1} parent=1 // pred_fallthru
      _
    // Predicated region
    $region154: #{tpu_custom_call.1} parent=1 // pred_check
      _
    $region155: #{tpu_custom_call.1} parent=1 // pred_check_branch
      %347 = sbr.rel (0) target = $region157
    $region156: #{tpu_custom_call.1} parent=1 // pred_region
      %348 = dma.done [#allocation27], 8192
    $region157: #{tpu_custom_call.1} parent=1 // pred_fallthru
      _
    // Predicated region
    $region158: #{tpu_custom_call.1} parent=1 // pred_check
      _
    $region159: #{tpu_custom_call.1} parent=1 // pred_check_branch
      %350 = sbr.rel (0) target = $region161
    $region160: #{tpu_custom_call.1} parent=1 // pred_region
      %351 = dma.done [#allocation27], 32
    $region161: #{tpu_custom_call.1} parent=1 // pred_fallthru
      _
    // Predicated region
    $region162: #{tpu_custom_call.1} parent=1 // pred_check
      _
    $region163: #{tpu_custom_call.1} parent=1 // pred_check_branch
      %353 = sbr.rel (0) target = $region165
    $region164: #{tpu_custom_call.1} parent=1 // pred_region
      %354 = dma.done [#allocation30], 2048
    $region165: #{tpu_custom_call.1} parent=1 // pred_fallthru
      _
    // Predicated region
    $region166: #{tpu_custom_call.1} parent=1 // pred_check
      _
    $region167: #{tpu_custom_call.1} parent=1 // pred_check_branch
      %356 = sbr.rel (0) target = $region169
    $region168: #{tpu_custom_call.1} parent=1 // pred_region
      %357 = dma.done [#allocation30], 16
    $region169: #{tpu_custom_call.1} parent=1 // pred_fallthru
      _
    // Predicated region
    $region170: #{tpu_custom_call.1} parent=1 // pred_check
      _
    $region171: #{tpu_custom_call.1} parent=1 // pred_check_branch
      %359 = sbr.rel (0) target = $region173
    $region172: #{tpu_custom_call.1} parent=1 // pred_region
      %360 = dma.done [#allocation33], 4096
    $region173: #{tpu_custom_call.1} parent=1 // pred_fallthru
      _
    // Predicated region
    $region174: #{tpu_custom_call.1} parent=1 // pred_check
      _
    $region175: #{tpu_custom_call.1} parent=1 // pred_check_branch
      %362 = sbr.rel (0) target = $region177
    $region176: #{tpu_custom_call.1} parent=1 // pred_region
      %363 = dma.done [#allocation33], 64
    $region177: #{tpu_custom_call.1} parent=1 // pred_fallthru
      _
    // Predicated region
    $region178: #{tpu_custom_call.1} parent=1 // pred_check
      _
    $region179: #{tpu_custom_call.1} parent=1 // pred_check_branch
      %365 = sbr.rel (0) target = $region181
    $region180: #{tpu_custom_call.1} parent=1 // pred_region
      %366 = dma.done [#allocation36], 4096
    $region181: #{tpu_custom_call.1} parent=1 // pred_fallthru
      _
    // Predicated region
    $region182: #{tpu_custom_call.1} parent=1 // pred_check
      _
    $region183: #{tpu_custom_call.1} parent=1 // pred_check_branch
      %368 = sbr.rel (0) target = $region185
    $region184: #{tpu_custom_call.1} parent=1 // pred_region
      %369 = dma.done [#allocation36], 64
    $region185: #{tpu_custom_call.1} parent=1 // pred_fallthru
      _
    %v371 = vld [vmem:[#allocation2] sm:$0xff]
    %v372 = vld [vmem:[#allocation2 + $0x8] sm:$0xff]
    %v373 = vld [vmem:[#allocation2 + $0x10] sm:$0xff]
    %v374 = vld [vmem:[#allocation2 + $0x18] sm:$0xff]
    %v375 = vld [vmem:[#allocation5] sm:$0xff]
    %v376 = vld [vmem:[#allocation5 + $0x8] sm:$0xff]
    %v377 = vld [vmem:[#allocation5 + $0x10] sm:$0xff]
    %v378 = vld [vmem:[#allocation5 + $0x18] sm:$0xff]
    %v379 = vld [vmem:[#allocation7] sm:$0xff]
    %v380 = vld [vmem:[#allocation7 + $0x8] sm:$0xff]
    %v381 = vld [vmem:[#allocation7 + $0x10] sm:$0xff]
    %v382 = vld [vmem:[#allocation7 + $0x18] sm:$0xff]
    %v387 = vunpack.c.l.b16 %v371
    %v388 = vunpack.c.h.b16 %v371
    %v389 = vunpack.c.l.b16 %v372
    %v390 = vunpack.c.h.b16 %v372
    %v391 = vunpack.c.l.b16 %v373
    %v392 = vunpack.c.h.b16 %v373
    %v393 = vunpack.c.l.b16 %v374
    %v394 = vunpack.c.h.b16 %v374
    %v395 = vpack.c.b16 %v391, %v387
    %v396 = vpack.c.b16 %v392, %v388
    %v397 = vpack.c.b16 %v393, %v389
    %v398 = vpack.c.b16 %v394, %v390
    %v407 = vunpack.c.l.b16 %v379
    %v408 = vunpack.c.h.b16 %v379
    %v409 = vunpack.c.l.b16 %v380
    %v410 = vunpack.c.h.b16 %v380
    %v411 = vunpack.c.l.b16 %v381
    %v412 = vunpack.c.h.b16 %v381
    %v413 = vunpack.c.l.b16 %v382
    %v414 = vunpack.c.h.b16 %v382
    %v415 = vpack.c.b16 %v411, %v407
    %v416 = vpack.c.b16 %v412, %v408
    %v417 = vpack.c.b16 %v413, %v409
    %v418 = vpack.c.b16 %v414, %v410
    %v423 = vld [vmem:[#allocation8] sm:$0xff]
    %v424 = vld [vmem:[#allocation8 + $0x8] sm:$0xff]
    %v425 = vld [vmem:[#allocation8 + $0x10] sm:$0xff]
    %v426 = vld [vmem:[#allocation8 + $0x18] sm:$0xff]
    %v427 = vld [vmem:[#allocation8 + $0x20] sm:$0xff]
    %v428 = vld [vmem:[#allocation8 + $0x28] sm:$0xff]
    %v429 = vld [vmem:[#allocation8 + $0x30] sm:$0xff]
    %v430 = vld [vmem:[#allocation8 + $0x38] sm:$0xff]
    %v431 = vld [vmem:[#allocation8 + $0x40] sm:$0xff]
    %v432 = vld [vmem:[#allocation8 + $0x48] sm:$0xff]
    %v433 = vld [vmem:[#allocation8 + $0x50] sm:$0xff]
    %v434 = vld [vmem:[#allocation8 + $0x58] sm:$0xff]
    %v435 = vld [vmem:[#allocation8 + $0x60] sm:$0xff]
    %v436 = vld [vmem:[#allocation8 + $0x68] sm:$0xff]
    %v437 = vld [vmem:[#allocation8 + $0x70] sm:$0xff]
    %v438 = vld [vmem:[#allocation8 + $0x78] sm:$0xff]
    %v439 = vld [vmem:[#allocation8 + $0x80] sm:$0xff]
    %v440 = vld [vmem:[#allocation8 + $0x88] sm:$0xff]
    %v441 = vld [vmem:[#allocation8 + $0x90] sm:$0xff]
    %v442 = vld [vmem:[#allocation8 + $0x98] sm:$0xff]
    %v443 = vld [vmem:[#allocation8 + $0xa0] sm:$0xff]
    %v444 = vld [vmem:[#allocation8 + $0xa8] sm:$0xff]
    %v445 = vld [vmem:[#allocation8 + $0xb0] sm:$0xff]
    %v446 = vld [vmem:[#allocation8 + $0xb8] sm:$0xff]
    %v447 = vld [vmem:[#allocation8 + $0xc0] sm:$0xff]
    %v448 = vld [vmem:[#allocation8 + $0xc8] sm:$0xff]
    %v449 = vld [vmem:[#allocation8 + $0xd0] sm:$0xff]
    %v450 = vld [vmem:[#allocation8 + $0xd8] sm:$0xff]
    %v451 = vld [vmem:[#allocation8 + $0xe0] sm:$0xff]
    %v452 = vld [vmem:[#allocation8 + $0xe8] sm:$0xff]
    %v453 = vld [vmem:[#allocation8 + $0xf0] sm:$0xff]
    %v454 = vld [vmem:[#allocation8 + $0xf8] sm:$0xff]
    %v455 = vld [vmem:[#allocation8 + $0x100] sm:$0xff]
    %v456 = vld [vmem:[#allocation8 + $0x108] sm:$0xff]
    %v457 = vld [vmem:[#allocation8 + $0x110] sm:$0xff]
    %v458 = vld [vmem:[#allocation8 + $0x118] sm:$0xff]
    %v459 = vld [vmem:[#allocation8 + $0x120] sm:$0xff]
    %v460 = vld [vmem:[#allocation8 + $0x128] sm:$0xff]
    %v461 = vld [vmem:[#allocation8 + $0x130] sm:$0xff]
    %v462 = vld [vmem:[#allocation8 + $0x138] sm:$0xff]
    %v463 = vld [vmem:[#allocation8 + $0x140] sm:$0xff]
    %v464 = vld [vmem:[#allocation8 + $0x148] sm:$0xff]
    %v465 = vld [vmem:[#allocation8 + $0x150] sm:$0xff]
    %v466 = vld [vmem:[#allocation8 + $0x158] sm:$0xff]
    %v467 = vld [vmem:[#allocation8 + $0x160] sm:$0xff]
    %v468 = vld [vmem:[#allocation8 + $0x168] sm:$0xff]
    %v469 = vld [vmem:[#allocation8 + $0x170] sm:$0xff]
    %v470 = vld [vmem:[#allocation8 + $0x178] sm:$0xff]
    %v471 = vld [vmem:[#allocation8 + $0x180] sm:$0xff]
    %v472 = vld [vmem:[#allocation8 + $0x188] sm:$0xff]
    %v473 = vld [vmem:[#allocation8 + $0x190] sm:$0xff]
    %v474 = vld [vmem:[#allocation8 + $0x198] sm:$0xff]
    %v475 = vld [vmem:[#allocation8 + $0x1a0] sm:$0xff]
    %v476 = vld [vmem:[#allocation8 + $0x1a8] sm:$0xff]
    %v477 = vld [vmem:[#allocation8 + $0x1b0] sm:$0xff]
    %v478 = vld [vmem:[#allocation8 + $0x1b8] sm:$0xff]
    %v479 = vld [vmem:[#allocation8 + $0x1c0] sm:$0xff]
    %v480 = vld [vmem:[#allocation8 + $0x1c8] sm:$0xff]
    %v481 = vld [vmem:[#allocation8 + $0x1d0] sm:$0xff]
    %v482 = vld [vmem:[#allocation8 + $0x1d8] sm:$0xff]
    %v483 = vld [vmem:[#allocation8 + $0x1e0] sm:$0xff]
    %v484 = vld [vmem:[#allocation8 + $0x1e8] sm:$0xff]
    %v485 = vld [vmem:[#allocation8 + $0x1f0] sm:$0xff]
    %v486 = vld [vmem:[#allocation8 + $0x1f8] sm:$0xff]
    %v487 = vld [vmem:[#allocation8 + $0x200] sm:$0xff]
    %v488 = vld [vmem:[#allocation8 + $0x208] sm:$0xff]
    %v489 = vld [vmem:[#allocation8 + $0x210] sm:$0xff]
    %v490 = vld [vmem:[#allocation8 + $0x218] sm:$0xff]
    %v491 = vld [vmem:[#allocation8 + $0x220] sm:$0xff]
    %v492 = vld [vmem:[#allocation8 + $0x228] sm:$0xff]
    %v493 = vld [vmem:[#allocation8 + $0x230] sm:$0xff]
    %v494 = vld [vmem:[#allocation8 + $0x238] sm:$0xff]
    %v495 = vld [vmem:[#allocation8 + $0x240] sm:$0xff]
    %v496 = vld [vmem:[#allocation8 + $0x248] sm:$0xff]
    %v497 = vld [vmem:[#allocation8 + $0x250] sm:$0xff]
    %v498 = vld [vmem:[#allocation8 + $0x258] sm:$0xff]
    %v499 = vld [vmem:[#allocation8 + $0x260] sm:$0xff]
    %v500 = vld [vmem:[#allocation8 + $0x268] sm:$0xff]
    %v501 = vld [vmem:[#allocation8 + $0x270] sm:$0xff]
    %v502 = vld [vmem:[#allocation8 + $0x278] sm:$0xff]
    %v503 = vld [vmem:[#allocation8 + $0x280] sm:$0xff]
    %v504 = vld [vmem:[#allocation8 + $0x288] sm:$0xff]
    %v505 = vld [vmem:[#allocation8 + $0x290] sm:$0xff]
    %v506 = vld [vmem:[#allocation8 + $0x298] sm:$0xff]
    %v507 = vld [vmem:[#allocation8 + $0x2a0] sm:$0xff]
    %v508 = vld [vmem:[#allocation8 + $0x2a8] sm:$0xff]
    %v509 = vld [vmem:[#allocation8 + $0x2b0] sm:$0xff]
    %v510 = vld [vmem:[#allocation8 + $0x2b8] sm:$0xff]
    %v511 = vld [vmem:[#allocation8 + $0x2c0] sm:$0xff]
    %v512 = vld [vmem:[#allocation8 + $0x2c8] sm:$0xff]
    %v513 = vld [vmem:[#allocation8 + $0x2d0] sm:$0xff]
    %v514 = vld [vmem:[#allocation8 + $0x2d8] sm:$0xff]
    %v515 = vld [vmem:[#allocation8 + $0x2e0] sm:$0xff]
    %v516 = vld [vmem:[#allocation8 + $0x2e8] sm:$0xff]
    %v517 = vld [vmem:[#allocation8 + $0x2f0] sm:$0xff]
    %v518 = vld [vmem:[#allocation8 + $0x2f8] sm:$0xff]
    %v519 = vld [vmem:[#allocation8 + $0x300] sm:$0xff]
    %v520 = vld [vmem:[#allocation8 + $0x308] sm:$0xff]
    %v521 = vld [vmem:[#allocation8 + $0x310] sm:$0xff]
    %v522 = vld [vmem:[#allocation8 + $0x318] sm:$0xff]
    %v523 = vld [vmem:[#allocation8 + $0x320] sm:$0xff]
    %v524 = vld [vmem:[#allocation8 + $0x328] sm:$0xff]
    %v525 = vld [vmem:[#allocation8 + $0x330] sm:$0xff]
    %v526 = vld [vmem:[#allocation8 + $0x338] sm:$0xff]
    %v527 = vld [vmem:[#allocation8 + $0x340] sm:$0xff]
    %v528 = vld [vmem:[#allocation8 + $0x348] sm:$0xff]
    %v529 = vld [vmem:[#allocation8 + $0x350] sm:$0xff]
    %v530 = vld [vmem:[#allocation8 + $0x358] sm:$0xff]
    %v531 = vld [vmem:[#allocation8 + $0x360] sm:$0xff]
    %v532 = vld [vmem:[#allocation8 + $0x368] sm:$0xff]
    %v533 = vld [vmem:[#allocation8 + $0x370] sm:$0xff]
    %v534 = vld [vmem:[#allocation8 + $0x378] sm:$0xff]
    %v535 = vld [vmem:[#allocation8 + $0x380] sm:$0xff]
    %v536 = vld [vmem:[#allocation8 + $0x388] sm:$0xff]
    %v537 = vld [vmem:[#allocation8 + $0x390] sm:$0xff]
    %v538 = vld [vmem:[#allocation8 + $0x398] sm:$0xff]
    %v539 = vld [vmem:[#allocation8 + $0x3a0] sm:$0xff]
    %v540 = vld [vmem:[#allocation8 + $0x3a8] sm:$0xff]
    %v541 = vld [vmem:[#allocation8 + $0x3b0] sm:$0xff]
    %v542 = vld [vmem:[#allocation8 + $0x3b8] sm:$0xff]
    %v543 = vld [vmem:[#allocation8 + $0x3c0] sm:$0xff]
    %v544 = vld [vmem:[#allocation8 + $0x3c8] sm:$0xff]
    %v545 = vld [vmem:[#allocation8 + $0x3d0] sm:$0xff]
    %v546 = vld [vmem:[#allocation8 + $0x3d8] sm:$0xff]
    %v547 = vld [vmem:[#allocation8 + $0x3e0] sm:$0xff]
    %v548 = vld [vmem:[#allocation8 + $0x3e8] sm:$0xff]
    %v549 = vld [vmem:[#allocation8 + $0x3f0] sm:$0xff]
    %v550 = vld [vmem:[#allocation8 + $0x3f8] sm:$0xff]
    %v551 = vld [vmem:[#allocation8 + $0x400] sm:$0xff]
    %v552 = vld [vmem:[#allocation8 + $0x408] sm:$0xff]
    %v553 = vld [vmem:[#allocation8 + $0x410] sm:$0xff]
    %v554 = vld [vmem:[#allocation8 + $0x418] sm:$0xff]
    %v555 = vld [vmem:[#allocation8 + $0x420] sm:$0xff]
    %v556 = vld [vmem:[#allocation8 + $0x428] sm:$0xff]
    %v557 = vld [vmem:[#allocation8 + $0x430] sm:$0xff]
    %v558 = vld [vmem:[#allocation8 + $0x438] sm:$0xff]
    %v559 = vld [vmem:[#allocation8 + $0x440] sm:$0xff]
    %v560 = vld [vmem:[#allocation8 + $0x448] sm:$0xff]
    %v561 = vld [vmem:[#allocation8 + $0x450] sm:$0xff]
    %v562 = vld [vmem:[#allocation8 + $0x458] sm:$0xff]
    %v563 = vld [vmem:[#allocation8 + $0x460] sm:$0xff]
    %v564 = vld [vmem:[#allocation8 + $0x468] sm:$0xff]
    %v565 = vld [vmem:[#allocation8 + $0x470] sm:$0xff]
    %v566 = vld [vmem:[#allocation8 + $0x478] sm:$0xff]
    %v567 = vld [vmem:[#allocation8 + $0x480] sm:$0xff]
    %v568 = vld [vmem:[#allocation8 + $0x488] sm:$0xff]
    %v569 = vld [vmem:[#allocation8 + $0x490] sm:$0xff]
    %v570 = vld [vmem:[#allocation8 + $0x498] sm:$0xff]
    %v571 = vld [vmem:[#allocation8 + $0x4a0] sm:$0xff]
    %v572 = vld [vmem:[#allocation8 + $0x4a8] sm:$0xff]
    %v573 = vld [vmem:[#allocation8 + $0x4b0] sm:$0xff]
    %v574 = vld [vmem:[#allocation8 + $0x4b8] sm:$0xff]
    %v575 = vld [vmem:[#allocation8 + $0x4c0] sm:$0xff]
    %v576 = vld [vmem:[#allocation8 + $0x4c8] sm:$0xff]
    %v577 = vld [vmem:[#allocation8 + $0x4d0] sm:$0xff]
    %v578 = vld [vmem:[#allocation8 + $0x4d8] sm:$0xff]
    %v579 = vld [vmem:[#allocation8 + $0x4e0] sm:$0xff]
    %v580 = vld [vmem:[#allocation8 + $0x4e8] sm:$0xff]
    %v581 = vld [vmem:[#allocation8 + $0x4f0] sm:$0xff]
    %v582 = vld [vmem:[#allocation8 + $0x4f8] sm:$0xff]
    %v583 = vld [vmem:[#allocation8 + $0x500] sm:$0xff]
    %v584 = vld [vmem:[#allocation8 + $0x508] sm:$0xff]
    %v585 = vld [vmem:[#allocation8 + $0x510] sm:$0xff]
    %v586 = vld [vmem:[#allocation8 + $0x518] sm:$0xff]
    %v587 = vld [vmem:[#allocation8 + $0x520] sm:$0xff]
    %v588 = vld [vmem:[#allocation8 + $0x528] sm:$0xff]
    %v589 = vld [vmem:[#allocation8 + $0x530] sm:$0xff]
    %v590 = vld [vmem:[#allocation8 + $0x538] sm:$0xff]
    %v591 = vld [vmem:[#allocation8 + $0x540] sm:$0xff]
    %v592 = vld [vmem:[#allocation8 + $0x548] sm:$0xff]
    %v593 = vld [vmem:[#allocation8 + $0x550] sm:$0xff]
    %v594 = vld [vmem:[#allocation8 + $0x558] sm:$0xff]
    %v595 = vld [vmem:[#allocation8 + $0x560] sm:$0xff]
    %v596 = vld [vmem:[#allocation8 + $0x568] sm:$0xff]
    %v597 = vld [vmem:[#allocation8 + $0x570] sm:$0xff]
    %v598 = vld [vmem:[#allocation8 + $0x578] sm:$0xff]
    %v599 = vld [vmem:[#allocation8 + $0x580] sm:$0xff]
    %v600 = vld [vmem:[#allocation8 + $0x588] sm:$0xff]
    %v601 = vld [vmem:[#allocation8 + $0x590] sm:$0xff]
    %v602 = vld [vmem:[#allocation8 + $0x598] sm:$0xff]
    %v603 = vld [vmem:[#allocation8 + $0x5a0] sm:$0xff]
    %v604 = vld [vmem:[#allocation8 + $0x5a8] sm:$0xff]
    %v605 = vld [vmem:[#allocation8 + $0x5b0] sm:$0xff]
    %v606 = vld [vmem:[#allocation8 + $0x5b8] sm:$0xff]
    %v607 = vld [vmem:[#allocation8 + $0x5c0] sm:$0xff]
    %v608 = vld [vmem:[#allocation8 + $0x5c8] sm:$0xff]
    %v609 = vld [vmem:[#allocation8 + $0x5d0] sm:$0xff]
    %v610 = vld [vmem:[#allocation8 + $0x5d8] sm:$0xff]
    %v611 = vld [vmem:[#allocation8 + $0x5e0] sm:$0xff]
    %v612 = vld [vmem:[#allocation8 + $0x5e8] sm:$0xff]
    %v613 = vld [vmem:[#allocation8 + $0x5f0] sm:$0xff]
    %v614 = vld [vmem:[#allocation8 + $0x5f8] sm:$0xff]
    %v615 = vld [vmem:[#allocation8 + $0x600] sm:$0xff]
    %v616 = vld [vmem:[#allocation8 + $0x608] sm:$0xff]
    %v617 = vld [vmem:[#allocation8 + $0x610] sm:$0xff]
    %v618 = vld [vmem:[#allocation8 + $0x618] sm:$0xff]
    %v619 = vld [vmem:[#allocation8 + $0x620] sm:$0xff]
    %v620 = vld [vmem:[#allocation8 + $0x628] sm:$0xff]
    %v621 = vld [vmem:[#allocation8 + $0x630] sm:$0xff]
    %v622 = vld [vmem:[#allocation8 + $0x638] sm:$0xff]
    %v623 = vld [vmem:[#allocation8 + $0x640] sm:$0xff]
    %v624 = vld [vmem:[#allocation8 + $0x648] sm:$0xff]
    %v625 = vld [vmem:[#allocation8 + $0x650] sm:$0xff]
    %v626 = vld [vmem:[#allocation8 + $0x658] sm:$0xff]
    %v627 = vld [vmem:[#allocation8 + $0x660] sm:$0xff]
    %v628 = vld [vmem:[#allocation8 + $0x668] sm:$0xff]
    %v629 = vld [vmem:[#allocation8 + $0x670] sm:$0xff]
    %v630 = vld [vmem:[#allocation8 + $0x678] sm:$0xff]
    %v631 = vld [vmem:[#allocation8 + $0x680] sm:$0xff]
    %v632 = vld [vmem:[#allocation8 + $0x688] sm:$0xff]
    %v633 = vld [vmem:[#allocation8 + $0x690] sm:$0xff]
    %v634 = vld [vmem:[#allocation8 + $0x698] sm:$0xff]
    %v635 = vld [vmem:[#allocation8 + $0x6a0] sm:$0xff]
    %v636 = vld [vmem:[#allocation8 + $0x6a8] sm:$0xff]
    %v637 = vld [vmem:[#allocation8 + $0x6b0] sm:$0xff]
    %v638 = vld [vmem:[#allocation8 + $0x6b8] sm:$0xff]
    %v639 = vld [vmem:[#allocation8 + $0x6c0] sm:$0xff]
    %v640 = vld [vmem:[#allocation8 + $0x6c8] sm:$0xff]
    %v641 = vld [vmem:[#allocation8 + $0x6d0] sm:$0xff]
    %v642 = vld [vmem:[#allocation8 + $0x6d8] sm:$0xff]
    %v643 = vld [vmem:[#allocation8 + $0x6e0] sm:$0xff]
    %v644 = vld [vmem:[#allocation8 + $0x6e8] sm:$0xff]
    %v645 = vld [vmem:[#allocation8 + $0x6f0] sm:$0xff]
    %v646 = vld [vmem:[#allocation8 + $0x6f8] sm:$0xff]
    %v647 = vld [vmem:[#allocation8 + $0x700] sm:$0xff]
    %v648 = vld [vmem:[#allocation8 + $0x708] sm:$0xff]
    %v649 = vld [vmem:[#allocation8 + $0x710] sm:$0xff]
    %v650 = vld [vmem:[#allocation8 + $0x718] sm:$0xff]
    %v651 = vld [vmem:[#allocation8 + $0x720] sm:$0xff]
    %v652 = vld [vmem:[#allocation8 + $0x728] sm:$0xff]
    %v653 = vld [vmem:[#allocation8 + $0x730] sm:$0xff]
    %v654 = vld [vmem:[#allocation8 + $0x738] sm:$0xff]
    %v655 = vld [vmem:[#allocation8 + $0x740] sm:$0xff]
    %v656 = vld [vmem:[#allocation8 + $0x748] sm:$0xff]
    %v657 = vld [vmem:[#allocation8 + $0x750] sm:$0xff]
    %v658 = vld [vmem:[#allocation8 + $0x758] sm:$0xff]
    %v659 = vld [vmem:[#allocation8 + $0x760] sm:$0xff]
    %v660 = vld [vmem:[#allocation8 + $0x768] sm:$0xff]
    %v661 = vld [vmem:[#allocation8 + $0x770] sm:$0xff]
    %v662 = vld [vmem:[#allocation8 + $0x778] sm:$0xff]
    %v663 = vld [vmem:[#allocation8 + $0x780] sm:$0xff]
    %v664 = vld [vmem:[#allocation8 + $0x788] sm:$0xff]
    %v665 = vld [vmem:[#allocation8 + $0x790] sm:$0xff]
    %v666 = vld [vmem:[#allocation8 + $0x798] sm:$0xff]
    %v667 = vld [vmem:[#allocation8 + $0x7a0] sm:$0xff]
    %v668 = vld [vmem:[#allocation8 + $0x7a8] sm:$0xff]
    %v669 = vld [vmem:[#allocation8 + $0x7b0] sm:$0xff]
    %v670 = vld [vmem:[#allocation8 + $0x7b8] sm:$0xff]
    %v671 = vld [vmem:[#allocation8 + $0x7c0] sm:$0xff]
    %v672 = vld [vmem:[#allocation8 + $0x7c8] sm:$0xff]
    %v673 = vld [vmem:[#allocation8 + $0x7d0] sm:$0xff]
    %v674 = vld [vmem:[#allocation8 + $0x7d8] sm:$0xff]
    %v675 = vld [vmem:[#allocation8 + $0x7e0] sm:$0xff]
    %v676 = vld [vmem:[#allocation8 + $0x7e8] sm:$0xff]
    %v677 = vld [vmem:[#allocation8 + $0x7f0] sm:$0xff]
    %v678 = vld [vmem:[#allocation8 + $0x7f8] sm:$0xff]
    %v935 = vunpack.c.l.b16 %v423
    %v936 = vunpack.c.h.b16 %v423
    %v937 = vunpack.c.l.b16 %v424
    %v938 = vunpack.c.h.b16 %v424
    %v939 = vunpack.c.l.b16 %v425
    %v940 = vunpack.c.h.b16 %v425
    %v941 = vunpack.c.l.b16 %v426
    %v942 = vunpack.c.h.b16 %v426
    %v943 = vunpack.c.l.b16 %v427
    %v944 = vunpack.c.h.b16 %v427
    %v945 = vunpack.c.l.b16 %v428
    %v946 = vunpack.c.h.b16 %v428
    %v947 = vunpack.c.l.b16 %v429
    %v948 = vunpack.c.h.b16 %v429
    %v949 = vunpack.c.l.b16 %v430
    %v950 = vunpack.c.h.b16 %v430
    %v951 = vunpack.c.l.b16 %v431
    %v952 = vunpack.c.h.b16 %v431
    %v953 = vunpack.c.l.b16 %v432
    %v954 = vunpack.c.h.b16 %v432
    %v955 = vunpack.c.l.b16 %v433
    %v956 = vunpack.c.h.b16 %v433
    %v957 = vunpack.c.l.b16 %v434
    %v958 = vunpack.c.h.b16 %v434
    %v959 = vunpack.c.l.b16 %v435
    %v960 = vunpack.c.h.b16 %v435
    %v961 = vunpack.c.l.b16 %v436
    %v962 = vunpack.c.h.b16 %v436
    %v963 = vunpack.c.l.b16 %v437
    %v964 = vunpack.c.h.b16 %v437
    %v965 = vunpack.c.l.b16 %v438
    %v966 = vunpack.c.h.b16 %v438
    %v967 = vunpack.c.l.b16 %v439
    %v968 = vunpack.c.h.b16 %v439
    %v969 = vunpack.c.l.b16 %v440
    %v970 = vunpack.c.h.b16 %v440
    %v971 = vunpack.c.l.b16 %v441
    %v972 = vunpack.c.h.b16 %v441
    %v973 = vunpack.c.l.b16 %v442
    %v974 = vunpack.c.h.b16 %v442
    %v975 = vunpack.c.l.b16 %v443
    %v976 = vunpack.c.h.b16 %v443
    %v977 = vunpack.c.l.b16 %v444
    %v978 = vunpack.c.h.b16 %v444
    %v979 = vunpack.c.l.b16 %v445
    %v980 = vunpack.c.h.b16 %v445
    %v981 = vunpack.c.l.b16 %v446
    %v982 = vunpack.c.h.b16 %v446
    %v983 = vunpack.c.l.b16 %v447
    %v984 = vunpack.c.h.b16 %v447
    %v985 = vunpack.c.l.b16 %v448
    %v986 = vunpack.c.h.b16 %v448
    %v987 = vunpack.c.l.b16 %v449
    %v988 = vunpack.c.h.b16 %v449
    %v989 = vunpack.c.l.b16 %v450
    %v990 = vunpack.c.h.b16 %v450
    %v991 = vunpack.c.l.b16 %v451
    %v992 = vunpack.c.h.b16 %v451
    %v993 = vunpack.c.l.b16 %v452
    %v994 = vunpack.c.h.b16 %v452
    %v995 = vunpack.c.l.b16 %v453
    %v996 = vunpack.c.h.b16 %v453
    %v997 = vunpack.c.l.b16 %v454
    %v998 = vunpack.c.h.b16 %v454
    %v999 = vunpack.c.l.b16 %v455
    %v1000 = vunpack.c.h.b16 %v455
    %v1001 = vunpack.c.l.b16 %v456
    %v1002 = vunpack.c.h.b16 %v456
    %v1003 = vunpack.c.l.b16 %v457
    %v1004 = vunpack.c.h.b16 %v457
    %v1005 = vunpack.c.l.b16 %v458
    %v1006 = vunpack.c.h.b16 %v458
    %v1007 = vunpack.c.l.b16 %v459
    %v1008 = vunpack.c.h.b16 %v459
    %v1009 = vunpack.c.l.b16 %v460
    %v1010 = vunpack.c.h.b16 %v460
    %v1011 = vunpack.c.l.b16 %v461
    %v1012 = vunpack.c.h.b16 %v461
    %v1013 = vunpack.c.l.b16 %v462
    %v1014 = vunpack.c.h.b16 %v462
    %v1015 = vunpack.c.l.b16 %v463
    %v1016 = vunpack.c.h.b16 %v463
    %v1017 = vunpack.c.l.b16 %v464
    %v1018 = vunpack.c.h.b16 %v464
    %v1019 = vunpack.c.l.b16 %v465
    %v1020 = vunpack.c.h.b16 %v465
    %v1021 = vunpack.c.l.b16 %v466
    %v1022 = vunpack.c.h.b16 %v466
    %v1023 = vunpack.c.l.b16 %v467
    %v1024 = vunpack.c.h.b16 %v467
    %v1025 = vunpack.c.l.b16 %v468
    %v1026 = vunpack.c.h.b16 %v468
    %v1027 = vunpack.c.l.b16 %v469
    %v1028 = vunpack.c.h.b16 %v469
    %v1029 = vunpack.c.l.b16 %v470
    %v1030 = vunpack.c.h.b16 %v470
    %v1031 = vunpack.c.l.b16 %v471
    %v1032 = vunpack.c.h.b16 %v471
    %v1033 = vunpack.c.l.b16 %v472
    %v1034 = vunpack.c.h.b16 %v472
    %v1035 = vunpack.c.l.b16 %v473
    %v1036 = vunpack.c.h.b16 %v473
    %v1037 = vunpack.c.l.b16 %v474
    %v1038 = vunpack.c.h.b16 %v474
    %v1039 = vunpack.c.l.b16 %v475
    %v1040 = vunpack.c.h.b16 %v475
    %v1041 = vunpack.c.l.b16 %v476
    %v1042 = vunpack.c.h.b16 %v476
    %v1043 = vunpack.c.l.b16 %v477
    %v1044 = vunpack.c.h.b16 %v477
    %v1045 = vunpack.c.l.b16 %v478
    %v1046 = vunpack.c.h.b16 %v478
    %v1047 = vunpack.c.l.b16 %v479
    %v1048 = vunpack.c.h.b16 %v479
    %v1049 = vunpack.c.l.b16 %v480
    %v1050 = vunpack.c.h.b16 %v480
    %v1051 = vunpack.c.l.b16 %v481
    %v1052 = vunpack.c.h.b16 %v481
    %v1053 = vunpack.c.l.b16 %v482
    %v1054 = vunpack.c.h.b16 %v482
    %v1055 = vunpack.c.l.b16 %v483
    %v1056 = vunpack.c.h.b16 %v483
    %v1057 = vunpack.c.l.b16 %v484
    %v1058 = vunpack.c.h.b16 %v484
    %v1059 = vunpack.c.l.b16 %v485
    %v1060 = vunpack.c.h.b16 %v485
    %v1061 = vunpack.c.l.b16 %v486
    %v1062 = vunpack.c.h.b16 %v486
    %v1063 = vunpack.c.l.b16 %v487
    %v1064 = vunpack.c.h.b16 %v487
    %v1065 = vunpack.c.l.b16 %v488
    %v1066 = vunpack.c.h.b16 %v488
    %v1067 = vunpack.c.l.b16 %v489
    %v1068 = vunpack.c.h.b16 %v489
    %v1069 = vunpack.c.l.b16 %v490
    %v1070 = vunpack.c.h.b16 %v490
    %v1071 = vunpack.c.l.b16 %v491
    %v1072 = vunpack.c.h.b16 %v491
    %v1073 = vunpack.c.l.b16 %v492
    %v1074 = vunpack.c.h.b16 %v492
    %v1075 = vunpack.c.l.b16 %v493
    %v1076 = vunpack.c.h.b16 %v493
    %v1077 = vunpack.c.l.b16 %v494
    %v1078 = vunpack.c.h.b16 %v494
    %v1079 = vunpack.c.l.b16 %v495
    %v1080 = vunpack.c.h.b16 %v495
    %v1081 = vunpack.c.l.b16 %v496
    %v1082 = vunpack.c.h.b16 %v496
    %v1083 = vunpack.c.l.b16 %v497
    %v1084 = vunpack.c.h.b16 %v497
    %v1085 = vunpack.c.l.b16 %v498
    %v1086 = vunpack.c.h.b16 %v498
    %v1087 = vunpack.c.l.b16 %v499
    %v1088 = vunpack.c.h.b16 %v499
    %v1089 = vunpack.c.l.b16 %v500
    %v1090 = vunpack.c.h.b16 %v500
    %v1091 = vunpack.c.l.b16 %v501
    %v1092 = vunpack.c.h.b16 %v501
    %v1093 = vunpack.c.l.b16 %v502
    %v1094 = vunpack.c.h.b16 %v502
    %v1095 = vunpack.c.l.b16 %v503
    %v1096 = vunpack.c.h.b16 %v503
    %v1097 = vunpack.c.l.b16 %v504
    %v1098 = vunpack.c.h.b16 %v504
    %v1099 = vunpack.c.l.b16 %v505
    %v1100 = vunpack.c.h.b16 %v505
    %v1101 = vunpack.c.l.b16 %v506
    %v1102 = vunpack.c.h.b16 %v506
    %v1103 = vunpack.c.l.b16 %v507
    %v1104 = vunpack.c.h.b16 %v507
    %v1105 = vunpack.c.l.b16 %v508
    %v1106 = vunpack.c.h.b16 %v508
    %v1107 = vunpack.c.l.b16 %v509
    %v1108 = vunpack.c.h.b16 %v509
    %v1109 = vunpack.c.l.b16 %v510
    %v1110 = vunpack.c.h.b16 %v510
    %v1111 = vunpack.c.l.b16 %v511
    %v1112 = vunpack.c.h.b16 %v511
    %v1113 = vunpack.c.l.b16 %v512
    %v1114 = vunpack.c.h.b16 %v512
    %v1115 = vunpack.c.l.b16 %v513
    %v1116 = vunpack.c.h.b16 %v513
    %v1117 = vunpack.c.l.b16 %v514
    %v1118 = vunpack.c.h.b16 %v514
    %v1119 = vunpack.c.l.b16 %v515
    %v1120 = vunpack.c.h.b16 %v515
    %v1121 = vunpack.c.l.b16 %v516
    %v1122 = vunpack.c.h.b16 %v516
    %v1123 = vunpack.c.l.b16 %v517
    %v1124 = vunpack.c.h.b16 %v517
    %v1125 = vunpack.c.l.b16 %v518
    %v1126 = vunpack.c.h.b16 %v518
    %v1127 = vunpack.c.l.b16 %v519
    %v1128 = vunpack.c.h.b16 %v519
    %v1129 = vunpack.c.l.b16 %v520
    %v1130 = vunpack.c.h.b16 %v520
    %v1131 = vunpack.c.l.b16 %v521
    %v1132 = vunpack.c.h.b16 %v521
    %v1133 = vunpack.c.l.b16 %v522
    %v1134 = vunpack.c.h.b16 %v522
    %v1135 = vunpack.c.l.b16 %v523
    %v1136 = vunpack.c.h.b16 %v523
    %v1137 = vunpack.c.l.b16 %v524
    %v1138 = vunpack.c.h.b16 %v524
    %v1139 = vunpack.c.l.b16 %v525
    %v1140 = vunpack.c.h.b16 %v525
    %v1141 = vunpack.c.l.b16 %v526
    %v1142 = vunpack.c.h.b16 %v526
    %v1143 = vunpack.c.l.b16 %v527
    %v1144 = vunpack.c.h.b16 %v527
    %v1145 = vunpack.c.l.b16 %v528
    %v1146 = vunpack.c.h.b16 %v528
    %v1147 = vunpack.c.l.b16 %v529
    %v1148 = vunpack.c.h.b16 %v529
    %v1149 = vunpack.c.l.b16 %v530
    %v1150 = vunpack.c.h.b16 %v530
    %v1151 = vunpack.c.l.b16 %v531
    %v1152 = vunpack.c.h.b16 %v531
    %v1153 = vunpack.c.l.b16 %v532
    %v1154 = vunpack.c.h.b16 %v532
    %v1155 = vunpack.c.l.b16 %v533
    %v1156 = vunpack.c.h.b16 %v533
    %v1157 = vunpack.c.l.b16 %v534
    %v1158 = vunpack.c.h.b16 %v534
    %v1159 = vunpack.c.l.b16 %v535
    %v1160 = vunpack.c.h.b16 %v535
    %v1161 = vunpack.c.l.b16 %v536
    %v1162 = vunpack.c.h.b16 %v536
    %v1163 = vunpack.c.l.b16 %v537
    %v1164 = vunpack.c.h.b16 %v537
    %v1165 = vunpack.c.l.b16 %v538
    %v1166 = vunpack.c.h.b16 %v538
    %v1167 = vunpack.c.l.b16 %v539
    %v1168 = vunpack.c.h.b16 %v539
    %v1169 = vunpack.c.l.b16 %v540
    %v1170 = vunpack.c.h.b16 %v540
    %v1171 = vunpack.c.l.b16 %v541
    %v1172 = vunpack.c.h.b16 %v541
    %v1173 = vunpack.c.l.b16 %v542
    %v1174 = vunpack.c.h.b16 %v542
    %v1175 = vunpack.c.l.b16 %v543
    %v1176 = vunpack.c.h.b16 %v543
    %v1177 = vunpack.c.l.b16 %v544
    %v1178 = vunpack.c.h.b16 %v544
    %v1179 = vunpack.c.l.b16 %v545
    %v1180 = vunpack.c.h.b16 %v545
    %v1181 = vunpack.c.l.b16 %v546
    %v1182 = vunpack.c.h.b16 %v546
    %v1183 = vunpack.c.l.b16 %v547
    %v1184 = vunpack.c.h.b16 %v547
    %v1185 = vunpack.c.l.b16 %v548
    %v1186 = vunpack.c.h.b16 %v548
    %v1187 = vunpack.c.l.b16 %v549
    %v1188 = vunpack.c.h.b16 %v549
    %v1189 = vunpack.c.l.b16 %v550
    %v1190 = vunpack.c.h.b16 %v550
    %v1191 = vunpack.c.l.b16 %v551
    %v1192 = vunpack.c.h.b16 %v551
    %v1193 = vunpack.c.l.b16 %v552
    %v1194 = vunpack.c.h.b16 %v552
    %v1195 = vunpack.c.l.b16 %v553
    %v1196 = vunpack.c.h.b16 %v553
    %v1197 = vunpack.c.l.b16 %v554
    %v1198 = vunpack.c.h.b16 %v554
    %v1199 = vunpack.c.l.b16 %v555
    %v1200 = vunpack.c.h.b16 %v555
    %v1201 = vunpack.c.l.b16 %v556
    %v1202 = vunpack.c.h.b16 %v556
    %v1203 = vunpack.c.l.b16 %v557
    %v1204 = vunpack.c.h.b16 %v557
    %v1205 = vunpack.c.l.b16 %v558
    %v1206 = vunpack.c.h.b16 %v558
    %v1207 = vunpack.c.l.b16 %v559
    %v1208 = vunpack.c.h.b16 %v559
    %v1209 = vunpack.c.l.b16 %v560
    %v1210 = vunpack.c.h.b16 %v560
    %v1211 = vunpack.c.l.b16 %v561
    %v1212 = vunpack.c.h.b16 %v561
    %v1213 = vunpack.c.l.b16 %v562
    %v1214 = vunpack.c.h.b16 %v562
    %v1215 = vunpack.c.l.b16 %v563
    %v1216 = vunpack.c.h.b16 %v563
    %v1217 = vunpack.c.l.b16 %v564
    %v1218 = vunpack.c.h.b16 %v564
    %v1219 = vunpack.c.l.b16 %v565
    %v1220 = vunpack.c.h.b16 %v565
    %v1221 = vunpack.c.l.b16 %v566
    %v1222 = vunpack.c.h.b16 %v566
    %v1223 = vunpack.c.l.b16 %v567
    %v1224 = vunpack.c.h.b16 %v567
    %v1225 = vunpack.c.l.b16 %v568
    %v1226 = vunpack.c.h.b16 %v568
    %v1227 = vunpack.c.l.b16 %v569
    %v1228 = vunpack.c.h.b16 %v569
    %v1229 = vunpack.c.l.b16 %v570
    %v1230 = vunpack.c.h.b16 %v570
    %v1231 = vunpack.c.l.b16 %v571
    %v1232 = vunpack.c.h.b16 %v571
    %v1233 = vunpack.c.l.b16 %v572
    %v1234 = vunpack.c.h.b16 %v572
    %v1235 = vunpack.c.l.b16 %v573
    %v1236 = vunpack.c.h.b16 %v573
    %v1237 = vunpack.c.l.b16 %v574
    %v1238 = vunpack.c.h.b16 %v574
    %v1239 = vunpack.c.l.b16 %v575
    %v1240 = vunpack.c.h.b16 %v575
    %v1241 = vunpack.c.l.b16 %v576
    %v1242 = vunpack.c.h.b16 %v576
    %v1243 = vunpack.c.l.b16 %v577
    %v1244 = vunpack.c.h.b16 %v577
    %v1245 = vunpack.c.l.b16 %v578
    %v1246 = vunpack.c.h.b16 %v578
    %v1247 = vunpack.c.l.b16 %v579
    %v1248 = vunpack.c.h.b16 %v579
    %v1249 = vunpack.c.l.b16 %v580
    %v1250 = vunpack.c.h.b16 %v580
    %v1251 = vunpack.c.l.b16 %v581
    %v1252 = vunpack.c.h.b16 %v581
    %v1253 = vunpack.c.l.b16 %v582
    %v1254 = vunpack.c.h.b16 %v582
    %v1255 = vunpack.c.l.b16 %v583
    %v1256 = vunpack.c.h.b16 %v583
    %v1257 = vunpack.c.l.b16 %v584
    %v1258 = vunpack.c.h.b16 %v584
    %v1259 = vunpack.c.l.b16 %v585
    %v1260 = vunpack.c.h.b16 %v585
    %v1261 = vunpack.c.l.b16 %v586
    %v1262 = vunpack.c.h.b16 %v586
    %v1263 = vunpack.c.l.b16 %v587
    %v1264 = vunpack.c.h.b16 %v587
    %v1265 = vunpack.c.l.b16 %v588
    %v1266 = vunpack.c.h.b16 %v588
    %v1267 = vunpack.c.l.b16 %v589
    %v1268 = vunpack.c.h.b16 %v589
    %v1269 = vunpack.c.l.b16 %v590
    %v1270 = vunpack.c.h.b16 %v590
    %v1271 = vunpack.c.l.b16 %v591
    %v1272 = vunpack.c.h.b16 %v591
    %v1273 = vunpack.c.l.b16 %v592
    %v1274 = vunpack.c.h.b16 %v592
    %v1275 = vunpack.c.l.b16 %v593
    %v1276 = vunpack.c.h.b16 %v593
    %v1277 = vunpack.c.l.b16 %v594
    %v1278 = vunpack.c.h.b16 %v594
    %v1279 = vunpack.c.l.b16 %v595
    %v1280 = vunpack.c.h.b16 %v595
    %v1281 = vunpack.c.l.b16 %v596
    %v1282 = vunpack.c.h.b16 %v596
    %v1283 = vunpack.c.l.b16 %v597
    %v1284 = vunpack.c.h.b16 %v597
    %v1285 = vunpack.c.l.b16 %v598
    %v1286 = vunpack.c.h.b16 %v598
    %v1287 = vunpack.c.l.b16 %v599
    %v1288 = vunpack.c.h.b16 %v599
    %v1289 = vunpack.c.l.b16 %v600
    %v1290 = vunpack.c.h.b16 %v600
    %v1291 = vunpack.c.l.b16 %v601
    %v1292 = vunpack.c.h.b16 %v601
    %v1293 = vunpack.c.l.b16 %v602
    %v1294 = vunpack.c.h.b16 %v602
    %v1295 = vunpack.c.l.b16 %v603
    %v1296 = vunpack.c.h.b16 %v603
    %v1297 = vunpack.c.l.b16 %v604
    %v1298 = vunpack.c.h.b16 %v604
    %v1299 = vunpack.c.l.b16 %v605
    %v1300 = vunpack.c.h.b16 %v605
    %v1301 = vunpack.c.l.b16 %v606
    %v1302 = vunpack.c.h.b16 %v606
    %v1303 = vunpack.c.l.b16 %v607
    %v1304 = vunpack.c.h.b16 %v607
    %v1305 = vunpack.c.l.b16 %v608
    %v1306 = vunpack.c.h.b16 %v608
    %v1307 = vunpack.c.l.b16 %v609
    %v1308 = vunpack.c.h.b16 %v609
    %v1309 = vunpack.c.l.b16 %v610
    %v1310 = vunpack.c.h.b16 %v610
    %v1311 = vunpack.c.l.b16 %v611
    %v1312 = vunpack.c.h.b16 %v611
    %v1313 = vunpack.c.l.b16 %v612
    %v1314 = vunpack.c.h.b16 %v612
    %v1315 = vunpack.c.l.b16 %v613
    %v1316 = vunpack.c.h.b16 %v613
    %v1317 = vunpack.c.l.b16 %v614
    %v1318 = vunpack.c.h.b16 %v614
    %v1319 = vunpack.c.l.b16 %v615
    %v1320 = vunpack.c.h.b16 %v615
    %v1321 = vunpack.c.l.b16 %v616
    %v1322 = vunpack.c.h.b16 %v616
    %v1323 = vunpack.c.l.b16 %v617
    %v1324 = vunpack.c.h.b16 %v617
    %v1325 = vunpack.c.l.b16 %v618
    %v1326 = vunpack.c.h.b16 %v618
    %v1327 = vunpack.c.l.b16 %v619
    %v1328 = vunpack.c.h.b16 %v619
    %v1329 = vunpack.c.l.b16 %v620
    %v1330 = vunpack.c.h.b16 %v620
    %v1331 = vunpack.c.l.b16 %v621
    %v1332 = vunpack.c.h.b16 %v621
    %v1333 = vunpack.c.l.b16 %v622
    %v1334 = vunpack.c.h.b16 %v622
    %v1335 = vunpack.c.l.b16 %v623
    %v1336 = vunpack.c.h.b16 %v623
    %v1337 = vunpack.c.l.b16 %v624
    %v1338 = vunpack.c.h.b16 %v624
    %v1339 = vunpack.c.l.b16 %v625
    %v1340 = vunpack.c.h.b16 %v625
    %v1341 = vunpack.c.l.b16 %v626
    %v1342 = vunpack.c.h.b16 %v626
    %v1343 = vunpack.c.l.b16 %v627
    %v1344 = vunpack.c.h.b16 %v627
    %v1345 = vunpack.c.l.b16 %v628
    %v1346 = vunpack.c.h.b16 %v628
    %v1347 = vunpack.c.l.b16 %v629
    %v1348 = vunpack.c.h.b16 %v629
    %v1349 = vunpack.c.l.b16 %v630
    %v1350 = vunpack.c.h.b16 %v630
    %v1351 = vunpack.c.l.b16 %v631
    %v1352 = vunpack.c.h.b16 %v631
    %v1353 = vunpack.c.l.b16 %v632
    %v1354 = vunpack.c.h.b16 %v632
    %v1355 = vunpack.c.l.b16 %v633
    %v1356 = vunpack.c.h.b16 %v633
    %v1357 = vunpack.c.l.b16 %v634
    %v1358 = vunpack.c.h.b16 %v634
    %v1359 = vunpack.c.l.b16 %v635
    %v1360 = vunpack.c.h.b16 %v635
    %v1361 = vunpack.c.l.b16 %v636
    %v1362 = vunpack.c.h.b16 %v636
    %v1363 = vunpack.c.l.b16 %v637
    %v1364 = vunpack.c.h.b16 %v637
    %v1365 = vunpack.c.l.b16 %v638
    %v1366 = vunpack.c.h.b16 %v638
    %v1367 = vunpack.c.l.b16 %v639
    %v1368 = vunpack.c.h.b16 %v639
    %v1369 = vunpack.c.l.b16 %v640
    %v1370 = vunpack.c.h.b16 %v640
    %v1371 = vunpack.c.l.b16 %v641
    %v1372 = vunpack.c.h.b16 %v641
    %v1373 = vunpack.c.l.b16 %v642
    %v1374 = vunpack.c.h.b16 %v642
    %v1375 = vunpack.c.l.b16 %v643
    %v1376 = vunpack.c.h.b16 %v643
    %v1377 = vunpack.c.l.b16 %v644
    %v1378 = vunpack.c.h.b16 %v644
    %v1379 = vunpack.c.l.b16 %v645
    %v1380 = vunpack.c.h.b16 %v645
    %v1381 = vunpack.c.l.b16 %v646
    %v1382 = vunpack.c.h.b16 %v646
    %v1383 = vunpack.c.l.b16 %v647
    %v1384 = vunpack.c.h.b16 %v647
    %v1385 = vunpack.c.l.b16 %v648
    %v1386 = vunpack.c.h.b16 %v648
    %v1387 = vunpack.c.l.b16 %v649
    %v1388 = vunpack.c.h.b16 %v649
    %v1389 = vunpack.c.l.b16 %v650
    %v1390 = vunpack.c.h.b16 %v650
    %v1391 = vunpack.c.l.b16 %v651
    %v1392 = vunpack.c.h.b16 %v651
    %v1393 = vunpack.c.l.b16 %v652
    %v1394 = vunpack.c.h.b16 %v652
    %v1395 = vunpack.c.l.b16 %v653
    %v1396 = vunpack.c.h.b16 %v653
    %v1397 = vunpack.c.l.b16 %v654
    %v1398 = vunpack.c.h.b16 %v654
    %v1399 = vunpack.c.l.b16 %v655
    %v1400 = vunpack.c.h.b16 %v655
    %v1401 = vunpack.c.l.b16 %v656
    %v1402 = vunpack.c.h.b16 %v656
    %v1403 = vunpack.c.l.b16 %v657
    %v1404 = vunpack.c.h.b16 %v657
    %v1405 = vunpack.c.l.b16 %v658
    %v1406 = vunpack.c.h.b16 %v658
    %v1407 = vunpack.c.l.b16 %v659
    %v1408 = vunpack.c.h.b16 %v659
    %v1409 = vunpack.c.l.b16 %v660
    %v1410 = vunpack.c.h.b16 %v660
    %v1411 = vunpack.c.l.b16 %v661
    %v1412 = vunpack.c.h.b16 %v661
    %v1413 = vunpack.c.l.b16 %v662
    %v1414 = vunpack.c.h.b16 %v662
    %v1415 = vunpack.c.l.b16 %v663
    %v1416 = vunpack.c.h.b16 %v663
    %v1417 = vunpack.c.l.b16 %v664
    %v1418 = vunpack.c.h.b16 %v664
    %v1419 = vunpack.c.l.b16 %v665
    %v1420 = vunpack.c.h.b16 %v665
    %v1421 = vunpack.c.l.b16 %v666
    %v1422 = vunpack.c.h.b16 %v666
    %v1423 = vunpack.c.l.b16 %v667
    %v1424 = vunpack.c.h.b16 %v667
    %v1425 = vunpack.c.l.b16 %v668
    %v1426 = vunpack.c.h.b16 %v668
    %v1427 = vunpack.c.l.b16 %v669
    %v1428 = vunpack.c.h.b16 %v669
    %v1429 = vunpack.c.l.b16 %v670
    %v1430 = vunpack.c.h.b16 %v670
    %v1431 = vunpack.c.l.b16 %v671
    %v1432 = vunpack.c.h.b16 %v671
    %v1433 = vunpack.c.l.b16 %v672
    %v1434 = vunpack.c.h.b16 %v672
    %v1435 = vunpack.c.l.b16 %v673
    %v1436 = vunpack.c.h.b16 %v673
    %v1437 = vunpack.c.l.b16 %v674
    %v1438 = vunpack.c.h.b16 %v674
    %v1439 = vunpack.c.l.b16 %v675
    %v1440 = vunpack.c.h.b16 %v675
    %v1441 = vunpack.c.l.b16 %v676
    %v1442 = vunpack.c.h.b16 %v676
    %v1443 = vunpack.c.l.b16 %v677
    %v1444 = vunpack.c.h.b16 %v677
    %v1445 = vunpack.c.l.b16 %v678
    %v1446 = vunpack.c.h.b16 %v678
    %v1447 = vpack.c.b16 %v943, %v935
    %v1448 = vpack.c.b16 %v944, %v936
    %v1449 = vpack.c.b16 %v945, %v937
    %v1450 = vpack.c.b16 %v946, %v938
    %v1451 = vpack.c.b16 %v947, %v939
    %v1452 = vpack.c.b16 %v948, %v940
    %v1453 = vpack.c.b16 %v949, %v941
    %v1454 = vpack.c.b16 %v950, %v942
    %v1455 = vpack.c.b16 %v959, %v951
    %v1456 = vpack.c.b16 %v960, %v952
    %v1457 = vpack.c.b16 %v961, %v953
    %v1458 = vpack.c.b16 %v962, %v954
    %v1459 = vpack.c.b16 %v963, %v955
    %v1460 = vpack.c.b16 %v964, %v956
    %v1461 = vpack.c.b16 %v965, %v957
    %v1462 = vpack.c.b16 %v966, %v958
    %v1463 = vpack.c.b16 %v975, %v967
    %v1464 = vpack.c.b16 %v976, %v968
    %v1465 = vpack.c.b16 %v977, %v969
    %v1466 = vpack.c.b16 %v978, %v970
    %v1467 = vpack.c.b16 %v979, %v971
    %v1468 = vpack.c.b16 %v980, %v972
    %v1469 = vpack.c.b16 %v981, %v973
    %v1470 = vpack.c.b16 %v982, %v974
    %v1471 = vpack.c.b16 %v991, %v983
    %v1472 = vpack.c.b16 %v992, %v984
    %v1473 = vpack.c.b16 %v993, %v985
    %v1474 = vpack.c.b16 %v994, %v986
    %v1475 = vpack.c.b16 %v995, %v987
    %v1476 = vpack.c.b16 %v996, %v988
    %v1477 = vpack.c.b16 %v997, %v989
    %v1478 = vpack.c.b16 %v998, %v990
    %v1479 = vpack.c.b16 %v1007, %v999
    %v1480 = vpack.c.b16 %v1008, %v1000
    %v1481 = vpack.c.b16 %v1009, %v1001
    %v1482 = vpack.c.b16 %v1010, %v1002
    %v1483 = vpack.c.b16 %v1011, %v1003
    %v1484 = vpack.c.b16 %v1012, %v1004
    %v1485 = vpack.c.b16 %v1013, %v1005
    %v1486 = vpack.c.b16 %v1014, %v1006
    %v1487 = vpack.c.b16 %v1023, %v1015
    %v1488 = vpack.c.b16 %v1024, %v1016
    %v1489 = vpack.c.b16 %v1025, %v1017
    %v1490 = vpack.c.b16 %v1026, %v1018
    %v1491 = vpack.c.b16 %v1027, %v1019
    %v1492 = vpack.c.b16 %v1028, %v1020
    %v1493 = vpack.c.b16 %v1029, %v1021
    %v1494 = vpack.c.b16 %v1030, %v1022
    %v1495 = vpack.c.b16 %v1039, %v1031
    %v1496 = vpack.c.b16 %v1040, %v1032
    %v1497 = vpack.c.b16 %v1041, %v1033
    %v1498 = vpack.c.b16 %v1042, %v1034
    %v1499 = vpack.c.b16 %v1043, %v1035
    %v1500 = vpack.c.b16 %v1044, %v1036
    %v1501 = vpack.c.b16 %v1045, %v1037
    %v1502 = vpack.c.b16 %v1046, %v1038
    %v1503 = vpack.c.b16 %v1055, %v1047
    %v1504 = vpack.c.b16 %v1056, %v1048
    %v1505 = vpack.c.b16 %v1057, %v1049
    %v1506 = vpack.c.b16 %v1058, %v1050
    %v1507 = vpack.c.b16 %v1059, %v1051
    %v1508 = vpack.c.b16 %v1060, %v1052
    %v1509 = vpack.c.b16 %v1061, %v1053
    %v1510 = vpack.c.b16 %v1062, %v1054
    %v1511 = vpack.c.b16 %v1071, %v1063
    %v1512 = vpack.c.b16 %v1072, %v1064
    %v1513 = vpack.c.b16 %v1073, %v1065
    %v1514 = vpack.c.b16 %v1074, %v1066
    %v1515 = vpack.c.b16 %v1075, %v1067
    %v1516 = vpack.c.b16 %v1076, %v1068
    %v1517 = vpack.c.b16 %v1077, %v1069
    %v1518 = vpack.c.b16 %v1078, %v1070
    %v1519 = vpack.c.b16 %v1087, %v1079
    %v1520 = vpack.c.b16 %v1088, %v1080
    %v1521 = vpack.c.b16 %v1089, %v1081
    %v1522 = vpack.c.b16 %v1090, %v1082
    %v1523 = vpack.c.b16 %v1091, %v1083
    %v1524 = vpack.c.b16 %v1092, %v1084
    %v1525 = vpack.c.b16 %v1093, %v1085
    %v1526 = vpack.c.b16 %v1094, %v1086
    %v1527 = vpack.c.b16 %v1103, %v1095
    %v1528 = vpack.c.b16 %v1104, %v1096
    %v1529 = vpack.c.b16 %v1105, %v1097
    %v1530 = vpack.c.b16 %v1106, %v1098
    %v1531 = vpack.c.b16 %v1107, %v1099
    %v1532 = vpack.c.b16 %v1108, %v1100
    %v1533 = vpack.c.b16 %v1109, %v1101
    %v1534 = vpack.c.b16 %v1110, %v1102
    %v1535 = vpack.c.b16 %v1119, %v1111
    %v1536 = vpack.c.b16 %v1120, %v1112
    %v1537 = vpack.c.b16 %v1121, %v1113
    %v1538 = vpack.c.b16 %v1122, %v1114
    %v1539 = vpack.c.b16 %v1123, %v1115
    %v1540 = vpack.c.b16 %v1124, %v1116
    %v1541 = vpack.c.b16 %v1125, %v1117
    %v1542 = vpack.c.b16 %v1126, %v1118
    %v1543 = vpack.c.b16 %v1135, %v1127
    %v1544 = vpack.c.b16 %v1136, %v1128
    %v1545 = vpack.c.b16 %v1137, %v1129
    %v1546 = vpack.c.b16 %v1138, %v1130
    %v1547 = vpack.c.b16 %v1139, %v1131
    %v1548 = vpack.c.b16 %v1140, %v1132
    %v1549 = vpack.c.b16 %v1141, %v1133
    %v1550 = vpack.c.b16 %v1142, %v1134
    %v1551 = vpack.c.b16 %v1151, %v1143
    %v1552 = vpack.c.b16 %v1152, %v1144
    %v1553 = vpack.c.b16 %v1153, %v1145
    %v1554 = vpack.c.b16 %v1154, %v1146
    %v1555 = vpack.c.b16 %v1155, %v1147
    %v1556 = vpack.c.b16 %v1156, %v1148
    %v1557 = vpack.c.b16 %v1157, %v1149
    %v1558 = vpack.c.b16 %v1158, %v1150
    %v1559 = vpack.c.b16 %v1167, %v1159
    %v1560 = vpack.c.b16 %v1168, %v1160
    %v1561 = vpack.c.b16 %v1169, %v1161
    %v1562 = vpack.c.b16 %v1170, %v1162
    %v1563 = vpack.c.b16 %v1171, %v1163
    %v1564 = vpack.c.b16 %v1172, %v1164
    %v1565 = vpack.c.b16 %v1173, %v1165
    %v1566 = vpack.c.b16 %v1174, %v1166
    %v1567 = vpack.c.b16 %v1183, %v1175
    %v1568 = vpack.c.b16 %v1184, %v1176
    %v1569 = vpack.c.b16 %v1185, %v1177
    %v1570 = vpack.c.b16 %v1186, %v1178
    %v1571 = vpack.c.b16 %v1187, %v1179
    %v1572 = vpack.c.b16 %v1188, %v1180
    %v1573 = vpack.c.b16 %v1189, %v1181
    %v1574 = vpack.c.b16 %v1190, %v1182
    %v1575 = vpack.c.b16 %v1199, %v1191
    %v1576 = vpack.c.b16 %v1200, %v1192
    %v1577 = vpack.c.b16 %v1201, %v1193
    %v1578 = vpack.c.b16 %v1202, %v1194
    %v1579 = vpack.c.b16 %v1203, %v1195
    %v1580 = vpack.c.b16 %v1204, %v1196
    %v1581 = vpack.c.b16 %v1205, %v1197
    %v1582 = vpack.c.b16 %v1206, %v1198
    %v1583 = vpack.c.b16 %v1215, %v1207
    %v1584 = vpack.c.b16 %v1216, %v1208
    %v1585 = vpack.c.b16 %v1217, %v1209
    %v1586 = vpack.c.b16 %v1218, %v1210
    %v1587 = vpack.c.b16 %v1219, %v1211
    %v1588 = vpack.c.b16 %v1220, %v1212
    %v1589 = vpack.c.b16 %v1221, %v1213
    %v1590 = vpack.c.b16 %v1222, %v1214
    %v1591 = vpack.c.b16 %v1231, %v1223
    %v1592 = vpack.c.b16 %v1232, %v1224
    %v1593 = vpack.c.b16 %v1233, %v1225
    %v1594 = vpack.c.b16 %v1234, %v1226
    %v1595 = vpack.c.b16 %v1235, %v1227
    %v1596 = vpack.c.b16 %v1236, %v1228
    %v1597 = vpack.c.b16 %v1237, %v1229
    %v1598 = vpack.c.b16 %v1238, %v1230
    %v1599 = vpack.c.b16 %v1247, %v1239
    %v1600 = vpack.c.b16 %v1248, %v1240
    %v1601 = vpack.c.b16 %v1249, %v1241
    %v1602 = vpack.c.b16 %v1250, %v1242
    %v1603 = vpack.c.b16 %v1251, %v1243
    %v1604 = vpack.c.b16 %v1252, %v1244
    %v1605 = vpack.c.b16 %v1253, %v1245
    %v1606 = vpack.c.b16 %v1254, %v1246
    %v1607 = vpack.c.b16 %v1263, %v1255
    %v1608 = vpack.c.b16 %v1264, %v1256
    %v1609 = vpack.c.b16 %v1265, %v1257
    %v1610 = vpack.c.b16 %v1266, %v1258
    %v1611 = vpack.c.b16 %v1267, %v1259
    %v1612 = vpack.c.b16 %v1268, %v1260
    %v1613 = vpack.c.b16 %v1269, %v1261
    %v1614 = vpack.c.b16 %v1270, %v1262
    %v1615 = vpack.c.b16 %v1279, %v1271
    %v1616 = vpack.c.b16 %v1280, %v1272
    %v1617 = vpack.c.b16 %v1281, %v1273
    %v1618 = vpack.c.b16 %v1282, %v1274
    %v1619 = vpack.c.b16 %v1283, %v1275
    %v1620 = vpack.c.b16 %v1284, %v1276
    %v1621 = vpack.c.b16 %v1285, %v1277
    %v1622 = vpack.c.b16 %v1286, %v1278
    %v1623 = vpack.c.b16 %v1295, %v1287
    %v1624 = vpack.c.b16 %v1296, %v1288
    %v1625 = vpack.c.b16 %v1297, %v1289
    %v1626 = vpack.c.b16 %v1298, %v1290
    %v1627 = vpack.c.b16 %v1299, %v1291
    %v1628 = vpack.c.b16 %v1300, %v1292
    %v1629 = vpack.c.b16 %v1301, %v1293
    %v1630 = vpack.c.b16 %v1302, %v1294
    %v1631 = vpack.c.b16 %v1311, %v1303
    %v1632 = vpack.c.b16 %v1312, %v1304
    %v1633 = vpack.c.b16 %v1313, %v1305
    %v1634 = vpack.c.b16 %v1314, %v1306
    %v1635 = vpack.c.b16 %v1315, %v1307
    %v1636 = vpack.c.b16 %v1316, %v1308
    %v1637 = vpack.c.b16 %v1317, %v1309
    %v1638 = vpack.c.b16 %v1318, %v1310
    %v1639 = vpack.c.b16 %v1327, %v1319
    %v1640 = vpack.c.b16 %v1328, %v1320
    %v1641 = vpack.c.b16 %v1329, %v1321
    %v1642 = vpack.c.b16 %v1330, %v1322
    %v1643 = vpack.c.b16 %v1331, %v1323
    %v1644 = vpack.c.b16 %v1332, %v1324
    %v1645 = vpack.c.b16 %v1333, %v1325
    %v1646 = vpack.c.b16 %v1334, %v1326
    %v1647 = vpack.c.b16 %v1343, %v1335
    %v1648 = vpack.c.b16 %v1344, %v1336
    %v1649 = vpack.c.b16 %v1345, %v1337
    %v1650 = vpack.c.b16 %v1346, %v1338
    %v1651 = vpack.c.b16 %v1347, %v1339
    %v1652 = vpack.c.b16 %v1348, %v1340
    %v1653 = vpack.c.b16 %v1349, %v1341
    %v1654 = vpack.c.b16 %v1350, %v1342
    %v1655 = vpack.c.b16 %v1359, %v1351
    %v1656 = vpack.c.b16 %v1360, %v1352
    %v1657 = vpack.c.b16 %v1361, %v1353
    %v1658 = vpack.c.b16 %v1362, %v1354
    %v1659 = vpack.c.b16 %v1363, %v1355
    %v1660 = vpack.c.b16 %v1364, %v1356
    %v1661 = vpack.c.b16 %v1365, %v1357
    %v1662 = vpack.c.b16 %v1366, %v1358
    %v1663 = vpack.c.b16 %v1375, %v1367
    %v1664 = vpack.c.b16 %v1376, %v1368
    %v1665 = vpack.c.b16 %v1377, %v1369
    %v1666 = vpack.c.b16 %v1378, %v1370
    %v1667 = vpack.c.b16 %v1379, %v1371
    %v1668 = vpack.c.b16 %v1380, %v1372
    %v1669 = vpack.c.b16 %v1381, %v1373
    %v1670 = vpack.c.b16 %v1382, %v1374
    %v1671 = vpack.c.b16 %v1391, %v1383
    %v1672 = vpack.c.b16 %v1392, %v1384
    %v1673 = vpack.c.b16 %v1393, %v1385
    %v1674 = vpack.c.b16 %v1394, %v1386
    %v1675 = vpack.c.b16 %v1395, %v1387
    %v1676 = vpack.c.b16 %v1396, %v1388
    %v1677 = vpack.c.b16 %v1397, %v1389
    %v1678 = vpack.c.b16 %v1398, %v1390
    %v1679 = vpack.c.b16 %v1407, %v1399
    %v1680 = vpack.c.b16 %v1408, %v1400
    %v1681 = vpack.c.b16 %v1409, %v1401
    %v1682 = vpack.c.b16 %v1410, %v1402
    %v1683 = vpack.c.b16 %v1411, %v1403
    %v1684 = vpack.c.b16 %v1412, %v1404
    %v1685 = vpack.c.b16 %v1413, %v1405
    %v1686 = vpack.c.b16 %v1414, %v1406
    %v1687 = vpack.c.b16 %v1423, %v1415
    %v1688 = vpack.c.b16 %v1424, %v1416
    %v1689 = vpack.c.b16 %v1425, %v1417
    %v1690 = vpack.c.b16 %v1426, %v1418
    %v1691 = vpack.c.b16 %v1427, %v1419
    %v1692 = vpack.c.b16 %v1428, %v1420
    %v1693 = vpack.c.b16 %v1429, %v1421
    %v1694 = vpack.c.b16 %v1430, %v1422
    %v1695 = vpack.c.b16 %v1439, %v1431
    %v1696 = vpack.c.b16 %v1440, %v1432
    %v1697 = vpack.c.b16 %v1441, %v1433
    %v1698 = vpack.c.b16 %v1442, %v1434
    %v1699 = vpack.c.b16 %v1443, %v1435
    %v1700 = vpack.c.b16 %v1444, %v1436
    %v1701 = vpack.c.b16 %v1445, %v1437
    %v1702 = vpack.c.b16 %v1446, %v1438
    %1959 = vmatprep.subr.bf16.mxu0 %v1448
    %1960 = vmatpush1.bf16.msra.mxu0 %v1447
    %1961 = vmatprep.subr.bf16.mxu0 %v1456
    %1962 = vmatpush1.bf16.msra.mxu0 %v1455
    %1963 = vmatprep.subr.bf16.mxu0 %v1464
    %1964 = vmatpush1.bf16.msra.mxu0 %v1463
    %1965 = vmatprep.subr.bf16.mxu0 %v1472
    %1966 = vmatpush1.bf16.msra.mxu0 %v1471
    %1967 = vmatprep.subr.bf16.mxu0 %v1480
    %1968 = vmatpush1.bf16.msra.mxu0 %v1479
    %1969 = vmatprep.subr.bf16.mxu0 %v1488
    %1970 = vmatpush1.bf16.msra.mxu0 %v1487
    %1971 = vmatprep.subr.bf16.mxu0 %v1496
    %1972 = vmatpush1.bf16.msra.mxu0 %v1495
    %1973 = vmatprep.subr.bf16.mxu0 %v1504
    %1974 = vmatpush1.bf16.msra.mxu0 %v1503
    %1975 = vmatprep.subr.bf16.mxu0 %v1512
    %1976 = vmatpush1.bf16.msra.mxu0 %v1511
    %1977 = vmatprep.subr.bf16.mxu0 %v1520
    %1978 = vmatpush1.bf16.msra.mxu0 %v1519
    %1979 = vmatprep.subr.bf16.mxu0 %v1528
    %1980 = vmatpush1.bf16.msra.mxu0 %v1527
    %1981 = vmatprep.subr.bf16.mxu0 %v1536
    %1982 = vmatpush1.bf16.msra.mxu0 %v1535
    %1983 = vmatprep.subr.bf16.mxu0 %v1544
    %1984 = vmatpush1.bf16.msra.mxu0 %v1543
    %1985 = vmatprep.subr.bf16.mxu0 %v1552
    %1986 = vmatpush1.bf16.msra.mxu0 %v1551
    %1987 = vmatprep.subr.bf16.mxu0 %v1560
    %1988 = vmatpush1.bf16.msra.mxu0 %v1559
    %1989 = vmatprep.subr.bf16.mxu0 %v1568
    %1990 = vmatpush1.bf16.msra.mxu0 %v1567
    %1991 = vmatprep.mubr.bf16.mxu0 %v396
    %1992 = vmatmul.mubr.bf16.gmra.mrb[0].mxu0 %v395
    %v1993 = vpop.f32.mrb[0].mxu0
    %v1994 = vadd.f32 0.0, %v1993
    %v1995 = vpop.f32.mrb[0].mxu0
    %v1996 = vadd.f32 0.0, %v1995
    %v1997 = vpop.f32.mrb[0].mxu0
    %v1998 = vadd.f32 0.0, %v1997
    %v1999 = vpop.f32.mrb[0].mxu0
    %v2000 = vadd.f32 0.0, %v1999
    %2001 = vmatprep.mubr.bf16.mxu0 %v416
    %2002 = vmatmul.mubr.bf16.gmra.mrb[0].mxu0 %v415
    %v2003 = vpop.f32.mrb[0].mxu0
    %v2004 = vadd.f32 0.0, %v2003
    %v2005 = vpop.f32.mrb[0].mxu0
    %v2006 = vadd.f32 0.0, %v2005
    %v2007 = vpop.f32.mrb[0].mxu0
    %v2008 = vadd.f32 0.0, %v2007
    %v2009 = vpop.f32.mrb[0].mxu0
    %v2010 = vadd.f32 0.0, %v2009
    %2011 = vdwg.mxu0
    %2012 = vmatprep.subr.bf16.mxu0 %v1576
    %2013 = vmatpush1.bf16.msra.mxu0 %v1575
    %2014 = vmatprep.subr.bf16.mxu0 %v1584
    %2015 = vmatpush1.bf16.msra.mxu0 %v1583
    %2016 = vmatprep.subr.bf16.mxu0 %v1592
    %2017 = vmatpush1.bf16.msra.mxu0 %v1591
    %2018 = vmatprep.subr.bf16.mxu0 %v1600
    %2019 = vmatpush1.bf16.msra.mxu0 %v1599
    %2020 = vmatprep.subr.bf16.mxu0 %v1608
    %2021 = vmatpush1.bf16.msra.mxu0 %v1607
    %2022 = vmatprep.subr.bf16.mxu0 %v1616
    %2023 = vmatpush1.bf16.msra.mxu0 %v1615
    %2024 = vmatprep.subr.bf16.mxu0 %v1624
    %2025 = vmatpush1.bf16.msra.mxu0 %v1623
    %2026 = vmatprep.subr.bf16.mxu0 %v1632
    %2027 = vmatpush1.bf16.msra.mxu0 %v1631
    %2028 = vmatprep.subr.bf16.mxu0 %v1640
    %2029 = vmatpush1.bf16.msra.mxu0 %v1639
    %2030 = vmatprep.subr.bf16.mxu0 %v1648
    %2031 = vmatpush1.bf16.msra.mxu0 %v1647
    %2032 = vmatprep.subr.bf16.mxu0 %v1656
    %2033 = vmatpush1.bf16.msra.mxu0 %v1655
    %2034 = vmatprep.subr.bf16.mxu0 %v1664
    %2035 = vmatpush1.bf16.msra.mxu0 %v1663
    %2036 = vmatprep.subr.bf16.mxu0 %v1672
    %2037 = vmatpush1.bf16.msra.mxu0 %v1671
    %2038 = vmatprep.subr.bf16.mxu0 %v1680
    %2039 = vmatpush1.bf16.msra.mxu0 %v1679
    %2040 = vmatprep.subr.bf16.mxu0 %v1688
    %2041 = vmatpush1.bf16.msra.mxu0 %v1687
    %2042 = vmatprep.subr.bf16.mxu0 %v1696
    %2043 = vmatpush1.bf16.msra.mxu0 %v1695
    %2044 = vmatprep.mubr.bf16.mxu0 %v398
    %2045 = vmatmul.mubr.bf16.gmra.mrb[0].mxu0 %v397
    %v2046 = vpop.f32.mrb[0].mxu0
    %v2047 = vadd.f32 %v1994, %v2046
    %v2048 = vpop.f32.mrb[0].mxu0
    %v2049 = vadd.f32 %v1996, %v2048
    %v2050 = vpop.f32.mrb[0].mxu0
    %v2051 = vadd.f32 %v1998, %v2050
    %v2052 = vpop.f32.mrb[0].mxu0
    %v2053 = vadd.f32 %v2000, %v2052
    %2054 = vmatprep.mubr.bf16.mxu0 %v418
    %2055 = vmatmul.mubr.bf16.gmra.mrb[0].mxu0 %v417
    %v2056 = vpop.f32.mrb[0].mxu0
    %v2057 = vadd.f32 %v2004, %v2056
    %v2058 = vpop.f32.mrb[0].mxu0
    %v2059 = vadd.f32 %v2006, %v2058
    %v2060 = vpop.f32.mrb[0].mxu0
    %v2061 = vadd.f32 %v2008, %v2060
    %v2062 = vpop.f32.mrb[0].mxu0
    %v2063 = vadd.f32 %v2010, %v2062
    %2064 = vdwg.mxu0
    %2065 = vmatprep.subr.bf16.mxu0 %v1450
    %2066 = vmatpush1.bf16.msra.mxu0 %v1449
    %2067 = vmatprep.subr.bf16.mxu0 %v1458
    %2068 = vmatpush1.bf16.msra.mxu0 %v1457
    %2069 = vmatprep.subr.bf16.mxu0 %v1466
    %2070 = vmatpush1.bf16.msra.mxu0 %v1465
    %2071 = vmatprep.subr.bf16.mxu0 %v1474
    %2072 = vmatpush1.bf16.msra.mxu0 %v1473
    %2073 = vmatprep.subr.bf16.mxu0 %v1482
    %2074 = vmatpush1.bf16.msra.mxu0 %v1481
    %2075 = vmatprep.subr.bf16.mxu0 %v1490
    %2076 = vmatpush1.bf16.msra.mxu0 %v1489
    %2077 = vmatprep.subr.bf16.mxu0 %v1498
    %2078 = vmatpush1.bf16.msra.mxu0 %v1497
    %2079 = vmatprep.subr.bf16.mxu0 %v1506
    %2080 = vmatpush1.bf16.msra.mxu0 %v1505
    %2081 = vmatprep.subr.bf16.mxu0 %v1514
    %2082 = vmatpush1.bf16.msra.mxu0 %v1513
    %2083 = vmatprep.subr.bf16.mxu0 %v1522
    %2084 = vmatpush1.bf16.msra.mxu0 %v1521
    %2085 = vmatprep.subr.bf16.mxu0 %v1530
    %2086 = vmatpush1.bf16.msra.mxu0 %v1529
    %2087 = vmatprep.subr.bf16.mxu0 %v1538
    %2088 = vmatpush1.bf16.msra.mxu0 %v1537
    %2089 = vmatprep.subr.bf16.mxu0 %v1546
    %2090 = vmatpush1.bf16.msra.mxu0 %v1545
    %2091 = vmatprep.subr.bf16.mxu0 %v1554
    %2092 = vmatpush1.bf16.msra.mxu0 %v1553
    %2093 = vmatprep.subr.bf16.mxu0 %v1562
    %2094 = vmatpush1.bf16.msra.mxu0 %v1561
    %2095 = vmatprep.subr.bf16.mxu0 %v1570
    %2096 = vmatpush1.bf16.msra.mxu0 %v1569
    %2097 = vmatprep.mubr.bf16.mxu0 %v396
    %2098 = vmatmul.mubr.bf16.gmra.mrb[0].mxu0 %v395
    %v2099 = vpop.f32.mrb[0].mxu0
    %v2100 = vadd.f32 0.0, %v2099
    %v2101 = vpop.f32.mrb[0].mxu0
    %v2102 = vadd.f32 0.0, %v2101
    %v2103 = vpop.f32.mrb[0].mxu0
    %v2104 = vadd.f32 0.0, %v2103
    %v2105 = vpop.f32.mrb[0].mxu0
    %v2106 = vadd.f32 0.0, %v2105
    %2107 = vmatprep.mubr.bf16.mxu0 %v416
    %2108 = vmatmul.mubr.bf16.gmra.mrb[0].mxu0 %v415
    %v2109 = vpop.f32.mrb[0].mxu0
    %v2110 = vadd.f32 0.0, %v2109
    %v2111 = vpop.f32.mrb[0].mxu0
    %v2112 = vadd.f32 0.0, %v2111
    %v2113 = vpop.f32.mrb[0].mxu0
    %v2114 = vadd.f32 0.0, %v2113
    %v2115 = vpop.f32.mrb[0].mxu0
    %v2116 = vadd.f32 0.0, %v2115
    %2117 = vdwg.mxu0
    %2118 = vmatprep.subr.bf16.mxu0 %v1578
    %2119 = vmatpush1.bf16.msra.mxu0 %v1577
    %2120 = vmatprep.subr.bf16.mxu0 %v1586
    %2121 = vmatpush1.bf16.msra.mxu0 %v1585
    %2122 = vmatprep.subr.bf16.mxu0 %v1594
    %2123 = vmatpush1.bf16.msra.mxu0 %v1593
    %2124 = vmatprep.subr.bf16.mxu0 %v1602
    %2125 = vmatpush1.bf16.msra.mxu0 %v1601
    %2126 = vmatprep.subr.bf16.mxu0 %v1610
    %2127 = vmatpush1.bf16.msra.mxu0 %v1609
    %2128 = vmatprep.subr.bf16.mxu0 %v1618
    %2129 = vmatpush1.bf16.msra.mxu0 %v1617
    %2130 = vmatprep.subr.bf16.mxu0 %v1626
    %2131 = vmatpush1.bf16.msra.mxu0 %v1625
    %2132 = vmatprep.subr.bf16.mxu0 %v1634
    %2133 = vmatpush1.bf16.msra.mxu0 %v1633
    %2134 = vmatprep.subr.bf16.mxu0 %v1642
    %2135 = vmatpush1.bf16.msra.mxu0 %v1641
    %2136 = vmatprep.subr.bf16.mxu0 %v1650
    %2137 = vmatpush1.bf16.msra.mxu0 %v1649
    %2138 = vmatprep.subr.bf16.mxu0 %v1658
    %2139 = vmatpush1.bf16.msra.mxu0 %v1657
    %2140 = vmatprep.subr.bf16.mxu0 %v1666
    %2141 = vmatpush1.bf16.msra.mxu0 %v1665
    %2142 = vmatprep.subr.bf16.mxu0 %v1674
    %2143 = vmatpush1.bf16.msra.mxu0 %v1673
    %2144 = vmatprep.subr.bf16.mxu0 %v1682
    %2145 = vmatpush1.bf16.msra.mxu0 %v1681
    %2146 = vmatprep.subr.bf16.mxu0 %v1690
    %2147 = vmatpush1.bf16.msra.mxu0 %v1689
    %2148 = vmatprep.subr.bf16.mxu0 %v1698
    %2149 = vmatpush1.bf16.msra.mxu0 %v1697
    %2150 = vmatprep.mubr.bf16.mxu0 %v398
    %2151 = vmatmul.mubr.bf16.gmra.mrb[0].mxu0 %v397
    %v2152 = vpop.f32.mrb[0].mxu0
    %v2153 = vadd.f32 %v2100, %v2152
    %v2154 = vpop.f32.mrb[0].mxu0
    %v2155 = vadd.f32 %v2102, %v2154
    %v2156 = vpop.f32.mrb[0].mxu0
    %v2157 = vadd.f32 %v2104, %v2156
    %v2158 = vpop.f32.mrb[0].mxu0
    %v2159 = vadd.f32 %v2106, %v2158
    %2160 = vmatprep.mubr.bf16.mxu0 %v418
    %2161 = vmatmul.mubr.bf16.gmra.mrb[0].mxu0 %v417
    %v2162 = vpop.f32.mrb[0].mxu0
    %v2163 = vadd.f32 %v2110, %v2162
    %v2164 = vpop.f32.mrb[0].mxu0
    %v2165 = vadd.f32 %v2112, %v2164
    %v2166 = vpop.f32.mrb[0].mxu0
    %v2167 = vadd.f32 %v2114, %v2166
    %v2168 = vpop.f32.mrb[0].mxu0
    %v2169 = vadd.f32 %v2116, %v2168
    %2170 = vdwg.mxu0
    %2171 = vmatprep.subr.bf16.mxu0 %v1452
    %2172 = vmatpush1.bf16.msra.mxu0 %v1451
    %2173 = vmatprep.subr.bf16.mxu0 %v1460
    %2174 = vmatpush1.bf16.msra.mxu0 %v1459
    %2175 = vmatprep.subr.bf16.mxu0 %v1468
    %2176 = vmatpush1.bf16.msra.mxu0 %v1467
    %2177 = vmatprep.subr.bf16.mxu0 %v1476
    %2178 = vmatpush1.bf16.msra.mxu0 %v1475
    %2179 = vmatprep.subr.bf16.mxu0 %v1484
    %2180 = vmatpush1.bf16.msra.mxu0 %v1483
    %2181 = vmatprep.subr.bf16.mxu0 %v1492
    %2182 = vmatpush1.bf16.msra.mxu0 %v1491
    %2183 = vmatprep.subr.bf16.mxu0 %v1500
    %2184 = vmatpush1.bf16.msra.mxu0 %v1499
    %2185 = vmatprep.subr.bf16.mxu0 %v1508
    %2186 = vmatpush1.bf16.msra.mxu0 %v1507
    %2187 = vmatprep.subr.bf16.mxu0 %v1516
    %2188 = vmatpush1.bf16.msra.mxu0 %v1515
    %2189 = vmatprep.subr.bf16.mxu0 %v1524
    %2190 = vmatpush1.bf16.msra.mxu0 %v1523
    %2191 = vmatprep.subr.bf16.mxu0 %v1532
    %2192 = vmatpush1.bf16.msra.mxu0 %v1531
    %2193 = vmatprep.subr.bf16.mxu0 %v1540
    %2194 = vmatpush1.bf16.msra.mxu0 %v1539
    %2195 = vmatprep.subr.bf16.mxu0 %v1548
    %2196 = vmatpush1.bf16.msra.mxu0 %v1547
    %2197 = vmatprep.subr.bf16.mxu0 %v1556
    %2198 = vmatpush1.bf16.msra.mxu0 %v1555
    %2199 = vmatprep.subr.bf16.mxu0 %v1564
    %2200 = vmatpush1.bf16.msra.mxu0 %v1563
    %2201 = vmatprep.subr.bf16.mxu0 %v1572
    %2202 = vmatpush1.bf16.msra.mxu0 %v1571
    %2203 = vmatprep.mubr.bf16.mxu0 %v396
    %2204 = vmatmul.mubr.bf16.gmra.mrb[0].mxu0 %v395
    %v2205 = vpop.f32.mrb[0].mxu0
    %v2206 = vadd.f32 0.0, %v2205
    %v2207 = vpop.f32.mrb[0].mxu0
    %v2208 = vadd.f32 0.0, %v2207
    %v2209 = vpop.f32.mrb[0].mxu0
    %v2210 = vadd.f32 0.0, %v2209
    %v2211 = vpop.f32.mrb[0].mxu0
    %v2212 = vadd.f32 0.0, %v2211
    %2213 = vmatprep.mubr.bf16.mxu0 %v416
    %2214 = vmatmul.mubr.bf16.gmra.mrb[0].mxu0 %v415
    %v2215 = vpop.f32.mrb[0].mxu0
    %v2216 = vadd.f32 0.0, %v2215
    %v2217 = vpop.f32.mrb[0].mxu0
    %v2218 = vadd.f32 0.0, %v2217
    %v2219 = vpop.f32.mrb[0].mxu0
    %v2220 = vadd.f32 0.0, %v2219
    %v2221 = vpop.f32.mrb[0].mxu0
    %v2222 = vadd.f32 0.0, %v2221
    %2223 = vdwg.mxu0
    %2224 = vmatprep.subr.bf16.mxu0 %v1580
    %2225 = vmatpush1.bf16.msra.mxu0 %v1579
    %2226 = vmatprep.subr.bf16.mxu0 %v1588
    %2227 = vmatpush1.bf16.msra.mxu0 %v1587
    %2228 = vmatprep.subr.bf16.mxu0 %v1596
    %2229 = vmatpush1.bf16.msra.mxu0 %v1595
    %2230 = vmatprep.subr.bf16.mxu0 %v1604
    %2231 = vmatpush1.bf16.msra.mxu0 %v1603
    %2232 = vmatprep.subr.bf16.mxu0 %v1612
    %2233 = vmatpush1.bf16.msra.mxu0 %v1611
    %2234 = vmatprep.subr.bf16.mxu0 %v1620
    %2235 = vmatpush1.bf16.msra.mxu0 %v1619
    %2236 = vmatprep.subr.bf16.mxu0 %v1628
    %2237 = vmatpush1.bf16.msra.mxu0 %v1627
    %2238 = vmatprep.subr.bf16.mxu0 %v1636
    %2239 = vmatpush1.bf16.msra.mxu0 %v1635
    %2240 = vmatprep.subr.bf16.mxu0 %v1644
    %2241 = vmatpush1.bf16.msra.mxu0 %v1643
    %2242 = vmatprep.subr.bf16.mxu0 %v1652
    %2243 = vmatpush1.bf16.msra.mxu0 %v1651
    %2244 = vmatprep.subr.bf16.mxu0 %v1660
    %2245 = vmatpush1.bf16.msra.mxu0 %v1659
    %2246 = vmatprep.subr.bf16.mxu0 %v1668
    %2247 = vmatpush1.bf16.msra.mxu0 %v1667
    %2248 = vmatprep.subr.bf16.mxu0 %v1676
    %2249 = vmatpush1.bf16.msra.mxu0 %v1675
    %2250 = vmatprep.subr.bf16.mxu0 %v1684
    %2251 = vmatpush1.bf16.msra.mxu0 %v1683
    %2252 = vmatprep.subr.bf16.mxu0 %v1692
    %2253 = vmatpush1.bf16.msra.mxu0 %v1691
    %2254 = vmatprep.subr.bf16.mxu0 %v1700
    %2255 = vmatpush1.bf16.msra.mxu0 %v1699
    %2256 = vmatprep.mubr.bf16.mxu0 %v398
    %2257 = vmatmul.mubr.bf16.gmra.mrb[0].mxu0 %v397
    %v2258 = vpop.f32.mrb[0].mxu0
    %v2259 = vadd.f32 %v2206, %v2258
    %v2260 = vpop.f32.mrb[0].mxu0
    %v2261 = vadd.f32 %v2208, %v2260
    %v2262 = vpop.f32.mrb[0].mxu0
    %v2263 = vadd.f32 %v2210, %v2262
    %v2264 = vpop.f32.mrb[0].mxu0
    %v2265 = vadd.f32 %v2212, %v2264
    %2266 = vmatprep.mubr.bf16.mxu0 %v418
    %2267 = vmatmul.mubr.bf16.gmra.mrb[0].mxu0 %v417
    %v2268 = vpop.f32.mrb[0].mxu0
    %v2269 = vadd.f32 %v2216, %v2268
    %v2270 = vpop.f32.mrb[0].mxu0
    %v2271 = vadd.f32 %v2218, %v2270
    %v2272 = vpop.f32.mrb[0].mxu0
    %v2273 = vadd.f32 %v2220, %v2272
    %v2274 = vpop.f32.mrb[0].mxu0
    %v2275 = vadd.f32 %v2222, %v2274
    %2276 = vdwg.mxu0
    %2277 = vmatprep.subr.bf16.mxu0 %v1454
    %2278 = vmatpush1.bf16.msra.mxu0 %v1453
    %2279 = vmatprep.subr.bf16.mxu0 %v1462
    %2280 = vmatpush1.bf16.msra.mxu0 %v1461
    %2281 = vmatprep.subr.bf16.mxu0 %v1470
    %2282 = vmatpush1.bf16.msra.mxu0 %v1469
    %2283 = vmatprep.subr.bf16.mxu0 %v1478
    %2284 = vmatpush1.bf16.msra.mxu0 %v1477
    %2285 = vmatprep.subr.bf16.mxu0 %v1486
    %2286 = vmatpush1.bf16.msra.mxu0 %v1485
    %2287 = vmatprep.subr.bf16.mxu0 %v1494
    %2288 = vmatpush1.bf16.msra.mxu0 %v1493
    %2289 = vmatprep.subr.bf16.mxu0 %v1502
    %2290 = vmatpush1.bf16.msra.mxu0 %v1501
    %2291 = vmatprep.subr.bf16.mxu0 %v1510
    %2292 = vmatpush1.bf16.msra.mxu0 %v1509
    %2293 = vmatprep.subr.bf16.mxu0 %v1518
    %2294 = vmatpush1.bf16.msra.mxu0 %v1517
    %2295 = vmatprep.subr.bf16.mxu0 %v1526
    %2296 = vmatpush1.bf16.msra.mxu0 %v1525
    %2297 = vmatprep.subr.bf16.mxu0 %v1534
    %2298 = vmatpush1.bf16.msra.mxu0 %v1533
    %2299 = vmatprep.subr.bf16.mxu0 %v1542
    %2300 = vmatpush1.bf16.msra.mxu0 %v1541
    %2301 = vmatprep.subr.bf16.mxu0 %v1550
    %2302 = vmatpush1.bf16.msra.mxu0 %v1549
    %2303 = vmatprep.subr.bf16.mxu0 %v1558
    %2304 = vmatpush1.bf16.msra.mxu0 %v1557
    %2305 = vmatprep.subr.bf16.mxu0 %v1566
    %2306 = vmatpush1.bf16.msra.mxu0 %v1565
    %2307 = vmatprep.subr.bf16.mxu0 %v1574
    %2308 = vmatpush1.bf16.msra.mxu0 %v1573
    %2309 = vmatprep.mubr.bf16.mxu0 %v396
    %2310 = vmatmul.mubr.bf16.gmra.mrb[0].mxu0 %v395
    %v2311 = vpop.f32.mrb[0].mxu0
    %v2312 = vadd.f32 0.0, %v2311
    %v2313 = vpop.f32.mrb[0].mxu0
    %v2314 = vadd.f32 0.0, %v2313
    %v2315 = vpop.f32.mrb[0].mxu0
    %v2316 = vadd.f32 0.0, %v2315
    %v2317 = vpop.f32.mrb[0].mxu0
    %v2318 = vadd.f32 0.0, %v2317
    %2319 = vmatprep.mubr.bf16.mxu0 %v416
    %2320 = vmatmul.mubr.bf16.gmra.mrb[0].mxu0 %v415
    %v2321 = vpop.f32.mrb[0].mxu0
    %v2322 = vadd.f32 0.0, %v2321
    %v2323 = vpop.f32.mrb[0].mxu0
    %v2324 = vadd.f32 0.0, %v2323
    %v2325 = vpop.f32.mrb[0].mxu0
    %v2326 = vadd.f32 0.0, %v2325
    %v2327 = vpop.f32.mrb[0].mxu0
    %v2328 = vadd.f32 0.0, %v2327
    %2329 = vdwg.mxu0
    %2330 = vmatprep.subr.bf16.mxu0 %v1582
    %2331 = vmatpush1.bf16.msra.mxu0 %v1581
    %2332 = vmatprep.subr.bf16.mxu0 %v1590
    %2333 = vmatpush1.bf16.msra.mxu0 %v1589
    %2334 = vmatprep.subr.bf16.mxu0 %v1598
    %2335 = vmatpush1.bf16.msra.mxu0 %v1597
    %2336 = vmatprep.subr.bf16.mxu0 %v1606
    %2337 = vmatpush1.bf16.msra.mxu0 %v1605
    %2338 = vmatprep.subr.bf16.mxu0 %v1614
    %2339 = vmatpush1.bf16.msra.mxu0 %v1613
    %2340 = vmatprep.subr.bf16.mxu0 %v1622
    %2341 = vmatpush1.bf16.msra.mxu0 %v1621
    %2342 = vmatprep.subr.bf16.mxu0 %v1630
    %2343 = vmatpush1.bf16.msra.mxu0 %v1629
    %2344 = vmatprep.subr.bf16.mxu0 %v1638
    %2345 = vmatpush1.bf16.msra.mxu0 %v1637
    %2346 = vmatprep.subr.bf16.mxu0 %v1646
    %2347 = vmatpush1.bf16.msra.mxu0 %v1645
    %2348 = vmatprep.subr.bf16.mxu0 %v1654
    %2349 = vmatpush1.bf16.msra.mxu0 %v1653
    %2350 = vmatprep.subr.bf16.mxu0 %v1662
    %2351 = vmatpush1.bf16.msra.mxu0 %v1661
    %2352 = vmatprep.subr.bf16.mxu0 %v1670
    %2353 = vmatpush1.bf16.msra.mxu0 %v1669
    %2354 = vmatprep.subr.bf16.mxu0 %v1678
    %2355 = vmatpush1.bf16.msra.mxu0 %v1677
    %2356 = vmatprep.subr.bf16.mxu0 %v1686
    %2357 = vmatpush1.bf16.msra.mxu0 %v1685
    %2358 = vmatprep.subr.bf16.mxu0 %v1694
    %2359 = vmatpush1.bf16.msra.mxu0 %v1693
    %2360 = vmatprep.subr.bf16.mxu0 %v1702
    %2361 = vmatpush1.bf16.msra.mxu0 %v1701
    %2362 = vmatprep.mubr.bf16.mxu0 %v398
    %2363 = vmatmul.mubr.bf16.gmra.mrb[0].mxu0 %v397
    %v2364 = vpop.f32.mrb[0].mxu0
    %v2365 = vadd.f32 %v2312, %v2364
    %v2366 = vpop.f32.mrb[0].mxu0
    %v2367 = vadd.f32 %v2314, %v2366
    %v2368 = vpop.f32.mrb[0].mxu0
    %v2369 = vadd.f32 %v2316, %v2368
    %v2370 = vpop.f32.mrb[0].mxu0
    %v2371 = vadd.f32 %v2318, %v2370
    %2372 = vmatprep.mubr.bf16.mxu0 %v418
    %2373 = vmatmul.mubr.bf16.gmra.mrb[0].mxu0 %v417
    %v2374 = vpop.f32.mrb[0].mxu0
    %v2375 = vadd.f32 %v2322, %v2374
    %v2376 = vpop.f32.mrb[0].mxu0
    %v2377 = vadd.f32 %v2324, %v2376
    %v2378 = vpop.f32.mrb[0].mxu0
    %v2379 = vadd.f32 %v2326, %v2378
    %v2380 = vpop.f32.mrb[0].mxu0
    %v2381 = vadd.f32 %v2328, %v2380
    %2382 = vdwg.mxu0
    %v2383 = vld [vmem:[#allocation10] sm:$0xf]
    %v2385 = vlaneseq
    %v2386 = vshrl.u32 %v2385, 7
    %v2387 = vsub.s32 0, %v2386
    %v2388 = vrot.slane %v2383, %v2387
    %v2389 = vlaneseq
    %v2390 = vshrl.u32 %v2389, 7
    %v2391 = vsub.s32 1, %v2390
    %v2392 = vrot.slane %v2383, %v2391
    %v2393 = vlaneseq
    %v2394 = vshrl.u32 %v2393, 7
    %v2395 = vsub.s32 2, %v2394
    %v2396 = vrot.slane %v2383, %v2395
    %v2397 = vlaneseq
    %v2398 = vshrl.u32 %v2397, 7
    %v2399 = vsub.s32 3, %v2398
    %v2400 = vrot.slane %v2383, %v2399
    %v2405 = vadd.f32 %v2047, %v2388
    %v2406 = vadd.f32 %v2049, %v2392
    %v2407 = vadd.f32 %v2153, %v2396
    %v2408 = vadd.f32 %v2155, %v2400
    %v2409 = vadd.f32 %v2051, %v2388
    %v2410 = vadd.f32 %v2053, %v2392
    %v2411 = vadd.f32 %v2157, %v2396
    %v2412 = vadd.f32 %v2159, %v2400
    %v2413 = vadd.f32 %v2057, %v2388
    %v2414 = vadd.f32 %v2059, %v2392
    %v2415 = vadd.f32 %v2163, %v2396
    %v2416 = vadd.f32 %v2165, %v2400
    %v2417 = vadd.f32 %v2061, %v2388
    %v2418 = vadd.f32 %v2063, %v2392
    %v2419 = vadd.f32 %v2167, %v2396
    %v2420 = vadd.f32 %v2169, %v2400
    %v2421 = vmax.f32 %v2405, 0.0
    %v2422 = vmax.f32 %v2406, 0.0
    %v2423 = vmax.f32 %v2407, 0.0
    %v2424 = vmax.f32 %v2408, 0.0
    %v2425 = vmax.f32 %v2409, 0.0
    %v2426 = vmax.f32 %v2410, 0.0
    %v2427 = vmax.f32 %v2411, 0.0
    %v2428 = vmax.f32 %v2412, 0.0
    %v2429 = vmax.f32 %v2413, 0.0
    %v2430 = vmax.f32 %v2414, 0.0
    %v2431 = vmax.f32 %v2415, 0.0
    %v2432 = vmax.f32 %v2416, 0.0
    %v2433 = vmax.f32 %v2417, 0.0
    %v2434 = vmax.f32 %v2418, 0.0
    %v2435 = vmax.f32 %v2419, 0.0
    %v2436 = vmax.f32 %v2420, 0.0
    %v2437 = vunpack.c.l.bf16 %v371
    %v2438 = vunpack.c.h.bf16 %v371
    %v2439 = vunpack.c.l.bf16 %v372
    %v2440 = vunpack.c.h.bf16 %v372
    %v2441 = vunpack.c.l.bf16 %v373
    %v2442 = vunpack.c.h.bf16 %v373
    %v2443 = vunpack.c.l.bf16 %v374
    %v2444 = vunpack.c.h.bf16 %v374
    %v2445 = vmul.f32 %v2437, %v2421
    %v2446 = vmul.f32 %v2438, %v2422
    %v2447 = vmul.f32 %v2439, %v2423
    %v2448 = vmul.f32 %v2440, %v2424
    %v2449 = vmul.f32 %v2441, %v2425
    %v2450 = vmul.f32 %v2442, %v2426
    %v2451 = vmul.f32 %v2443, %v2427
    %v2452 = vmul.f32 %v2444, %v2428
    %v2453 = vpack.c.bf16 %v2449, %v2445
    %v2454 = vpack.c.bf16 %v2450, %v2446
    %v2455 = vpack.c.bf16 %v2451, %v2447
    %v2456 = vpack.c.bf16 %v2452, %v2448
    %v2457 = vunpack.c.l.bf16 %v379
    %v2458 = vunpack.c.h.bf16 %v379
    %v2459 = vunpack.c.l.bf16 %v380
    %v2460 = vunpack.c.h.bf16 %v380
    %v2461 = vunpack.c.l.bf16 %v381
    %v2462 = vunpack.c.h.bf16 %v381
    %v2463 = vunpack.c.l.bf16 %v382
    %v2464 = vunpack.c.h.bf16 %v382
    %v2465 = vmul.f32 %v2457, %v2429
    %v2466 = vmul.f32 %v2458, %v2430
    %v2467 = vmul.f32 %v2459, %v2431
    %v2468 = vmul.f32 %v2460, %v2432
    %v2469 = vmul.f32 %v2461, %v2433
    %v2470 = vmul.f32 %v2462, %v2434
    %v2471 = vmul.f32 %v2463, %v2435
    %v2472 = vmul.f32 %v2464, %v2436
    %v2473 = vpack.c.bf16 %v2469, %v2465
    %v2474 = vpack.c.bf16 %v2470, %v2466
    %v2475 = vpack.c.bf16 %v2471, %v2467
    %v2476 = vpack.c.bf16 %v2472, %v2468
    %v2481 = vunpack.c.l.b16 %v375
    %v2482 = vunpack.c.h.b16 %v375
    %v2483 = vunpack.c.l.b16 %v376
    %v2484 = vunpack.c.h.b16 %v376
    %v2485 = vunpack.c.l.b16 %v377
    %v2486 = vunpack.c.h.b16 %v377
    %v2487 = vunpack.c.l.b16 %v378
    %v2488 = vunpack.c.h.b16 %v378
    %v2489 = vpack.c.b16 %v2485, %v2481
    %v2490 = vpack.c.b16 %v2486, %v2482
    %v2491 = vpack.c.b16 %v2487, %v2483
    %v2492 = vpack.c.b16 %v2488, %v2484
    %v2497 = vld [vmem:[#allocation14] sm:$0xff]
    %v2498 = vld [vmem:[#allocation14 + $0x8] sm:$0xff]
    %v2499 = vld [vmem:[#allocation14 + $0x10] sm:$0xff]
    %v2500 = vld [vmem:[#allocation14 + $0x18] sm:$0xff]
    %v2501 = vld [vmem:[#allocation14 + $0x20] sm:$0xff]
    %v2502 = vld [vmem:[#allocation14 + $0x28] sm:$0xff]
    %v2503 = vld [vmem:[#allocation14 + $0x30] sm:$0xff]
    %v2504 = vld [vmem:[#allocation14 + $0x38] sm:$0xff]
    %v2505 = vld [vmem:[#allocation14 + $0x40] sm:$0xff]
    %v2506 = vld [vmem:[#allocation14 + $0x48] sm:$0xff]
    %v2507 = vld [vmem:[#allocation14 + $0x50] sm:$0xff]
    %v2508 = vld [vmem:[#allocation14 + $0x58] sm:$0xff]
    %v2509 = vld [vmem:[#allocation14 + $0x60] sm:$0xff]
    %v2510 = vld [vmem:[#allocation14 + $0x68] sm:$0xff]
    %v2511 = vld [vmem:[#allocation14 + $0x70] sm:$0xff]
    %v2512 = vld [vmem:[#allocation14 + $0x78] sm:$0xff]
    %v2513 = vld [vmem:[#allocation14 + $0x80] sm:$0xff]
    %v2514 = vld [vmem:[#allocation14 + $0x88] sm:$0xff]
    %v2515 = vld [vmem:[#allocation14 + $0x90] sm:$0xff]
    %v2516 = vld [vmem:[#allocation14 + $0x98] sm:$0xff]
    %v2517 = vld [vmem:[#allocation14 + $0xa0] sm:$0xff]
    %v2518 = vld [vmem:[#allocation14 + $0xa8] sm:$0xff]
    %v2519 = vld [vmem:[#allocation14 + $0xb0] sm:$0xff]
    %v2520 = vld [vmem:[#allocation14 + $0xb8] sm:$0xff]
    %v2521 = vld [vmem:[#allocation14 + $0xc0] sm:$0xff]
    %v2522 = vld [vmem:[#allocation14 + $0xc8] sm:$0xff]
    %v2523 = vld [vmem:[#allocation14 + $0xd0] sm:$0xff]
    %v2524 = vld [vmem:[#allocation14 + $0xd8] sm:$0xff]
    %v2525 = vld [vmem:[#allocation14 + $0xe0] sm:$0xff]
    %v2526 = vld [vmem:[#allocation14 + $0xe8] sm:$0xff]
    %v2527 = vld [vmem:[#allocation14 + $0xf0] sm:$0xff]
    %v2528 = vld [vmem:[#allocation14 + $0xf8] sm:$0xff]
    %v2529 = vld [vmem:[#allocation14 + $0x100] sm:$0xff]
    %v2530 = vld [vmem:[#allocation14 + $0x108] sm:$0xff]
    %v2531 = vld [vmem:[#allocation14 + $0x110] sm:$0xff]
    %v2532 = vld [vmem:[#allocation14 + $0x118] sm:$0xff]
    %v2533 = vld [vmem:[#allocation14 + $0x120] sm:$0xff]
    %v2534 = vld [vmem:[#allocation14 + $0x128] sm:$0xff]
    %v2535 = vld [vmem:[#allocation14 + $0x130] sm:$0xff]
    %v2536 = vld [vmem:[#allocation14 + $0x138] sm:$0xff]
    %v2537 = vld [vmem:[#allocation14 + $0x140] sm:$0xff]
    %v2538 = vld [vmem:[#allocation14 + $0x148] sm:$0xff]
    %v2539 = vld [vmem:[#allocation14 + $0x150] sm:$0xff]
    %v2540 = vld [vmem:[#allocation14 + $0x158] sm:$0xff]
    %v2541 = vld [vmem:[#allocation14 + $0x160] sm:$0xff]
    %v2542 = vld [vmem:[#allocation14 + $0x168] sm:$0xff]
    %v2543 = vld [vmem:[#allocation14 + $0x170] sm:$0xff]
    %v2544 = vld [vmem:[#allocation14 + $0x178] sm:$0xff]
    %v2545 = vld [vmem:[#allocation14 + $0x180] sm:$0xff]
    %v2546 = vld [vmem:[#allocation14 + $0x188] sm:$0xff]
    %v2547 = vld [vmem:[#allocation14 + $0x190] sm:$0xff]
    %v2548 = vld [vmem:[#allocation14 + $0x198] sm:$0xff]
    %v2549 = vld [vmem:[#allocation14 + $0x1a0] sm:$0xff]
    %v2550 = vld [vmem:[#allocation14 + $0x1a8] sm:$0xff]
    %v2551 = vld [vmem:[#allocation14 + $0x1b0] sm:$0xff]
    %v2552 = vld [vmem:[#allocation14 + $0x1b8] sm:$0xff]
    %v2553 = vld [vmem:[#allocation14 + $0x1c0] sm:$0xff]
    %v2554 = vld [vmem:[#allocation14 + $0x1c8] sm:$0xff]
    %v2555 = vld [vmem:[#allocation14 + $0x1d0] sm:$0xff]
    %v2556 = vld [vmem:[#allocation14 + $0x1d8] sm:$0xff]
    %v2557 = vld [vmem:[#allocation14 + $0x1e0] sm:$0xff]
    %v2558 = vld [vmem:[#allocation14 + $0x1e8] sm:$0xff]
    %v2559 = vld [vmem:[#allocation14 + $0x1f0] sm:$0xff]
    %v2560 = vld [vmem:[#allocation14 + $0x1f8] sm:$0xff]
    %v2561 = vld [vmem:[#allocation14 + $0x200] sm:$0xff]
    %v2562 = vld [vmem:[#allocation14 + $0x208] sm:$0xff]
    %v2563 = vld [vmem:[#allocation14 + $0x210] sm:$0xff]
    %v2564 = vld [vmem:[#allocation14 + $0x218] sm:$0xff]
    %v2565 = vld [vmem:[#allocation14 + $0x220] sm:$0xff]
    %v2566 = vld [vmem:[#allocation14 + $0x228] sm:$0xff]
    %v2567 = vld [vmem:[#allocation14 + $0x230] sm:$0xff]
    %v2568 = vld [vmem:[#allocation14 + $0x238] sm:$0xff]
    %v2569 = vld [vmem:[#allocation14 + $0x240] sm:$0xff]
    %v2570 = vld [vmem:[#allocation14 + $0x248] sm:$0xff]
    %v2571 = vld [vmem:[#allocation14 + $0x250] sm:$0xff]
    %v2572 = vld [vmem:[#allocation14 + $0x258] sm:$0xff]
    %v2573 = vld [vmem:[#allocation14 + $0x260] sm:$0xff]
    %v2574 = vld [vmem:[#allocation14 + $0x268] sm:$0xff]
    %v2575 = vld [vmem:[#allocation14 + $0x270] sm:$0xff]
    %v2576 = vld [vmem:[#allocation14 + $0x278] sm:$0xff]
    %v2577 = vld [vmem:[#allocation14 + $0x280] sm:$0xff]
    %v2578 = vld [vmem:[#allocation14 + $0x288] sm:$0xff]
    %v2579 = vld [vmem:[#allocation14 + $0x290] sm:$0xff]
    %v2580 = vld [vmem:[#allocation14 + $0x298] sm:$0xff]
    %v2581 = vld [vmem:[#allocation14 + $0x2a0] sm:$0xff]
    %v2582 = vld [vmem:[#allocation14 + $0x2a8] sm:$0xff]
    %v2583 = vld [vmem:[#allocation14 + $0x2b0] sm:$0xff]
    %v2584 = vld [vmem:[#allocation14 + $0x2b8] sm:$0xff]
    %v2585 = vld [vmem:[#allocation14 + $0x2c0] sm:$0xff]
    %v2586 = vld [vmem:[#allocation14 + $0x2c8] sm:$0xff]
    %v2587 = vld [vmem:[#allocation14 + $0x2d0] sm:$0xff]
    %v2588 = vld [vmem:[#allocation14 + $0x2d8] sm:$0xff]
    %v2589 = vld [vmem:[#allocation14 + $0x2e0] sm:$0xff]
    %v2590 = vld [vmem:[#allocation14 + $0x2e8] sm:$0xff]
    %v2591 = vld [vmem:[#allocation14 + $0x2f0] sm:$0xff]
    %v2592 = vld [vmem:[#allocation14 + $0x2f8] sm:$0xff]
    %v2593 = vld [vmem:[#allocation14 + $0x300] sm:$0xff]
    %v2594 = vld [vmem:[#allocation14 + $0x308] sm:$0xff]
    %v2595 = vld [vmem:[#allocation14 + $0x310] sm:$0xff]
    %v2596 = vld [vmem:[#allocation14 + $0x318] sm:$0xff]
    %v2597 = vld [vmem:[#allocation14 + $0x320] sm:$0xff]
    %v2598 = vld [vmem:[#allocation14 + $0x328] sm:$0xff]
    %v2599 = vld [vmem:[#allocation14 + $0x330] sm:$0xff]
    %v2600 = vld [vmem:[#allocation14 + $0x338] sm:$0xff]
    %v2601 = vld [vmem:[#allocation14 + $0x340] sm:$0xff]
    %v2602 = vld [vmem:[#allocation14 + $0x348] sm:$0xff]
    %v2603 = vld [vmem:[#allocation14 + $0x350] sm:$0xff]
    %v2604 = vld [vmem:[#allocation14 + $0x358] sm:$0xff]
    %v2605 = vld [vmem:[#allocation14 + $0x360] sm:$0xff]
    %v2606 = vld [vmem:[#allocation14 + $0x368] sm:$0xff]
    %v2607 = vld [vmem:[#allocation14 + $0x370] sm:$0xff]
    %v2608 = vld [vmem:[#allocation14 + $0x378] sm:$0xff]
    %v2609 = vld [vmem:[#allocation14 + $0x380] sm:$0xff]
    %v2610 = vld [vmem:[#allocation14 + $0x388] sm:$0xff]
    %v2611 = vld [vmem:[#allocation14 + $0x390] sm:$0xff]
    %v2612 = vld [vmem:[#allocation14 + $0x398] sm:$0xff]
    %v2613 = vld [vmem:[#allocation14 + $0x3a0] sm:$0xff]
    %v2614 = vld [vmem:[#allocation14 + $0x3a8] sm:$0xff]
    %v2615 = vld [vmem:[#allocation14 + $0x3b0] sm:$0xff]
    %v2616 = vld [vmem:[#allocation14 + $0x3b8] sm:$0xff]
    %v2617 = vld [vmem:[#allocation14 + $0x3c0] sm:$0xff]
    %v2618 = vld [vmem:[#allocation14 + $0x3c8] sm:$0xff]
    %v2619 = vld [vmem:[#allocation14 + $0x3d0] sm:$0xff]
    %v2620 = vld [vmem:[#allocation14 + $0x3d8] sm:$0xff]
    %v2621 = vld [vmem:[#allocation14 + $0x3e0] sm:$0xff]
    %v2622 = vld [vmem:[#allocation14 + $0x3e8] sm:$0xff]
    %v2623 = vld [vmem:[#allocation14 + $0x3f0] sm:$0xff]
    %v2624 = vld [vmem:[#allocation14 + $0x3f8] sm:$0xff]
    %v2625 = vld [vmem:[#allocation14 + $0x400] sm:$0xff]
    %v2626 = vld [vmem:[#allocation14 + $0x408] sm:$0xff]
    %v2627 = vld [vmem:[#allocation14 + $0x410] sm:$0xff]
    %v2628 = vld [vmem:[#allocation14 + $0x418] sm:$0xff]
    %v2629 = vld [vmem:[#allocation14 + $0x420] sm:$0xff]
    %v2630 = vld [vmem:[#allocation14 + $0x428] sm:$0xff]
    %v2631 = vld [vmem:[#allocation14 + $0x430] sm:$0xff]
    %v2632 = vld [vmem:[#allocation14 + $0x438] sm:$0xff]
    %v2633 = vld [vmem:[#allocation14 + $0x440] sm:$0xff]
    %v2634 = vld [vmem:[#allocation14 + $0x448] sm:$0xff]
    %v2635 = vld [vmem:[#allocation14 + $0x450] sm:$0xff]
    %v2636 = vld [vmem:[#allocation14 + $0x458] sm:$0xff]
    %v2637 = vld [vmem:[#allocation14 + $0x460] sm:$0xff]
    %v2638 = vld [vmem:[#allocation14 + $0x468] sm:$0xff]
    %v2639 = vld [vmem:[#allocation14 + $0x470] sm:$0xff]
    %v2640 = vld [vmem:[#allocation14 + $0x478] sm:$0xff]
    %v2641 = vld [vmem:[#allocation14 + $0x480] sm:$0xff]
    %v2642 = vld [vmem:[#allocation14 + $0x488] sm:$0xff]
    %v2643 = vld [vmem:[#allocation14 + $0x490] sm:$0xff]
    %v2644 = vld [vmem:[#allocation14 + $0x498] sm:$0xff]
    %v2645 = vld [vmem:[#allocation14 + $0x4a0] sm:$0xff]
    %v2646 = vld [vmem:[#allocation14 + $0x4a8] sm:$0xff]
    %v2647 = vld [vmem:[#allocation14 + $0x4b0] sm:$0xff]
    %v2648 = vld [vmem:[#allocation14 + $0x4b8] sm:$0xff]
    %v2649 = vld [vmem:[#allocation14 + $0x4c0] sm:$0xff]
    %v2650 = vld [vmem:[#allocation14 + $0x4c8] sm:$0xff]
    %v2651 = vld [vmem:[#allocation14 + $0x4d0] sm:$0xff]
    %v2652 = vld [vmem:[#allocation14 + $0x4d8] sm:$0xff]
    %v2653 = vld [vmem:[#allocation14 + $0x4e0] sm:$0xff]
    %v2654 = vld [vmem:[#allocation14 + $0x4e8] sm:$0xff]
    %v2655 = vld [vmem:[#allocation14 + $0x4f0] sm:$0xff]
    %v2656 = vld [vmem:[#allocation14 + $0x4f8] sm:$0xff]
    %v2657 = vld [vmem:[#allocation14 + $0x500] sm:$0xff]
    %v2658 = vld [vmem:[#allocation14 + $0x508] sm:$0xff]
    %v2659 = vld [vmem:[#allocation14 + $0x510] sm:$0xff]
    %v2660 = vld [vmem:[#allocation14 + $0x518] sm:$0xff]
    %v2661 = vld [vmem:[#allocation14 + $0x520] sm:$0xff]
    %v2662 = vld [vmem:[#allocation14 + $0x528] sm:$0xff]
    %v2663 = vld [vmem:[#allocation14 + $0x530] sm:$0xff]
    %v2664 = vld [vmem:[#allocation14 + $0x538] sm:$0xff]
    %v2665 = vld [vmem:[#allocation14 + $0x540] sm:$0xff]
    %v2666 = vld [vmem:[#allocation14 + $0x548] sm:$0xff]
    %v2667 = vld [vmem:[#allocation14 + $0x550] sm:$0xff]
    %v2668 = vld [vmem:[#allocation14 + $0x558] sm:$0xff]
    %v2669 = vld [vmem:[#allocation14 + $0x560] sm:$0xff]
    %v2670 = vld [vmem:[#allocation14 + $0x568] sm:$0xff]
    %v2671 = vld [vmem:[#allocation14 + $0x570] sm:$0xff]
    %v2672 = vld [vmem:[#allocation14 + $0x578] sm:$0xff]
    %v2673 = vld [vmem:[#allocation14 + $0x580] sm:$0xff]
    %v2674 = vld [vmem:[#allocation14 + $0x588] sm:$0xff]
    %v2675 = vld [vmem:[#allocation14 + $0x590] sm:$0xff]
    %v2676 = vld [vmem:[#allocation14 + $0x598] sm:$0xff]
    %v2677 = vld [vmem:[#allocation14 + $0x5a0] sm:$0xff]
    %v2678 = vld [vmem:[#allocation14 + $0x5a8] sm:$0xff]
    %v2679 = vld [vmem:[#allocation14 + $0x5b0] sm:$0xff]
    %v2680 = vld [vmem:[#allocation14 + $0x5b8] sm:$0xff]
    %v2681 = vld [vmem:[#allocation14 + $0x5c0] sm:$0xff]
    %v2682 = vld [vmem:[#allocation14 + $0x5c8] sm:$0xff]
    %v2683 = vld [vmem:[#allocation14 + $0x5d0] sm:$0xff]
    %v2684 = vld [vmem:[#allocation14 + $0x5d8] sm:$0xff]
    %v2685 = vld [vmem:[#allocation14 + $0x5e0] sm:$0xff]
    %v2686 = vld [vmem:[#allocation14 + $0x5e8] sm:$0xff]
    %v2687 = vld [vmem:[#allocation14 + $0x5f0] sm:$0xff]
    %v2688 = vld [vmem:[#allocation14 + $0x5f8] sm:$0xff]
    %v2689 = vld [vmem:[#allocation14 + $0x600] sm:$0xff]
    %v2690 = vld [vmem:[#allocation14 + $0x608] sm:$0xff]
    %v2691 = vld [vmem:[#allocation14 + $0x610] sm:$0xff]
    %v2692 = vld [vmem:[#allocation14 + $0x618] sm:$0xff]
    %v2693 = vld [vmem:[#allocation14 + $0x620] sm:$0xff]
    %v2694 = vld [vmem:[#allocation14 + $0x628] sm:$0xff]
    %v2695 = vld [vmem:[#allocation14 + $0x630] sm:$0xff]
    %v2696 = vld [vmem:[#allocation14 + $0x638] sm:$0xff]
    %v2697 = vld [vmem:[#allocation14 + $0x640] sm:$0xff]
    %v2698 = vld [vmem:[#allocation14 + $0x648] sm:$0xff]
    %v2699 = vld [vmem:[#allocation14 + $0x650] sm:$0xff]
    %v2700 = vld [vmem:[#allocation14 + $0x658] sm:$0xff]
    %v2701 = vld [vmem:[#allocation14 + $0x660] sm:$0xff]
    %v2702 = vld [vmem:[#allocation14 + $0x668] sm:$0xff]
    %v2703 = vld [vmem:[#allocation14 + $0x670] sm:$0xff]
    %v2704 = vld [vmem:[#allocation14 + $0x678] sm:$0xff]
    %v2705 = vld [vmem:[#allocation14 + $0x680] sm:$0xff]
    %v2706 = vld [vmem:[#allocation14 + $0x688] sm:$0xff]
    %v2707 = vld [vmem:[#allocation14 + $0x690] sm:$0xff]
    %v2708 = vld [vmem:[#allocation14 + $0x698] sm:$0xff]
    %v2709 = vld [vmem:[#allocation14 + $0x6a0] sm:$0xff]
    %v2710 = vld [vmem:[#allocation14 + $0x6a8] sm:$0xff]
    %v2711 = vld [vmem:[#allocation14 + $0x6b0] sm:$0xff]
    %v2712 = vld [vmem:[#allocation14 + $0x6b8] sm:$0xff]
    %v2713 = vld [vmem:[#allocation14 + $0x6c0] sm:$0xff]
    %v2714 = vld [vmem:[#allocation14 + $0x6c8] sm:$0xff]
    %v2715 = vld [vmem:[#allocation14 + $0x6d0] sm:$0xff]
    %v2716 = vld [vmem:[#allocation14 + $0x6d8] sm:$0xff]
    %v2717 = vld [vmem:[#allocation14 + $0x6e0] sm:$0xff]
    %v2718 = vld [vmem:[#allocation14 + $0x6e8] sm:$0xff]
    %v2719 = vld [vmem:[#allocation14 + $0x6f0] sm:$0xff]
    %v2720 = vld [vmem:[#allocation14 + $0x6f8] sm:$0xff]
    %v2721 = vld [vmem:[#allocation14 + $0x700] sm:$0xff]
    %v2722 = vld [vmem:[#allocation14 + $0x708] sm:$0xff]
    %v2723 = vld [vmem:[#allocation14 + $0x710] sm:$0xff]
    %v2724 = vld [vmem:[#allocation14 + $0x718] sm:$0xff]
    %v2725 = vld [vmem:[#allocation14 + $0x720] sm:$0xff]
    %v2726 = vld [vmem:[#allocation14 + $0x728] sm:$0xff]
    %v2727 = vld [vmem:[#allocation14 + $0x730] sm:$0xff]
    %v2728 = vld [vmem:[#allocation14 + $0x738] sm:$0xff]
    %v2729 = vld [vmem:[#allocation14 + $0x740] sm:$0xff]
    %v2730 = vld [vmem:[#allocation14 + $0x748] sm:$0xff]
    %v2731 = vld [vmem:[#allocation14 + $0x750] sm:$0xff]
    %v2732 = vld [vmem:[#allocation14 + $0x758] sm:$0xff]
    %v2733 = vld [vmem:[#allocation14 + $0x760] sm:$0xff]
    %v2734 = vld [vmem:[#allocation14 + $0x768] sm:$0xff]
    %v2735 = vld [vmem:[#allocation14 + $0x770] sm:$0xff]
    %v2736 = vld [vmem:[#allocation14 + $0x778] sm:$0xff]
    %v2737 = vld [vmem:[#allocation14 + $0x780] sm:$0xff]
    %v2738 = vld [vmem:[#allocation14 + $0x788] sm:$0xff]
    %v2739 = vld [vmem:[#allocation14 + $0x790] sm:$0xff]
    %v2740 = vld [vmem:[#allocation14 + $0x798] sm:$0xff]
    %v2741 = vld [vmem:[#allocation14 + $0x7a0] sm:$0xff]
    %v2742 = vld [vmem:[#allocation14 + $0x7a8] sm:$0xff]
    %v2743 = vld [vmem:[#allocation14 + $0x7b0] sm:$0xff]
    %v2744 = vld [vmem:[#allocation14 + $0x7b8] sm:$0xff]
    %v2745 = vld [vmem:[#allocation14 + $0x7c0] sm:$0xff]
    %v2746 = vld [vmem:[#allocation14 + $0x7c8] sm:$0xff]
    %v2747 = vld [vmem:[#allocation14 + $0x7d0] sm:$0xff]
    %v2748 = vld [vmem:[#allocation14 + $0x7d8] sm:$0xff]
    %v2749 = vld [vmem:[#allocation14 + $0x7e0] sm:$0xff]
    %v2750 = vld [vmem:[#allocation14 + $0x7e8] sm:$0xff]
    %v2751 = vld [vmem:[#allocation14 + $0x7f0] sm:$0xff]
    %v2752 = vld [vmem:[#allocation14 + $0x7f8] sm:$0xff]
    %v2753 = vld [vmem:[#allocation14 + $0x800] sm:$0xff]
    %v2754 = vld [vmem:[#allocation14 + $0x808] sm:$0xff]
    %v2755 = vld [vmem:[#allocation14 + $0x810] sm:$0xff]
    %v2756 = vld [vmem:[#allocation14 + $0x818] sm:$0xff]
    %v2757 = vld [vmem:[#allocation14 + $0x820] sm:$0xff]
    %v2758 = vld [vmem:[#allocation14 + $0x828] sm:$0xff]
    %v2759 = vld [vmem:[#allocation14 + $0x830] sm:$0xff]
    %v2760 = vld [vmem:[#allocation14 + $0x838] sm:$0xff]
    %v2761 = vld [vmem:[#allocation14 + $0x840] sm:$0xff]
    %v2762 = vld [vmem:[#allocation14 + $0x848] sm:$0xff]
    %v2763 = vld [vmem:[#allocation14 + $0x850] sm:$0xff]
    %v2764 = vld [vmem:[#allocation14 + $0x858] sm:$0xff]
    %v2765 = vld [vmem:[#allocation14 + $0x860] sm:$0xff]
    %v2766 = vld [vmem:[#allocation14 + $0x868] sm:$0xff]
    %v2767 = vld [vmem:[#allocation14 + $0x870] sm:$0xff]
    %v2768 = vld [vmem:[#allocation14 + $0x878] sm:$0xff]
    %v2769 = vld [vmem:[#allocation14 + $0x880] sm:$0xff]
    %v2770 = vld [vmem:[#allocation14 + $0x888] sm:$0xff]
    %v2771 = vld [vmem:[#allocation14 + $0x890] sm:$0xff]
    %v2772 = vld [vmem:[#allocation14 + $0x898] sm:$0xff]
    %v2773 = vld [vmem:[#allocation14 + $0x8a0] sm:$0xff]
    %v2774 = vld [vmem:[#allocation14 + $0x8a8] sm:$0xff]
    %v2775 = vld [vmem:[#allocation14 + $0x8b0] sm:$0xff]
    %v2776 = vld [vmem:[#allocation14 + $0x8b8] sm:$0xff]
    %v2777 = vld [vmem:[#allocation14 + $0x8c0] sm:$0xff]
    %v2778 = vld [vmem:[#allocation14 + $0x8c8] sm:$0xff]
    %v2779 = vld [vmem:[#allocation14 + $0x8d0] sm:$0xff]
    %v2780 = vld [vmem:[#allocation14 + $0x8d8] sm:$0xff]
    %v2781 = vld [vmem:[#allocation14 + $0x8e0] sm:$0xff]
    %v2782 = vld [vmem:[#allocation14 + $0x8e8] sm:$0xff]
    %v2783 = vld [vmem:[#allocation14 + $0x8f0] sm:$0xff]
    %v2784 = vld [vmem:[#allocation14 + $0x8f8] sm:$0xff]
    %v2785 = vld [vmem:[#allocation14 + $0x900] sm:$0xff]
    %v2786 = vld [vmem:[#allocation14 + $0x908] sm:$0xff]
    %v2787 = vld [vmem:[#allocation14 + $0x910] sm:$0xff]
    %v2788 = vld [vmem:[#allocation14 + $0x918] sm:$0xff]
    %v2789 = vld [vmem:[#allocation14 + $0x920] sm:$0xff]
    %v2790 = vld [vmem:[#allocation14 + $0x928] sm:$0xff]
    %v2791 = vld [vmem:[#allocation14 + $0x930] sm:$0xff]
    %v2792 = vld [vmem:[#allocation14 + $0x938] sm:$0xff]
    %v2793 = vld [vmem:[#allocation14 + $0x940] sm:$0xff]
    %v2794 = vld [vmem:[#allocation14 + $0x948] sm:$0xff]
    %v2795 = vld [vmem:[#allocation14 + $0x950] sm:$0xff]
    %v2796 = vld [vmem:[#allocation14 + $0x958] sm:$0xff]
    %v2797 = vld [vmem:[#allocation14 + $0x960] sm:$0xff]
    %v2798 = vld [vmem:[#allocation14 + $0x968] sm:$0xff]
    %v2799 = vld [vmem:[#allocation14 + $0x970] sm:$0xff]
    %v2800 = vld [vmem:[#allocation14 + $0x978] sm:$0xff]
    %v2801 = vld [vmem:[#allocation14 + $0x980] sm:$0xff]
    %v2802 = vld [vmem:[#allocation14 + $0x988] sm:$0xff]
    %v2803 = vld [vmem:[#allocation14 + $0x990] sm:$0xff]
    %v2804 = vld [vmem:[#allocation14 + $0x998] sm:$0xff]
    %v2805 = vld [vmem:[#allocation14 + $0x9a0] sm:$0xff]
    %v2806 = vld [vmem:[#allocation14 + $0x9a8] sm:$0xff]
    %v2807 = vld [vmem:[#allocation14 + $0x9b0] sm:$0xff]
    %v2808 = vld [vmem:[#allocation14 + $0x9b8] sm:$0xff]
    %v2809 = vld [vmem:[#allocation14 + $0x9c0] sm:$0xff]
    %v2810 = vld [vmem:[#allocation14 + $0x9c8] sm:$0xff]
    %v2811 = vld [vmem:[#allocation14 + $0x9d0] sm:$0xff]
    %v2812 = vld [vmem:[#allocation14 + $0x9d8] sm:$0xff]
    %v2813 = vld [vmem:[#allocation14 + $0x9e0] sm:$0xff]
    %v2814 = vld [vmem:[#allocation14 + $0x9e8] sm:$0xff]
    %v2815 = vld [vmem:[#allocation14 + $0x9f0] sm:$0xff]
    %v2816 = vld [vmem:[#allocation14 + $0x9f8] sm:$0xff]
    %v2817 = vld [vmem:[#allocation14 + $0xa00] sm:$0xff]
    %v2818 = vld [vmem:[#allocation14 + $0xa08] sm:$0xff]
    %v2819 = vld [vmem:[#allocation14 + $0xa10] sm:$0xff]
    %v2820 = vld [vmem:[#allocation14 + $0xa18] sm:$0xff]
    %v2821 = vld [vmem:[#allocation14 + $0xa20] sm:$0xff]
    %v2822 = vld [vmem:[#allocation14 + $0xa28] sm:$0xff]
    %v2823 = vld [vmem:[#allocation14 + $0xa30] sm:$0xff]
    %v2824 = vld [vmem:[#allocation14 + $0xa38] sm:$0xff]
    %v2825 = vld [vmem:[#allocation14 + $0xa40] sm:$0xff]
    %v2826 = vld [vmem:[#allocation14 + $0xa48] sm:$0xff]
    %v2827 = vld [vmem:[#allocation14 + $0xa50] sm:$0xff]
    %v2828 = vld [vmem:[#allocation14 + $0xa58] sm:$0xff]
    %v2829 = vld [vmem:[#allocation14 + $0xa60] sm:$0xff]
    %v2830 = vld [vmem:[#allocation14 + $0xa68] sm:$0xff]
    %v2831 = vld [vmem:[#allocation14 + $0xa70] sm:$0xff]
    %v2832 = vld [vmem:[#allocation14 + $0xa78] sm:$0xff]
    %v2833 = vld [vmem:[#allocation14 + $0xa80] sm:$0xff]
    %v2834 = vld [vmem:[#allocation14 + $0xa88] sm:$0xff]
    %v2835 = vld [vmem:[#allocation14 + $0xa90] sm:$0xff]
    %v2836 = vld [vmem:[#allocation14 + $0xa98] sm:$0xff]
    %v2837 = vld [vmem:[#allocation14 + $0xaa0] sm:$0xff]
    %v2838 = vld [vmem:[#allocation14 + $0xaa8] sm:$0xff]
    %v2839 = vld [vmem:[#allocation14 + $0xab0] sm:$0xff]
    %v2840 = vld [vmem:[#allocation14 + $0xab8] sm:$0xff]
    %v2841 = vld [vmem:[#allocation14 + $0xac0] sm:$0xff]
    %v2842 = vld [vmem:[#allocation14 + $0xac8] sm:$0xff]
    %v2843 = vld [vmem:[#allocation14 + $0xad0] sm:$0xff]
    %v2844 = vld [vmem:[#allocation14 + $0xad8] sm:$0xff]
    %v2845 = vld [vmem:[#allocation14 + $0xae0] sm:$0xff]
    %v2846 = vld [vmem:[#allocation14 + $0xae8] sm:$0xff]
    %v2847 = vld [vmem:[#allocation14 + $0xaf0] sm:$0xff]
    %v2848 = vld [vmem:[#allocation14 + $0xaf8] sm:$0xff]
    %v2849 = vld [vmem:[#allocation14 + $0xb00] sm:$0xff]
    %v2850 = vld [vmem:[#allocation14 + $0xb08] sm:$0xff]
    %v2851 = vld [vmem:[#allocation14 + $0xb10] sm:$0xff]
    %v2852 = vld [vmem:[#allocation14 + $0xb18] sm:$0xff]
    %v2853 = vld [vmem:[#allocation14 + $0xb20] sm:$0xff]
    %v2854 = vld [vmem:[#allocation14 + $0xb28] sm:$0xff]
    %v2855 = vld [vmem:[#allocation14 + $0xb30] sm:$0xff]
    %v2856 = vld [vmem:[#allocation14 + $0xb38] sm:$0xff]
    %v2857 = vld [vmem:[#allocation14 + $0xb40] sm:$0xff]
    %v2858 = vld [vmem:[#allocation14 + $0xb48] sm:$0xff]
    %v2859 = vld [vmem:[#allocation14 + $0xb50] sm:$0xff]
    %v2860 = vld [vmem:[#allocation14 + $0xb58] sm:$0xff]
    %v2861 = vld [vmem:[#allocation14 + $0xb60] sm:$0xff]
    %v2862 = vld [vmem:[#allocation14 + $0xb68] sm:$0xff]
    %v2863 = vld [vmem:[#allocation14 + $0xb70] sm:$0xff]
    %v2864 = vld [vmem:[#allocation14 + $0xb78] sm:$0xff]
    %v2865 = vld [vmem:[#allocation14 + $0xb80] sm:$0xff]
    %v2866 = vld [vmem:[#allocation14 + $0xb88] sm:$0xff]
    %v2867 = vld [vmem:[#allocation14 + $0xb90] sm:$0xff]
    %v2868 = vld [vmem:[#allocation14 + $0xb98] sm:$0xff]
    %v2869 = vld [vmem:[#allocation14 + $0xba0] sm:$0xff]
    %v2870 = vld [vmem:[#allocation14 + $0xba8] sm:$0xff]
    %v2871 = vld [vmem:[#allocation14 + $0xbb0] sm:$0xff]
    %v2872 = vld [vmem:[#allocation14 + $0xbb8] sm:$0xff]
    %v2873 = vld [vmem:[#allocation14 + $0xbc0] sm:$0xff]
    %v2874 = vld [vmem:[#allocation14 + $0xbc8] sm:$0xff]
    %v2875 = vld [vmem:[#allocation14 + $0xbd0] sm:$0xff]
    %v2876 = vld [vmem:[#allocation14 + $0xbd8] sm:$0xff]
    %v2877 = vld [vmem:[#allocation14 + $0xbe0] sm:$0xff]
    %v2878 = vld [vmem:[#allocation14 + $0xbe8] sm:$0xff]
    %v2879 = vld [vmem:[#allocation14 + $0xbf0] sm:$0xff]
    %v2880 = vld [vmem:[#allocation14 + $0xbf8] sm:$0xff]
    %v2881 = vld [vmem:[#allocation16] sm:$0xf]
    %v2883 = vlaneseq
    %v2884 = vshrl.u32 %v2883, 7
    %v2885 = vsub.s32 0, %v2884
    %v2886 = vrot.slane %v2881, %v2885
    %v2887 = vlaneseq
    %v2888 = vshrl.u32 %v2887, 7
    %v2889 = vsub.s32 1, %v2888
    %v2890 = vrot.slane %v2881, %v2889
    %v2891 = vlaneseq
    %v2892 = vshrl.u32 %v2891, 7
    %v2893 = vsub.s32 2, %v2892
    %v2894 = vrot.slane %v2881, %v2893
    %v2895 = vlaneseq
    %v2896 = vshrl.u32 %v2895, 7
    %v2897 = vsub.s32 3, %v2896
    %v2898 = vrot.slane %v2881, %v2897
    %v3287 = vunpack.c.l.b16 %v2497
    %v3288 = vunpack.c.h.b16 %v2497
    %v3289 = vunpack.c.l.b16 %v2498
    %v3290 = vunpack.c.h.b16 %v2498
    %v3291 = vunpack.c.l.b16 %v2499
    %v3292 = vunpack.c.h.b16 %v2499
    %v3293 = vunpack.c.l.b16 %v2500
    %v3294 = vunpack.c.h.b16 %v2500
    %v3295 = vunpack.c.l.b16 %v2501
    %v3296 = vunpack.c.h.b16 %v2501
    %v3297 = vunpack.c.l.b16 %v2502
    %v3298 = vunpack.c.h.b16 %v2502
    %v3299 = vunpack.c.l.b16 %v2503
    %v3300 = vunpack.c.h.b16 %v2503
    %v3301 = vunpack.c.l.b16 %v2504
    %v3302 = vunpack.c.h.b16 %v2504
    %v3303 = vunpack.c.l.b16 %v2505
    %v3304 = vunpack.c.h.b16 %v2505
    %v3305 = vunpack.c.l.b16 %v2506
    %v3306 = vunpack.c.h.b16 %v2506
    %v3307 = vunpack.c.l.b16 %v2507
    %v3308 = vunpack.c.h.b16 %v2507
    %v3309 = vunpack.c.l.b16 %v2508
    %v3310 = vunpack.c.h.b16 %v2508
    %v3311 = vunpack.c.l.b16 %v2509
    %v3312 = vunpack.c.h.b16 %v2509
    %v3313 = vunpack.c.l.b16 %v2510
    %v3314 = vunpack.c.h.b16 %v2510
    %v3315 = vunpack.c.l.b16 %v2511
    %v3316 = vunpack.c.h.b16 %v2511
    %v3317 = vunpack.c.l.b16 %v2512
    %v3318 = vunpack.c.h.b16 %v2512
    %v3319 = vunpack.c.l.b16 %v2513
    %v3320 = vunpack.c.h.b16 %v2513
    %v3321 = vunpack.c.l.b16 %v2514
    %v3322 = vunpack.c.h.b16 %v2514
    %v3323 = vunpack.c.l.b16 %v2515
    %v3324 = vunpack.c.h.b16 %v2515
    %v3325 = vunpack.c.l.b16 %v2516
    %v3326 = vunpack.c.h.b16 %v2516
    %v3327 = vunpack.c.l.b16 %v2517
    %v3328 = vunpack.c.h.b16 %v2517
    %v3329 = vunpack.c.l.b16 %v2518
    %v3330 = vunpack.c.h.b16 %v2518
    %v3331 = vunpack.c.l.b16 %v2519
    %v3332 = vunpack.c.h.b16 %v2519
    %v3333 = vunpack.c.l.b16 %v2520
    %v3334 = vunpack.c.h.b16 %v2520
    %v3335 = vunpack.c.l.b16 %v2521
    %v3336 = vunpack.c.h.b16 %v2521
    %v3337 = vunpack.c.l.b16 %v2522
    %v3338 = vunpack.c.h.b16 %v2522
    %v3339 = vunpack.c.l.b16 %v2523
    %v3340 = vunpack.c.h.b16 %v2523
    %v3341 = vunpack.c.l.b16 %v2524
    %v3342 = vunpack.c.h.b16 %v2524
    %v3343 = vunpack.c.l.b16 %v2525
    %v3344 = vunpack.c.h.b16 %v2525
    %v3345 = vunpack.c.l.b16 %v2526
    %v3346 = vunpack.c.h.b16 %v2526
    %v3347 = vunpack.c.l.b16 %v2527
    %v3348 = vunpack.c.h.b16 %v2527
    %v3349 = vunpack.c.l.b16 %v2528
    %v3350 = vunpack.c.h.b16 %v2528
    %v3351 = vunpack.c.l.b16 %v2529
    %v3352 = vunpack.c.h.b16 %v2529
    %v3353 = vunpack.c.l.b16 %v2530
    %v3354 = vunpack.c.h.b16 %v2530
    %v3355 = vunpack.c.l.b16 %v2531
    %v3356 = vunpack.c.h.b16 %v2531
    %v3357 = vunpack.c.l.b16 %v2532
    %v3358 = vunpack.c.h.b16 %v2532
    %v3359 = vunpack.c.l.b16 %v2533
    %v3360 = vunpack.c.h.b16 %v2533
    %v3361 = vunpack.c.l.b16 %v2534
    %v3362 = vunpack.c.h.b16 %v2534
    %v3363 = vunpack.c.l.b16 %v2535
    %v3364 = vunpack.c.h.b16 %v2535
    %v3365 = vunpack.c.l.b16 %v2536
    %v3366 = vunpack.c.h.b16 %v2536
    %v3367 = vunpack.c.l.b16 %v2537
    %v3368 = vunpack.c.h.b16 %v2537
    %v3369 = vunpack.c.l.b16 %v2538
    %v3370 = vunpack.c.h.b16 %v2538
    %v3371 = vunpack.c.l.b16 %v2539
    %v3372 = vunpack.c.h.b16 %v2539
    %v3373 = vunpack.c.l.b16 %v2540
    %v3374 = vunpack.c.h.b16 %v2540
    %v3375 = vunpack.c.l.b16 %v2541
    %v3376 = vunpack.c.h.b16 %v2541
    %v3377 = vunpack.c.l.b16 %v2542
    %v3378 = vunpack.c.h.b16 %v2542
    %v3379 = vunpack.c.l.b16 %v2543
    %v3380 = vunpack.c.h.b16 %v2543
    %v3381 = vunpack.c.l.b16 %v2544
    %v3382 = vunpack.c.h.b16 %v2544
    %v3383 = vunpack.c.l.b16 %v2545
    %v3384 = vunpack.c.h.b16 %v2545
    %v3385 = vunpack.c.l.b16 %v2546
    %v3386 = vunpack.c.h.b16 %v2546
    %v3387 = vunpack.c.l.b16 %v2547
    %v3388 = vunpack.c.h.b16 %v2547
    %v3389 = vunpack.c.l.b16 %v2548
    %v3390 = vunpack.c.h.b16 %v2548
    %v3391 = vunpack.c.l.b16 %v2549
    %v3392 = vunpack.c.h.b16 %v2549
    %v3393 = vunpack.c.l.b16 %v2550
    %v3394 = vunpack.c.h.b16 %v2550
    %v3395 = vunpack.c.l.b16 %v2551
    %v3396 = vunpack.c.h.b16 %v2551
    %v3397 = vunpack.c.l.b16 %v2552
    %v3398 = vunpack.c.h.b16 %v2552
    %v3399 = vunpack.c.l.b16 %v2553
    %v3400 = vunpack.c.h.b16 %v2553
    %v3401 = vunpack.c.l.b16 %v2554
    %v3402 = vunpack.c.h.b16 %v2554
    %v3403 = vunpack.c.l.b16 %v2555
    %v3404 = vunpack.c.h.b16 %v2555
    %v3405 = vunpack.c.l.b16 %v2556
    %v3406 = vunpack.c.h.b16 %v2556
    %v3407 = vunpack.c.l.b16 %v2557
    %v3408 = vunpack.c.h.b16 %v2557
    %v3409 = vunpack.c.l.b16 %v2558
    %v3410 = vunpack.c.h.b16 %v2558
    %v3411 = vunpack.c.l.b16 %v2559
    %v3412 = vunpack.c.h.b16 %v2559
    %v3413 = vunpack.c.l.b16 %v2560
    %v3414 = vunpack.c.h.b16 %v2560
    %v3415 = vunpack.c.l.b16 %v2561
    %v3416 = vunpack.c.h.b16 %v2561
    %v3417 = vunpack.c.l.b16 %v2562
    %v3418 = vunpack.c.h.b16 %v2562
    %v3419 = vunpack.c.l.b16 %v2563
    %v3420 = vunpack.c.h.b16 %v2563
    %v3421 = vunpack.c.l.b16 %v2564
    %v3422 = vunpack.c.h.b16 %v2564
    %v3423 = vunpack.c.l.b16 %v2565
    %v3424 = vunpack.c.h.b16 %v2565
    %v3425 = vunpack.c.l.b16 %v2566
    %v3426 = vunpack.c.h.b16 %v2566
    %v3427 = vunpack.c.l.b16 %v2567
    %v3428 = vunpack.c.h.b16 %v2567
    %v3429 = vunpack.c.l.b16 %v2568
    %v3430 = vunpack.c.h.b16 %v2568
    %v3431 = vunpack.c.l.b16 %v2569
    %v3432 = vunpack.c.h.b16 %v2569
    %v3433 = vunpack.c.l.b16 %v2570
    %v3434 = vunpack.c.h.b16 %v2570
    %v3435 = vunpack.c.l.b16 %v2571
    %v3436 = vunpack.c.h.b16 %v2571
    %v3437 = vunpack.c.l.b16 %v2572
    %v3438 = vunpack.c.h.b16 %v2572
    %v3439 = vunpack.c.l.b16 %v2573
    %v3440 = vunpack.c.h.b16 %v2573
    %v3441 = vunpack.c.l.b16 %v2574
    %v3442 = vunpack.c.h.b16 %v2574
    %v3443 = vunpack.c.l.b16 %v2575
    %v3444 = vunpack.c.h.b16 %v2575
    %v3445 = vunpack.c.l.b16 %v2576
    %v3446 = vunpack.c.h.b16 %v2576
    %v3447 = vunpack.c.l.b16 %v2577
    %v3448 = vunpack.c.h.b16 %v2577
    %v3449 = vunpack.c.l.b16 %v2578
    %v3450 = vunpack.c.h.b16 %v2578
    %v3451 = vunpack.c.l.b16 %v2579
    %v3452 = vunpack.c.h.b16 %v2579
    %v3453 = vunpack.c.l.b16 %v2580
    %v3454 = vunpack.c.h.b16 %v2580
    %v3455 = vunpack.c.l.b16 %v2581
    %v3456 = vunpack.c.h.b16 %v2581
    %v3457 = vunpack.c.l.b16 %v2582
    %v3458 = vunpack.c.h.b16 %v2582
    %v3459 = vunpack.c.l.b16 %v2583
    %v3460 = vunpack.c.h.b16 %v2583
    %v3461 = vunpack.c.l.b16 %v2584
    %v3462 = vunpack.c.h.b16 %v2584
    %v3463 = vunpack.c.l.b16 %v2585
    %v3464 = vunpack.c.h.b16 %v2585
    %v3465 = vunpack.c.l.b16 %v2586
    %v3466 = vunpack.c.h.b16 %v2586
    %v3467 = vunpack.c.l.b16 %v2587
    %v3468 = vunpack.c.h.b16 %v2587
    %v3469 = vunpack.c.l.b16 %v2588
    %v3470 = vunpack.c.h.b16 %v2588
    %v3471 = vunpack.c.l.b16 %v2589
    %v3472 = vunpack.c.h.b16 %v2589
    %v3473 = vunpack.c.l.b16 %v2590
    %v3474 = vunpack.c.h.b16 %v2590
    %v3475 = vunpack.c.l.b16 %v2591
    %v3476 = vunpack.c.h.b16 %v2591
    %v3477 = vunpack.c.l.b16 %v2592
    %v3478 = vunpack.c.h.b16 %v2592
    %v3479 = vunpack.c.l.b16 %v2593
    %v3480 = vunpack.c.h.b16 %v2593
    %v3481 = vunpack.c.l.b16 %v2594
    %v3482 = vunpack.c.h.b16 %v2594
    %v3483 = vunpack.c.l.b16 %v2595
    %v3484 = vunpack.c.h.b16 %v2595
    %v3485 = vunpack.c.l.b16 %v2596
    %v3486 = vunpack.c.h.b16 %v2596
    %v3487 = vunpack.c.l.b16 %v2597
    %v3488 = vunpack.c.h.b16 %v2597
    %v3489 = vunpack.c.l.b16 %v2598
    %v3490 = vunpack.c.h.b16 %v2598
    %v3491 = vunpack.c.l.b16 %v2599
    %v3492 = vunpack.c.h.b16 %v2599
    %v3493 = vunpack.c.l.b16 %v2600
    %v3494 = vunpack.c.h.b16 %v2600
    %v3495 = vunpack.c.l.b16 %v2601
    %v3496 = vunpack.c.h.b16 %v2601
    %v3497 = vunpack.c.l.b16 %v2602
    %v3498 = vunpack.c.h.b16 %v2602
    %v3499 = vunpack.c.l.b16 %v2603
    %v3500 = vunpack.c.h.b16 %v2603
    %v3501 = vunpack.c.l.b16 %v2604
    %v3502 = vunpack.c.h.b16 %v2604
    %v3503 = vunpack.c.l.b16 %v2605
    %v3504 = vunpack.c.h.b16 %v2605
    %v3505 = vunpack.c.l.b16 %v2606
    %v3506 = vunpack.c.h.b16 %v2606
    %v3507 = vunpack.c.l.b16 %v2607
    %v3508 = vunpack.c.h.b16 %v2607
    %v3509 = vunpack.c.l.b16 %v2608
    %v3510 = vunpack.c.h.b16 %v2608
    %v3511 = vunpack.c.l.b16 %v2609
    %v3512 = vunpack.c.h.b16 %v2609
    %v3513 = vunpack.c.l.b16 %v2610
    %v3514 = vunpack.c.h.b16 %v2610
    %v3515 = vunpack.c.l.b16 %v2611
    %v3516 = vunpack.c.h.b16 %v2611
    %v3517 = vunpack.c.l.b16 %v2612
    %v3518 = vunpack.c.h.b16 %v2612
    %v3519 = vunpack.c.l.b16 %v2613
    %v3520 = vunpack.c.h.b16 %v2613
    %v3521 = vunpack.c.l.b16 %v2614
    %v3522 = vunpack.c.h.b16 %v2614
    %v3523 = vunpack.c.l.b16 %v2615
    %v3524 = vunpack.c.h.b16 %v2615
    %v3525 = vunpack.c.l.b16 %v2616
    %v3526 = vunpack.c.h.b16 %v2616
    %v3527 = vunpack.c.l.b16 %v2617
    %v3528 = vunpack.c.h.b16 %v2617
    %v3529 = vunpack.c.l.b16 %v2618
    %v3530 = vunpack.c.h.b16 %v2618
    %v3531 = vunpack.c.l.b16 %v2619
    %v3532 = vunpack.c.h.b16 %v2619
    %v3533 = vunpack.c.l.b16 %v2620
    %v3534 = vunpack.c.h.b16 %v2620
    %v3535 = vunpack.c.l.b16 %v2621
    %v3536 = vunpack.c.h.b16 %v2621
    %v3537 = vunpack.c.l.b16 %v2622
    %v3538 = vunpack.c.h.b16 %v2622
    %v3539 = vunpack.c.l.b16 %v2623
    %v3540 = vunpack.c.h.b16 %v2623
    %v3541 = vunpack.c.l.b16 %v2624
    %v3542 = vunpack.c.h.b16 %v2624
    %v3543 = vunpack.c.l.b16 %v2625
    %v3544 = vunpack.c.h.b16 %v2625
    %v3545 = vunpack.c.l.b16 %v2626
    %v3546 = vunpack.c.h.b16 %v2626
    %v3547 = vunpack.c.l.b16 %v2627
    %v3548 = vunpack.c.h.b16 %v2627
    %v3549 = vunpack.c.l.b16 %v2628
    %v3550 = vunpack.c.h.b16 %v2628
    %v3551 = vunpack.c.l.b16 %v2629
    %v3552 = vunpack.c.h.b16 %v2629
    %v3553 = vunpack.c.l.b16 %v2630
    %v3554 = vunpack.c.h.b16 %v2630
    %v3555 = vunpack.c.l.b16 %v2631
    %v3556 = vunpack.c.h.b16 %v2631
    %v3557 = vunpack.c.l.b16 %v2632
    %v3558 = vunpack.c.h.b16 %v2632
    %v3559 = vunpack.c.l.b16 %v2633
    %v3560 = vunpack.c.h.b16 %v2633
    %v3561 = vunpack.c.l.b16 %v2634
    %v3562 = vunpack.c.h.b16 %v2634
    %v3563 = vunpack.c.l.b16 %v2635
    %v3564 = vunpack.c.h.b16 %v2635
    %v3565 = vunpack.c.l.b16 %v2636
    %v3566 = vunpack.c.h.b16 %v2636
    %v3567 = vunpack.c.l.b16 %v2637
    %v3568 = vunpack.c.h.b16 %v2637
    %v3569 = vunpack.c.l.b16 %v2638
    %v3570 = vunpack.c.h.b16 %v2638
    %v3571 = vunpack.c.l.b16 %v2639
    %v3572 = vunpack.c.h.b16 %v2639
    %v3573 = vunpack.c.l.b16 %v2640
    %v3574 = vunpack.c.h.b16 %v2640
    %v3575 = vunpack.c.l.b16 %v2641
    %v3576 = vunpack.c.h.b16 %v2641
    %v3577 = vunpack.c.l.b16 %v2642
    %v3578 = vunpack.c.h.b16 %v2642
    %v3579 = vunpack.c.l.b16 %v2643
    %v3580 = vunpack.c.h.b16 %v2643
    %v3581 = vunpack.c.l.b16 %v2644
    %v3582 = vunpack.c.h.b16 %v2644
    %v3583 = vunpack.c.l.b16 %v2645
    %v3584 = vunpack.c.h.b16 %v2645
    %v3585 = vunpack.c.l.b16 %v2646
    %v3586 = vunpack.c.h.b16 %v2646
    %v3587 = vunpack.c.l.b16 %v2647
    %v3588 = vunpack.c.h.b16 %v2647
    %v3589 = vunpack.c.l.b16 %v2648
    %v3590 = vunpack.c.h.b16 %v2648
    %v3591 = vunpack.c.l.b16 %v2649
    %v3592 = vunpack.c.h.b16 %v2649
    %v3593 = vunpack.c.l.b16 %v2650
    %v3594 = vunpack.c.h.b16 %v2650
    %v3595 = vunpack.c.l.b16 %v2651
    %v3596 = vunpack.c.h.b16 %v2651
    %v3597 = vunpack.c.l.b16 %v2652
    %v3598 = vunpack.c.h.b16 %v2652
    %v3599 = vunpack.c.l.b16 %v2653
    %v3600 = vunpack.c.h.b16 %v2653
    %v3601 = vunpack.c.l.b16 %v2654
    %v3602 = vunpack.c.h.b16 %v2654
    %v3603 = vunpack.c.l.b16 %v2655
    %v3604 = vunpack.c.h.b16 %v2655
    %v3605 = vunpack.c.l.b16 %v2656
    %v3606 = vunpack.c.h.b16 %v2656
    %v3607 = vunpack.c.l.b16 %v2657
    %v3608 = vunpack.c.h.b16 %v2657
    %v3609 = vunpack.c.l.b16 %v2658
    %v3610 = vunpack.c.h.b16 %v2658
    %v3611 = vunpack.c.l.b16 %v2659
    %v3612 = vunpack.c.h.b16 %v2659
    %v3613 = vunpack.c.l.b16 %v2660
    %v3614 = vunpack.c.h.b16 %v2660
    %v3615 = vunpack.c.l.b16 %v2661
    %v3616 = vunpack.c.h.b16 %v2661
    %v3617 = vunpack.c.l.b16 %v2662
    %v3618 = vunpack.c.h.b16 %v2662
    %v3619 = vunpack.c.l.b16 %v2663
    %v3620 = vunpack.c.h.b16 %v2663
    %v3621 = vunpack.c.l.b16 %v2664
    %v3622 = vunpack.c.h.b16 %v2664
    %v3623 = vunpack.c.l.b16 %v2665
    %v3624 = vunpack.c.h.b16 %v2665
    %v3625 = vunpack.c.l.b16 %v2666
    %v3626 = vunpack.c.h.b16 %v2666
    %v3627 = vunpack.c.l.b16 %v2667
    %v3628 = vunpack.c.h.b16 %v2667
    %v3629 = vunpack.c.l.b16 %v2668
    %v3630 = vunpack.c.h.b16 %v2668
    %v3631 = vunpack.c.l.b16 %v2669
    %v3632 = vunpack.c.h.b16 %v2669
    %v3633 = vunpack.c.l.b16 %v2670
    %v3634 = vunpack.c.h.b16 %v2670
    %v3635 = vunpack.c.l.b16 %v2671
    %v3636 = vunpack.c.h.b16 %v2671
    %v3637 = vunpack.c.l.b16 %v2672
    %v3638 = vunpack.c.h.b16 %v2672
    %v3639 = vunpack.c.l.b16 %v2673
    %v3640 = vunpack.c.h.b16 %v2673
    %v3641 = vunpack.c.l.b16 %v2674
    %v3642 = vunpack.c.h.b16 %v2674
    %v3643 = vunpack.c.l.b16 %v2675
    %v3644 = vunpack.c.h.b16 %v2675
    %v3645 = vunpack.c.l.b16 %v2676
    %v3646 = vunpack.c.h.b16 %v2676
    %v3647 = vunpack.c.l.b16 %v2677
    %v3648 = vunpack.c.h.b16 %v2677
    %v3649 = vunpack.c.l.b16 %v2678
    %v3650 = vunpack.c.h.b16 %v2678
    %v3651 = vunpack.c.l.b16 %v2679
    %v3652 = vunpack.c.h.b16 %v2679
    %v3653 = vunpack.c.l.b16 %v2680
    %v3654 = vunpack.c.h.b16 %v2680
    %v3655 = vunpack.c.l.b16 %v2681
    %v3656 = vunpack.c.h.b16 %v2681
    %v3657 = vunpack.c.l.b16 %v2682
    %v3658 = vunpack.c.h.b16 %v2682
    %v3659 = vunpack.c.l.b16 %v2683
    %v3660 = vunpack.c.h.b16 %v2683
    %v3661 = vunpack.c.l.b16 %v2684
    %v3662 = vunpack.c.h.b16 %v2684
    %v3663 = vunpack.c.l.b16 %v2685
    %v3664 = vunpack.c.h.b16 %v2685
    %v3665 = vunpack.c.l.b16 %v2686
    %v3666 = vunpack.c.h.b16 %v2686
    %v3667 = vunpack.c.l.b16 %v2687
    %v3668 = vunpack.c.h.b16 %v2687
    %v3669 = vunpack.c.l.b16 %v2688
    %v3670 = vunpack.c.h.b16 %v2688
    %v3671 = vunpack.c.l.b16 %v2689
    %v3672 = vunpack.c.h.b16 %v2689
    %v3673 = vunpack.c.l.b16 %v2690
    %v3674 = vunpack.c.h.b16 %v2690
    %v3675 = vunpack.c.l.b16 %v2691
    %v3676 = vunpack.c.h.b16 %v2691
    %v3677 = vunpack.c.l.b16 %v2692
    %v3678 = vunpack.c.h.b16 %v2692
    %v3679 = vunpack.c.l.b16 %v2693
    %v3680 = vunpack.c.h.b16 %v2693
    %v3681 = vunpack.c.l.b16 %v2694
    %v3682 = vunpack.c.h.b16 %v2694
    %v3683 = vunpack.c.l.b16 %v2695
    %v3684 = vunpack.c.h.b16 %v2695
    %v3685 = vunpack.c.l.b16 %v2696
    %v3686 = vunpack.c.h.b16 %v2696
    %v3687 = vunpack.c.l.b16 %v2697
    %v3688 = vunpack.c.h.b16 %v2697
    %v3689 = vunpack.c.l.b16 %v2698
    %v3690 = vunpack.c.h.b16 %v2698
    %v3691 = vunpack.c.l.b16 %v2699
    %v3692 = vunpack.c.h.b16 %v2699
    %v3693 = vunpack.c.l.b16 %v2700
    %v3694 = vunpack.c.h.b16 %v2700
    %v3695 = vunpack.c.l.b16 %v2701
    %v3696 = vunpack.c.h.b16 %v2701
    %v3697 = vunpack.c.l.b16 %v2702
    %v3698 = vunpack.c.h.b16 %v2702
    %v3699 = vunpack.c.l.b16 %v2703
    %v3700 = vunpack.c.h.b16 %v2703
    %v3701 = vunpack.c.l.b16 %v2704
    %v3702 = vunpack.c.h.b16 %v2704
    %v3703 = vunpack.c.l.b16 %v2705
    %v3704 = vunpack.c.h.b16 %v2705
    %v3705 = vunpack.c.l.b16 %v2706
    %v3706 = vunpack.c.h.b16 %v2706
    %v3707 = vunpack.c.l.b16 %v2707
    %v3708 = vunpack.c.h.b16 %v2707
    %v3709 = vunpack.c.l.b16 %v2708
    %v3710 = vunpack.c.h.b16 %v2708
    %v3711 = vunpack.c.l.b16 %v2709
    %v3712 = vunpack.c.h.b16 %v2709
    %v3713 = vunpack.c.l.b16 %v2710
    %v3714 = vunpack.c.h.b16 %v2710
    %v3715 = vunpack.c.l.b16 %v2711
    %v3716 = vunpack.c.h.b16 %v2711
    %v3717 = vunpack.c.l.b16 %v2712
    %v3718 = vunpack.c.h.b16 %v2712
    %v3719 = vunpack.c.l.b16 %v2713
    %v3720 = vunpack.c.h.b16 %v2713
    %v3721 = vunpack.c.l.b16 %v2714
    %v3722 = vunpack.c.h.b16 %v2714
    %v3723 = vunpack.c.l.b16 %v2715
    %v3724 = vunpack.c.h.b16 %v2715
    %v3725 = vunpack.c.l.b16 %v2716
    %v3726 = vunpack.c.h.b16 %v2716
    %v3727 = vunpack.c.l.b16 %v2717
    %v3728 = vunpack.c.h.b16 %v2717
    %v3729 = vunpack.c.l.b16 %v2718
    %v3730 = vunpack.c.h.b16 %v2718
    %v3731 = vunpack.c.l.b16 %v2719
    %v3732 = vunpack.c.h.b16 %v2719
    %v3733 = vunpack.c.l.b16 %v2720
    %v3734 = vunpack.c.h.b16 %v2720
    %v3735 = vunpack.c.l.b16 %v2721
    %v3736 = vunpack.c.h.b16 %v2721
    %v3737 = vunpack.c.l.b16 %v2722
    %v3738 = vunpack.c.h.b16 %v2722
    %v3739 = vunpack.c.l.b16 %v2723
    %v3740 = vunpack.c.h.b16 %v2723
    %v3741 = vunpack.c.l.b16 %v2724
    %v3742 = vunpack.c.h.b16 %v2724
    %v3743 = vunpack.c.l.b16 %v2725
    %v3744 = vunpack.c.h.b16 %v2725
    %v3745 = vunpack.c.l.b16 %v2726
    %v3746 = vunpack.c.h.b16 %v2726
    %v3747 = vunpack.c.l.b16 %v2727
    %v3748 = vunpack.c.h.b16 %v2727
    %v3749 = vunpack.c.l.b16 %v2728
    %v3750 = vunpack.c.h.b16 %v2728
    %v3751 = vunpack.c.l.b16 %v2729
    %v3752 = vunpack.c.h.b16 %v2729
    %v3753 = vunpack.c.l.b16 %v2730
    %v3754 = vunpack.c.h.b16 %v2730
    %v3755 = vunpack.c.l.b16 %v2731
    %v3756 = vunpack.c.h.b16 %v2731
    %v3757 = vunpack.c.l.b16 %v2732
    %v3758 = vunpack.c.h.b16 %v2732
    %v3759 = vunpack.c.l.b16 %v2733
    %v3760 = vunpack.c.h.b16 %v2733
    %v3761 = vunpack.c.l.b16 %v2734
    %v3762 = vunpack.c.h.b16 %v2734
    %v3763 = vunpack.c.l.b16 %v2735
    %v3764 = vunpack.c.h.b16 %v2735
    %v3765 = vunpack.c.l.b16 %v2736
    %v3766 = vunpack.c.h.b16 %v2736
    %v3767 = vunpack.c.l.b16 %v2737
    %v3768 = vunpack.c.h.b16 %v2737
    %v3769 = vunpack.c.l.b16 %v2738
    %v3770 = vunpack.c.h.b16 %v2738
    %v3771 = vunpack.c.l.b16 %v2739
    %v3772 = vunpack.c.h.b16 %v2739
    %v3773 = vunpack.c.l.b16 %v2740
    %v3774 = vunpack.c.h.b16 %v2740
    %v3775 = vunpack.c.l.b16 %v2741
    %v3776 = vunpack.c.h.b16 %v2741
    %v3777 = vunpack.c.l.b16 %v2742
    %v3778 = vunpack.c.h.b16 %v2742
    %v3779 = vunpack.c.l.b16 %v2743
    %v3780 = vunpack.c.h.b16 %v2743
    %v3781 = vunpack.c.l.b16 %v2744
    %v3782 = vunpack.c.h.b16 %v2744
    %v3783 = vunpack.c.l.b16 %v2745
    %v3784 = vunpack.c.h.b16 %v2745
    %v3785 = vunpack.c.l.b16 %v2746
    %v3786 = vunpack.c.h.b16 %v2746
    %v3787 = vunpack.c.l.b16 %v2747
    %v3788 = vunpack.c.h.b16 %v2747
    %v3789 = vunpack.c.l.b16 %v2748
    %v3790 = vunpack.c.h.b16 %v2748
    %v3791 = vunpack.c.l.b16 %v2749
    %v3792 = vunpack.c.h.b16 %v2749
    %v3793 = vunpack.c.l.b16 %v2750
    %v3794 = vunpack.c.h.b16 %v2750
    %v3795 = vunpack.c.l.b16 %v2751
    %v3796 = vunpack.c.h.b16 %v2751
    %v3797 = vunpack.c.l.b16 %v2752
    %v3798 = vunpack.c.h.b16 %v2752
    %v3799 = vunpack.c.l.b16 %v2753
    %v3800 = vunpack.c.h.b16 %v2753
    %v3801 = vunpack.c.l.b16 %v2754
    %v3802 = vunpack.c.h.b16 %v2754
    %v3803 = vunpack.c.l.b16 %v2755
    %v3804 = vunpack.c.h.b16 %v2755
    %v3805 = vunpack.c.l.b16 %v2756
    %v3806 = vunpack.c.h.b16 %v2756
    %v3807 = vunpack.c.l.b16 %v2757
    %v3808 = vunpack.c.h.b16 %v2757
    %v3809 = vunpack.c.l.b16 %v2758
    %v3810 = vunpack.c.h.b16 %v2758
    %v3811 = vunpack.c.l.b16 %v2759
    %v3812 = vunpack.c.h.b16 %v2759
    %v3813 = vunpack.c.l.b16 %v2760
    %v3814 = vunpack.c.h.b16 %v2760
    %v3815 = vunpack.c.l.b16 %v2761
    %v3816 = vunpack.c.h.b16 %v2761
    %v3817 = vunpack.c.l.b16 %v2762
    %v3818 = vunpack.c.h.b16 %v2762
    %v3819 = vunpack.c.l.b16 %v2763
    %v3820 = vunpack.c.h.b16 %v2763
    %v3821 = vunpack.c.l.b16 %v2764
    %v3822 = vunpack.c.h.b16 %v2764
    %v3823 = vunpack.c.l.b16 %v2765
    %v3824 = vunpack.c.h.b16 %v2765
    %v3825 = vunpack.c.l.b16 %v2766
    %v3826 = vunpack.c.h.b16 %v2766
    %v3827 = vunpack.c.l.b16 %v2767
    %v3828 = vunpack.c.h.b16 %v2767
    %v3829 = vunpack.c.l.b16 %v2768
    %v3830 = vunpack.c.h.b16 %v2768
    %v3831 = vunpack.c.l.b16 %v2769
    %v3832 = vunpack.c.h.b16 %v2769
    %v3833 = vunpack.c.l.b16 %v2770
    %v3834 = vunpack.c.h.b16 %v2770
    %v3835 = vunpack.c.l.b16 %v2771
    %v3836 = vunpack.c.h.b16 %v2771
    %v3837 = vunpack.c.l.b16 %v2772
    %v3838 = vunpack.c.h.b16 %v2772
    %v3839 = vunpack.c.l.b16 %v2773
    %v3840 = vunpack.c.h.b16 %v2773
    %v3841 = vunpack.c.l.b16 %v2774
    %v3842 = vunpack.c.h.b16 %v2774
    %v3843 = vunpack.c.l.b16 %v2775
    %v3844 = vunpack.c.h.b16 %v2775
    %v3845 = vunpack.c.l.b16 %v2776
    %v3846 = vunpack.c.h.b16 %v2776
    %v3847 = vunpack.c.l.b16 %v2777
    %v3848 = vunpack.c.h.b16 %v2777
    %v3849 = vunpack.c.l.b16 %v2778
    %v3850 = vunpack.c.h.b16 %v2778
    %v3851 = vunpack.c.l.b16 %v2779
    %v3852 = vunpack.c.h.b16 %v2779
    %v3853 = vunpack.c.l.b16 %v2780
    %v3854 = vunpack.c.h.b16 %v2780
    %v3855 = vunpack.c.l.b16 %v2781
    %v3856 = vunpack.c.h.b16 %v2781
    %v3857 = vunpack.c.l.b16 %v2782
    %v3858 = vunpack.c.h.b16 %v2782
    %v3859 = vunpack.c.l.b16 %v2783
    %v3860 = vunpack.c.h.b16 %v2783
    %v3861 = vunpack.c.l.b16 %v2784
    %v3862 = vunpack.c.h.b16 %v2784
    %v3863 = vunpack.c.l.b16 %v2785
    %v3864 = vunpack.c.h.b16 %v2785
    %v3865 = vunpack.c.l.b16 %v2786
    %v3866 = vunpack.c.h.b16 %v2786
    %v3867 = vunpack.c.l.b16 %v2787
    %v3868 = vunpack.c.h.b16 %v2787
    %v3869 = vunpack.c.l.b16 %v2788
    %v3870 = vunpack.c.h.b16 %v2788
    %v3871 = vunpack.c.l.b16 %v2789
    %v3872 = vunpack.c.h.b16 %v2789
    %v3873 = vunpack.c.l.b16 %v2790
    %v3874 = vunpack.c.h.b16 %v2790
    %v3875 = vunpack.c.l.b16 %v2791
    %v3876 = vunpack.c.h.b16 %v2791
    %v3877 = vunpack.c.l.b16 %v2792
    %v3878 = vunpack.c.h.b16 %v2792
    %v3879 = vunpack.c.l.b16 %v2793
    %v3880 = vunpack.c.h.b16 %v2793
    %v3881 = vunpack.c.l.b16 %v2794
    %v3882 = vunpack.c.h.b16 %v2794
    %v3883 = vunpack.c.l.b16 %v2795
    %v3884 = vunpack.c.h.b16 %v2795
    %v3885 = vunpack.c.l.b16 %v2796
    %v3886 = vunpack.c.h.b16 %v2796
    %v3887 = vunpack.c.l.b16 %v2797
    %v3888 = vunpack.c.h.b16 %v2797
    %v3889 = vunpack.c.l.b16 %v2798
    %v3890 = vunpack.c.h.b16 %v2798
    %v3891 = vunpack.c.l.b16 %v2799
    %v3892 = vunpack.c.h.b16 %v2799
    %v3893 = vunpack.c.l.b16 %v2800
    %v3894 = vunpack.c.h.b16 %v2800
    %v3895 = vunpack.c.l.b16 %v2801
    %v3896 = vunpack.c.h.b16 %v2801
    %v3897 = vunpack.c.l.b16 %v2802
    %v3898 = vunpack.c.h.b16 %v2802
    %v3899 = vunpack.c.l.b16 %v2803
    %v3900 = vunpack.c.h.b16 %v2803
    %v3901 = vunpack.c.l.b16 %v2804
    %v3902 = vunpack.c.h.b16 %v2804
    %v3903 = vunpack.c.l.b16 %v2805
    %v3904 = vunpack.c.h.b16 %v2805
    %v3905 = vunpack.c.l.b16 %v2806
    %v3906 = vunpack.c.h.b16 %v2806
    %v3907 = vunpack.c.l.b16 %v2807
    %v3908 = vunpack.c.h.b16 %v2807
    %v3909 = vunpack.c.l.b16 %v2808
    %v3910 = vunpack.c.h.b16 %v2808
    %v3911 = vunpack.c.l.b16 %v2809
    %v3912 = vunpack.c.h.b16 %v2809
    %v3913 = vunpack.c.l.b16 %v2810
    %v3914 = vunpack.c.h.b16 %v2810
    %v3915 = vunpack.c.l.b16 %v2811
    %v3916 = vunpack.c.h.b16 %v2811
    %v3917 = vunpack.c.l.b16 %v2812
    %v3918 = vunpack.c.h.b16 %v2812
    %v3919 = vunpack.c.l.b16 %v2813
    %v3920 = vunpack.c.h.b16 %v2813
    %v3921 = vunpack.c.l.b16 %v2814
    %v3922 = vunpack.c.h.b16 %v2814
    %v3923 = vunpack.c.l.b16 %v2815
    %v3924 = vunpack.c.h.b16 %v2815
    %v3925 = vunpack.c.l.b16 %v2816
    %v3926 = vunpack.c.h.b16 %v2816
    %v3927 = vunpack.c.l.b16 %v2817
    %v3928 = vunpack.c.h.b16 %v2817
    %v3929 = vunpack.c.l.b16 %v2818
    %v3930 = vunpack.c.h.b16 %v2818
    %v3931 = vunpack.c.l.b16 %v2819
    %v3932 = vunpack.c.h.b16 %v2819
    %v3933 = vunpack.c.l.b16 %v2820
    %v3934 = vunpack.c.h.b16 %v2820
    %v3935 = vunpack.c.l.b16 %v2821
    %v3936 = vunpack.c.h.b16 %v2821
    %v3937 = vunpack.c.l.b16 %v2822
    %v3938 = vunpack.c.h.b16 %v2822
    %v3939 = vunpack.c.l.b16 %v2823
    %v3940 = vunpack.c.h.b16 %v2823
    %v3941 = vunpack.c.l.b16 %v2824
    %v3942 = vunpack.c.h.b16 %v2824
    %v3943 = vunpack.c.l.b16 %v2825
    %v3944 = vunpack.c.h.b16 %v2825
    %v3945 = vunpack.c.l.b16 %v2826
    %v3946 = vunpack.c.h.b16 %v2826
    %v3947 = vunpack.c.l.b16 %v2827
    %v3948 = vunpack.c.h.b16 %v2827
    %v3949 = vunpack.c.l.b16 %v2828
    %v3950 = vunpack.c.h.b16 %v2828
    %v3951 = vunpack.c.l.b16 %v2829
    %v3952 = vunpack.c.h.b16 %v2829
    %v3953 = vunpack.c.l.b16 %v2830
    %v3954 = vunpack.c.h.b16 %v2830
    %v3955 = vunpack.c.l.b16 %v2831
    %v3956 = vunpack.c.h.b16 %v2831
    %v3957 = vunpack.c.l.b16 %v2832
    %v3958 = vunpack.c.h.b16 %v2832
    %v3959 = vunpack.c.l.b16 %v2833
    %v3960 = vunpack.c.h.b16 %v2833
    %v3961 = vunpack.c.l.b16 %v2834
    %v3962 = vunpack.c.h.b16 %v2834
    %v3963 = vunpack.c.l.b16 %v2835
    %v3964 = vunpack.c.h.b16 %v2835
    %v3965 = vunpack.c.l.b16 %v2836
    %v3966 = vunpack.c.h.b16 %v2836
    %v3967 = vunpack.c.l.b16 %v2837
    %v3968 = vunpack.c.h.b16 %v2837
    %v3969 = vunpack.c.l.b16 %v2838
    %v3970 = vunpack.c.h.b16 %v2838
    %v3971 = vunpack.c.l.b16 %v2839
    %v3972 = vunpack.c.h.b16 %v2839
    %v3973 = vunpack.c.l.b16 %v2840
    %v3974 = vunpack.c.h.b16 %v2840
    %v3975 = vunpack.c.l.b16 %v2841
    %v3976 = vunpack.c.h.b16 %v2841
    %v3977 = vunpack.c.l.b16 %v2842
    %v3978 = vunpack.c.h.b16 %v2842
    %v3979 = vunpack.c.l.b16 %v2843
    %v3980 = vunpack.c.h.b16 %v2843
    %v3981 = vunpack.c.l.b16 %v2844
    %v3982 = vunpack.c.h.b16 %v2844
    %v3983 = vunpack.c.l.b16 %v2845
    %v3984 = vunpack.c.h.b16 %v2845
    %v3985 = vunpack.c.l.b16 %v2846
    %v3986 = vunpack.c.h.b16 %v2846
    %v3987 = vunpack.c.l.b16 %v2847
    %v3988 = vunpack.c.h.b16 %v2847
    %v3989 = vunpack.c.l.b16 %v2848
    %v3990 = vunpack.c.h.b16 %v2848
    %v3991 = vunpack.c.l.b16 %v2849
    %v3992 = vunpack.c.h.b16 %v2849
    %v3993 = vunpack.c.l.b16 %v2850
    %v3994 = vunpack.c.h.b16 %v2850
    %v3995 = vunpack.c.l.b16 %v2851
    %v3996 = vunpack.c.h.b16 %v2851
    %v3997 = vunpack.c.l.b16 %v2852
    %v3998 = vunpack.c.h.b16 %v2852
    %v3999 = vunpack.c.l.b16 %v2853
    %v4000 = vunpack.c.h.b16 %v2853
    %v4001 = vunpack.c.l.b16 %v2854
    %v4002 = vunpack.c.h.b16 %v2854
    %v4003 = vunpack.c.l.b16 %v2855
    %v4004 = vunpack.c.h.b16 %v2855
    %v4005 = vunpack.c.l.b16 %v2856
    %v4006 = vunpack.c.h.b16 %v2856
    %v4007 = vunpack.c.l.b16 %v2857
    %v4008 = vunpack.c.h.b16 %v2857
    %v4009 = vunpack.c.l.b16 %v2858
    %v4010 = vunpack.c.h.b16 %v2858
    %v4011 = vunpack.c.l.b16 %v2859
    %v4012 = vunpack.c.h.b16 %v2859
    %v4013 = vunpack.c.l.b16 %v2860
    %v4014 = vunpack.c.h.b16 %v2860
    %v4015 = vunpack.c.l.b16 %v2861
    %v4016 = vunpack.c.h.b16 %v2861
    %v4017 = vunpack.c.l.b16 %v2862
    %v4018 = vunpack.c.h.b16 %v2862
    %v4019 = vunpack.c.l.b16 %v2863
    %v4020 = vunpack.c.h.b16 %v2863
    %v4021 = vunpack.c.l.b16 %v2864
    %v4022 = vunpack.c.h.b16 %v2864
    %v4023 = vunpack.c.l.b16 %v2865
    %v4024 = vunpack.c.h.b16 %v2865
    %v4025 = vunpack.c.l.b16 %v2866
    %v4026 = vunpack.c.h.b16 %v2866
    %v4027 = vunpack.c.l.b16 %v2867
    %v4028 = vunpack.c.h.b16 %v2867
    %v4029 = vunpack.c.l.b16 %v2868
    %v4030 = vunpack.c.h.b16 %v2868
    %v4031 = vunpack.c.l.b16 %v2869
    %v4032 = vunpack.c.h.b16 %v2869
    %v4033 = vunpack.c.l.b16 %v2870
    %v4034 = vunpack.c.h.b16 %v2870
    %v4035 = vunpack.c.l.b16 %v2871
    %v4036 = vunpack.c.h.b16 %v2871
    %v4037 = vunpack.c.l.b16 %v2872
    %v4038 = vunpack.c.h.b16 %v2872
    %v4039 = vunpack.c.l.b16 %v2873
    %v4040 = vunpack.c.h.b16 %v2873
    %v4041 = vunpack.c.l.b16 %v2874
    %v4042 = vunpack.c.h.b16 %v2874
    %v4043 = vunpack.c.l.b16 %v2875
    %v4044 = vunpack.c.h.b16 %v2875
    %v4045 = vunpack.c.l.b16 %v2876
    %v4046 = vunpack.c.h.b16 %v2876
    %v4047 = vunpack.c.l.b16 %v2877
    %v4048 = vunpack.c.h.b16 %v2877
    %v4049 = vunpack.c.l.b16 %v2878
    %v4050 = vunpack.c.h.b16 %v2878
    %v4051 = vunpack.c.l.b16 %v2879
    %v4052 = vunpack.c.h.b16 %v2879
    %v4053 = vunpack.c.l.b16 %v2880
    %v4054 = vunpack.c.h.b16 %v2880
    %v4055 = vpack.c.b16 %v3291, %v3287
    %v4056 = vpack.c.b16 %v3292, %v3288
    %v4057 = vpack.c.b16 %v3293, %v3289
    %v4058 = vpack.c.b16 %v3294, %v3290
    %v4059 = vpack.c.b16 %v3299, %v3295
    %v4060 = vpack.c.b16 %v3300, %v3296
    %v4061 = vpack.c.b16 %v3301, %v3297
    %v4062 = vpack.c.b16 %v3302, %v3298
    %v4063 = vpack.c.b16 %v3307, %v3303
    %v4064 = vpack.c.b16 %v3308, %v3304
    %v4065 = vpack.c.b16 %v3309, %v3305
    %v4066 = vpack.c.b16 %v3310, %v3306
    %v4067 = vpack.c.b16 %v3315, %v3311
    %v4068 = vpack.c.b16 %v3316, %v3312
    %v4069 = vpack.c.b16 %v3317, %v3313
    %v4070 = vpack.c.b16 %v3318, %v3314
    %v4071 = vpack.c.b16 %v3323, %v3319
    %v4072 = vpack.c.b16 %v3324, %v3320
    %v4073 = vpack.c.b16 %v3325, %v3321
    %v4074 = vpack.c.b16 %v3326, %v3322
    %v4075 = vpack.c.b16 %v3331, %v3327
    %v4076 = vpack.c.b16 %v3332, %v3328
    %v4077 = vpack.c.b16 %v3333, %v3329
    %v4078 = vpack.c.b16 %v3334, %v3330
    %v4079 = vpack.c.b16 %v3339, %v3335
    %v4080 = vpack.c.b16 %v3340, %v3336
    %v4081 = vpack.c.b16 %v3341, %v3337
    %v4082 = vpack.c.b16 %v3342, %v3338
    %v4083 = vpack.c.b16 %v3347, %v3343
    %v4084 = vpack.c.b16 %v3348, %v3344
    %v4085 = vpack.c.b16 %v3349, %v3345
    %v4086 = vpack.c.b16 %v3350, %v3346
    %v4087 = vpack.c.b16 %v3355, %v3351
    %v4088 = vpack.c.b16 %v3356, %v3352
    %v4089 = vpack.c.b16 %v3357, %v3353
    %v4090 = vpack.c.b16 %v3358, %v3354
    %v4091 = vpack.c.b16 %v3363, %v3359
    %v4092 = vpack.c.b16 %v3364, %v3360
    %v4093 = vpack.c.b16 %v3365, %v3361
    %v4094 = vpack.c.b16 %v3366, %v3362
    %v4095 = vpack.c.b16 %v3371, %v3367
    %v4096 = vpack.c.b16 %v3372, %v3368
    %v4097 = vpack.c.b16 %v3373, %v3369
    %v4098 = vpack.c.b16 %v3374, %v3370
    %v4099 = vpack.c.b16 %v3379, %v3375
    %v4100 = vpack.c.b16 %v3380, %v3376
    %v4101 = vpack.c.b16 %v3381, %v3377
    %v4102 = vpack.c.b16 %v3382, %v3378
    %v4103 = vpack.c.b16 %v3387, %v3383
    %v4104 = vpack.c.b16 %v3388, %v3384
    %v4105 = vpack.c.b16 %v3389, %v3385
    %v4106 = vpack.c.b16 %v3390, %v3386
    %v4107 = vpack.c.b16 %v3395, %v3391
    %v4108 = vpack.c.b16 %v3396, %v3392
    %v4109 = vpack.c.b16 %v3397, %v3393
    %v4110 = vpack.c.b16 %v3398, %v3394
    %v4111 = vpack.c.b16 %v3403, %v3399
    %v4112 = vpack.c.b16 %v3404, %v3400
    %v4113 = vpack.c.b16 %v3405, %v3401
    %v4114 = vpack.c.b16 %v3406, %v3402
    %v4115 = vpack.c.b16 %v3411, %v3407
    %v4116 = vpack.c.b16 %v3412, %v3408
    %v4117 = vpack.c.b16 %v3413, %v3409
    %v4118 = vpack.c.b16 %v3414, %v3410
    %v4119 = vpack.c.b16 %v3419, %v3415
    %v4120 = vpack.c.b16 %v3420, %v3416
    %v4121 = vpack.c.b16 %v3421, %v3417
    %v4122 = vpack.c.b16 %v3422, %v3418
    %v4123 = vpack.c.b16 %v3427, %v3423
    %v4124 = vpack.c.b16 %v3428, %v3424
    %v4125 = vpack.c.b16 %v3429, %v3425
    %v4126 = vpack.c.b16 %v3430, %v3426
    %v4127 = vpack.c.b16 %v3435, %v3431
    %v4128 = vpack.c.b16 %v3436, %v3432
    %v4129 = vpack.c.b16 %v3437, %v3433
    %v4130 = vpack.c.b16 %v3438, %v3434
    %v4131 = vpack.c.b16 %v3443, %v3439
    %v4132 = vpack.c.b16 %v3444, %v3440
    %v4133 = vpack.c.b16 %v3445, %v3441
    %v4134 = vpack.c.b16 %v3446, %v3442
    %v4135 = vpack.c.b16 %v3451, %v3447
    %v4136 = vpack.c.b16 %v3452, %v3448
    %v4137 = vpack.c.b16 %v3453, %v3449
    %v4138 = vpack.c.b16 %v3454, %v3450
    %v4139 = vpack.c.b16 %v3459, %v3455
    %v4140 = vpack.c.b16 %v3460, %v3456
    %v4141 = vpack.c.b16 %v3461, %v3457
    %v4142 = vpack.c.b16 %v3462, %v3458
    %v4143 = vpack.c.b16 %v3467, %v3463
    %v4144 = vpack.c.b16 %v3468, %v3464
    %v4145 = vpack.c.b16 %v3469, %v3465
    %v4146 = vpack.c.b16 %v3470, %v3466
    %v4147 = vpack.c.b16 %v3475, %v3471
    %v4148 = vpack.c.b16 %v3476, %v3472
    %v4149 = vpack.c.b16 %v3477, %v3473
    %v4150 = vpack.c.b16 %v3478, %v3474
    %v4151 = vpack.c.b16 %v3483, %v3479
    %v4152 = vpack.c.b16 %v3484, %v3480
    %v4153 = vpack.c.b16 %v3485, %v3481
    %v4154 = vpack.c.b16 %v3486, %v3482
    %v4155 = vpack.c.b16 %v3491, %v3487
    %v4156 = vpack.c.b16 %v3492, %v3488
    %v4157 = vpack.c.b16 %v3493, %v3489
    %v4158 = vpack.c.b16 %v3494, %v3490
    %v4159 = vpack.c.b16 %v3499, %v3495
    %v4160 = vpack.c.b16 %v3500, %v3496
    %v4161 = vpack.c.b16 %v3501, %v3497
    %v4162 = vpack.c.b16 %v3502, %v3498
    %v4163 = vpack.c.b16 %v3507, %v3503
    %v4164 = vpack.c.b16 %v3508, %v3504
    %v4165 = vpack.c.b16 %v3509, %v3505
    %v4166 = vpack.c.b16 %v3510, %v3506
    %v4167 = vpack.c.b16 %v3515, %v3511
    %v4168 = vpack.c.b16 %v3516, %v3512
    %v4169 = vpack.c.b16 %v3517, %v3513
    %v4170 = vpack.c.b16 %v3518, %v3514
    %v4171 = vpack.c.b16 %v3523, %v3519
    %v4172 = vpack.c.b16 %v3524, %v3520
    %v4173 = vpack.c.b16 %v3525, %v3521
    %v4174 = vpack.c.b16 %v3526, %v3522
    %v4175 = vpack.c.b16 %v3531, %v3527
    %v4176 = vpack.c.b16 %v3532, %v3528
    %v4177 = vpack.c.b16 %v3533, %v3529
    %v4178 = vpack.c.b16 %v3534, %v3530
    %v4179 = vpack.c.b16 %v3539, %v3535
    %v4180 = vpack.c.b16 %v3540, %v3536
    %v4181 = vpack.c.b16 %v3541, %v3537
    %v4182 = vpack.c.b16 %v3542, %v3538
    %v4183 = vpack.c.b16 %v3547, %v3543
    %v4184 = vpack.c.b16 %v3548, %v3544
    %v4185 = vpack.c.b16 %v3549, %v3545
    %v4186 = vpack.c.b16 %v3550, %v3546
    %v4187 = vpack.c.b16 %v3555, %v3551
    %v4188 = vpack.c.b16 %v3556, %v3552
    %v4189 = vpack.c.b16 %v3557, %v3553
    %v4190 = vpack.c.b16 %v3558, %v3554
    %v4191 = vpack.c.b16 %v3563, %v3559
    %v4192 = vpack.c.b16 %v3564, %v3560
    %v4193 = vpack.c.b16 %v3565, %v3561
    %v4194 = vpack.c.b16 %v3566, %v3562
    %v4195 = vpack.c.b16 %v3571, %v3567
    %v4196 = vpack.c.b16 %v3572, %v3568
    %v4197 = vpack.c.b16 %v3573, %v3569
    %v4198 = vpack.c.b16 %v3574, %v3570
    %v4199 = vpack.c.b16 %v3579, %v3575
    %v4200 = vpack.c.b16 %v3580, %v3576
    %v4201 = vpack.c.b16 %v3581, %v3577
    %v4202 = vpack.c.b16 %v3582, %v3578
    %v4203 = vpack.c.b16 %v3587, %v3583
    %v4204 = vpack.c.b16 %v3588, %v3584
    %v4205 = vpack.c.b16 %v3589, %v3585
    %v4206 = vpack.c.b16 %v3590, %v3586
    %v4207 = vpack.c.b16 %v3595, %v3591
    %v4208 = vpack.c.b16 %v3596, %v3592
    %v4209 = vpack.c.b16 %v3597, %v3593
    %v4210 = vpack.c.b16 %v3598, %v3594
    %v4211 = vpack.c.b16 %v3603, %v3599
    %v4212 = vpack.c.b16 %v3604, %v3600
    %v4213 = vpack.c.b16 %v3605, %v3601
    %v4214 = vpack.c.b16 %v3606, %v3602
    %v4215 = vpack.c.b16 %v3611, %v3607
    %v4216 = vpack.c.b16 %v3612, %v3608
    %v4217 = vpack.c.b16 %v3613, %v3609
    %v4218 = vpack.c.b16 %v3614, %v3610
    %v4219 = vpack.c.b16 %v3619, %v3615
    %v4220 = vpack.c.b16 %v3620, %v3616
    %v4221 = vpack.c.b16 %v3621, %v3617
    %v4222 = vpack.c.b16 %v3622, %v3618
    %v4223 = vpack.c.b16 %v3627, %v3623
    %v4224 = vpack.c.b16 %v3628, %v3624
    %v4225 = vpack.c.b16 %v3629, %v3625
    %v4226 = vpack.c.b16 %v3630, %v3626
    %v4227 = vpack.c.b16 %v3635, %v3631
    %v4228 = vpack.c.b16 %v3636, %v3632
    %v4229 = vpack.c.b16 %v3637, %v3633
    %v4230 = vpack.c.b16 %v3638, %v3634
    %v4231 = vpack.c.b16 %v3643, %v3639
    %v4232 = vpack.c.b16 %v3644, %v3640
    %v4233 = vpack.c.b16 %v3645, %v3641
    %v4234 = vpack.c.b16 %v3646, %v3642
    %v4235 = vpack.c.b16 %v3651, %v3647
    %v4236 = vpack.c.b16 %v3652, %v3648
    %v4237 = vpack.c.b16 %v3653, %v3649
    %v4238 = vpack.c.b16 %v3654, %v3650
    %v4239 = vpack.c.b16 %v3659, %v3655
    %v4240 = vpack.c.b16 %v3660, %v3656
    %v4241 = vpack.c.b16 %v3661, %v3657
    %v4242 = vpack.c.b16 %v3662, %v3658
    %v4243 = vpack.c.b16 %v3667, %v3663
    %v4244 = vpack.c.b16 %v3668, %v3664
    %v4245 = vpack.c.b16 %v3669, %v3665
    %v4246 = vpack.c.b16 %v3670, %v3666
    %v4247 = vpack.c.b16 %v3675, %v3671
    %v4248 = vpack.c.b16 %v3676, %v3672
    %v4249 = vpack.c.b16 %v3677, %v3673
    %v4250 = vpack.c.b16 %v3678, %v3674
    %v4251 = vpack.c.b16 %v3683, %v3679
    %v4252 = vpack.c.b16 %v3684, %v3680
    %v4253 = vpack.c.b16 %v3685, %v3681
    %v4254 = vpack.c.b16 %v3686, %v3682
    %v4255 = vpack.c.b16 %v3691, %v3687
    %v4256 = vpack.c.b16 %v3692, %v3688
    %v4257 = vpack.c.b16 %v3693, %v3689
    %v4258 = vpack.c.b16 %v3694, %v3690
    %v4259 = vpack.c.b16 %v3699, %v3695
    %v4260 = vpack.c.b16 %v3700, %v3696
    %v4261 = vpack.c.b16 %v3701, %v3697
    %v4262 = vpack.c.b16 %v3702, %v3698
    %v4263 = vpack.c.b16 %v3707, %v3703
    %v4264 = vpack.c.b16 %v3708, %v3704
    %v4265 = vpack.c.b16 %v3709, %v3705
    %v4266 = vpack.c.b16 %v3710, %v3706
    %v4267 = vpack.c.b16 %v3715, %v3711
    %v4268 = vpack.c.b16 %v3716, %v3712
    %v4269 = vpack.c.b16 %v3717, %v3713
    %v4270 = vpack.c.b16 %v3718, %v3714
    %v4271 = vpack.c.b16 %v3723, %v3719
    %v4272 = vpack.c.b16 %v3724, %v3720
    %v4273 = vpack.c.b16 %v3725, %v3721
    %v4274 = vpack.c.b16 %v3726, %v3722
    %v4275 = vpack.c.b16 %v3731, %v3727
    %v4276 = vpack.c.b16 %v3732, %v3728
    %v4277 = vpack.c.b16 %v3733, %v3729
    %v4278 = vpack.c.b16 %v3734, %v3730
    %v4279 = vpack.c.b16 %v3739, %v3735
    %v4280 = vpack.c.b16 %v3740, %v3736
    %v4281 = vpack.c.b16 %v3741, %v3737
    %v4282 = vpack.c.b16 %v3742, %v3738
    %v4283 = vpack.c.b16 %v3747, %v3743
    %v4284 = vpack.c.b16 %v3748, %v3744
    %v4285 = vpack.c.b16 %v3749, %v3745
    %v4286 = vpack.c.b16 %v3750, %v3746
    %v4287 = vpack.c.b16 %v3755, %v3751
    %v4288 = vpack.c.b16 %v3756, %v3752
    %v4289 = vpack.c.b16 %v3757, %v3753
    %v4290 = vpack.c.b16 %v3758, %v3754
    %v4291 = vpack.c.b16 %v3763, %v3759
    %v4292 = vpack.c.b16 %v3764, %v3760
    %v4293 = vpack.c.b16 %v3765, %v3761
    %v4294 = vpack.c.b16 %v3766, %v3762
    %v4295 = vpack.c.b16 %v3771, %v3767
    %v4296 = vpack.c.b16 %v3772, %v3768
    %v4297 = vpack.c.b16 %v3773, %v3769
    %v4298 = vpack.c.b16 %v3774, %v3770
    %v4299 = vpack.c.b16 %v3779, %v3775
    %v4300 = vpack.c.b16 %v3780, %v3776
    %v4301 = vpack.c.b16 %v3781, %v3777
    %v4302 = vpack.c.b16 %v3782, %v3778
    %v4303 = vpack.c.b16 %v3787, %v3783
    %v4304 = vpack.c.b16 %v3788, %v3784
    %v4305 = vpack.c.b16 %v3789, %v3785
    %v4306 = vpack.c.b16 %v3790, %v3786
    %v4307 = vpack.c.b16 %v3795, %v3791
    %v4308 = vpack.c.b16 %v3796, %v3792
    %v4309 = vpack.c.b16 %v3797, %v3793
    %v4310 = vpack.c.b16 %v3798, %v3794
    %v4311 = vpack.c.b16 %v3803, %v3799
    %v4312 = vpack.c.b16 %v3804, %v3800
    %v4313 = vpack.c.b16 %v3805, %v3801
    %v4314 = vpack.c.b16 %v3806, %v3802
    %v4315 = vpack.c.b16 %v3811, %v3807
    %v4316 = vpack.c.b16 %v3812, %v3808
    %v4317 = vpack.c.b16 %v3813, %v3809
    %v4318 = vpack.c.b16 %v3814, %v3810
    %v4319 = vpack.c.b16 %v3819, %v3815
    %v4320 = vpack.c.b16 %v3820, %v3816
    %v4321 = vpack.c.b16 %v3821, %v3817
    %v4322 = vpack.c.b16 %v3822, %v3818
    %v4323 = vpack.c.b16 %v3827, %v3823
    %v4324 = vpack.c.b16 %v3828, %v3824
    %v4325 = vpack.c.b16 %v3829, %v3825
    %v4326 = vpack.c.b16 %v3830, %v3826
    %v4327 = vpack.c.b16 %v3835, %v3831
    %v4328 = vpack.c.b16 %v3836, %v3832
    %v4329 = vpack.c.b16 %v3837, %v3833
    %v4330 = vpack.c.b16 %v3838, %v3834
    %v4331 = vpack.c.b16 %v3843, %v3839
    %v4332 = vpack.c.b16 %v3844, %v3840
    %v4333 = vpack.c.b16 %v3845, %v3841
    %v4334 = vpack.c.b16 %v3846, %v3842
    %v4335 = vpack.c.b16 %v3851, %v3847
    %v4336 = vpack.c.b16 %v3852, %v3848
    %v4337 = vpack.c.b16 %v3853, %v3849
    %v4338 = vpack.c.b16 %v3854, %v3850
    %v4339 = vpack.c.b16 %v3859, %v3855
    %v4340 = vpack.c.b16 %v3860, %v3856
    %v4341 = vpack.c.b16 %v3861, %v3857
    %v4342 = vpack.c.b16 %v3862, %v3858
    %v4343 = vpack.c.b16 %v3867, %v3863
    %v4344 = vpack.c.b16 %v3868, %v3864
    %v4345 = vpack.c.b16 %v3869, %v3865
    %v4346 = vpack.c.b16 %v3870, %v3866
    %v4347 = vpack.c.b16 %v3875, %v3871
    %v4348 = vpack.c.b16 %v3876, %v3872
    %v4349 = vpack.c.b16 %v3877, %v3873
    %v4350 = vpack.c.b16 %v3878, %v3874
    %v4351 = vpack.c.b16 %v3883, %v3879
    %v4352 = vpack.c.b16 %v3884, %v3880
    %v4353 = vpack.c.b16 %v3885, %v3881
    %v4354 = vpack.c.b16 %v3886, %v3882
    %v4355 = vpack.c.b16 %v3891, %v3887
    %v4356 = vpack.c.b16 %v3892, %v3888
    %v4357 = vpack.c.b16 %v3893, %v3889
    %v4358 = vpack.c.b16 %v3894, %v3890
    %v4359 = vpack.c.b16 %v3899, %v3895
    %v4360 = vpack.c.b16 %v3900, %v3896
    %v4361 = vpack.c.b16 %v3901, %v3897
    %v4362 = vpack.c.b16 %v3902, %v3898
    %v4363 = vpack.c.b16 %v3907, %v3903
    %v4364 = vpack.c.b16 %v3908, %v3904
    %v4365 = vpack.c.b16 %v3909, %v3905
    %v4366 = vpack.c.b16 %v3910, %v3906
    %v4367 = vpack.c.b16 %v3915, %v3911
    %v4368 = vpack.c.b16 %v3916, %v3912
    %v4369 = vpack.c.b16 %v3917, %v3913
    %v4370 = vpack.c.b16 %v3918, %v3914
    %v4371 = vpack.c.b16 %v3923, %v3919
    %v4372 = vpack.c.b16 %v3924, %v3920
    %v4373 = vpack.c.b16 %v3925, %v3921
    %v4374 = vpack.c.b16 %v3926, %v3922
    %v4375 = vpack.c.b16 %v3931, %v3927
    %v4376 = vpack.c.b16 %v3932, %v3928
    %v4377 = vpack.c.b16 %v3933, %v3929
    %v4378 = vpack.c.b16 %v3934, %v3930
    %v4379 = vpack.c.b16 %v3939, %v3935
    %v4380 = vpack.c.b16 %v3940, %v3936
    %v4381 = vpack.c.b16 %v3941, %v3937
    %v4382 = vpack.c.b16 %v3942, %v3938
    %v4383 = vpack.c.b16 %v3947, %v3943
    %v4384 = vpack.c.b16 %v3948, %v3944
    %v4385 = vpack.c.b16 %v3949, %v3945
    %v4386 = vpack.c.b16 %v3950, %v3946
    %v4387 = vpack.c.b16 %v3955, %v3951
    %v4388 = vpack.c.b16 %v3956, %v3952
    %v4389 = vpack.c.b16 %v3957, %v3953
    %v4390 = vpack.c.b16 %v3958, %v3954
    %v4391 = vpack.c.b16 %v3963, %v3959
    %v4392 = vpack.c.b16 %v3964, %v3960
    %v4393 = vpack.c.b16 %v3965, %v3961
    %v4394 = vpack.c.b16 %v3966, %v3962
    %v4395 = vpack.c.b16 %v3971, %v3967
    %v4396 = vpack.c.b16 %v3972, %v3968
    %v4397 = vpack.c.b16 %v3973, %v3969
    %v4398 = vpack.c.b16 %v3974, %v3970
    %v4399 = vpack.c.b16 %v3979, %v3975
    %v4400 = vpack.c.b16 %v3980, %v3976
    %v4401 = vpack.c.b16 %v3981, %v3977
    %v4402 = vpack.c.b16 %v3982, %v3978
    %v4403 = vpack.c.b16 %v3987, %v3983
    %v4404 = vpack.c.b16 %v3988, %v3984
    %v4405 = vpack.c.b16 %v3989, %v3985
    %v4406 = vpack.c.b16 %v3990, %v3986
    %v4407 = vpack.c.b16 %v3995, %v3991
    %v4408 = vpack.c.b16 %v3996, %v3992
    %v4409 = vpack.c.b16 %v3997, %v3993
    %v4410 = vpack.c.b16 %v3998, %v3994
    %v4411 = vpack.c.b16 %v4003, %v3999
    %v4412 = vpack.c.b16 %v4004, %v4000
    %v4413 = vpack.c.b16 %v4005, %v4001
    %v4414 = vpack.c.b16 %v4006, %v4002
    %v4415 = vpack.c.b16 %v4011, %v4007
    %v4416 = vpack.c.b16 %v4012, %v4008
    %v4417 = vpack.c.b16 %v4013, %v4009
    %v4418 = vpack.c.b16 %v4014, %v4010
    %v4419 = vpack.c.b16 %v4019, %v4015
    %v4420 = vpack.c.b16 %v4020, %v4016
    %v4421 = vpack.c.b16 %v4021, %v4017
    %v4422 = vpack.c.b16 %v4022, %v4018
    %v4423 = vpack.c.b16 %v4027, %v4023
    %v4424 = vpack.c.b16 %v4028, %v4024
    %v4425 = vpack.c.b16 %v4029, %v4025
    %v4426 = vpack.c.b16 %v4030, %v4026
    %v4427 = vpack.c.b16 %v4035, %v4031
    %v4428 = vpack.c.b16 %v4036, %v4032
    %v4429 = vpack.c.b16 %v4037, %v4033
    %v4430 = vpack.c.b16 %v4038, %v4034
    %v4431 = vpack.c.b16 %v4043, %v4039
    %v4432 = vpack.c.b16 %v4044, %v4040
    %v4433 = vpack.c.b16 %v4045, %v4041
    %v4434 = vpack.c.b16 %v4046, %v4042
    %v4435 = vpack.c.b16 %v4051, %v4047
    %v4436 = vpack.c.b16 %v4052, %v4048
    %v4437 = vpack.c.b16 %v4053, %v4049
    %v4438 = vpack.c.b16 %v4054, %v4050
    %4823 = vmatprep.subr.bf16.mxu0 %v4056
    %4824 = vmatpush1.bf16.msra.mxu0 %v4055
    %4825 = vmatprep.subr.bf16.mxu0 %v4060
    %4826 = vmatpush1.bf16.msra.mxu0 %v4059
    %4827 = vmatprep.subr.bf16.mxu0 %v4064
    %4828 = vmatpush1.bf16.msra.mxu0 %v4063
    %4829 = vmatprep.subr.bf16.mxu0 %v4068
    %4830 = vmatpush1.bf16.msra.mxu0 %v4067
    %4831 = vmatprep.subr.bf16.mxu0 %v4072
    %4832 = vmatpush1.bf16.msra.mxu0 %v4071
    %4833 = vmatprep.subr.bf16.mxu0 %v4076
    %4834 = vmatpush1.bf16.msra.mxu0 %v4075
    %4835 = vmatprep.subr.bf16.mxu0 %v4080
    %4836 = vmatpush1.bf16.msra.mxu0 %v4079
    %4837 = vmatprep.subr.bf16.mxu0 %v4084
    %4838 = vmatpush1.bf16.msra.mxu0 %v4083
    %4839 = vmatprep.subr.bf16.mxu0 %v4088
    %4840 = vmatpush1.bf16.msra.mxu0 %v4087
    %4841 = vmatprep.subr.bf16.mxu0 %v4092
    %4842 = vmatpush1.bf16.msra.mxu0 %v4091
    %4843 = vmatprep.subr.bf16.mxu0 %v4096
    %4844 = vmatpush1.bf16.msra.mxu0 %v4095
    %4845 = vmatprep.subr.bf16.mxu0 %v4100
    %4846 = vmatpush1.bf16.msra.mxu0 %v4099
    %4847 = vmatprep.subr.bf16.mxu0 %v4104
    %4848 = vmatpush1.bf16.msra.mxu0 %v4103
    %4849 = vmatprep.subr.bf16.mxu0 %v4108
    %4850 = vmatpush1.bf16.msra.mxu0 %v4107
    %4851 = vmatprep.subr.bf16.mxu0 %v4112
    %4852 = vmatpush1.bf16.msra.mxu0 %v4111
    %4853 = vmatprep.subr.bf16.mxu0 %v4116
    %4854 = vmatpush1.bf16.msra.mxu0 %v4115
    %4855 = vmatprep.mubr.bf16.mxu0 %v2454
    %4856 = vmatmul.mubr.bf16.gmra.mrb[0].mxu0 %v2453
    %v4857 = vpop.f32.mrb[0].mxu0
    %v4858 = vadd.f32 %v2886, %v4857
    %v4859 = vpop.f32.mrb[0].mxu0
    %v4860 = vadd.f32 %v2890, %v4859
    %v4861 = vpop.f32.mrb[0].mxu0
    %v4862 = vadd.f32 %v2886, %v4861
    %v4863 = vpop.f32.mrb[0].mxu0
    %v4864 = vadd.f32 %v2890, %v4863
    %4865 = vdwg.mxu0
    %4866 = vmatprep.subr.bf16.mxu0 %v4120
    %4867 = vmatpush1.bf16.msra.mxu0 %v4119
    %4868 = vmatprep.subr.bf16.mxu0 %v4124
    %4869 = vmatpush1.bf16.msra.mxu0 %v4123
    %4870 = vmatprep.subr.bf16.mxu0 %v4128
    %4871 = vmatpush1.bf16.msra.mxu0 %v4127
    %4872 = vmatprep.subr.bf16.mxu0 %v4132
    %4873 = vmatpush1.bf16.msra.mxu0 %v4131
    %4874 = vmatprep.subr.bf16.mxu0 %v4136
    %4875 = vmatpush1.bf16.msra.mxu0 %v4135
    %4876 = vmatprep.subr.bf16.mxu0 %v4140
    %4877 = vmatpush1.bf16.msra.mxu0 %v4139
    %4878 = vmatprep.subr.bf16.mxu0 %v4144
    %4879 = vmatpush1.bf16.msra.mxu0 %v4143
    %4880 = vmatprep.subr.bf16.mxu0 %v4148
    %4881 = vmatpush1.bf16.msra.mxu0 %v4147
    %4882 = vmatprep.subr.bf16.mxu0 %v4152
    %4883 = vmatpush1.bf16.msra.mxu0 %v4151
    %4884 = vmatprep.subr.bf16.mxu0 %v4156
    %4885 = vmatpush1.bf16.msra.mxu0 %v4155
    %4886 = vmatprep.subr.bf16.mxu0 %v4160
    %4887 = vmatpush1.bf16.msra.mxu0 %v4159
    %4888 = vmatprep.subr.bf16.mxu0 %v4164
    %4889 = vmatpush1.bf16.msra.mxu0 %v4163
    %4890 = vmatprep.subr.bf16.mxu0 %v4168
    %4891 = vmatpush1.bf16.msra.mxu0 %v4167
    %4892 = vmatprep.subr.bf16.mxu0 %v4172
    %4893 = vmatpush1.bf16.msra.mxu0 %v4171
    %4894 = vmatprep.subr.bf16.mxu0 %v4176
    %4895 = vmatpush1.bf16.msra.mxu0 %v4175
    %4896 = vmatprep.subr.bf16.mxu0 %v4180
    %4897 = vmatpush1.bf16.msra.mxu0 %v4179
    %4898 = vmatprep.mubr.bf16.mxu0 %v2456
    %4899 = vmatmul.mubr.bf16.gmra.mrb[0].mxu0 %v2455
    %v4900 = vpop.f32.mrb[0].mxu0
    %v4901 = vadd.f32 %v4858, %v4900
    %v4902 = vpop.f32.mrb[0].mxu0
    %v4903 = vadd.f32 %v4860, %v4902
    %v4904 = vpop.f32.mrb[0].mxu0
    %v4905 = vadd.f32 %v4862, %v4904
    %v4906 = vpop.f32.mrb[0].mxu0
    %v4907 = vadd.f32 %v4864, %v4906
    %4908 = vdwg.mxu0
    %4909 = vmatprep.subr.bf16.mxu0 %v4184
    %4910 = vmatpush1.bf16.msra.mxu0 %v4183
    %4911 = vmatprep.subr.bf16.mxu0 %v4188
    %4912 = vmatpush1.bf16.msra.mxu0 %v4187
    %4913 = vmatprep.subr.bf16.mxu0 %v4192
    %4914 = vmatpush1.bf16.msra.mxu0 %v4191
    %4915 = vmatprep.subr.bf16.mxu0 %v4196
    %4916 = vmatpush1.bf16.msra.mxu0 %v4195
    %4917 = vmatprep.subr.bf16.mxu0 %v4200
    %4918 = vmatpush1.bf16.msra.mxu0 %v4199
    %4919 = vmatprep.subr.bf16.mxu0 %v4204
    %4920 = vmatpush1.bf16.msra.mxu0 %v4203
    %4921 = vmatprep.subr.bf16.mxu0 %v4208
    %4922 = vmatpush1.bf16.msra.mxu0 %v4207
    %4923 = vmatprep.subr.bf16.mxu0 %v4212
    %4924 = vmatpush1.bf16.msra.mxu0 %v4211
    %4925 = vmatprep.subr.bf16.mxu0 %v4216
    %4926 = vmatpush1.bf16.msra.mxu0 %v4215
    %4927 = vmatprep.subr.bf16.mxu0 %v4220
    %4928 = vmatpush1.bf16.msra.mxu0 %v4219
    %4929 = vmatprep.subr.bf16.mxu0 %v4224
    %4930 = vmatpush1.bf16.msra.mxu0 %v4223
    %4931 = vmatprep.subr.bf16.mxu0 %v4228
    %4932 = vmatpush1.bf16.msra.mxu0 %v4227
    %4933 = vmatprep.subr.bf16.mxu0 %v4232
    %4934 = vmatpush1.bf16.msra.mxu0 %v4231
    %4935 = vmatprep.subr.bf16.mxu0 %v4236
    %4936 = vmatpush1.bf16.msra.mxu0 %v4235
    %4937 = vmatprep.subr.bf16.mxu0 %v4240
    %4938 = vmatpush1.bf16.msra.mxu0 %v4239
    %4939 = vmatprep.subr.bf16.mxu0 %v4244
    %4940 = vmatpush1.bf16.msra.mxu0 %v4243
    %4941 = vmatprep.mubr.bf16.mxu0 %v2490
    %4942 = vmatmul.mubr.bf16.gmra.mrb[0].mxu0 %v2489
    %v4943 = vpop.f32.mrb[0].mxu0
    %v4944 = vadd.f32 %v4901, %v4943
    %v4945 = vpop.f32.mrb[0].mxu0
    %v4946 = vadd.f32 %v4903, %v4945
    %v4947 = vpop.f32.mrb[0].mxu0
    %v4948 = vadd.f32 %v4905, %v4947
    %v4949 = vpop.f32.mrb[0].mxu0
    %v4950 = vadd.f32 %v4907, %v4949
    %4951 = vdwg.mxu0
    %4952 = vmatprep.subr.bf16.mxu0 %v4248
    %4953 = vmatpush1.bf16.msra.mxu0 %v4247
    %4954 = vmatprep.subr.bf16.mxu0 %v4252
    %4955 = vmatpush1.bf16.msra.mxu0 %v4251
    %4956 = vmatprep.subr.bf16.mxu0 %v4256
    %4957 = vmatpush1.bf16.msra.mxu0 %v4255
    %4958 = vmatprep.subr.bf16.mxu0 %v4260
    %4959 = vmatpush1.bf16.msra.mxu0 %v4259
    %4960 = vmatprep.subr.bf16.mxu0 %v4264
    %4961 = vmatpush1.bf16.msra.mxu0 %v4263
    %4962 = vmatprep.subr.bf16.mxu0 %v4268
    %4963 = vmatpush1.bf16.msra.mxu0 %v4267
    %4964 = vmatprep.subr.bf16.mxu0 %v4272
    %4965 = vmatpush1.bf16.msra.mxu0 %v4271
    %4966 = vmatprep.subr.bf16.mxu0 %v4276
    %4967 = vmatpush1.bf16.msra.mxu0 %v4275
    %4968 = vmatprep.subr.bf16.mxu0 %v4280
    %4969 = vmatpush1.bf16.msra.mxu0 %v4279
    %4970 = vmatprep.subr.bf16.mxu0 %v4284
    %4971 = vmatpush1.bf16.msra.mxu0 %v4283
    %4972 = vmatprep.subr.bf16.mxu0 %v4288
    %4973 = vmatpush1.bf16.msra.mxu0 %v4287
    %4974 = vmatprep.subr.bf16.mxu0 %v4292
    %4975 = vmatpush1.bf16.msra.mxu0 %v4291
    %4976 = vmatprep.subr.bf16.mxu0 %v4296
    %4977 = vmatpush1.bf16.msra.mxu0 %v4295
    %4978 = vmatprep.subr.bf16.mxu0 %v4300
    %4979 = vmatpush1.bf16.msra.mxu0 %v4299
    %4980 = vmatprep.subr.bf16.mxu0 %v4304
    %4981 = vmatpush1.bf16.msra.mxu0 %v4303
    %4982 = vmatprep.subr.bf16.mxu0 %v4308
    %4983 = vmatpush1.bf16.msra.mxu0 %v4307
    %4984 = vmatprep.mubr.bf16.mxu0 %v2492
    %4985 = vmatmul.mubr.bf16.gmra.mrb[0].mxu0 %v2491
    %v4986 = vpop.f32.mrb[0].mxu0
    %v4987 = vadd.f32 %v4944, %v4986
    %v4988 = vpop.f32.mrb[0].mxu0
    %v4989 = vadd.f32 %v4946, %v4988
    %v4990 = vpop.f32.mrb[0].mxu0
    %v4991 = vadd.f32 %v4948, %v4990
    %v4992 = vpop.f32.mrb[0].mxu0
    %v4993 = vadd.f32 %v4950, %v4992
    %4994 = vdwg.mxu0
    %4995 = vmatprep.subr.bf16.mxu0 %v4312
    %4996 = vmatpush1.bf16.msra.mxu0 %v4311
    %4997 = vmatprep.subr.bf16.mxu0 %v4316
    %4998 = vmatpush1.bf16.msra.mxu0 %v4315
    %4999 = vmatprep.subr.bf16.mxu0 %v4320
    %5000 = vmatpush1.bf16.msra.mxu0 %v4319
    %5001 = vmatprep.subr.bf16.mxu0 %v4324
    %5002 = vmatpush1.bf16.msra.mxu0 %v4323
    %5003 = vmatprep.subr.bf16.mxu0 %v4328
    %5004 = vmatpush1.bf16.msra.mxu0 %v4327
    %5005 = vmatprep.subr.bf16.mxu0 %v4332
    %5006 = vmatpush1.bf16.msra.mxu0 %v4331
    %5007 = vmatprep.subr.bf16.mxu0 %v4336
    %5008 = vmatpush1.bf16.msra.mxu0 %v4335
    %5009 = vmatprep.subr.bf16.mxu0 %v4340
    %5010 = vmatpush1.bf16.msra.mxu0 %v4339
    %5011 = vmatprep.subr.bf16.mxu0 %v4344
    %5012 = vmatpush1.bf16.msra.mxu0 %v4343
    %5013 = vmatprep.subr.bf16.mxu0 %v4348
    %5014 = vmatpush1.bf16.msra.mxu0 %v4347
    %5015 = vmatprep.subr.bf16.mxu0 %v4352
    %5016 = vmatpush1.bf16.msra.mxu0 %v4351
    %5017 = vmatprep.subr.bf16.mxu0 %v4356
    %5018 = vmatpush1.bf16.msra.mxu0 %v4355
    %5019 = vmatprep.subr.bf16.mxu0 %v4360
    %5020 = vmatpush1.bf16.msra.mxu0 %v4359
    %5021 = vmatprep.subr.bf16.mxu0 %v4364
    %5022 = vmatpush1.bf16.msra.mxu0 %v4363
    %5023 = vmatprep.subr.bf16.mxu0 %v4368
    %5024 = vmatpush1.bf16.msra.mxu0 %v4367
    %5025 = vmatprep.subr.bf16.mxu0 %v4372
    %5026 = vmatpush1.bf16.msra.mxu0 %v4371
    %5027 = vmatprep.mubr.bf16.mxu0 %v2474
    %5028 = vmatmul.mubr.bf16.gmra.mrb[0].mxu0 %v2473
    %v5029 = vpop.f32.mrb[0].mxu0
    %v5030 = vadd.f32 %v4987, %v5029
    %v5031 = vpop.f32.mrb[0].mxu0
    %v5032 = vadd.f32 %v4989, %v5031
    %v5033 = vpop.f32.mrb[0].mxu0
    %v5034 = vadd.f32 %v4991, %v5033
    %v5035 = vpop.f32.mrb[0].mxu0
    %v5036 = vadd.f32 %v4993, %v5035
    %5037 = vdwg.mxu0
    %5038 = vmatprep.subr.bf16.mxu0 %v4376
    %5039 = vmatpush1.bf16.msra.mxu0 %v4375
    %5040 = vmatprep.subr.bf16.mxu0 %v4380
    %5041 = vmatpush1.bf16.msra.mxu0 %v4379
    %5042 = vmatprep.subr.bf16.mxu0 %v4384
    %5043 = vmatpush1.bf16.msra.mxu0 %v4383
    %5044 = vmatprep.subr.bf16.mxu0 %v4388
    %5045 = vmatpush1.bf16.msra.mxu0 %v4387
    %5046 = vmatprep.subr.bf16.mxu0 %v4392
    %5047 = vmatpush1.bf16.msra.mxu0 %v4391
    %5048 = vmatprep.subr.bf16.mxu0 %v4396
    %5049 = vmatpush1.bf16.msra.mxu0 %v4395
    %5050 = vmatprep.subr.bf16.mxu0 %v4400
    %5051 = vmatpush1.bf16.msra.mxu0 %v4399
    %5052 = vmatprep.subr.bf16.mxu0 %v4404
    %5053 = vmatpush1.bf16.msra.mxu0 %v4403
    %5054 = vmatprep.subr.bf16.mxu0 %v4408
    %5055 = vmatpush1.bf16.msra.mxu0 %v4407
    %5056 = vmatprep.subr.bf16.mxu0 %v4412
    %5057 = vmatpush1.bf16.msra.mxu0 %v4411
    %5058 = vmatprep.subr.bf16.mxu0 %v4416
    %5059 = vmatpush1.bf16.msra.mxu0 %v4415
    %5060 = vmatprep.subr.bf16.mxu0 %v4420
    %5061 = vmatpush1.bf16.msra.mxu0 %v4419
    %5062 = vmatprep.subr.bf16.mxu0 %v4424
    %5063 = vmatpush1.bf16.msra.mxu0 %v4423
    %5064 = vmatprep.subr.bf16.mxu0 %v4428
    %5065 = vmatpush1.bf16.msra.mxu0 %v4427
    %5066 = vmatprep.subr.bf16.mxu0 %v4432
    %5067 = vmatpush1.bf16.msra.mxu0 %v4431
    %5068 = vmatprep.subr.bf16.mxu0 %v4436
    %5069 = vmatpush1.bf16.msra.mxu0 %v4435
    %5070 = vmatprep.mubr.bf16.mxu0 %v2476
    %5071 = vmatmul.mubr.bf16.gmra.mrb[0].mxu0 %v2475
    %v5072 = vpop.f32.mrb[0].mxu0
    %v5073 = vadd.f32 %v5030, %v5072
    %v5074 = vpop.f32.mrb[0].mxu0
    %v5075 = vadd.f32 %v5032, %v5074
    %v5076 = vpop.f32.mrb[0].mxu0
    %v5077 = vadd.f32 %v5034, %v5076
    %v5078 = vpop.f32.mrb[0].mxu0
    %v5079 = vadd.f32 %v5036, %v5078
    %5080 = vdwg.mxu0
    %5081 = vmatprep.subr.bf16.mxu0 %v4058
    %5082 = vmatpush1.bf16.msra.mxu0 %v4057
    %5083 = vmatprep.subr.bf16.mxu0 %v4062
    %5084 = vmatpush1.bf16.msra.mxu0 %v4061
    %5085 = vmatprep.subr.bf16.mxu0 %v4066
    %5086 = vmatpush1.bf16.msra.mxu0 %v4065
    %5087 = vmatprep.subr.bf16.mxu0 %v4070
    %5088 = vmatpush1.bf16.msra.mxu0 %v4069
    %5089 = vmatprep.subr.bf16.mxu0 %v4074
    %5090 = vmatpush1.bf16.msra.mxu0 %v4073
    %5091 = vmatprep.subr.bf16.mxu0 %v4078
    %5092 = vmatpush1.bf16.msra.mxu0 %v4077
    %5093 = vmatprep.subr.bf16.mxu0 %v4082
    %5094 = vmatpush1.bf16.msra.mxu0 %v4081
    %5095 = vmatprep.subr.bf16.mxu0 %v4086
    %5096 = vmatpush1.bf16.msra.mxu0 %v4085
    %5097 = vmatprep.subr.bf16.mxu0 %v4090
    %5098 = vmatpush1.bf16.msra.mxu0 %v4089
    %5099 = vmatprep.subr.bf16.mxu0 %v4094
    %5100 = vmatpush1.bf16.msra.mxu0 %v4093
    %5101 = vmatprep.subr.bf16.mxu0 %v4098
    %5102 = vmatpush1.bf16.msra.mxu0 %v4097
    %5103 = vmatprep.subr.bf16.mxu0 %v4102
    %5104 = vmatpush1.bf16.msra.mxu0 %v4101
    %5105 = vmatprep.subr.bf16.mxu0 %v4106
    %5106 = vmatpush1.bf16.msra.mxu0 %v4105
    %5107 = vmatprep.subr.bf16.mxu0 %v4110
    %5108 = vmatpush1.bf16.msra.mxu0 %v4109
    %5109 = vmatprep.subr.bf16.mxu0 %v4114
    %5110 = vmatpush1.bf16.msra.mxu0 %v4113
    %5111 = vmatprep.subr.bf16.mxu0 %v4118
    %5112 = vmatpush1.bf16.msra.mxu0 %v4117
    %5113 = vmatprep.mubr.bf16.mxu0 %v2454
    %5114 = vmatmul.mubr.bf16.gmra.mrb[0].mxu0 %v2453
    %v5115 = vpop.f32.mrb[0].mxu0
    %v5116 = vadd.f32 %v2894, %v5115
    %v5117 = vpop.f32.mrb[0].mxu0
    %v5118 = vadd.f32 %v2898, %v5117
    %v5119 = vpop.f32.mrb[0].mxu0
    %v5120 = vadd.f32 %v2894, %v5119
    %v5121 = vpop.f32.mrb[0].mxu0
    %v5122 = vadd.f32 %v2898, %v5121
    %5123 = vdwg.mxu0
    %5124 = vmatprep.subr.bf16.mxu0 %v4122
    %5125 = vmatpush1.bf16.msra.mxu0 %v4121
    %5126 = vmatprep.subr.bf16.mxu0 %v4126
    %5127 = vmatpush1.bf16.msra.mxu0 %v4125
    %5128 = vmatprep.subr.bf16.mxu0 %v4130
    %5129 = vmatpush1.bf16.msra.mxu0 %v4129
    %5130 = vmatprep.subr.bf16.mxu0 %v4134
    %5131 = vmatpush1.bf16.msra.mxu0 %v4133
    %5132 = vmatprep.subr.bf16.mxu0 %v4138
    %5133 = vmatpush1.bf16.msra.mxu0 %v4137
    %5134 = vmatprep.subr.bf16.mxu0 %v4142
    %5135 = vmatpush1.bf16.msra.mxu0 %v4141
    %5136 = vmatprep.subr.bf16.mxu0 %v4146
    %5137 = vmatpush1.bf16.msra.mxu0 %v4145
    %5138 = vmatprep.subr.bf16.mxu0 %v4150
    %5139 = vmatpush1.bf16.msra.mxu0 %v4149
    %5140 = vmatprep.subr.bf16.mxu0 %v4154
    %5141 = vmatpush1.bf16.msra.mxu0 %v4153
    %5142 = vmatprep.subr.bf16.mxu0 %v4158
    %5143 = vmatpush1.bf16.msra.mxu0 %v4157
    %5144 = vmatprep.subr.bf16.mxu0 %v4162
    %5145 = vmatpush1.bf16.msra.mxu0 %v4161
    %5146 = vmatprep.subr.bf16.mxu0 %v4166
    %5147 = vmatpush1.bf16.msra.mxu0 %v4165
    %5148 = vmatprep.subr.bf16.mxu0 %v4170
    %5149 = vmatpush1.bf16.msra.mxu0 %v4169
    %5150 = vmatprep.subr.bf16.mxu0 %v4174
    %5151 = vmatpush1.bf16.msra.mxu0 %v4173
    %5152 = vmatprep.subr.bf16.mxu0 %v4178
    %5153 = vmatpush1.bf16.msra.mxu0 %v4177
    %5154 = vmatprep.subr.bf16.mxu0 %v4182
    %5155 = vmatpush1.bf16.msra.mxu0 %v4181
    %5156 = vmatprep.mubr.bf16.mxu0 %v2456
    %5157 = vmatmul.mubr.bf16.gmra.mrb[0].mxu0 %v2455
    %v5158 = vpop.f32.mrb[0].mxu0
    %v5159 = vadd.f32 %v5116, %v5158
    %v5160 = vpop.f32.mrb[0].mxu0
    %v5161 = vadd.f32 %v5118, %v5160
    %v5162 = vpop.f32.mrb[0].mxu0
    %v5163 = vadd.f32 %v5120, %v5162
    %v5164 = vpop.f32.mrb[0].mxu0
    %v5165 = vadd.f32 %v5122, %v5164
    %5166 = vdwg.mxu0
    %5167 = vmatprep.subr.bf16.mxu0 %v4186
    %5168 = vmatpush1.bf16.msra.mxu0 %v4185
    %5169 = vmatprep.subr.bf16.mxu0 %v4190
    %5170 = vmatpush1.bf16.msra.mxu0 %v4189
    %5171 = vmatprep.subr.bf16.mxu0 %v4194
    %5172 = vmatpush1.bf16.msra.mxu0 %v4193
    %5173 = vmatprep.subr.bf16.mxu0 %v4198
    %5174 = vmatpush1.bf16.msra.mxu0 %v4197
    %5175 = vmatprep.subr.bf16.mxu0 %v4202
    %5176 = vmatpush1.bf16.msra.mxu0 %v4201
    %5177 = vmatprep.subr.bf16.mxu0 %v4206
    %5178 = vmatpush1.bf16.msra.mxu0 %v4205
    %5179 = vmatprep.subr.bf16.mxu0 %v4210
    %5180 = vmatpush1.bf16.msra.mxu0 %v4209
    %5181 = vmatprep.subr.bf16.mxu0 %v4214
    %5182 = vmatpush1.bf16.msra.mxu0 %v4213
    %5183 = vmatprep.subr.bf16.mxu0 %v4218
    %5184 = vmatpush1.bf16.msra.mxu0 %v4217
    %5185 = vmatprep.subr.bf16.mxu0 %v4222
    %5186 = vmatpush1.bf16.msra.mxu0 %v4221
    %5187 = vmatprep.subr.bf16.mxu0 %v4226
    %5188 = vmatpush1.bf16.msra.mxu0 %v4225
    %5189 = vmatprep.subr.bf16.mxu0 %v4230
    %5190 = vmatpush1.bf16.msra.mxu0 %v4229
    %5191 = vmatprep.subr.bf16.mxu0 %v4234
    %5192 = vmatpush1.bf16.msra.mxu0 %v4233
    %5193 = vmatprep.subr.bf16.mxu0 %v4238
    %5194 = vmatpush1.bf16.msra.mxu0 %v4237
    %5195 = vmatprep.subr.bf16.mxu0 %v4242
    %5196 = vmatpush1.bf16.msra.mxu0 %v4241
    %5197 = vmatprep.subr.bf16.mxu0 %v4246
    %5198 = vmatpush1.bf16.msra.mxu0 %v4245
    %5199 = vmatprep.mubr.bf16.mxu0 %v2490
    %5200 = vmatmul.mubr.bf16.gmra.mrb[0].mxu0 %v2489
    %v5201 = vpop.f32.mrb[0].mxu0
    %v5202 = vadd.f32 %v5159, %v5201
    %v5203 = vpop.f32.mrb[0].mxu0
    %v5204 = vadd.f32 %v5161, %v5203
    %v5205 = vpop.f32.mrb[0].mxu0
    %v5206 = vadd.f32 %v5163, %v5205
    %v5207 = vpop.f32.mrb[0].mxu0
    %v5208 = vadd.f32 %v5165, %v5207
    %5209 = vdwg.mxu0
    %5210 = vmatprep.subr.bf16.mxu0 %v4250
    %5211 = vmatpush1.bf16.msra.mxu0 %v4249
    %5212 = vmatprep.subr.bf16.mxu0 %v4254
    %5213 = vmatpush1.bf16.msra.mxu0 %v4253
    %5214 = vmatprep.subr.bf16.mxu0 %v4258
    %5215 = vmatpush1.bf16.msra.mxu0 %v4257
    %5216 = vmatprep.subr.bf16.mxu0 %v4262
    %5217 = vmatpush1.bf16.msra.mxu0 %v4261
    %5218 = vmatprep.subr.bf16.mxu0 %v4266
    %5219 = vmatpush1.bf16.msra.mxu0 %v4265
    %5220 = vmatprep.subr.bf16.mxu0 %v4270
    %5221 = vmatpush1.bf16.msra.mxu0 %v4269
    %5222 = vmatprep.subr.bf16.mxu0 %v4274
    %5223 = vmatpush1.bf16.msra.mxu0 %v4273
    %5224 = vmatprep.subr.bf16.mxu0 %v4278
    %5225 = vmatpush1.bf16.msra.mxu0 %v4277
    %5226 = vmatprep.subr.bf16.mxu0 %v4282
    %5227 = vmatpush1.bf16.msra.mxu0 %v4281
    %5228 = vmatprep.subr.bf16.mxu0 %v4286
    %5229 = vmatpush1.bf16.msra.mxu0 %v4285
    %5230 = vmatprep.subr.bf16.mxu0 %v4290
    %5231 = vmatpush1.bf16.msra.mxu0 %v4289
    %5232 = vmatprep.subr.bf16.mxu0 %v4294
    %5233 = vmatpush1.bf16.msra.mxu0 %v4293
    %5234 = vmatprep.subr.bf16.mxu0 %v4298
    %5235 = vmatpush1.bf16.msra.mxu0 %v4297
    %5236 = vmatprep.subr.bf16.mxu0 %v4302
    %5237 = vmatpush1.bf16.msra.mxu0 %v4301
    %5238 = vmatprep.subr.bf16.mxu0 %v4306
    %5239 = vmatpush1.bf16.msra.mxu0 %v4305
    %5240 = vmatprep.subr.bf16.mxu0 %v4310
    %5241 = vmatpush1.bf16.msra.mxu0 %v4309
    %5242 = vmatprep.mubr.bf16.mxu0 %v2492
    %5243 = vmatmul.mubr.bf16.gmra.mrb[0].mxu0 %v2491
    %v5244 = vpop.f32.mrb[0].mxu0
    %v5245 = vadd.f32 %v5202, %v5244
    %v5246 = vpop.f32.mrb[0].mxu0
    %v5247 = vadd.f32 %v5204, %v5246
    %v5248 = vpop.f32.mrb[0].mxu0
    %v5249 = vadd.f32 %v5206, %v5248
    %v5250 = vpop.f32.mrb[0].mxu0
    %v5251 = vadd.f32 %v5208, %v5250
    %5252 = vdwg.mxu0
    %5253 = vmatprep.subr.bf16.mxu0 %v4314
    %5254 = vmatpush1.bf16.msra.mxu0 %v4313
    %5255 = vmatprep.subr.bf16.mxu0 %v4318
    %5256 = vmatpush1.bf16.msra.mxu0 %v4317
    %5257 = vmatprep.subr.bf16.mxu0 %v4322
    %5258 = vmatpush1.bf16.msra.mxu0 %v4321
    %5259 = vmatprep.subr.bf16.mxu0 %v4326
    %5260 = vmatpush1.bf16.msra.mxu0 %v4325
    %5261 = vmatprep.subr.bf16.mxu0 %v4330
    %5262 = vmatpush1.bf16.msra.mxu0 %v4329
    %5263 = vmatprep.subr.bf16.mxu0 %v4334
    %5264 = vmatpush1.bf16.msra.mxu0 %v4333
    %5265 = vmatprep.subr.bf16.mxu0 %v4338
    %5266 = vmatpush1.bf16.msra.mxu0 %v4337
    %5267 = vmatprep.subr.bf16.mxu0 %v4342
    %5268 = vmatpush1.bf16.msra.mxu0 %v4341
    %5269 = vmatprep.subr.bf16.mxu0 %v4346
    %5270 = vmatpush1.bf16.msra.mxu0 %v4345
    %5271 = vmatprep.subr.bf16.mxu0 %v4350
    %5272 = vmatpush1.bf16.msra.mxu0 %v4349
    %5273 = vmatprep.subr.bf16.mxu0 %v4354
    %5274 = vmatpush1.bf16.msra.mxu0 %v4353
    %5275 = vmatprep.subr.bf16.mxu0 %v4358
    %5276 = vmatpush1.bf16.msra.mxu0 %v4357
    %5277 = vmatprep.subr.bf16.mxu0 %v4362
    %5278 = vmatpush1.bf16.msra.mxu0 %v4361
    %5279 = vmatprep.subr.bf16.mxu0 %v4366
    %5280 = vmatpush1.bf16.msra.mxu0 %v4365
    %5281 = vmatprep.subr.bf16.mxu0 %v4370
    %5282 = vmatpush1.bf16.msra.mxu0 %v4369
    %5283 = vmatprep.subr.bf16.mxu0 %v4374
    %5284 = vmatpush1.bf16.msra.mxu0 %v4373
    %5285 = vmatprep.mubr.bf16.mxu0 %v2474
    %5286 = vmatmul.mubr.bf16.gmra.mrb[0].mxu0 %v2473
    %v5287 = vpop.f32.mrb[0].mxu0
    %v5288 = vadd.f32 %v5245, %v5287
    %v5289 = vpop.f32.mrb[0].mxu0
    %v5290 = vadd.f32 %v5247, %v5289
    %v5291 = vpop.f32.mrb[0].mxu0
    %v5292 = vadd.f32 %v5249, %v5291
    %v5293 = vpop.f32.mrb[0].mxu0
    %v5294 = vadd.f32 %v5251, %v5293
    %5295 = vdwg.mxu0
    %5296 = vmatprep.subr.bf16.mxu0 %v4378
    %5297 = vmatpush1.bf16.msra.mxu0 %v4377
    %5298 = vmatprep.subr.bf16.mxu0 %v4382
    %5299 = vmatpush1.bf16.msra.mxu0 %v4381
    %5300 = vmatprep.subr.bf16.mxu0 %v4386
    %5301 = vmatpush1.bf16.msra.mxu0 %v4385
    %5302 = vmatprep.subr.bf16.mxu0 %v4390
    %5303 = vmatpush1.bf16.msra.mxu0 %v4389
    %5304 = vmatprep.subr.bf16.mxu0 %v4394
    %5305 = vmatpush1.bf16.msra.mxu0 %v4393
    %5306 = vmatprep.subr.bf16.mxu0 %v4398
    %5307 = vmatpush1.bf16.msra.mxu0 %v4397
    %5308 = vmatprep.subr.bf16.mxu0 %v4402
    %5309 = vmatpush1.bf16.msra.mxu0 %v4401
    %5310 = vmatprep.subr.bf16.mxu0 %v4406
    %5311 = vmatpush1.bf16.msra.mxu0 %v4405
    %5312 = vmatprep.subr.bf16.mxu0 %v4410
    %5313 = vmatpush1.bf16.msra.mxu0 %v4409
    %5314 = vmatprep.subr.bf16.mxu0 %v4414
    %5315 = vmatpush1.bf16.msra.mxu0 %v4413
    %5316 = vmatprep.subr.bf16.mxu0 %v4418
    %5317 = vmatpush1.bf16.msra.mxu0 %v4417
    %5318 = vmatprep.subr.bf16.mxu0 %v4422
    %5319 = vmatpush1.bf16.msra.mxu0 %v4421
    %5320 = vmatprep.subr.bf16.mxu0 %v4426
    %5321 = vmatpush1.bf16.msra.mxu0 %v4425
    %5322 = vmatprep.subr.bf16.mxu0 %v4430
    %5323 = vmatpush1.bf16.msra.mxu0 %v4429
    %5324 = vmatprep.subr.bf16.mxu0 %v4434
    %5325 = vmatpush1.bf16.msra.mxu0 %v4433
    %5326 = vmatprep.subr.bf16.mxu0 %v4438
    %5327 = vmatpush1.bf16.msra.mxu0 %v4437
    %5328 = vmatprep.mubr.bf16.mxu0 %v2476
    %5329 = vmatmul.mubr.bf16.gmra.mrb[0].mxu0 %v2475
    %v5330 = vpop.f32.mrb[0].mxu0
    %v5331 = vadd.f32 %v5288, %v5330
    %v5332 = vpop.f32.mrb[0].mxu0
    %v5333 = vadd.f32 %v5290, %v5332
    %v5334 = vpop.f32.mrb[0].mxu0
    %v5335 = vadd.f32 %v5292, %v5334
    %v5336 = vpop.f32.mrb[0].mxu0
    %v5337 = vadd.f32 %v5294, %v5336
    %5338 = vdwg.mxu0
    %v5339 = vmax.f32 %v5073, 0.0
    %v5340 = vmax.f32 %v5075, 0.0
    %v5341 = vmax.f32 %v5331, 0.0
    %v5342 = vmax.f32 %v5333, 0.0
    %v5343 = vmax.f32 %v5077, 0.0
    %v5344 = vmax.f32 %v5079, 0.0
    %v5345 = vmax.f32 %v5335, 0.0
    %v5346 = vmax.f32 %v5337, 0.0
    %v5347 = vpack.c.bf16 %v5343, %v5339
    %v5348 = vpack.c.bf16 %v5344, %v5340
    %v5349 = vpack.c.bf16 %v5345, %v5341
    %v5350 = vpack.c.bf16 %v5346, %v5342
    %v5351 = vld [vmem:[#allocation17] sm:$0xff]
    %v5352 = vld [vmem:[#allocation17 + $0x8] sm:$0xff]
    %v5353 = vld [vmem:[#allocation17 + $0x10] sm:$0xff]
    %v5354 = vld [vmem:[#allocation17 + $0x18] sm:$0xff]
    %v5355 = vld [vmem:[#allocation17 + $0x20] sm:$0xff]
    %v5356 = vld [vmem:[#allocation17 + $0x28] sm:$0xff]
    %v5357 = vld [vmem:[#allocation17 + $0x30] sm:$0xff]
    %v5358 = vld [vmem:[#allocation17 + $0x38] sm:$0xff]
    %v5359 = vld [vmem:[#allocation17 + $0x40] sm:$0xff]
    %v5360 = vld [vmem:[#allocation17 + $0x48] sm:$0xff]
    %v5361 = vld [vmem:[#allocation17 + $0x50] sm:$0xff]
    %v5362 = vld [vmem:[#allocation17 + $0x58] sm:$0xff]
    %v5363 = vld [vmem:[#allocation17 + $0x60] sm:$0xff]
    %v5364 = vld [vmem:[#allocation17 + $0x68] sm:$0xff]
    %v5365 = vld [vmem:[#allocation17 + $0x70] sm:$0xff]
    %v5366 = vld [vmem:[#allocation17 + $0x78] sm:$0xff]
    %v5367 = vld [vmem:[#allocation17 + $0x80] sm:$0xff]
    %v5368 = vld [vmem:[#allocation17 + $0x88] sm:$0xff]
    %v5369 = vld [vmem:[#allocation17 + $0x90] sm:$0xff]
    %v5370 = vld [vmem:[#allocation17 + $0x98] sm:$0xff]
    %v5371 = vld [vmem:[#allocation17 + $0xa0] sm:$0xff]
    %v5372 = vld [vmem:[#allocation17 + $0xa8] sm:$0xff]
    %v5373 = vld [vmem:[#allocation17 + $0xb0] sm:$0xff]
    %v5374 = vld [vmem:[#allocation17 + $0xb8] sm:$0xff]
    %v5375 = vld [vmem:[#allocation17 + $0xc0] sm:$0xff]
    %v5376 = vld [vmem:[#allocation17 + $0xc8] sm:$0xff]
    %v5377 = vld [vmem:[#allocation17 + $0xd0] sm:$0xff]
    %v5378 = vld [vmem:[#allocation17 + $0xd8] sm:$0xff]
    %v5379 = vld [vmem:[#allocation17 + $0xe0] sm:$0xff]
    %v5380 = vld [vmem:[#allocation17 + $0xe8] sm:$0xff]
    %v5381 = vld [vmem:[#allocation17 + $0xf0] sm:$0xff]
    %v5382 = vld [vmem:[#allocation17 + $0xf8] sm:$0xff]
    %v5383 = vld [vmem:[#allocation17 + $0x100] sm:$0xff]
    %v5384 = vld [vmem:[#allocation17 + $0x108] sm:$0xff]
    %v5385 = vld [vmem:[#allocation17 + $0x110] sm:$0xff]
    %v5386 = vld [vmem:[#allocation17 + $0x118] sm:$0xff]
    %v5387 = vld [vmem:[#allocation17 + $0x120] sm:$0xff]
    %v5388 = vld [vmem:[#allocation17 + $0x128] sm:$0xff]
    %v5389 = vld [vmem:[#allocation17 + $0x130] sm:$0xff]
    %v5390 = vld [vmem:[#allocation17 + $0x138] sm:$0xff]
    %v5391 = vld [vmem:[#allocation17 + $0x140] sm:$0xff]
    %v5392 = vld [vmem:[#allocation17 + $0x148] sm:$0xff]
    %v5393 = vld [vmem:[#allocation17 + $0x150] sm:$0xff]
    %v5394 = vld [vmem:[#allocation17 + $0x158] sm:$0xff]
    %v5395 = vld [vmem:[#allocation17 + $0x160] sm:$0xff]
    %v5396 = vld [vmem:[#allocation17 + $0x168] sm:$0xff]
    %v5397 = vld [vmem:[#allocation17 + $0x170] sm:$0xff]
    %v5398 = vld [vmem:[#allocation17 + $0x178] sm:$0xff]
    %v5399 = vld [vmem:[#allocation17 + $0x180] sm:$0xff]
    %v5400 = vld [vmem:[#allocation17 + $0x188] sm:$0xff]
    %v5401 = vld [vmem:[#allocation17 + $0x190] sm:$0xff]
    %v5402 = vld [vmem:[#allocation17 + $0x198] sm:$0xff]
    %v5403 = vld [vmem:[#allocation17 + $0x1a0] sm:$0xff]
    %v5404 = vld [vmem:[#allocation17 + $0x1a8] sm:$0xff]
    %v5405 = vld [vmem:[#allocation17 + $0x1b0] sm:$0xff]
    %v5406 = vld [vmem:[#allocation17 + $0x1b8] sm:$0xff]
    %v5407 = vld [vmem:[#allocation17 + $0x1c0] sm:$0xff]
    %v5408 = vld [vmem:[#allocation17 + $0x1c8] sm:$0xff]
    %v5409 = vld [vmem:[#allocation17 + $0x1d0] sm:$0xff]
    %v5410 = vld [vmem:[#allocation17 + $0x1d8] sm:$0xff]
    %v5411 = vld [vmem:[#allocation17 + $0x1e0] sm:$0xff]
    %v5412 = vld [vmem:[#allocation17 + $0x1e8] sm:$0xff]
    %v5413 = vld [vmem:[#allocation17 + $0x1f0] sm:$0xff]
    %v5414 = vld [vmem:[#allocation17 + $0x1f8] sm:$0xff]
    %v5415 = vld [vmem:[#allocation19] sm:$0x3]
    %v5417 = vlaneseq
    %v5418 = vshrl.u32 %v5417, 7
    %v5419 = vsub.s32 0, %v5418
    %v5420 = vrot.slane %v5415, %v5419
    %v5421 = vlaneseq
    %v5422 = vshrl.u32 %v5421, 7
    %v5423 = vsub.s32 1, %v5422
    %v5424 = vrot.slane %v5415, %v5423
    %v5491 = vunpack.c.l.b16 %v5351
    %v5492 = vunpack.c.h.b16 %v5351
    %v5493 = vunpack.c.l.b16 %v5352
    %v5494 = vunpack.c.h.b16 %v5352
    %v5495 = vunpack.c.l.b16 %v5353
    %v5496 = vunpack.c.h.b16 %v5353
    %v5497 = vunpack.c.l.b16 %v5354
    %v5498 = vunpack.c.h.b16 %v5354
    %v5499 = vunpack.c.l.b16 %v5355
    %v5500 = vunpack.c.h.b16 %v5355
    %v5501 = vunpack.c.l.b16 %v5356
    %v5502 = vunpack.c.h.b16 %v5356
    %v5503 = vunpack.c.l.b16 %v5357
    %v5504 = vunpack.c.h.b16 %v5357
    %v5505 = vunpack.c.l.b16 %v5358
    %v5506 = vunpack.c.h.b16 %v5358
    %v5507 = vunpack.c.l.b16 %v5359
    %v5508 = vunpack.c.h.b16 %v5359
    %v5509 = vunpack.c.l.b16 %v5360
    %v5510 = vunpack.c.h.b16 %v5360
    %v5511 = vunpack.c.l.b16 %v5361
    %v5512 = vunpack.c.h.b16 %v5361
    %v5513 = vunpack.c.l.b16 %v5362
    %v5514 = vunpack.c.h.b16 %v5362
    %v5515 = vunpack.c.l.b16 %v5363
    %v5516 = vunpack.c.h.b16 %v5363
    %v5517 = vunpack.c.l.b16 %v5364
    %v5518 = vunpack.c.h.b16 %v5364
    %v5519 = vunpack.c.l.b16 %v5365
    %v5520 = vunpack.c.h.b16 %v5365
    %v5521 = vunpack.c.l.b16 %v5366
    %v5522 = vunpack.c.h.b16 %v5366
    %v5523 = vunpack.c.l.b16 %v5367
    %v5524 = vunpack.c.h.b16 %v5367
    %v5525 = vunpack.c.l.b16 %v5368
    %v5526 = vunpack.c.h.b16 %v5368
    %v5527 = vunpack.c.l.b16 %v5369
    %v5528 = vunpack.c.h.b16 %v5369
    %v5529 = vunpack.c.l.b16 %v5370
    %v5530 = vunpack.c.h.b16 %v5370
    %v5531 = vunpack.c.l.b16 %v5371
    %v5532 = vunpack.c.h.b16 %v5371
    %v5533 = vunpack.c.l.b16 %v5372
    %v5534 = vunpack.c.h.b16 %v5372
    %v5535 = vunpack.c.l.b16 %v5373
    %v5536 = vunpack.c.h.b16 %v5373
    %v5537 = vunpack.c.l.b16 %v5374
    %v5538 = vunpack.c.h.b16 %v5374
    %v5539 = vunpack.c.l.b16 %v5375
    %v5540 = vunpack.c.h.b16 %v5375
    %v5541 = vunpack.c.l.b16 %v5376
    %v5542 = vunpack.c.h.b16 %v5376
    %v5543 = vunpack.c.l.b16 %v5377
    %v5544 = vunpack.c.h.b16 %v5377
    %v5545 = vunpack.c.l.b16 %v5378
    %v5546 = vunpack.c.h.b16 %v5378
    %v5547 = vunpack.c.l.b16 %v5379
    %v5548 = vunpack.c.h.b16 %v5379
    %v5549 = vunpack.c.l.b16 %v5380
    %v5550 = vunpack.c.h.b16 %v5380
    %v5551 = vunpack.c.l.b16 %v5381
    %v5552 = vunpack.c.h.b16 %v5381
    %v5553 = vunpack.c.l.b16 %v5382
    %v5554 = vunpack.c.h.b16 %v5382
    %v5555 = vunpack.c.l.b16 %v5383
    %v5556 = vunpack.c.h.b16 %v5383
    %v5557 = vunpack.c.l.b16 %v5384
    %v5558 = vunpack.c.h.b16 %v5384
    %v5559 = vunpack.c.l.b16 %v5385
    %v5560 = vunpack.c.h.b16 %v5385
    %v5561 = vunpack.c.l.b16 %v5386
    %v5562 = vunpack.c.h.b16 %v5386
    %v5563 = vunpack.c.l.b16 %v5387
    %v5564 = vunpack.c.h.b16 %v5387
    %v5565 = vunpack.c.l.b16 %v5388
    %v5566 = vunpack.c.h.b16 %v5388
    %v5567 = vunpack.c.l.b16 %v5389
    %v5568 = vunpack.c.h.b16 %v5389
    %v5569 = vunpack.c.l.b16 %v5390
    %v5570 = vunpack.c.h.b16 %v5390
    %v5571 = vunpack.c.l.b16 %v5391
    %v5572 = vunpack.c.h.b16 %v5391
    %v5573 = vunpack.c.l.b16 %v5392
    %v5574 = vunpack.c.h.b16 %v5392
    %v5575 = vunpack.c.l.b16 %v5393
    %v5576 = vunpack.c.h.b16 %v5393
    %v5577 = vunpack.c.l.b16 %v5394
    %v5578 = vunpack.c.h.b16 %v5394
    %v5579 = vunpack.c.l.b16 %v5395
    %v5580 = vunpack.c.h.b16 %v5395
    %v5581 = vunpack.c.l.b16 %v5396
    %v5582 = vunpack.c.h.b16 %v5396
    %v5583 = vunpack.c.l.b16 %v5397
    %v5584 = vunpack.c.h.b16 %v5397
    %v5585 = vunpack.c.l.b16 %v5398
    %v5586 = vunpack.c.h.b16 %v5398
    %v5587 = vunpack.c.l.b16 %v5399
    %v5588 = vunpack.c.h.b16 %v5399
    %v5589 = vunpack.c.l.b16 %v5400
    %v5590 = vunpack.c.h.b16 %v5400
    %v5591 = vunpack.c.l.b16 %v5401
    %v5592 = vunpack.c.h.b16 %v5401
    %v5593 = vunpack.c.l.b16 %v5402
    %v5594 = vunpack.c.h.b16 %v5402
    %v5595 = vunpack.c.l.b16 %v5403
    %v5596 = vunpack.c.h.b16 %v5403
    %v5597 = vunpack.c.l.b16 %v5404
    %v5598 = vunpack.c.h.b16 %v5404
    %v5599 = vunpack.c.l.b16 %v5405
    %v5600 = vunpack.c.h.b16 %v5405
    %v5601 = vunpack.c.l.b16 %v5406
    %v5602 = vunpack.c.h.b16 %v5406
    %v5603 = vunpack.c.l.b16 %v5407
    %v5604 = vunpack.c.h.b16 %v5407
    %v5605 = vunpack.c.l.b16 %v5408
    %v5606 = vunpack.c.h.b16 %v5408
    %v5607 = vunpack.c.l.b16 %v5409
    %v5608 = vunpack.c.h.b16 %v5409
    %v5609 = vunpack.c.l.b16 %v5410
    %v5610 = vunpack.c.h.b16 %v5410
    %v5611 = vunpack.c.l.b16 %v5411
    %v5612 = vunpack.c.h.b16 %v5411
    %v5613 = vunpack.c.l.b16 %v5412
    %v5614 = vunpack.c.h.b16 %v5412
    %v5615 = vunpack.c.l.b16 %v5413
    %v5616 = vunpack.c.h.b16 %v5413
    %v5617 = vunpack.c.l.b16 %v5414
    %v5618 = vunpack.c.h.b16 %v5414
    %v5619 = vpack.c.b16 %v5493, %v5491
    %v5620 = vpack.c.b16 %v5494, %v5492
    %v5621 = vpack.c.b16 %v5497, %v5495
    %v5622 = vpack.c.b16 %v5498, %v5496
    %v5623 = vpack.c.b16 %v5501, %v5499
    %v5624 = vpack.c.b16 %v5502, %v5500
    %v5625 = vpack.c.b16 %v5505, %v5503
    %v5626 = vpack.c.b16 %v5506, %v5504
    %v5627 = vpack.c.b16 %v5509, %v5507
    %v5628 = vpack.c.b16 %v5510, %v5508
    %v5629 = vpack.c.b16 %v5513, %v5511
    %v5630 = vpack.c.b16 %v5514, %v5512
    %v5631 = vpack.c.b16 %v5517, %v5515
    %v5632 = vpack.c.b16 %v5518, %v5516
    %v5633 = vpack.c.b16 %v5521, %v5519
    %v5634 = vpack.c.b16 %v5522, %v5520
    %v5635 = vpack.c.b16 %v5525, %v5523
    %v5636 = vpack.c.b16 %v5526, %v5524
    %v5637 = vpack.c.b16 %v5529, %v5527
    %v5638 = vpack.c.b16 %v5530, %v5528
    %v5639 = vpack.c.b16 %v5533, %v5531
    %v5640 = vpack.c.b16 %v5534, %v5532
    %v5641 = vpack.c.b16 %v5537, %v5535
    %v5642 = vpack.c.b16 %v5538, %v5536
    %v5643 = vpack.c.b16 %v5541, %v5539
    %v5644 = vpack.c.b16 %v5542, %v5540
    %v5645 = vpack.c.b16 %v5545, %v5543
    %v5646 = vpack.c.b16 %v5546, %v5544
    %v5647 = vpack.c.b16 %v5549, %v5547
    %v5648 = vpack.c.b16 %v5550, %v5548
    %v5649 = vpack.c.b16 %v5553, %v5551
    %v5650 = vpack.c.b16 %v5554, %v5552
    %v5651 = vpack.c.b16 %v5557, %v5555
    %v5652 = vpack.c.b16 %v5558, %v5556
    %v5653 = vpack.c.b16 %v5561, %v5559
    %v5654 = vpack.c.b16 %v5562, %v5560
    %v5655 = vpack.c.b16 %v5565, %v5563
    %v5656 = vpack.c.b16 %v5566, %v5564
    %v5657 = vpack.c.b16 %v5569, %v5567
    %v5658 = vpack.c.b16 %v5570, %v5568
    %v5659 = vpack.c.b16 %v5573, %v5571
    %v5660 = vpack.c.b16 %v5574, %v5572
    %v5661 = vpack.c.b16 %v5577, %v5575
    %v5662 = vpack.c.b16 %v5578, %v5576
    %v5663 = vpack.c.b16 %v5581, %v5579
    %v5664 = vpack.c.b16 %v5582, %v5580
    %v5665 = vpack.c.b16 %v5585, %v5583
    %v5666 = vpack.c.b16 %v5586, %v5584
    %v5667 = vpack.c.b16 %v5589, %v5587
    %v5668 = vpack.c.b16 %v5590, %v5588
    %v5669 = vpack.c.b16 %v5593, %v5591
    %v5670 = vpack.c.b16 %v5594, %v5592
    %v5671 = vpack.c.b16 %v5597, %v5595
    %v5672 = vpack.c.b16 %v5598, %v5596
    %v5673 = vpack.c.b16 %v5601, %v5599
    %v5674 = vpack.c.b16 %v5602, %v5600
    %v5675 = vpack.c.b16 %v5605, %v5603
    %v5676 = vpack.c.b16 %v5606, %v5604
    %v5677 = vpack.c.b16 %v5609, %v5607
    %v5678 = vpack.c.b16 %v5610, %v5608
    %v5679 = vpack.c.b16 %v5613, %v5611
    %v5680 = vpack.c.b16 %v5614, %v5612
    %v5681 = vpack.c.b16 %v5617, %v5615
    %v5682 = vpack.c.b16 %v5618, %v5616
    %5747 = vmatprep.subr.bf16.mxu0 %v5620
    %5748 = vmatpush1.bf16.msra.mxu0 %v5619
    %5749 = vmatprep.subr.bf16.mxu0 %v5622
    %5750 = vmatpush1.bf16.msra.mxu0 %v5621
    %5751 = vmatprep.subr.bf16.mxu0 %v5624
    %5752 = vmatpush1.bf16.msra.mxu0 %v5623
    %5753 = vmatprep.subr.bf16.mxu0 %v5626
    %5754 = vmatpush1.bf16.msra.mxu0 %v5625
    %5755 = vmatprep.subr.bf16.mxu0 %v5628
    %5756 = vmatpush1.bf16.msra.mxu0 %v5627
    %5757 = vmatprep.subr.bf16.mxu0 %v5630
    %5758 = vmatpush1.bf16.msra.mxu0 %v5629
    %5759 = vmatprep.subr.bf16.mxu0 %v5632
    %5760 = vmatpush1.bf16.msra.mxu0 %v5631
    %5761 = vmatprep.subr.bf16.mxu0 %v5634
    %5762 = vmatpush1.bf16.msra.mxu0 %v5633
    %5763 = vmatprep.subr.bf16.mxu0 %v5636
    %5764 = vmatpush1.bf16.msra.mxu0 %v5635
    %5765 = vmatprep.subr.bf16.mxu0 %v5638
    %5766 = vmatpush1.bf16.msra.mxu0 %v5637
    %5767 = vmatprep.subr.bf16.mxu0 %v5640
    %5768 = vmatpush1.bf16.msra.mxu0 %v5639
    %5769 = vmatprep.subr.bf16.mxu0 %v5642
    %5770 = vmatpush1.bf16.msra.mxu0 %v5641
    %5771 = vmatprep.subr.bf16.mxu0 %v5644
    %5772 = vmatpush1.bf16.msra.mxu0 %v5643
    %5773 = vmatprep.subr.bf16.mxu0 %v5646
    %5774 = vmatpush1.bf16.msra.mxu0 %v5645
    %5775 = vmatprep.subr.bf16.mxu0 %v5648
    %5776 = vmatpush1.bf16.msra.mxu0 %v5647
    %5777 = vmatprep.subr.bf16.mxu0 %v5650
    %5778 = vmatpush1.bf16.msra.mxu0 %v5649
    %5779 = vmatprep.mubr.bf16.mxu0 %v5348
    %5780 = vmatmul.mubr.bf16.gmra.mrb[0].mxu0 %v5347
    %v5781 = vpop.f32.mrb[0].mxu0
    %v5782 = vadd.f32 %v5420, %v5781
    %v5783 = vpop.f32.mrb[0].mxu0
    %v5784 = vadd.f32 %v5424, %v5783
    %v5785 = vpop.f32.mrb[0].mxu0
    %v5786 = vadd.f32 %v5420, %v5785
    %v5787 = vpop.f32.mrb[0].mxu0
    %v5788 = vadd.f32 %v5424, %v5787
    %5789 = vdwg.mxu0
    %5790 = vmatprep.subr.bf16.mxu0 %v5652
    %5791 = vmatpush1.bf16.msra.mxu0 %v5651
    %5792 = vmatprep.subr.bf16.mxu0 %v5654
    %5793 = vmatpush1.bf16.msra.mxu0 %v5653
    %5794 = vmatprep.subr.bf16.mxu0 %v5656
    %5795 = vmatpush1.bf16.msra.mxu0 %v5655
    %5796 = vmatprep.subr.bf16.mxu0 %v5658
    %5797 = vmatpush1.bf16.msra.mxu0 %v5657
    %5798 = vmatprep.subr.bf16.mxu0 %v5660
    %5799 = vmatpush1.bf16.msra.mxu0 %v5659
    %5800 = vmatprep.subr.bf16.mxu0 %v5662
    %5801 = vmatpush1.bf16.msra.mxu0 %v5661
    %5802 = vmatprep.subr.bf16.mxu0 %v5664
    %5803 = vmatpush1.bf16.msra.mxu0 %v5663
    %5804 = vmatprep.subr.bf16.mxu0 %v5666
    %5805 = vmatpush1.bf16.msra.mxu0 %v5665
    %5806 = vmatprep.subr.bf16.mxu0 %v5668
    %5807 = vmatpush1.bf16.msra.mxu0 %v5667
    %5808 = vmatprep.subr.bf16.mxu0 %v5670
    %5809 = vmatpush1.bf16.msra.mxu0 %v5669
    %5810 = vmatprep.subr.bf16.mxu0 %v5672
    %5811 = vmatpush1.bf16.msra.mxu0 %v5671
    %5812 = vmatprep.subr.bf16.mxu0 %v5674
    %5813 = vmatpush1.bf16.msra.mxu0 %v5673
    %5814 = vmatprep.subr.bf16.mxu0 %v5676
    %5815 = vmatpush1.bf16.msra.mxu0 %v5675
    %5816 = vmatprep.subr.bf16.mxu0 %v5678
    %5817 = vmatpush1.bf16.msra.mxu0 %v5677
    %5818 = vmatprep.subr.bf16.mxu0 %v5680
    %5819 = vmatpush1.bf16.msra.mxu0 %v5679
    %5820 = vmatprep.subr.bf16.mxu0 %v5682
    %5821 = vmatpush1.bf16.msra.mxu0 %v5681
    %5822 = vmatprep.mubr.bf16.mxu0 %v5350
    %5823 = vmatmul.mubr.bf16.gmra.mrb[0].mxu0 %v5349
    %v5824 = vpop.f32.mrb[0].mxu0
    %v5825 = vadd.f32 %v5782, %v5824
    %v5826 = vpop.f32.mrb[0].mxu0
    %v5827 = vadd.f32 %v5784, %v5826
    %v5828 = vpop.f32.mrb[0].mxu0
    %v5829 = vadd.f32 %v5786, %v5828
    %v5830 = vpop.f32.mrb[0].mxu0
    %v5831 = vadd.f32 %v5788, %v5830
    %5832 = vdwg.mxu0
    %v5833 = vmax.f32 %v5825, 0.0
    %v5834 = vmax.f32 %v5827, 0.0
    %v5835 = vmax.f32 %v5829, 0.0
    %v5836 = vmax.f32 %v5831, 0.0
    %v5837 = vpack.c.bf16 %v5835, %v5833
    %v5838 = vpack.c.bf16 %v5836, %v5834
    %v5839 = vld [vmem:[#allocation20] sm:$0xf]
    %v5840 = vld [vmem:[#allocation20 + $0x4] sm:$0xf]
    %v5841 = vld [vmem:[#allocation20 + $0x8] sm:$0xf]
    %v5842 = vld [vmem:[#allocation20 + $0xc] sm:$0xf]
    %v5843 = vld [vmem:[#allocation20 + $0x10] sm:$0xf]
    %v5844 = vld [vmem:[#allocation20 + $0x14] sm:$0xf]
    %v5845 = vld [vmem:[#allocation20 + $0x18] sm:$0xf]
    %v5846 = vld [vmem:[#allocation20 + $0x1c] sm:$0xf]
    %v5847 = vld [vmem:[#allocation20 + $0x20] sm:$0xf]
    %v5848 = vld [vmem:[#allocation20 + $0x24] sm:$0xf]
    %v5849 = vld [vmem:[#allocation20 + $0x28] sm:$0xf]
    %v5850 = vld [vmem:[#allocation20 + $0x2c] sm:$0xf]
    %v5851 = vld [vmem:[#allocation20 + $0x30] sm:$0xf]
    %v5852 = vld [vmem:[#allocation20 + $0x34] sm:$0xf]
    %v5853 = vld [vmem:[#allocation20 + $0x38] sm:$0xf]
    %v5854 = vld [vmem:[#allocation20 + $0x3c] sm:$0xf]
    %v5855 = vld [vmem:[#allocation20 + $0x40] sm:$0xf]
    %v5856 = vld [vmem:[#allocation20 + $0x44] sm:$0xf]
    %v5857 = vld [vmem:[#allocation20 + $0x48] sm:$0xf]
    %v5858 = vld [vmem:[#allocation20 + $0x4c] sm:$0xf]
    %v5859 = vld [vmem:[#allocation20 + $0x50] sm:$0xf]
    %v5860 = vld [vmem:[#allocation20 + $0x54] sm:$0xf]
    %v5861 = vld [vmem:[#allocation20 + $0x58] sm:$0xf]
    %v5862 = vld [vmem:[#allocation20 + $0x5c] sm:$0xf]
    %v5863 = vld [vmem:[#allocation20 + $0x60] sm:$0xf]
    %v5864 = vld [vmem:[#allocation20 + $0x64] sm:$0xf]
    %v5865 = vld [vmem:[#allocation20 + $0x68] sm:$0xf]
    %v5866 = vld [vmem:[#allocation20 + $0x6c] sm:$0xf]
    %v5867 = vld [vmem:[#allocation20 + $0x70] sm:$0xf]
    %v5868 = vld [vmem:[#allocation20 + $0x74] sm:$0xf]
    %v5869 = vld [vmem:[#allocation20 + $0x78] sm:$0xf]
    %v5870 = vld [vmem:[#allocation20 + $0x7c] sm:$0xf]
    %v5871 = vld [vmem:[#allocation22] sm:$0x1]
    %v5873 = vlaneseq
    %v5874 = vshrl.u32 %v5873, 7
    %v5875 = vsub.s32 0, %v5874
    %v5876 = vrot.slane %v5871, %v5875
    %v5910 = vunpack.c.l.b16 %v5839
    %v5911 = vunpack.c.l.b16 %v5840
    %v5912 = vunpack.c.l.b16 %v5841
    %v5913 = vunpack.c.l.b16 %v5842
    %v5914 = vunpack.c.l.b16 %v5843
    %v5915 = vunpack.c.l.b16 %v5844
    %v5916 = vunpack.c.l.b16 %v5845
    %v5917 = vunpack.c.l.b16 %v5846
    %v5918 = vunpack.c.l.b16 %v5847
    %v5919 = vunpack.c.l.b16 %v5848
    %v5920 = vunpack.c.l.b16 %v5849
    %v5921 = vunpack.c.l.b16 %v5850
    %v5922 = vunpack.c.l.b16 %v5851
    %v5923 = vunpack.c.l.b16 %v5852
    %v5924 = vunpack.c.l.b16 %v5853
    %v5925 = vunpack.c.l.b16 %v5854
    %v5926 = vunpack.c.l.b16 %v5855
    %v5927 = vunpack.c.l.b16 %v5856
    %v5928 = vunpack.c.l.b16 %v5857
    %v5929 = vunpack.c.l.b16 %v5858
    %v5930 = vunpack.c.l.b16 %v5859
    %v5931 = vunpack.c.l.b16 %v5860
    %v5932 = vunpack.c.l.b16 %v5861
    %v5933 = vunpack.c.l.b16 %v5862
    %v5934 = vunpack.c.l.b16 %v5863
    %v5935 = vunpack.c.l.b16 %v5864
    %v5936 = vunpack.c.l.b16 %v5865
    %v5937 = vunpack.c.l.b16 %v5866
    %v5938 = vunpack.c.l.b16 %v5867
    %v5939 = vunpack.c.l.b16 %v5868
    %v5940 = vunpack.c.l.b16 %v5869
    %v5941 = vunpack.c.l.b16 %v5870
    %v5942 = vpack.c.b16 %v5911, %v5910
    %v5943 = vpack.c.b16 %v5913, %v5912
    %v5944 = vpack.c.b16 %v5915, %v5914
    %v5945 = vpack.c.b16 %v5917, %v5916
    %v5946 = vpack.c.b16 %v5919, %v5918
    %v5947 = vpack.c.b16 %v5921, %v5920
    %v5948 = vpack.c.b16 %v5923, %v5922
    %v5949 = vpack.c.b16 %v5925, %v5924
    %v5950 = vpack.c.b16 %v5927, %v5926
    %v5951 = vpack.c.b16 %v5929, %v5928
    %v5952 = vpack.c.b16 %v5931, %v5930
    %v5953 = vpack.c.b16 %v5933, %v5932
    %v5954 = vpack.c.b16 %v5935, %v5934
    %v5955 = vpack.c.b16 %v5937, %v5936
    %v5956 = vpack.c.b16 %v5939, %v5938
    %v5957 = vpack.c.b16 %v5941, %v5940
    %5974 = vmatprep.subr.bf16.mxu0 0
    %5975 = vmatpush1.bf16.msra.mxu0 %v5942
    %5976 = vmatprep.subr.bf16.mxu0 0
    %5977 = vmatpush1.bf16.msra.mxu0 %v5943
    %5978 = vmatprep.subr.bf16.mxu0 0
    %5979 = vmatpush1.bf16.msra.mxu0 %v5944
    %5980 = vmatprep.subr.bf16.mxu0 0
    %5981 = vmatpush1.bf16.msra.mxu0 %v5945
    %5982 = vmatprep.subr.bf16.mxu0 0
    %5983 = vmatpush1.bf16.msra.mxu0 %v5946
    %5984 = vmatprep.subr.bf16.mxu0 0
    %5985 = vmatpush1.bf16.msra.mxu0 %v5947
    %5986 = vmatprep.subr.bf16.mxu0 0
    %5987 = vmatpush1.bf16.msra.mxu0 %v5948
    %5988 = vmatprep.subr.bf16.mxu0 0
    %5989 = vmatpush1.bf16.msra.mxu0 %v5949
    %5990 = vmatprep.subr.bf16.mxu0 0
    %5991 = vmatpush1.bf16.msra.mxu0 %v5950
    %5992 = vmatprep.subr.bf16.mxu0 0
    %5993 = vmatpush1.bf16.msra.mxu0 %v5951
    %5994 = vmatprep.subr.bf16.mxu0 0
    %5995 = vmatpush1.bf16.msra.mxu0 %v5952
    %5996 = vmatprep.subr.bf16.mxu0 0
    %5997 = vmatpush1.bf16.msra.mxu0 %v5953
    %5998 = vmatprep.subr.bf16.mxu0 0
    %5999 = vmatpush1.bf16.msra.mxu0 %v5954
    %6000 = vmatprep.subr.bf16.mxu0 0
    %6001 = vmatpush1.bf16.msra.mxu0 %v5955
    %6002 = vmatprep.subr.bf16.mxu0 0
    %6003 = vmatpush1.bf16.msra.mxu0 %v5956
    %6004 = vmatprep.subr.bf16.mxu0 0
    %6005 = vmatpush1.bf16.msra.mxu0 %v5957
    %6006 = vmatprep.mubr.bf16.mxu0 %v5838
    %6007 = vmatmul.mubr.bf16.gmra.mrb[0].mxu0 %v5837
    %v6008 = vpop.f32.mrb[0].mxu0
    %v6009 = vadd.f32 %v5876, %v6008
    %v6010 = vpop.f32.mrb[0].mxu0
    %v6011 = vpop.f32.mrb[0].mxu0
    %v6012 = vadd.f32 %v5876, %v6011
    %v6013 = vpop.f32.mrb[0].mxu0
    %6014 = vdwg.mxu0
    %v6015 = vmax.f32 %v6009, 0.0
    %v6016 = vmax.f32 %v6012, 0.0
    %v6017 = vld [vmem:[#allocation11] sm:$0xff]
    %v6018 = vld [vmem:[#allocation11 + $0x8] sm:$0xff]
    %v6019 = vld [vmem:[#allocation11 + $0x10] sm:$0xff]
    %v6020 = vld [vmem:[#allocation11 + $0x18] sm:$0xff]
    %v6021 = vld [vmem:[#allocation11 + $0x20] sm:$0xff]
    %v6022 = vld [vmem:[#allocation11 + $0x28] sm:$0xff]
    %v6023 = vld [vmem:[#allocation11 + $0x30] sm:$0xff]
    %v6024 = vld [vmem:[#allocation11 + $0x38] sm:$0xff]
    %v6025 = vld [vmem:[#allocation11 + $0x40] sm:$0xff]
    %v6026 = vld [vmem:[#allocation11 + $0x48] sm:$0xff]
    %v6027 = vld [vmem:[#allocation11 + $0x50] sm:$0xff]
    %v6028 = vld [vmem:[#allocation11 + $0x58] sm:$0xff]
    %v6029 = vld [vmem:[#allocation11 + $0x60] sm:$0xff]
    %v6030 = vld [vmem:[#allocation11 + $0x68] sm:$0xff]
    %v6031 = vld [vmem:[#allocation11 + $0x70] sm:$0xff]
    %v6032 = vld [vmem:[#allocation11 + $0x78] sm:$0xff]
    %v6033 = vld [vmem:[#allocation11 + $0x80] sm:$0xff]
    %v6034 = vld [vmem:[#allocation11 + $0x88] sm:$0xff]
    %v6035 = vld [vmem:[#allocation11 + $0x90] sm:$0xff]
    %v6036 = vld [vmem:[#allocation11 + $0x98] sm:$0xff]
    %v6037 = vld [vmem:[#allocation11 + $0xa0] sm:$0xff]
    %v6038 = vld [vmem:[#allocation11 + $0xa8] sm:$0xff]
    %v6039 = vld [vmem:[#allocation11 + $0xb0] sm:$0xff]
    %v6040 = vld [vmem:[#allocation11 + $0xb8] sm:$0xff]
    %v6041 = vld [vmem:[#allocation11 + $0xc0] sm:$0xff]
    %v6042 = vld [vmem:[#allocation11 + $0xc8] sm:$0xff]
    %v6043 = vld [vmem:[#allocation11 + $0xd0] sm:$0xff]
    %v6044 = vld [vmem:[#allocation11 + $0xd8] sm:$0xff]
    %v6045 = vld [vmem:[#allocation11 + $0xe0] sm:$0xff]
    %v6046 = vld [vmem:[#allocation11 + $0xe8] sm:$0xff]
    %v6047 = vld [vmem:[#allocation11 + $0xf0] sm:$0xff]
    %v6048 = vld [vmem:[#allocation11 + $0xf8] sm:$0xff]
    %v6049 = vld [vmem:[#allocation11 + $0x100] sm:$0xff]
    %v6050 = vld [vmem:[#allocation11 + $0x108] sm:$0xff]
    %v6051 = vld [vmem:[#allocation11 + $0x110] sm:$0xff]
    %v6052 = vld [vmem:[#allocation11 + $0x118] sm:$0xff]
    %v6053 = vld [vmem:[#allocation11 + $0x120] sm:$0xff]
    %v6054 = vld [vmem:[#allocation11 + $0x128] sm:$0xff]
    %v6055 = vld [vmem:[#allocation11 + $0x130] sm:$0xff]
    %v6056 = vld [vmem:[#allocation11 + $0x138] sm:$0xff]
    %v6057 = vld [vmem:[#allocation11 + $0x140] sm:$0xff]
    %v6058 = vld [vmem:[#allocation11 + $0x148] sm:$0xff]
    %v6059 = vld [vmem:[#allocation11 + $0x150] sm:$0xff]
    %v6060 = vld [vmem:[#allocation11 + $0x158] sm:$0xff]
    %v6061 = vld [vmem:[#allocation11 + $0x160] sm:$0xff]
    %v6062 = vld [vmem:[#allocation11 + $0x168] sm:$0xff]
    %v6063 = vld [vmem:[#allocation11 + $0x170] sm:$0xff]
    %v6064 = vld [vmem:[#allocation11 + $0x178] sm:$0xff]
    %v6065 = vld [vmem:[#allocation11 + $0x180] sm:$0xff]
    %v6066 = vld [vmem:[#allocation11 + $0x188] sm:$0xff]
    %v6067 = vld [vmem:[#allocation11 + $0x190] sm:$0xff]
    %v6068 = vld [vmem:[#allocation11 + $0x198] sm:$0xff]
    %v6069 = vld [vmem:[#allocation11 + $0x1a0] sm:$0xff]
    %v6070 = vld [vmem:[#allocation11 + $0x1a8] sm:$0xff]
    %v6071 = vld [vmem:[#allocation11 + $0x1b0] sm:$0xff]
    %v6072 = vld [vmem:[#allocation11 + $0x1b8] sm:$0xff]
    %v6073 = vld [vmem:[#allocation11 + $0x1c0] sm:$0xff]
    %v6074 = vld [vmem:[#allocation11 + $0x1c8] sm:$0xff]
    %v6075 = vld [vmem:[#allocation11 + $0x1d0] sm:$0xff]
    %v6076 = vld [vmem:[#allocation11 + $0x1d8] sm:$0xff]
    %v6077 = vld [vmem:[#allocation11 + $0x1e0] sm:$0xff]
    %v6078 = vld [vmem:[#allocation11 + $0x1e8] sm:$0xff]
    %v6079 = vld [vmem:[#allocation11 + $0x1f0] sm:$0xff]
    %v6080 = vld [vmem:[#allocation11 + $0x1f8] sm:$0xff]
    %v6081 = vld [vmem:[#allocation11 + $0x200] sm:$0xff]
    %v6082 = vld [vmem:[#allocation11 + $0x208] sm:$0xff]
    %v6083 = vld [vmem:[#allocation11 + $0x210] sm:$0xff]
    %v6084 = vld [vmem:[#allocation11 + $0x218] sm:$0xff]
    %v6085 = vld [vmem:[#allocation11 + $0x220] sm:$0xff]
    %v6086 = vld [vmem:[#allocation11 + $0x228] sm:$0xff]
    %v6087 = vld [vmem:[#allocation11 + $0x230] sm:$0xff]
    %v6088 = vld [vmem:[#allocation11 + $0x238] sm:$0xff]
    %v6089 = vld [vmem:[#allocation11 + $0x240] sm:$0xff]
    %v6090 = vld [vmem:[#allocation11 + $0x248] sm:$0xff]
    %v6091 = vld [vmem:[#allocation11 + $0x250] sm:$0xff]
    %v6092 = vld [vmem:[#allocation11 + $0x258] sm:$0xff]
    %v6093 = vld [vmem:[#allocation11 + $0x260] sm:$0xff]
    %v6094 = vld [vmem:[#allocation11 + $0x268] sm:$0xff]
    %v6095 = vld [vmem:[#allocation11 + $0x270] sm:$0xff]
    %v6096 = vld [vmem:[#allocation11 + $0x278] sm:$0xff]
    %v6097 = vld [vmem:[#allocation11 + $0x280] sm:$0xff]
    %v6098 = vld [vmem:[#allocation11 + $0x288] sm:$0xff]
    %v6099 = vld [vmem:[#allocation11 + $0x290] sm:$0xff]
    %v6100 = vld [vmem:[#allocation11 + $0x298] sm:$0xff]
    %v6101 = vld [vmem:[#allocation11 + $0x2a0] sm:$0xff]
    %v6102 = vld [vmem:[#allocation11 + $0x2a8] sm:$0xff]
    %v6103 = vld [vmem:[#allocation11 + $0x2b0] sm:$0xff]
    %v6104 = vld [vmem:[#allocation11 + $0x2b8] sm:$0xff]
    %v6105 = vld [vmem:[#allocation11 + $0x2c0] sm:$0xff]
    %v6106 = vld [vmem:[#allocation11 + $0x2c8] sm:$0xff]
    %v6107 = vld [vmem:[#allocation11 + $0x2d0] sm:$0xff]
    %v6108 = vld [vmem:[#allocation11 + $0x2d8] sm:$0xff]
    %v6109 = vld [vmem:[#allocation11 + $0x2e0] sm:$0xff]
    %v6110 = vld [vmem:[#allocation11 + $0x2e8] sm:$0xff]
    %v6111 = vld [vmem:[#allocation11 + $0x2f0] sm:$0xff]
    %v6112 = vld [vmem:[#allocation11 + $0x2f8] sm:$0xff]
    %v6113 = vld [vmem:[#allocation11 + $0x300] sm:$0xff]
    %v6114 = vld [vmem:[#allocation11 + $0x308] sm:$0xff]
    %v6115 = vld [vmem:[#allocation11 + $0x310] sm:$0xff]
    %v6116 = vld [vmem:[#allocation11 + $0x318] sm:$0xff]
    %v6117 = vld [vmem:[#allocation11 + $0x320] sm:$0xff]
    %v6118 = vld [vmem:[#allocation11 + $0x328] sm:$0xff]
    %v6119 = vld [vmem:[#allocation11 + $0x330] sm:$0xff]
    %v6120 = vld [vmem:[#allocation11 + $0x338] sm:$0xff]
    %v6121 = vld [vmem:[#allocation11 + $0x340] sm:$0xff]
    %v6122 = vld [vmem:[#allocation11 + $0x348] sm:$0xff]
    %v6123 = vld [vmem:[#allocation11 + $0x350] sm:$0xff]
    %v6124 = vld [vmem:[#allocation11 + $0x358] sm:$0xff]
    %v6125 = vld [vmem:[#allocation11 + $0x360] sm:$0xff]
    %v6126 = vld [vmem:[#allocation11 + $0x368] sm:$0xff]
    %v6127 = vld [vmem:[#allocation11 + $0x370] sm:$0xff]
    %v6128 = vld [vmem:[#allocation11 + $0x378] sm:$0xff]
    %v6129 = vld [vmem:[#allocation11 + $0x380] sm:$0xff]
    %v6130 = vld [vmem:[#allocation11 + $0x388] sm:$0xff]
    %v6131 = vld [vmem:[#allocation11 + $0x390] sm:$0xff]
    %v6132 = vld [vmem:[#allocation11 + $0x398] sm:$0xff]
    %v6133 = vld [vmem:[#allocation11 + $0x3a0] sm:$0xff]
    %v6134 = vld [vmem:[#allocation11 + $0x3a8] sm:$0xff]
    %v6135 = vld [vmem:[#allocation11 + $0x3b0] sm:$0xff]
    %v6136 = vld [vmem:[#allocation11 + $0x3b8] sm:$0xff]
    %v6137 = vld [vmem:[#allocation11 + $0x3c0] sm:$0xff]
    %v6138 = vld [vmem:[#allocation11 + $0x3c8] sm:$0xff]
    %v6139 = vld [vmem:[#allocation11 + $0x3d0] sm:$0xff]
    %v6140 = vld [vmem:[#allocation11 + $0x3d8] sm:$0xff]
    %v6141 = vld [vmem:[#allocation11 + $0x3e0] sm:$0xff]
    %v6142 = vld [vmem:[#allocation11 + $0x3e8] sm:$0xff]
    %v6143 = vld [vmem:[#allocation11 + $0x3f0] sm:$0xff]
    %v6144 = vld [vmem:[#allocation11 + $0x3f8] sm:$0xff]
    %v6145 = vld [vmem:[#allocation11 + $0x400] sm:$0xff]
    %v6146 = vld [vmem:[#allocation11 + $0x408] sm:$0xff]
    %v6147 = vld [vmem:[#allocation11 + $0x410] sm:$0xff]
    %v6148 = vld [vmem:[#allocation11 + $0x418] sm:$0xff]
    %v6149 = vld [vmem:[#allocation11 + $0x420] sm:$0xff]
    %v6150 = vld [vmem:[#allocation11 + $0x428] sm:$0xff]
    %v6151 = vld [vmem:[#allocation11 + $0x430] sm:$0xff]
    %v6152 = vld [vmem:[#allocation11 + $0x438] sm:$0xff]
    %v6153 = vld [vmem:[#allocation11 + $0x440] sm:$0xff]
    %v6154 = vld [vmem:[#allocation11 + $0x448] sm:$0xff]
    %v6155 = vld [vmem:[#allocation11 + $0x450] sm:$0xff]
    %v6156 = vld [vmem:[#allocation11 + $0x458] sm:$0xff]
    %v6157 = vld [vmem:[#allocation11 + $0x460] sm:$0xff]
    %v6158 = vld [vmem:[#allocation11 + $0x468] sm:$0xff]
    %v6159 = vld [vmem:[#allocation11 + $0x470] sm:$0xff]
    %v6160 = vld [vmem:[#allocation11 + $0x478] sm:$0xff]
    %v6161 = vld [vmem:[#allocation11 + $0x480] sm:$0xff]
    %v6162 = vld [vmem:[#allocation11 + $0x488] sm:$0xff]
    %v6163 = vld [vmem:[#allocation11 + $0x490] sm:$0xff]
    %v6164 = vld [vmem:[#allocation11 + $0x498] sm:$0xff]
    %v6165 = vld [vmem:[#allocation11 + $0x4a0] sm:$0xff]
    %v6166 = vld [vmem:[#allocation11 + $0x4a8] sm:$0xff]
    %v6167 = vld [vmem:[#allocation11 + $0x4b0] sm:$0xff]
    %v6168 = vld [vmem:[#allocation11 + $0x4b8] sm:$0xff]
    %v6169 = vld [vmem:[#allocation11 + $0x4c0] sm:$0xff]
    %v6170 = vld [vmem:[#allocation11 + $0x4c8] sm:$0xff]
    %v6171 = vld [vmem:[#allocation11 + $0x4d0] sm:$0xff]
    %v6172 = vld [vmem:[#allocation11 + $0x4d8] sm:$0xff]
    %v6173 = vld [vmem:[#allocation11 + $0x4e0] sm:$0xff]
    %v6174 = vld [vmem:[#allocation11 + $0x4e8] sm:$0xff]
    %v6175 = vld [vmem:[#allocation11 + $0x4f0] sm:$0xff]
    %v6176 = vld [vmem:[#allocation11 + $0x4f8] sm:$0xff]
    %v6177 = vld [vmem:[#allocation11 + $0x500] sm:$0xff]
    %v6178 = vld [vmem:[#allocation11 + $0x508] sm:$0xff]
    %v6179 = vld [vmem:[#allocation11 + $0x510] sm:$0xff]
    %v6180 = vld [vmem:[#allocation11 + $0x518] sm:$0xff]
    %v6181 = vld [vmem:[#allocation11 + $0x520] sm:$0xff]
    %v6182 = vld [vmem:[#allocation11 + $0x528] sm:$0xff]
    %v6183 = vld [vmem:[#allocation11 + $0x530] sm:$0xff]
    %v6184 = vld [vmem:[#allocation11 + $0x538] sm:$0xff]
    %v6185 = vld [vmem:[#allocation11 + $0x540] sm:$0xff]
    %v6186 = vld [vmem:[#allocation11 + $0x548] sm:$0xff]
    %v6187 = vld [vmem:[#allocation11 + $0x550] sm:$0xff]
    %v6188 = vld [vmem:[#allocation11 + $0x558] sm:$0xff]
    %v6189 = vld [vmem:[#allocation11 + $0x560] sm:$0xff]
    %v6190 = vld [vmem:[#allocation11 + $0x568] sm:$0xff]
    %v6191 = vld [vmem:[#allocation11 + $0x570] sm:$0xff]
    %v6192 = vld [vmem:[#allocation11 + $0x578] sm:$0xff]
    %v6193 = vld [vmem:[#allocation11 + $0x580] sm:$0xff]
    %v6194 = vld [vmem:[#allocation11 + $0x588] sm:$0xff]
    %v6195 = vld [vmem:[#allocation11 + $0x590] sm:$0xff]
    %v6196 = vld [vmem:[#allocation11 + $0x598] sm:$0xff]
    %v6197 = vld [vmem:[#allocation11 + $0x5a0] sm:$0xff]
    %v6198 = vld [vmem:[#allocation11 + $0x5a8] sm:$0xff]
    %v6199 = vld [vmem:[#allocation11 + $0x5b0] sm:$0xff]
    %v6200 = vld [vmem:[#allocation11 + $0x5b8] sm:$0xff]
    %v6201 = vld [vmem:[#allocation11 + $0x5c0] sm:$0xff]
    %v6202 = vld [vmem:[#allocation11 + $0x5c8] sm:$0xff]
    %v6203 = vld [vmem:[#allocation11 + $0x5d0] sm:$0xff]
    %v6204 = vld [vmem:[#allocation11 + $0x5d8] sm:$0xff]
    %v6205 = vld [vmem:[#allocation11 + $0x5e0] sm:$0xff]
    %v6206 = vld [vmem:[#allocation11 + $0x5e8] sm:$0xff]
    %v6207 = vld [vmem:[#allocation11 + $0x5f0] sm:$0xff]
    %v6208 = vld [vmem:[#allocation11 + $0x5f8] sm:$0xff]
    %v6209 = vld [vmem:[#allocation11 + $0x600] sm:$0xff]
    %v6210 = vld [vmem:[#allocation11 + $0x608] sm:$0xff]
    %v6211 = vld [vmem:[#allocation11 + $0x610] sm:$0xff]
    %v6212 = vld [vmem:[#allocation11 + $0x618] sm:$0xff]
    %v6213 = vld [vmem:[#allocation11 + $0x620] sm:$0xff]
    %v6214 = vld [vmem:[#allocation11 + $0x628] sm:$0xff]
    %v6215 = vld [vmem:[#allocation11 + $0x630] sm:$0xff]
    %v6216 = vld [vmem:[#allocation11 + $0x638] sm:$0xff]
    %v6217 = vld [vmem:[#allocation11 + $0x640] sm:$0xff]
    %v6218 = vld [vmem:[#allocation11 + $0x648] sm:$0xff]
    %v6219 = vld [vmem:[#allocation11 + $0x650] sm:$0xff]
    %v6220 = vld [vmem:[#allocation11 + $0x658] sm:$0xff]
    %v6221 = vld [vmem:[#allocation11 + $0x660] sm:$0xff]
    %v6222 = vld [vmem:[#allocation11 + $0x668] sm:$0xff]
    %v6223 = vld [vmem:[#allocation11 + $0x670] sm:$0xff]
    %v6224 = vld [vmem:[#allocation11 + $0x678] sm:$0xff]
    %v6225 = vld [vmem:[#allocation11 + $0x680] sm:$0xff]
    %v6226 = vld [vmem:[#allocation11 + $0x688] sm:$0xff]
    %v6227 = vld [vmem:[#allocation11 + $0x690] sm:$0xff]
    %v6228 = vld [vmem:[#allocation11 + $0x698] sm:$0xff]
    %v6229 = vld [vmem:[#allocation11 + $0x6a0] sm:$0xff]
    %v6230 = vld [vmem:[#allocation11 + $0x6a8] sm:$0xff]
    %v6231 = vld [vmem:[#allocation11 + $0x6b0] sm:$0xff]
    %v6232 = vld [vmem:[#allocation11 + $0x6b8] sm:$0xff]
    %v6233 = vld [vmem:[#allocation11 + $0x6c0] sm:$0xff]
    %v6234 = vld [vmem:[#allocation11 + $0x6c8] sm:$0xff]
    %v6235 = vld [vmem:[#allocation11 + $0x6d0] sm:$0xff]
    %v6236 = vld [vmem:[#allocation11 + $0x6d8] sm:$0xff]
    %v6237 = vld [vmem:[#allocation11 + $0x6e0] sm:$0xff]
    %v6238 = vld [vmem:[#allocation11 + $0x6e8] sm:$0xff]
    %v6239 = vld [vmem:[#allocation11 + $0x6f0] sm:$0xff]
    %v6240 = vld [vmem:[#allocation11 + $0x6f8] sm:$0xff]
    %v6241 = vld [vmem:[#allocation11 + $0x700] sm:$0xff]
    %v6242 = vld [vmem:[#allocation11 + $0x708] sm:$0xff]
    %v6243 = vld [vmem:[#allocation11 + $0x710] sm:$0xff]
    %v6244 = vld [vmem:[#allocation11 + $0x718] sm:$0xff]
    %v6245 = vld [vmem:[#allocation11 + $0x720] sm:$0xff]
    %v6246 = vld [vmem:[#allocation11 + $0x728] sm:$0xff]
    %v6247 = vld [vmem:[#allocation11 + $0x730] sm:$0xff]
    %v6248 = vld [vmem:[#allocation11 + $0x738] sm:$0xff]
    %v6249 = vld [vmem:[#allocation11 + $0x740] sm:$0xff]
    %v6250 = vld [vmem:[#allocation11 + $0x748] sm:$0xff]
    %v6251 = vld [vmem:[#allocation11 + $0x750] sm:$0xff]
    %v6252 = vld [vmem:[#allocation11 + $0x758] sm:$0xff]
    %v6253 = vld [vmem:[#allocation11 + $0x760] sm:$0xff]
    %v6254 = vld [vmem:[#allocation11 + $0x768] sm:$0xff]
    %v6255 = vld [vmem:[#allocation11 + $0x770] sm:$0xff]
    %v6256 = vld [vmem:[#allocation11 + $0x778] sm:$0xff]
    %v6257 = vld [vmem:[#allocation11 + $0x780] sm:$0xff]
    %v6258 = vld [vmem:[#allocation11 + $0x788] sm:$0xff]
    %v6259 = vld [vmem:[#allocation11 + $0x790] sm:$0xff]
    %v6260 = vld [vmem:[#allocation11 + $0x798] sm:$0xff]
    %v6261 = vld [vmem:[#allocation11 + $0x7a0] sm:$0xff]
    %v6262 = vld [vmem:[#allocation11 + $0x7a8] sm:$0xff]
    %v6263 = vld [vmem:[#allocation11 + $0x7b0] sm:$0xff]
    %v6264 = vld [vmem:[#allocation11 + $0x7b8] sm:$0xff]
    %v6265 = vld [vmem:[#allocation11 + $0x7c0] sm:$0xff]
    %v6266 = vld [vmem:[#allocation11 + $0x7c8] sm:$0xff]
    %v6267 = vld [vmem:[#allocation11 + $0x7d0] sm:$0xff]
    %v6268 = vld [vmem:[#allocation11 + $0x7d8] sm:$0xff]
    %v6269 = vld [vmem:[#allocation11 + $0x7e0] sm:$0xff]
    %v6270 = vld [vmem:[#allocation11 + $0x7e8] sm:$0xff]
    %v6271 = vld [vmem:[#allocation11 + $0x7f0] sm:$0xff]
    %v6272 = vld [vmem:[#allocation11 + $0x7f8] sm:$0xff]
    %v6529 = vunpack.c.l.b16 %v6017
    %v6530 = vunpack.c.h.b16 %v6017
    %v6531 = vunpack.c.l.b16 %v6018
    %v6532 = vunpack.c.h.b16 %v6018
    %v6533 = vunpack.c.l.b16 %v6019
    %v6534 = vunpack.c.h.b16 %v6019
    %v6535 = vunpack.c.l.b16 %v6020
    %v6536 = vunpack.c.h.b16 %v6020
    %v6537 = vunpack.c.l.b16 %v6021
    %v6538 = vunpack.c.h.b16 %v6021
    %v6539 = vunpack.c.l.b16 %v6022
    %v6540 = vunpack.c.h.b16 %v6022
    %v6541 = vunpack.c.l.b16 %v6023
    %v6542 = vunpack.c.h.b16 %v6023
    %v6543 = vunpack.c.l.b16 %v6024
    %v6544 = vunpack.c.h.b16 %v6024
    %v6545 = vunpack.c.l.b16 %v6025
    %v6546 = vunpack.c.h.b16 %v6025
    %v6547 = vunpack.c.l.b16 %v6026
    %v6548 = vunpack.c.h.b16 %v6026
    %v6549 = vunpack.c.l.b16 %v6027
    %v6550 = vunpack.c.h.b16 %v6027
    %v6551 = vunpack.c.l.b16 %v6028
    %v6552 = vunpack.c.h.b16 %v6028
    %v6553 = vunpack.c.l.b16 %v6029
    %v6554 = vunpack.c.h.b16 %v6029
    %v6555 = vunpack.c.l.b16 %v6030
    %v6556 = vunpack.c.h.b16 %v6030
    %v6557 = vunpack.c.l.b16 %v6031
    %v6558 = vunpack.c.h.b16 %v6031
    %v6559 = vunpack.c.l.b16 %v6032
    %v6560 = vunpack.c.h.b16 %v6032
    %v6561 = vunpack.c.l.b16 %v6033
    %v6562 = vunpack.c.h.b16 %v6033
    %v6563 = vunpack.c.l.b16 %v6034
    %v6564 = vunpack.c.h.b16 %v6034
    %v6565 = vunpack.c.l.b16 %v6035
    %v6566 = vunpack.c.h.b16 %v6035
    %v6567 = vunpack.c.l.b16 %v6036
    %v6568 = vunpack.c.h.b16 %v6036
    %v6569 = vunpack.c.l.b16 %v6037
    %v6570 = vunpack.c.h.b16 %v6037
    %v6571 = vunpack.c.l.b16 %v6038
    %v6572 = vunpack.c.h.b16 %v6038
    %v6573 = vunpack.c.l.b16 %v6039
    %v6574 = vunpack.c.h.b16 %v6039
    %v6575 = vunpack.c.l.b16 %v6040
    %v6576 = vunpack.c.h.b16 %v6040
    %v6577 = vunpack.c.l.b16 %v6041
    %v6578 = vunpack.c.h.b16 %v6041
    %v6579 = vunpack.c.l.b16 %v6042
    %v6580 = vunpack.c.h.b16 %v6042
    %v6581 = vunpack.c.l.b16 %v6043
    %v6582 = vunpack.c.h.b16 %v6043
    %v6583 = vunpack.c.l.b16 %v6044
    %v6584 = vunpack.c.h.b16 %v6044
    %v6585 = vunpack.c.l.b16 %v6045
    %v6586 = vunpack.c.h.b16 %v6045
    %v6587 = vunpack.c.l.b16 %v6046
    %v6588 = vunpack.c.h.b16 %v6046
    %v6589 = vunpack.c.l.b16 %v6047
    %v6590 = vunpack.c.h.b16 %v6047
    %v6591 = vunpack.c.l.b16 %v6048
    %v6592 = vunpack.c.h.b16 %v6048
    %v6593 = vunpack.c.l.b16 %v6049
    %v6594 = vunpack.c.h.b16 %v6049
    %v6595 = vunpack.c.l.b16 %v6050
    %v6596 = vunpack.c.h.b16 %v6050
    %v6597 = vunpack.c.l.b16 %v6051
    %v6598 = vunpack.c.h.b16 %v6051
    %v6599 = vunpack.c.l.b16 %v6052
    %v6600 = vunpack.c.h.b16 %v6052
    %v6601 = vunpack.c.l.b16 %v6053
    %v6602 = vunpack.c.h.b16 %v6053
    %v6603 = vunpack.c.l.b16 %v6054
    %v6604 = vunpack.c.h.b16 %v6054
    %v6605 = vunpack.c.l.b16 %v6055
    %v6606 = vunpack.c.h.b16 %v6055
    %v6607 = vunpack.c.l.b16 %v6056
    %v6608 = vunpack.c.h.b16 %v6056
    %v6609 = vunpack.c.l.b16 %v6057
    %v6610 = vunpack.c.h.b16 %v6057
    %v6611 = vunpack.c.l.b16 %v6058
    %v6612 = vunpack.c.h.b16 %v6058
    %v6613 = vunpack.c.l.b16 %v6059
    %v6614 = vunpack.c.h.b16 %v6059
    %v6615 = vunpack.c.l.b16 %v6060
    %v6616 = vunpack.c.h.b16 %v6060
    %v6617 = vunpack.c.l.b16 %v6061
    %v6618 = vunpack.c.h.b16 %v6061
    %v6619 = vunpack.c.l.b16 %v6062
    %v6620 = vunpack.c.h.b16 %v6062
    %v6621 = vunpack.c.l.b16 %v6063
    %v6622 = vunpack.c.h.b16 %v6063
    %v6623 = vunpack.c.l.b16 %v6064
    %v6624 = vunpack.c.h.b16 %v6064
    %v6625 = vunpack.c.l.b16 %v6065
    %v6626 = vunpack.c.h.b16 %v6065
    %v6627 = vunpack.c.l.b16 %v6066
    %v6628 = vunpack.c.h.b16 %v6066
    %v6629 = vunpack.c.l.b16 %v6067
    %v6630 = vunpack.c.h.b16 %v6067
    %v6631 = vunpack.c.l.b16 %v6068
    %v6632 = vunpack.c.h.b16 %v6068
    %v6633 = vunpack.c.l.b16 %v6069
    %v6634 = vunpack.c.h.b16 %v6069
    %v6635 = vunpack.c.l.b16 %v6070
    %v6636 = vunpack.c.h.b16 %v6070
    %v6637 = vunpack.c.l.b16 %v6071
    %v6638 = vunpack.c.h.b16 %v6071
    %v6639 = vunpack.c.l.b16 %v6072
    %v6640 = vunpack.c.h.b16 %v6072
    %v6641 = vunpack.c.l.b16 %v6073
    %v6642 = vunpack.c.h.b16 %v6073
    %v6643 = vunpack.c.l.b16 %v6074
    %v6644 = vunpack.c.h.b16 %v6074
    %v6645 = vunpack.c.l.b16 %v6075
    %v6646 = vunpack.c.h.b16 %v6075
    %v6647 = vunpack.c.l.b16 %v6076
    %v6648 = vunpack.c.h.b16 %v6076
    %v6649 = vunpack.c.l.b16 %v6077
    %v6650 = vunpack.c.h.b16 %v6077
    %v6651 = vunpack.c.l.b16 %v6078
    %v6652 = vunpack.c.h.b16 %v6078
    %v6653 = vunpack.c.l.b16 %v6079
    %v6654 = vunpack.c.h.b16 %v6079
    %v6655 = vunpack.c.l.b16 %v6080
    %v6656 = vunpack.c.h.b16 %v6080
    %v6657 = vunpack.c.l.b16 %v6081
    %v6658 = vunpack.c.h.b16 %v6081
    %v6659 = vunpack.c.l.b16 %v6082
    %v6660 = vunpack.c.h.b16 %v6082
    %v6661 = vunpack.c.l.b16 %v6083
    %v6662 = vunpack.c.h.b16 %v6083
    %v6663 = vunpack.c.l.b16 %v6084
    %v6664 = vunpack.c.h.b16 %v6084
    %v6665 = vunpack.c.l.b16 %v6085
    %v6666 = vunpack.c.h.b16 %v6085
    %v6667 = vunpack.c.l.b16 %v6086
    %v6668 = vunpack.c.h.b16 %v6086
    %v6669 = vunpack.c.l.b16 %v6087
    %v6670 = vunpack.c.h.b16 %v6087
    %v6671 = vunpack.c.l.b16 %v6088
    %v6672 = vunpack.c.h.b16 %v6088
    %v6673 = vunpack.c.l.b16 %v6089
    %v6674 = vunpack.c.h.b16 %v6089
    %v6675 = vunpack.c.l.b16 %v6090
    %v6676 = vunpack.c.h.b16 %v6090
    %v6677 = vunpack.c.l.b16 %v6091
    %v6678 = vunpack.c.h.b16 %v6091
    %v6679 = vunpack.c.l.b16 %v6092
    %v6680 = vunpack.c.h.b16 %v6092
    %v6681 = vunpack.c.l.b16 %v6093
    %v6682 = vunpack.c.h.b16 %v6093
    %v6683 = vunpack.c.l.b16 %v6094
    %v6684 = vunpack.c.h.b16 %v6094
    %v6685 = vunpack.c.l.b16 %v6095
    %v6686 = vunpack.c.h.b16 %v6095
    %v6687 = vunpack.c.l.b16 %v6096
    %v6688 = vunpack.c.h.b16 %v6096
    %v6689 = vunpack.c.l.b16 %v6097
    %v6690 = vunpack.c.h.b16 %v6097
    %v6691 = vunpack.c.l.b16 %v6098
    %v6692 = vunpack.c.h.b16 %v6098
    %v6693 = vunpack.c.l.b16 %v6099
    %v6694 = vunpack.c.h.b16 %v6099
    %v6695 = vunpack.c.l.b16 %v6100
    %v6696 = vunpack.c.h.b16 %v6100
    %v6697 = vunpack.c.l.b16 %v6101
    %v6698 = vunpack.c.h.b16 %v6101
    %v6699 = vunpack.c.l.b16 %v6102
    %v6700 = vunpack.c.h.b16 %v6102
    %v6701 = vunpack.c.l.b16 %v6103
    %v6702 = vunpack.c.h.b16 %v6103
    %v6703 = vunpack.c.l.b16 %v6104
    %v6704 = vunpack.c.h.b16 %v6104
    %v6705 = vunpack.c.l.b16 %v6105
    %v6706 = vunpack.c.h.b16 %v6105
    %v6707 = vunpack.c.l.b16 %v6106
    %v6708 = vunpack.c.h.b16 %v6106
    %v6709 = vunpack.c.l.b16 %v6107
    %v6710 = vunpack.c.h.b16 %v6107
    %v6711 = vunpack.c.l.b16 %v6108
    %v6712 = vunpack.c.h.b16 %v6108
    %v6713 = vunpack.c.l.b16 %v6109
    %v6714 = vunpack.c.h.b16 %v6109
    %v6715 = vunpack.c.l.b16 %v6110
    %v6716 = vunpack.c.h.b16 %v6110
    %v6717 = vunpack.c.l.b16 %v6111
    %v6718 = vunpack.c.h.b16 %v6111
    %v6719 = vunpack.c.l.b16 %v6112
    %v6720 = vunpack.c.h.b16 %v6112
    %v6721 = vunpack.c.l.b16 %v6113
    %v6722 = vunpack.c.h.b16 %v6113
    %v6723 = vunpack.c.l.b16 %v6114
    %v6724 = vunpack.c.h.b16 %v6114
    %v6725 = vunpack.c.l.b16 %v6115
    %v6726 = vunpack.c.h.b16 %v6115
    %v6727 = vunpack.c.l.b16 %v6116
    %v6728 = vunpack.c.h.b16 %v6116
    %v6729 = vunpack.c.l.b16 %v6117
    %v6730 = vunpack.c.h.b16 %v6117
    %v6731 = vunpack.c.l.b16 %v6118
    %v6732 = vunpack.c.h.b16 %v6118
    %v6733 = vunpack.c.l.b16 %v6119
    %v6734 = vunpack.c.h.b16 %v6119
    %v6735 = vunpack.c.l.b16 %v6120
    %v6736 = vunpack.c.h.b16 %v6120
    %v6737 = vunpack.c.l.b16 %v6121
    %v6738 = vunpack.c.h.b16 %v6121
    %v6739 = vunpack.c.l.b16 %v6122
    %v6740 = vunpack.c.h.b16 %v6122
    %v6741 = vunpack.c.l.b16 %v6123
    %v6742 = vunpack.c.h.b16 %v6123
    %v6743 = vunpack.c.l.b16 %v6124
    %v6744 = vunpack.c.h.b16 %v6124
    %v6745 = vunpack.c.l.b16 %v6125
    %v6746 = vunpack.c.h.b16 %v6125
    %v6747 = vunpack.c.l.b16 %v6126
    %v6748 = vunpack.c.h.b16 %v6126
    %v6749 = vunpack.c.l.b16 %v6127
    %v6750 = vunpack.c.h.b16 %v6127
    %v6751 = vunpack.c.l.b16 %v6128
    %v6752 = vunpack.c.h.b16 %v6128
    %v6753 = vunpack.c.l.b16 %v6129
    %v6754 = vunpack.c.h.b16 %v6129
    %v6755 = vunpack.c.l.b16 %v6130
    %v6756 = vunpack.c.h.b16 %v6130
    %v6757 = vunpack.c.l.b16 %v6131
    %v6758 = vunpack.c.h.b16 %v6131
    %v6759 = vunpack.c.l.b16 %v6132
    %v6760 = vunpack.c.h.b16 %v6132
    %v6761 = vunpack.c.l.b16 %v6133
    %v6762 = vunpack.c.h.b16 %v6133
    %v6763 = vunpack.c.l.b16 %v6134
    %v6764 = vunpack.c.h.b16 %v6134
    %v6765 = vunpack.c.l.b16 %v6135
    %v6766 = vunpack.c.h.b16 %v6135
    %v6767 = vunpack.c.l.b16 %v6136
    %v6768 = vunpack.c.h.b16 %v6136
    %v6769 = vunpack.c.l.b16 %v6137
    %v6770 = vunpack.c.h.b16 %v6137
    %v6771 = vunpack.c.l.b16 %v6138
    %v6772 = vunpack.c.h.b16 %v6138
    %v6773 = vunpack.c.l.b16 %v6139
    %v6774 = vunpack.c.h.b16 %v6139
    %v6775 = vunpack.c.l.b16 %v6140
    %v6776 = vunpack.c.h.b16 %v6140
    %v6777 = vunpack.c.l.b16 %v6141
    %v6778 = vunpack.c.h.b16 %v6141
    %v6779 = vunpack.c.l.b16 %v6142
    %v6780 = vunpack.c.h.b16 %v6142
    %v6781 = vunpack.c.l.b16 %v6143
    %v6782 = vunpack.c.h.b16 %v6143
    %v6783 = vunpack.c.l.b16 %v6144
    %v6784 = vunpack.c.h.b16 %v6144
    %v6785 = vunpack.c.l.b16 %v6145
    %v6786 = vunpack.c.h.b16 %v6145
    %v6787 = vunpack.c.l.b16 %v6146
    %v6788 = vunpack.c.h.b16 %v6146
    %v6789 = vunpack.c.l.b16 %v6147
    %v6790 = vunpack.c.h.b16 %v6147
    %v6791 = vunpack.c.l.b16 %v6148
    %v6792 = vunpack.c.h.b16 %v6148
    %v6793 = vunpack.c.l.b16 %v6149
    %v6794 = vunpack.c.h.b16 %v6149
    %v6795 = vunpack.c.l.b16 %v6150
    %v6796 = vunpack.c.h.b16 %v6150
    %v6797 = vunpack.c.l.b16 %v6151
    %v6798 = vunpack.c.h.b16 %v6151
    %v6799 = vunpack.c.l.b16 %v6152
    %v6800 = vunpack.c.h.b16 %v6152
    %v6801 = vunpack.c.l.b16 %v6153
    %v6802 = vunpack.c.h.b16 %v6153
    %v6803 = vunpack.c.l.b16 %v6154
    %v6804 = vunpack.c.h.b16 %v6154
    %v6805 = vunpack.c.l.b16 %v6155
    %v6806 = vunpack.c.h.b16 %v6155
    %v6807 = vunpack.c.l.b16 %v6156
    %v6808 = vunpack.c.h.b16 %v6156
    %v6809 = vunpack.c.l.b16 %v6157
    %v6810 = vunpack.c.h.b16 %v6157
    %v6811 = vunpack.c.l.b16 %v6158
    %v6812 = vunpack.c.h.b16 %v6158
    %v6813 = vunpack.c.l.b16 %v6159
    %v6814 = vunpack.c.h.b16 %v6159
    %v6815 = vunpack.c.l.b16 %v6160
    %v6816 = vunpack.c.h.b16 %v6160
    %v6817 = vunpack.c.l.b16 %v6161
    %v6818 = vunpack.c.h.b16 %v6161
    %v6819 = vunpack.c.l.b16 %v6162
    %v6820 = vunpack.c.h.b16 %v6162
    %v6821 = vunpack.c.l.b16 %v6163
    %v6822 = vunpack.c.h.b16 %v6163
    %v6823 = vunpack.c.l.b16 %v6164
    %v6824 = vunpack.c.h.b16 %v6164
    %v6825 = vunpack.c.l.b16 %v6165
    %v6826 = vunpack.c.h.b16 %v6165
    %v6827 = vunpack.c.l.b16 %v6166
    %v6828 = vunpack.c.h.b16 %v6166
    %v6829 = vunpack.c.l.b16 %v6167
    %v6830 = vunpack.c.h.b16 %v6167
    %v6831 = vunpack.c.l.b16 %v6168
    %v6832 = vunpack.c.h.b16 %v6168
    %v6833 = vunpack.c.l.b16 %v6169
    %v6834 = vunpack.c.h.b16 %v6169
    %v6835 = vunpack.c.l.b16 %v6170
    %v6836 = vunpack.c.h.b16 %v6170
    %v6837 = vunpack.c.l.b16 %v6171
    %v6838 = vunpack.c.h.b16 %v6171
    %v6839 = vunpack.c.l.b16 %v6172
    %v6840 = vunpack.c.h.b16 %v6172
    %v6841 = vunpack.c.l.b16 %v6173
    %v6842 = vunpack.c.h.b16 %v6173
    %v6843 = vunpack.c.l.b16 %v6174
    %v6844 = vunpack.c.h.b16 %v6174
    %v6845 = vunpack.c.l.b16 %v6175
    %v6846 = vunpack.c.h.b16 %v6175
    %v6847 = vunpack.c.l.b16 %v6176
    %v6848 = vunpack.c.h.b16 %v6176
    %v6849 = vunpack.c.l.b16 %v6177
    %v6850 = vunpack.c.h.b16 %v6177
    %v6851 = vunpack.c.l.b16 %v6178
    %v6852 = vunpack.c.h.b16 %v6178
    %v6853 = vunpack.c.l.b16 %v6179
    %v6854 = vunpack.c.h.b16 %v6179
    %v6855 = vunpack.c.l.b16 %v6180
    %v6856 = vunpack.c.h.b16 %v6180
    %v6857 = vunpack.c.l.b16 %v6181
    %v6858 = vunpack.c.h.b16 %v6181
    %v6859 = vunpack.c.l.b16 %v6182
    %v6860 = vunpack.c.h.b16 %v6182
    %v6861 = vunpack.c.l.b16 %v6183
    %v6862 = vunpack.c.h.b16 %v6183
    %v6863 = vunpack.c.l.b16 %v6184
    %v6864 = vunpack.c.h.b16 %v6184
    %v6865 = vunpack.c.l.b16 %v6185
    %v6866 = vunpack.c.h.b16 %v6185
    %v6867 = vunpack.c.l.b16 %v6186
    %v6868 = vunpack.c.h.b16 %v6186
    %v6869 = vunpack.c.l.b16 %v6187
    %v6870 = vunpack.c.h.b16 %v6187
    %v6871 = vunpack.c.l.b16 %v6188
    %v6872 = vunpack.c.h.b16 %v6188
    %v6873 = vunpack.c.l.b16 %v6189
    %v6874 = vunpack.c.h.b16 %v6189
    %v6875 = vunpack.c.l.b16 %v6190
    %v6876 = vunpack.c.h.b16 %v6190
    %v6877 = vunpack.c.l.b16 %v6191
    %v6878 = vunpack.c.h.b16 %v6191
    %v6879 = vunpack.c.l.b16 %v6192
    %v6880 = vunpack.c.h.b16 %v6192
    %v6881 = vunpack.c.l.b16 %v6193
    %v6882 = vunpack.c.h.b16 %v6193
    %v6883 = vunpack.c.l.b16 %v6194
    %v6884 = vunpack.c.h.b16 %v6194
    %v6885 = vunpack.c.l.b16 %v6195
    %v6886 = vunpack.c.h.b16 %v6195
    %v6887 = vunpack.c.l.b16 %v6196
    %v6888 = vunpack.c.h.b16 %v6196
    %v6889 = vunpack.c.l.b16 %v6197
    %v6890 = vunpack.c.h.b16 %v6197
    %v6891 = vunpack.c.l.b16 %v6198
    %v6892 = vunpack.c.h.b16 %v6198
    %v6893 = vunpack.c.l.b16 %v6199
    %v6894 = vunpack.c.h.b16 %v6199
    %v6895 = vunpack.c.l.b16 %v6200
    %v6896 = vunpack.c.h.b16 %v6200
    %v6897 = vunpack.c.l.b16 %v6201
    %v6898 = vunpack.c.h.b16 %v6201
    %v6899 = vunpack.c.l.b16 %v6202
    %v6900 = vunpack.c.h.b16 %v6202
    %v6901 = vunpack.c.l.b16 %v6203
    %v6902 = vunpack.c.h.b16 %v6203
    %v6903 = vunpack.c.l.b16 %v6204
    %v6904 = vunpack.c.h.b16 %v6204
    %v6905 = vunpack.c.l.b16 %v6205
    %v6906 = vunpack.c.h.b16 %v6205
    %v6907 = vunpack.c.l.b16 %v6206
    %v6908 = vunpack.c.h.b16 %v6206
    %v6909 = vunpack.c.l.b16 %v6207
    %v6910 = vunpack.c.h.b16 %v6207
    %v6911 = vunpack.c.l.b16 %v6208
    %v6912 = vunpack.c.h.b16 %v6208
    %v6913 = vunpack.c.l.b16 %v6209
    %v6914 = vunpack.c.h.b16 %v6209
    %v6915 = vunpack.c.l.b16 %v6210
    %v6916 = vunpack.c.h.b16 %v6210
    %v6917 = vunpack.c.l.b16 %v6211
    %v6918 = vunpack.c.h.b16 %v6211
    %v6919 = vunpack.c.l.b16 %v6212
    %v6920 = vunpack.c.h.b16 %v6212
    %v6921 = vunpack.c.l.b16 %v6213
    %v6922 = vunpack.c.h.b16 %v6213
    %v6923 = vunpack.c.l.b16 %v6214
    %v6924 = vunpack.c.h.b16 %v6214
    %v6925 = vunpack.c.l.b16 %v6215
    %v6926 = vunpack.c.h.b16 %v6215
    %v6927 = vunpack.c.l.b16 %v6216
    %v6928 = vunpack.c.h.b16 %v6216
    %v6929 = vunpack.c.l.b16 %v6217
    %v6930 = vunpack.c.h.b16 %v6217
    %v6931 = vunpack.c.l.b16 %v6218
    %v6932 = vunpack.c.h.b16 %v6218
    %v6933 = vunpack.c.l.b16 %v6219
    %v6934 = vunpack.c.h.b16 %v6219
    %v6935 = vunpack.c.l.b16 %v6220
    %v6936 = vunpack.c.h.b16 %v6220
    %v6937 = vunpack.c.l.b16 %v6221
    %v6938 = vunpack.c.h.b16 %v6221
    %v6939 = vunpack.c.l.b16 %v6222
    %v6940 = vunpack.c.h.b16 %v6222
    %v6941 = vunpack.c.l.b16 %v6223
    %v6942 = vunpack.c.h.b16 %v6223
    %v6943 = vunpack.c.l.b16 %v6224
    %v6944 = vunpack.c.h.b16 %v6224
    %v6945 = vunpack.c.l.b16 %v6225
    %v6946 = vunpack.c.h.b16 %v6225
    %v6947 = vunpack.c.l.b16 %v6226
    %v6948 = vunpack.c.h.b16 %v6226
    %v6949 = vunpack.c.l.b16 %v6227
    %v6950 = vunpack.c.h.b16 %v6227
    %v6951 = vunpack.c.l.b16 %v6228
    %v6952 = vunpack.c.h.b16 %v6228
    %v6953 = vunpack.c.l.b16 %v6229
    %v6954 = vunpack.c.h.b16 %v6229
    %v6955 = vunpack.c.l.b16 %v6230
    %v6956 = vunpack.c.h.b16 %v6230
    %v6957 = vunpack.c.l.b16 %v6231
    %v6958 = vunpack.c.h.b16 %v6231
    %v6959 = vunpack.c.l.b16 %v6232
    %v6960 = vunpack.c.h.b16 %v6232
    %v6961 = vunpack.c.l.b16 %v6233
    %v6962 = vunpack.c.h.b16 %v6233
    %v6963 = vunpack.c.l.b16 %v6234
    %v6964 = vunpack.c.h.b16 %v6234
    %v6965 = vunpack.c.l.b16 %v6235
    %v6966 = vunpack.c.h.b16 %v6235
    %v6967 = vunpack.c.l.b16 %v6236
    %v6968 = vunpack.c.h.b16 %v6236
    %v6969 = vunpack.c.l.b16 %v6237
    %v6970 = vunpack.c.h.b16 %v6237
    %v6971 = vunpack.c.l.b16 %v6238
    %v6972 = vunpack.c.h.b16 %v6238
    %v6973 = vunpack.c.l.b16 %v6239
    %v6974 = vunpack.c.h.b16 %v6239
    %v6975 = vunpack.c.l.b16 %v6240
    %v6976 = vunpack.c.h.b16 %v6240
    %v6977 = vunpack.c.l.b16 %v6241
    %v6978 = vunpack.c.h.b16 %v6241
    %v6979 = vunpack.c.l.b16 %v6242
    %v6980 = vunpack.c.h.b16 %v6242
    %v6981 = vunpack.c.l.b16 %v6243
    %v6982 = vunpack.c.h.b16 %v6243
    %v6983 = vunpack.c.l.b16 %v6244
    %v6984 = vunpack.c.h.b16 %v6244
    %v6985 = vunpack.c.l.b16 %v6245
    %v6986 = vunpack.c.h.b16 %v6245
    %v6987 = vunpack.c.l.b16 %v6246
    %v6988 = vunpack.c.h.b16 %v6246
    %v6989 = vunpack.c.l.b16 %v6247
    %v6990 = vunpack.c.h.b16 %v6247
    %v6991 = vunpack.c.l.b16 %v6248
    %v6992 = vunpack.c.h.b16 %v6248
    %v6993 = vunpack.c.l.b16 %v6249
    %v6994 = vunpack.c.h.b16 %v6249
    %v6995 = vunpack.c.l.b16 %v6250
    %v6996 = vunpack.c.h.b16 %v6250
    %v6997 = vunpack.c.l.b16 %v6251
    %v6998 = vunpack.c.h.b16 %v6251
    %v6999 = vunpack.c.l.b16 %v6252
    %v7000 = vunpack.c.h.b16 %v6252
    %v7001 = vunpack.c.l.b16 %v6253
    %v7002 = vunpack.c.h.b16 %v6253
    %v7003 = vunpack.c.l.b16 %v6254
    %v7004 = vunpack.c.h.b16 %v6254
    %v7005 = vunpack.c.l.b16 %v6255
    %v7006 = vunpack.c.h.b16 %v6255
    %v7007 = vunpack.c.l.b16 %v6256
    %v7008 = vunpack.c.h.b16 %v6256
    %v7009 = vunpack.c.l.b16 %v6257
    %v7010 = vunpack.c.h.b16 %v6257
    %v7011 = vunpack.c.l.b16 %v6258
    %v7012 = vunpack.c.h.b16 %v6258
    %v7013 = vunpack.c.l.b16 %v6259
    %v7014 = vunpack.c.h.b16 %v6259
    %v7015 = vunpack.c.l.b16 %v6260
    %v7016 = vunpack.c.h.b16 %v6260
    %v7017 = vunpack.c.l.b16 %v6261
    %v7018 = vunpack.c.h.b16 %v6261
    %v7019 = vunpack.c.l.b16 %v6262
    %v7020 = vunpack.c.h.b16 %v6262
    %v7021 = vunpack.c.l.b16 %v6263
    %v7022 = vunpack.c.h.b16 %v6263
    %v7023 = vunpack.c.l.b16 %v6264
    %v7024 = vunpack.c.h.b16 %v6264
    %v7025 = vunpack.c.l.b16 %v6265
    %v7026 = vunpack.c.h.b16 %v6265
    %v7027 = vunpack.c.l.b16 %v6266
    %v7028 = vunpack.c.h.b16 %v6266
    %v7029 = vunpack.c.l.b16 %v6267
    %v7030 = vunpack.c.h.b16 %v6267
    %v7031 = vunpack.c.l.b16 %v6268
    %v7032 = vunpack.c.h.b16 %v6268
    %v7033 = vunpack.c.l.b16 %v6269
    %v7034 = vunpack.c.h.b16 %v6269
    %v7035 = vunpack.c.l.b16 %v6270
    %v7036 = vunpack.c.h.b16 %v6270
    %v7037 = vunpack.c.l.b16 %v6271
    %v7038 = vunpack.c.h.b16 %v6271
    %v7039 = vunpack.c.l.b16 %v6272
    %v7040 = vunpack.c.h.b16 %v6272
    %v7041 = vpack.c.b16 %v6537, %v6529
    %v7042 = vpack.c.b16 %v6538, %v6530
    %v7043 = vpack.c.b16 %v6539, %v6531
    %v7044 = vpack.c.b16 %v6540, %v6532
    %v7045 = vpack.c.b16 %v6541, %v6533
    %v7046 = vpack.c.b16 %v6542, %v6534
    %v7047 = vpack.c.b16 %v6543, %v6535
    %v7048 = vpack.c.b16 %v6544, %v6536
    %v7049 = vpack.c.b16 %v6553, %v6545
    %v7050 = vpack.c.b16 %v6554, %v6546
    %v7051 = vpack.c.b16 %v6555, %v6547
    %v7052 = vpack.c.b16 %v6556, %v6548
    %v7053 = vpack.c.b16 %v6557, %v6549
    %v7054 = vpack.c.b16 %v6558, %v6550
    %v7055 = vpack.c.b16 %v6559, %v6551
    %v7056 = vpack.c.b16 %v6560, %v6552
    %v7057 = vpack.c.b16 %v6569, %v6561
    %v7058 = vpack.c.b16 %v6570, %v6562
    %v7059 = vpack.c.b16 %v6571, %v6563
    %v7060 = vpack.c.b16 %v6572, %v6564
    %v7061 = vpack.c.b16 %v6573, %v6565
    %v7062 = vpack.c.b16 %v6574, %v6566
    %v7063 = vpack.c.b16 %v6575, %v6567
    %v7064 = vpack.c.b16 %v6576, %v6568
    %v7065 = vpack.c.b16 %v6585, %v6577
    %v7066 = vpack.c.b16 %v6586, %v6578
    %v7067 = vpack.c.b16 %v6587, %v6579
    %v7068 = vpack.c.b16 %v6588, %v6580
    %v7069 = vpack.c.b16 %v6589, %v6581
    %v7070 = vpack.c.b16 %v6590, %v6582
    %v7071 = vpack.c.b16 %v6591, %v6583
    %v7072 = vpack.c.b16 %v6592, %v6584
    %v7073 = vpack.c.b16 %v6601, %v6593
    %v7074 = vpack.c.b16 %v6602, %v6594
    %v7075 = vpack.c.b16 %v6603, %v6595
    %v7076 = vpack.c.b16 %v6604, %v6596
    %v7077 = vpack.c.b16 %v6605, %v6597
    %v7078 = vpack.c.b16 %v6606, %v6598
    %v7079 = vpack.c.b16 %v6607, %v6599
    %v7080 = vpack.c.b16 %v6608, %v6600
    %v7081 = vpack.c.b16 %v6617, %v6609
    %v7082 = vpack.c.b16 %v6618, %v6610
    %v7083 = vpack.c.b16 %v6619, %v6611
    %v7084 = vpack.c.b16 %v6620, %v6612
    %v7085 = vpack.c.b16 %v6621, %v6613
    %v7086 = vpack.c.b16 %v6622, %v6614
    %v7087 = vpack.c.b16 %v6623, %v6615
    %v7088 = vpack.c.b16 %v6624, %v6616
    %v7089 = vpack.c.b16 %v6633, %v6625
    %v7090 = vpack.c.b16 %v6634, %v6626
    %v7091 = vpack.c.b16 %v6635, %v6627
    %v7092 = vpack.c.b16 %v6636, %v6628
    %v7093 = vpack.c.b16 %v6637, %v6629
    %v7094 = vpack.c.b16 %v6638, %v6630
    %v7095 = vpack.c.b16 %v6639, %v6631
    %v7096 = vpack.c.b16 %v6640, %v6632
    %v7097 = vpack.c.b16 %v6649, %v6641
    %v7098 = vpack.c.b16 %v6650, %v6642
    %v7099 = vpack.c.b16 %v6651, %v6643
    %v7100 = vpack.c.b16 %v6652, %v6644
    %v7101 = vpack.c.b16 %v6653, %v6645
    %v7102 = vpack.c.b16 %v6654, %v6646
    %v7103 = vpack.c.b16 %v6655, %v6647
    %v7104 = vpack.c.b16 %v6656, %v6648
    %v7105 = vpack.c.b16 %v6665, %v6657
    %v7106 = vpack.c.b16 %v6666, %v6658
    %v7107 = vpack.c.b16 %v6667, %v6659
    %v7108 = vpack.c.b16 %v6668, %v6660
    %v7109 = vpack.c.b16 %v6669, %v6661
    %v7110 = vpack.c.b16 %v6670, %v6662
    %v7111 = vpack.c.b16 %v6671, %v6663
    %v7112 = vpack.c.b16 %v6672, %v6664
    %v7113 = vpack.c.b16 %v6681, %v6673
    %v7114 = vpack.c.b16 %v6682, %v6674
    %v7115 = vpack.c.b16 %v6683, %v6675
    %v7116 = vpack.c.b16 %v6684, %v6676
    %v7117 = vpack.c.b16 %v6685, %v6677
    %v7118 = vpack.c.b16 %v6686, %v6678
    %v7119 = vpack.c.b16 %v6687, %v6679
    %v7120 = vpack.c.b16 %v6688, %v6680
    %v7121 = vpack.c.b16 %v6697, %v6689
    %v7122 = vpack.c.b16 %v6698, %v6690
    %v7123 = vpack.c.b16 %v6699, %v6691
    %v7124 = vpack.c.b16 %v6700, %v6692
    %v7125 = vpack.c.b16 %v6701, %v6693
    %v7126 = vpack.c.b16 %v6702, %v6694
    %v7127 = vpack.c.b16 %v6703, %v6695
    %v7128 = vpack.c.b16 %v6704, %v6696
    %v7129 = vpack.c.b16 %v6713, %v6705
    %v7130 = vpack.c.b16 %v6714, %v6706
    %v7131 = vpack.c.b16 %v6715, %v6707
    %v7132 = vpack.c.b16 %v6716, %v6708
    %v7133 = vpack.c.b16 %v6717, %v6709
    %v7134 = vpack.c.b16 %v6718, %v6710
    %v7135 = vpack.c.b16 %v6719, %v6711
    %v7136 = vpack.c.b16 %v6720, %v6712
    %v7137 = vpack.c.b16 %v6729, %v6721
    %v7138 = vpack.c.b16 %v6730, %v6722
    %v7139 = vpack.c.b16 %v6731, %v6723
    %v7140 = vpack.c.b16 %v6732, %v6724
    %v7141 = vpack.c.b16 %v6733, %v6725
    %v7142 = vpack.c.b16 %v6734, %v6726
    %v7143 = vpack.c.b16 %v6735, %v6727
    %v7144 = vpack.c.b16 %v6736, %v6728
    %v7145 = vpack.c.b16 %v6745, %v6737
    %v7146 = vpack.c.b16 %v6746, %v6738
    %v7147 = vpack.c.b16 %v6747, %v6739
    %v7148 = vpack.c.b16 %v6748, %v6740
    %v7149 = vpack.c.b16 %v6749, %v6741
    %v7150 = vpack.c.b16 %v6750, %v6742
    %v7151 = vpack.c.b16 %v6751, %v6743
    %v7152 = vpack.c.b16 %v6752, %v6744
    %v7153 = vpack.c.b16 %v6761, %v6753
    %v7154 = vpack.c.b16 %v6762, %v6754
    %v7155 = vpack.c.b16 %v6763, %v6755
    %v7156 = vpack.c.b16 %v6764, %v6756
    %v7157 = vpack.c.b16 %v6765, %v6757
    %v7158 = vpack.c.b16 %v6766, %v6758
    %v7159 = vpack.c.b16 %v6767, %v6759
    %v7160 = vpack.c.b16 %v6768, %v6760
    %v7161 = vpack.c.b16 %v6777, %v6769
    %v7162 = vpack.c.b16 %v6778, %v6770
    %v7163 = vpack.c.b16 %v6779, %v6771
    %v7164 = vpack.c.b16 %v6780, %v6772
    %v7165 = vpack.c.b16 %v6781, %v6773
    %v7166 = vpack.c.b16 %v6782, %v6774
    %v7167 = vpack.c.b16 %v6783, %v6775
    %v7168 = vpack.c.b16 %v6784, %v6776
    %v7169 = vpack.c.b16 %v6793, %v6785
    %v7170 = vpack.c.b16 %v6794, %v6786
    %v7171 = vpack.c.b16 %v6795, %v6787
    %v7172 = vpack.c.b16 %v6796, %v6788
    %v7173 = vpack.c.b16 %v6797, %v6789
    %v7174 = vpack.c.b16 %v6798, %v6790
    %v7175 = vpack.c.b16 %v6799, %v6791
    %v7176 = vpack.c.b16 %v6800, %v6792
    %v7177 = vpack.c.b16 %v6809, %v6801
    %v7178 = vpack.c.b16 %v6810, %v6802
    %v7179 = vpack.c.b16 %v6811, %v6803
    %v7180 = vpack.c.b16 %v6812, %v6804
    %v7181 = vpack.c.b16 %v6813, %v6805
    %v7182 = vpack.c.b16 %v6814, %v6806
    %v7183 = vpack.c.b16 %v6815, %v6807
    %v7184 = vpack.c.b16 %v6816, %v6808
    %v7185 = vpack.c.b16 %v6825, %v6817
    %v7186 = vpack.c.b16 %v6826, %v6818
    %v7187 = vpack.c.b16 %v6827, %v6819
    %v7188 = vpack.c.b16 %v6828, %v6820
    %v7189 = vpack.c.b16 %v6829, %v6821
    %v7190 = vpack.c.b16 %v6830, %v6822
    %v7191 = vpack.c.b16 %v6831, %v6823
    %v7192 = vpack.c.b16 %v6832, %v6824
    %v7193 = vpack.c.b16 %v6841, %v6833
    %v7194 = vpack.c.b16 %v6842, %v6834
    %v7195 = vpack.c.b16 %v6843, %v6835
    %v7196 = vpack.c.b16 %v6844, %v6836
    %v7197 = vpack.c.b16 %v6845, %v6837
    %v7198 = vpack.c.b16 %v6846, %v6838
    %v7199 = vpack.c.b16 %v6847, %v6839
    %v7200 = vpack.c.b16 %v6848, %v6840
    %v7201 = vpack.c.b16 %v6857, %v6849
    %v7202 = vpack.c.b16 %v6858, %v6850
    %v7203 = vpack.c.b16 %v6859, %v6851
    %v7204 = vpack.c.b16 %v6860, %v6852
    %v7205 = vpack.c.b16 %v6861, %v6853
    %v7206 = vpack.c.b16 %v6862, %v6854
    %v7207 = vpack.c.b16 %v6863, %v6855
    %v7208 = vpack.c.b16 %v6864, %v6856
    %v7209 = vpack.c.b16 %v6873, %v6865
    %v7210 = vpack.c.b16 %v6874, %v6866
    %v7211 = vpack.c.b16 %v6875, %v6867
    %v7212 = vpack.c.b16 %v6876, %v6868
    %v7213 = vpack.c.b16 %v6877, %v6869
    %v7214 = vpack.c.b16 %v6878, %v6870
    %v7215 = vpack.c.b16 %v6879, %v6871
    %v7216 = vpack.c.b16 %v6880, %v6872
    %v7217 = vpack.c.b16 %v6889, %v6881
    %v7218 = vpack.c.b16 %v6890, %v6882
    %v7219 = vpack.c.b16 %v6891, %v6883
    %v7220 = vpack.c.b16 %v6892, %v6884
    %v7221 = vpack.c.b16 %v6893, %v6885
    %v7222 = vpack.c.b16 %v6894, %v6886
    %v7223 = vpack.c.b16 %v6895, %v6887
    %v7224 = vpack.c.b16 %v6896, %v6888
    %v7225 = vpack.c.b16 %v6905, %v6897
    %v7226 = vpack.c.b16 %v6906, %v6898
    %v7227 = vpack.c.b16 %v6907, %v6899
    %v7228 = vpack.c.b16 %v6908, %v6900
    %v7229 = vpack.c.b16 %v6909, %v6901
    %v7230 = vpack.c.b16 %v6910, %v6902
    %v7231 = vpack.c.b16 %v6911, %v6903
    %v7232 = vpack.c.b16 %v6912, %v6904
    %v7233 = vpack.c.b16 %v6921, %v6913
    %v7234 = vpack.c.b16 %v6922, %v6914
    %v7235 = vpack.c.b16 %v6923, %v6915
    %v7236 = vpack.c.b16 %v6924, %v6916
    %v7237 = vpack.c.b16 %v6925, %v6917
    %v7238 = vpack.c.b16 %v6926, %v6918
    %v7239 = vpack.c.b16 %v6927, %v6919
    %v7240 = vpack.c.b16 %v6928, %v6920
    %v7241 = vpack.c.b16 %v6937, %v6929
    %v7242 = vpack.c.b16 %v6938, %v6930
    %v7243 = vpack.c.b16 %v6939, %v6931
    %v7244 = vpack.c.b16 %v6940, %v6932
    %v7245 = vpack.c.b16 %v6941, %v6933
    %v7246 = vpack.c.b16 %v6942, %v6934
    %v7247 = vpack.c.b16 %v6943, %v6935
    %v7248 = vpack.c.b16 %v6944, %v6936
    %v7249 = vpack.c.b16 %v6953, %v6945
    %v7250 = vpack.c.b16 %v6954, %v6946
    %v7251 = vpack.c.b16 %v6955, %v6947
    %v7252 = vpack.c.b16 %v6956, %v6948
    %v7253 = vpack.c.b16 %v6957, %v6949
    %v7254 = vpack.c.b16 %v6958, %v6950
    %v7255 = vpack.c.b16 %v6959, %v6951
    %v7256 = vpack.c.b16 %v6960, %v6952
    %v7257 = vpack.c.b16 %v6969, %v6961
    %v7258 = vpack.c.b16 %v6970, %v6962
    %v7259 = vpack.c.b16 %v6971, %v6963
    %v7260 = vpack.c.b16 %v6972, %v6964
    %v7261 = vpack.c.b16 %v6973, %v6965
    %v7262 = vpack.c.b16 %v6974, %v6966
    %v7263 = vpack.c.b16 %v6975, %v6967
    %v7264 = vpack.c.b16 %v6976, %v6968
    %v7265 = vpack.c.b16 %v6985, %v6977
    %v7266 = vpack.c.b16 %v6986, %v6978
    %v7267 = vpack.c.b16 %v6987, %v6979
    %v7268 = vpack.c.b16 %v6988, %v6980
    %v7269 = vpack.c.b16 %v6989, %v6981
    %v7270 = vpack.c.b16 %v6990, %v6982
    %v7271 = vpack.c.b16 %v6991, %v6983
    %v7272 = vpack.c.b16 %v6992, %v6984
    %v7273 = vpack.c.b16 %v7001, %v6993
    %v7274 = vpack.c.b16 %v7002, %v6994
    %v7275 = vpack.c.b16 %v7003, %v6995
    %v7276 = vpack.c.b16 %v7004, %v6996
    %v7277 = vpack.c.b16 %v7005, %v6997
    %v7278 = vpack.c.b16 %v7006, %v6998
    %v7279 = vpack.c.b16 %v7007, %v6999
    %v7280 = vpack.c.b16 %v7008, %v7000
    %v7281 = vpack.c.b16 %v7017, %v7009
    %v7282 = vpack.c.b16 %v7018, %v7010
    %v7283 = vpack.c.b16 %v7019, %v7011
    %v7284 = vpack.c.b16 %v7020, %v7012
    %v7285 = vpack.c.b16 %v7021, %v7013
    %v7286 = vpack.c.b16 %v7022, %v7014
    %v7287 = vpack.c.b16 %v7023, %v7015
    %v7288 = vpack.c.b16 %v7024, %v7016
    %v7289 = vpack.c.b16 %v7033, %v7025
    %v7290 = vpack.c.b16 %v7034, %v7026
    %v7291 = vpack.c.b16 %v7035, %v7027
    %v7292 = vpack.c.b16 %v7036, %v7028
    %v7293 = vpack.c.b16 %v7037, %v7029
    %v7294 = vpack.c.b16 %v7038, %v7030
    %v7295 = vpack.c.b16 %v7039, %v7031
    %v7296 = vpack.c.b16 %v7040, %v7032
    %7553 = vmatprep.subr.bf16.mxu0 %v7042
    %7554 = vmatpush1.bf16.msra.mxu0 %v7041
    %7555 = vmatprep.subr.bf16.mxu0 %v7050
    %7556 = vmatpush1.bf16.msra.mxu0 %v7049
    %7557 = vmatprep.subr.bf16.mxu0 %v7058
    %7558 = vmatpush1.bf16.msra.mxu0 %v7057
    %7559 = vmatprep.subr.bf16.mxu0 %v7066
    %7560 = vmatpush1.bf16.msra.mxu0 %v7065
    %7561 = vmatprep.subr.bf16.mxu0 %v7074
    %7562 = vmatpush1.bf16.msra.mxu0 %v7073
    %7563 = vmatprep.subr.bf16.mxu0 %v7082
    %7564 = vmatpush1.bf16.msra.mxu0 %v7081
    %7565 = vmatprep.subr.bf16.mxu0 %v7090
    %7566 = vmatpush1.bf16.msra.mxu0 %v7089
    %7567 = vmatprep.subr.bf16.mxu0 %v7098
    %7568 = vmatpush1.bf16.msra.mxu0 %v7097
    %7569 = vmatprep.subr.bf16.mxu0 %v7106
    %7570 = vmatpush1.bf16.msra.mxu0 %v7105
    %7571 = vmatprep.subr.bf16.mxu0 %v7114
    %7572 = vmatpush1.bf16.msra.mxu0 %v7113
    %7573 = vmatprep.subr.bf16.mxu0 %v7122
    %7574 = vmatpush1.bf16.msra.mxu0 %v7121
    %7575 = vmatprep.subr.bf16.mxu0 %v7130
    %7576 = vmatpush1.bf16.msra.mxu0 %v7129
    %7577 = vmatprep.subr.bf16.mxu0 %v7138
    %7578 = vmatpush1.bf16.msra.mxu0 %v7137
    %7579 = vmatprep.subr.bf16.mxu0 %v7146
    %7580 = vmatpush1.bf16.msra.mxu0 %v7145
    %7581 = vmatprep.subr.bf16.mxu0 %v7154
    %7582 = vmatpush1.bf16.msra.mxu0 %v7153
    %7583 = vmatprep.subr.bf16.mxu0 %v7162
    %7584 = vmatpush1.bf16.msra.mxu0 %v7161
    %7585 = vmatprep.mubr.bf16.mxu0 %v2490
    %7586 = vmatmul.mubr.bf16.gmra.mrb[0].mxu0 %v2489
    %v7587 = vpop.f32.mrb[0].mxu0
    %v7588 = vadd.f32 0.0, %v7587
    %v7589 = vpop.f32.mrb[0].mxu0
    %v7590 = vadd.f32 0.0, %v7589
    %v7591 = vpop.f32.mrb[0].mxu0
    %v7592 = vadd.f32 0.0, %v7591
    %v7593 = vpop.f32.mrb[0].mxu0
    %v7594 = vadd.f32 0.0, %v7593
    %7595 = vdwg.mxu0
    %7596 = vmatprep.subr.bf16.mxu0 %v7170
    %7597 = vmatpush1.bf16.msra.mxu0 %v7169
    %7598 = vmatprep.subr.bf16.mxu0 %v7178
    %7599 = vmatpush1.bf16.msra.mxu0 %v7177
    %7600 = vmatprep.subr.bf16.mxu0 %v7186
    %7601 = vmatpush1.bf16.msra.mxu0 %v7185
    %7602 = vmatprep.subr.bf16.mxu0 %v7194
    %7603 = vmatpush1.bf16.msra.mxu0 %v7193
    %7604 = vmatprep.subr.bf16.mxu0 %v7202
    %7605 = vmatpush1.bf16.msra.mxu0 %v7201
    %7606 = vmatprep.subr.bf16.mxu0 %v7210
    %7607 = vmatpush1.bf16.msra.mxu0 %v7209
    %7608 = vmatprep.subr.bf16.mxu0 %v7218
    %7609 = vmatpush1.bf16.msra.mxu0 %v7217
    %7610 = vmatprep.subr.bf16.mxu0 %v7226
    %7611 = vmatpush1.bf16.msra.mxu0 %v7225
    %7612 = vmatprep.subr.bf16.mxu0 %v7234
    %7613 = vmatpush1.bf16.msra.mxu0 %v7233
    %7614 = vmatprep.subr.bf16.mxu0 %v7242
    %7615 = vmatpush1.bf16.msra.mxu0 %v7241
    %7616 = vmatprep.subr.bf16.mxu0 %v7250
    %7617 = vmatpush1.bf16.msra.mxu0 %v7249
    %7618 = vmatprep.subr.bf16.mxu0 %v7258
    %7619 = vmatpush1.bf16.msra.mxu0 %v7257
    %7620 = vmatprep.subr.bf16.mxu0 %v7266
    %7621 = vmatpush1.bf16.msra.mxu0 %v7265
    %7622 = vmatprep.subr.bf16.mxu0 %v7274
    %7623 = vmatpush1.bf16.msra.mxu0 %v7273
    %7624 = vmatprep.subr.bf16.mxu0 %v7282
    %7625 = vmatpush1.bf16.msra.mxu0 %v7281
    %7626 = vmatprep.subr.bf16.mxu0 %v7290
    %7627 = vmatpush1.bf16.msra.mxu0 %v7289
    %7628 = vmatprep.mubr.bf16.mxu0 %v2492
    %7629 = vmatmul.mubr.bf16.gmra.mrb[0].mxu0 %v2491
    %v7630 = vpop.f32.mrb[0].mxu0
    %v7631 = vadd.f32 %v7588, %v7630
    %v7632 = vpop.f32.mrb[0].mxu0
    %v7633 = vadd.f32 %v7590, %v7632
    %v7634 = vpop.f32.mrb[0].mxu0
    %v7635 = vadd.f32 %v7592, %v7634
    %v7636 = vpop.f32.mrb[0].mxu0
    %v7637 = vadd.f32 %v7594, %v7636
    %7638 = vdwg.mxu0
    %7639 = vmatprep.subr.bf16.mxu0 %v7044
    %7640 = vmatpush1.bf16.msra.mxu0 %v7043
    %7641 = vmatprep.subr.bf16.mxu0 %v7052
    %7642 = vmatpush1.bf16.msra.mxu0 %v7051
    %7643 = vmatprep.subr.bf16.mxu0 %v7060
    %7644 = vmatpush1.bf16.msra.mxu0 %v7059
    %7645 = vmatprep.subr.bf16.mxu0 %v7068
    %7646 = vmatpush1.bf16.msra.mxu0 %v7067
    %7647 = vmatprep.subr.bf16.mxu0 %v7076
    %7648 = vmatpush1.bf16.msra.mxu0 %v7075
    %7649 = vmatprep.subr.bf16.mxu0 %v7084
    %7650 = vmatpush1.bf16.msra.mxu0 %v7083
    %7651 = vmatprep.subr.bf16.mxu0 %v7092
    %7652 = vmatpush1.bf16.msra.mxu0 %v7091
    %7653 = vmatprep.subr.bf16.mxu0 %v7100
    %7654 = vmatpush1.bf16.msra.mxu0 %v7099
    %7655 = vmatprep.subr.bf16.mxu0 %v7108
    %7656 = vmatpush1.bf16.msra.mxu0 %v7107
    %7657 = vmatprep.subr.bf16.mxu0 %v7116
    %7658 = vmatpush1.bf16.msra.mxu0 %v7115
    %7659 = vmatprep.subr.bf16.mxu0 %v7124
    %7660 = vmatpush1.bf16.msra.mxu0 %v7123
    %7661 = vmatprep.subr.bf16.mxu0 %v7132
    %7662 = vmatpush1.bf16.msra.mxu0 %v7131
    %7663 = vmatprep.subr.bf16.mxu0 %v7140
    %7664 = vmatpush1.bf16.msra.mxu0 %v7139
    %7665 = vmatprep.subr.bf16.mxu0 %v7148
    %7666 = vmatpush1.bf16.msra.mxu0 %v7147
    %7667 = vmatprep.subr.bf16.mxu0 %v7156
    %7668 = vmatpush1.bf16.msra.mxu0 %v7155
    %7669 = vmatprep.subr.bf16.mxu0 %v7164
    %7670 = vmatpush1.bf16.msra.mxu0 %v7163
    %7671 = vmatprep.mubr.bf16.mxu0 %v2490
    %7672 = vmatmul.mubr.bf16.gmra.mrb[0].mxu0 %v2489
    %v7673 = vpop.f32.mrb[0].mxu0
    %v7674 = vadd.f32 0.0, %v7673
    %v7675 = vpop.f32.mrb[0].mxu0
    %v7676 = vadd.f32 0.0, %v7675
    %v7677 = vpop.f32.mrb[0].mxu0
    %v7678 = vadd.f32 0.0, %v7677
    %v7679 = vpop.f32.mrb[0].mxu0
    %v7680 = vadd.f32 0.0, %v7679
    %7681 = vdwg.mxu0
    %7682 = vmatprep.subr.bf16.mxu0 %v7172
    %7683 = vmatpush1.bf16.msra.mxu0 %v7171
    %7684 = vmatprep.subr.bf16.mxu0 %v7180
    %7685 = vmatpush1.bf16.msra.mxu0 %v7179
    %7686 = vmatprep.subr.bf16.mxu0 %v7188
    %7687 = vmatpush1.bf16.msra.mxu0 %v7187
    %7688 = vmatprep.subr.bf16.mxu0 %v7196
    %7689 = vmatpush1.bf16.msra.mxu0 %v7195
    %7690 = vmatprep.subr.bf16.mxu0 %v7204
    %7691 = vmatpush1.bf16.msra.mxu0 %v7203
    %7692 = vmatprep.subr.bf16.mxu0 %v7212
    %7693 = vmatpush1.bf16.msra.mxu0 %v7211
    %7694 = vmatprep.subr.bf16.mxu0 %v7220
    %7695 = vmatpush1.bf16.msra.mxu0 %v7219
    %7696 = vmatprep.subr.bf16.mxu0 %v7228
    %7697 = vmatpush1.bf16.msra.mxu0 %v7227
    %7698 = vmatprep.subr.bf16.mxu0 %v7236
    %7699 = vmatpush1.bf16.msra.mxu0 %v7235
    %7700 = vmatprep.subr.bf16.mxu0 %v7244
    %7701 = vmatpush1.bf16.msra.mxu0 %v7243
    %7702 = vmatprep.subr.bf16.mxu0 %v7252
    %7703 = vmatpush1.bf16.msra.mxu0 %v7251
    %7704 = vmatprep.subr.bf16.mxu0 %v7260
    %7705 = vmatpush1.bf16.msra.mxu0 %v7259
    %7706 = vmatprep.subr.bf16.mxu0 %v7268
    %7707 = vmatpush1.bf16.msra.mxu0 %v7267
    %7708 = vmatprep.subr.bf16.mxu0 %v7276
    %7709 = vmatpush1.bf16.msra.mxu0 %v7275
    %7710 = vmatprep.subr.bf16.mxu0 %v7284
    %7711 = vmatpush1.bf16.msra.mxu0 %v7283
    %7712 = vmatprep.subr.bf16.mxu0 %v7292
    %7713 = vmatpush1.bf16.msra.mxu0 %v7291
    %7714 = vmatprep.mubr.bf16.mxu0 %v2492
    %7715 = vmatmul.mubr.bf16.gmra.mrb[0].mxu0 %v2491
    %v7716 = vpop.f32.mrb[0].mxu0
    %v7717 = vadd.f32 %v7674, %v7716
    %v7718 = vpop.f32.mrb[0].mxu0
    %v7719 = vadd.f32 %v7676, %v7718
    %v7720 = vpop.f32.mrb[0].mxu0
    %v7721 = vadd.f32 %v7678, %v7720
    %v7722 = vpop.f32.mrb[0].mxu0
    %v7723 = vadd.f32 %v7680, %v7722
    %7724 = vdwg.mxu0
    %7725 = vmatprep.subr.bf16.mxu0 %v7046
    %7726 = vmatpush1.bf16.msra.mxu0 %v7045
    %7727 = vmatprep.subr.bf16.mxu0 %v7054
    %7728 = vmatpush1.bf16.msra.mxu0 %v7053
    %7729 = vmatprep.subr.bf16.mxu0 %v7062
    %7730 = vmatpush1.bf16.msra.mxu0 %v7061
    %7731 = vmatprep.subr.bf16.mxu0 %v7070
    %7732 = vmatpush1.bf16.msra.mxu0 %v7069
    %7733 = vmatprep.subr.bf16.mxu0 %v7078
    %7734 = vmatpush1.bf16.msra.mxu0 %v7077
    %7735 = vmatprep.subr.bf16.mxu0 %v7086
    %7736 = vmatpush1.bf16.msra.mxu0 %v7085
    %7737 = vmatprep.subr.bf16.mxu0 %v7094
    %7738 = vmatpush1.bf16.msra.mxu0 %v7093
    %7739 = vmatprep.subr.bf16.mxu0 %v7102
    %7740 = vmatpush1.bf16.msra.mxu0 %v7101
    %7741 = vmatprep.subr.bf16.mxu0 %v7110
    %7742 = vmatpush1.bf16.msra.mxu0 %v7109
    %7743 = vmatprep.subr.bf16.mxu0 %v7118
    %7744 = vmatpush1.bf16.msra.mxu0 %v7117
    %7745 = vmatprep.subr.bf16.mxu0 %v7126
    %7746 = vmatpush1.bf16.msra.mxu0 %v7125
    %7747 = vmatprep.subr.bf16.mxu0 %v7134
    %7748 = vmatpush1.bf16.msra.mxu0 %v7133
    %7749 = vmatprep.subr.bf16.mxu0 %v7142
    %7750 = vmatpush1.bf16.msra.mxu0 %v7141
    %7751 = vmatprep.subr.bf16.mxu0 %v7150
    %7752 = vmatpush1.bf16.msra.mxu0 %v7149
    %7753 = vmatprep.subr.bf16.mxu0 %v7158
    %7754 = vmatpush1.bf16.msra.mxu0 %v7157
    %7755 = vmatprep.subr.bf16.mxu0 %v7166
    %7756 = vmatpush1.bf16.msra.mxu0 %v7165
    %7757 = vmatprep.mubr.bf16.mxu0 %v2490
    %7758 = vmatmul.mubr.bf16.gmra.mrb[0].mxu0 %v2489
    %v7759 = vpop.f32.mrb[0].mxu0
    %v7760 = vadd.f32 0.0, %v7759
    %v7761 = vpop.f32.mrb[0].mxu0
    %v7762 = vadd.f32 0.0, %v7761
    %v7763 = vpop.f32.mrb[0].mxu0
    %v7764 = vadd.f32 0.0, %v7763
    %v7765 = vpop.f32.mrb[0].mxu0
    %v7766 = vadd.f32 0.0, %v7765
    %7767 = vdwg.mxu0
    %7768 = vmatprep.subr.bf16.mxu0 %v7174
    %7769 = vmatpush1.bf16.msra.mxu0 %v7173
    %7770 = vmatprep.subr.bf16.mxu0 %v7182
    %7771 = vmatpush1.bf16.msra.mxu0 %v7181
    %7772 = vmatprep.subr.bf16.mxu0 %v7190
    %7773 = vmatpush1.bf16.msra.mxu0 %v7189
    %7774 = vmatprep.subr.bf16.mxu0 %v7198
    %7775 = vmatpush1.bf16.msra.mxu0 %v7197
    %7776 = vmatprep.subr.bf16.mxu0 %v7206
    %7777 = vmatpush1.bf16.msra.mxu0 %v7205
    %7778 = vmatprep.subr.bf16.mxu0 %v7214
    %7779 = vmatpush1.bf16.msra.mxu0 %v7213
    %7780 = vmatprep.subr.bf16.mxu0 %v7222
    %7781 = vmatpush1.bf16.msra.mxu0 %v7221
    %7782 = vmatprep.subr.bf16.mxu0 %v7230
    %7783 = vmatpush1.bf16.msra.mxu0 %v7229
    %7784 = vmatprep.subr.bf16.mxu0 %v7238
    %7785 = vmatpush1.bf16.msra.mxu0 %v7237
    %7786 = vmatprep.subr.bf16.mxu0 %v7246
    %7787 = vmatpush1.bf16.msra.mxu0 %v7245
    %7788 = vmatprep.subr.bf16.mxu0 %v7254
    %7789 = vmatpush1.bf16.msra.mxu0 %v7253
    %7790 = vmatprep.subr.bf16.mxu0 %v7262
    %7791 = vmatpush1.bf16.msra.mxu0 %v7261
    %7792 = vmatprep.subr.bf16.mxu0 %v7270
    %7793 = vmatpush1.bf16.msra.mxu0 %v7269
    %7794 = vmatprep.subr.bf16.mxu0 %v7278
    %7795 = vmatpush1.bf16.msra.mxu0 %v7277
    %7796 = vmatprep.subr.bf16.mxu0 %v7286
    %7797 = vmatpush1.bf16.msra.mxu0 %v7285
    %7798 = vmatprep.subr.bf16.mxu0 %v7294
    %7799 = vmatpush1.bf16.msra.mxu0 %v7293
    %7800 = vmatprep.mubr.bf16.mxu0 %v2492
    %7801 = vmatmul.mubr.bf16.gmra.mrb[0].mxu0 %v2491
    %v7802 = vpop.f32.mrb[0].mxu0
    %v7803 = vadd.f32 %v7760, %v7802
    %v7804 = vpop.f32.mrb[0].mxu0
    %v7805 = vadd.f32 %v7762, %v7804
    %v7806 = vpop.f32.mrb[0].mxu0
    %v7807 = vadd.f32 %v7764, %v7806
    %v7808 = vpop.f32.mrb[0].mxu0
    %v7809 = vadd.f32 %v7766, %v7808
    %7810 = vdwg.mxu0
    %7811 = vmatprep.subr.bf16.mxu0 %v7048
    %7812 = vmatpush1.bf16.msra.mxu0 %v7047
    %7813 = vmatprep.subr.bf16.mxu0 %v7056
    %7814 = vmatpush1.bf16.msra.mxu0 %v7055
    %7815 = vmatprep.subr.bf16.mxu0 %v7064
    %7816 = vmatpush1.bf16.msra.mxu0 %v7063
    %7817 = vmatprep.subr.bf16.mxu0 %v7072
    %7818 = vmatpush1.bf16.msra.mxu0 %v7071
    %7819 = vmatprep.subr.bf16.mxu0 %v7080
    %7820 = vmatpush1.bf16.msra.mxu0 %v7079
    %7821 = vmatprep.subr.bf16.mxu0 %v7088
    %7822 = vmatpush1.bf16.msra.mxu0 %v7087
    %7823 = vmatprep.subr.bf16.mxu0 %v7096
    %7824 = vmatpush1.bf16.msra.mxu0 %v7095
    %7825 = vmatprep.subr.bf16.mxu0 %v7104
    %7826 = vmatpush1.bf16.msra.mxu0 %v7103
    %7827 = vmatprep.subr.bf16.mxu0 %v7112
    %7828 = vmatpush1.bf16.msra.mxu0 %v7111
    %7829 = vmatprep.subr.bf16.mxu0 %v7120
    %7830 = vmatpush1.bf16.msra.mxu0 %v7119
    %7831 = vmatprep.subr.bf16.mxu0 %v7128
    %7832 = vmatpush1.bf16.msra.mxu0 %v7127
    %7833 = vmatprep.subr.bf16.mxu0 %v7136
    %7834 = vmatpush1.bf16.msra.mxu0 %v7135
    %7835 = vmatprep.subr.bf16.mxu0 %v7144
    %7836 = vmatpush1.bf16.msra.mxu0 %v7143
    %7837 = vmatprep.subr.bf16.mxu0 %v7152
    %7838 = vmatpush1.bf16.msra.mxu0 %v7151
    %7839 = vmatprep.subr.bf16.mxu0 %v7160
    %7840 = vmatpush1.bf16.msra.mxu0 %v7159
    %7841 = vmatprep.subr.bf16.mxu0 %v7168
    %7842 = vmatpush1.bf16.msra.mxu0 %v7167
    %7843 = vmatprep.mubr.bf16.mxu0 %v2490
    %7844 = vmatmul.mubr.bf16.gmra.mrb[0].mxu0 %v2489
    %v7845 = vpop.f32.mrb[0].mxu0
    %v7846 = vadd.f32 0.0, %v7845
    %v7847 = vpop.f32.mrb[0].mxu0
    %v7848 = vadd.f32 0.0, %v7847
    %v7849 = vpop.f32.mrb[0].mxu0
    %v7850 = vadd.f32 0.0, %v7849
    %v7851 = vpop.f32.mrb[0].mxu0
    %v7852 = vadd.f32 0.0, %v7851
    %7853 = vdwg.mxu0
    %7854 = vmatprep.subr.bf16.mxu0 %v7176
    %7855 = vmatpush1.bf16.msra.mxu0 %v7175
    %7856 = vmatprep.subr.bf16.mxu0 %v7184
    %7857 = vmatpush1.bf16.msra.mxu0 %v7183
    %7858 = vmatprep.subr.bf16.mxu0 %v7192
    %7859 = vmatpush1.bf16.msra.mxu0 %v7191
    %7860 = vmatprep.subr.bf16.mxu0 %v7200
    %7861 = vmatpush1.bf16.msra.mxu0 %v7199
    %7862 = vmatprep.subr.bf16.mxu0 %v7208
    %7863 = vmatpush1.bf16.msra.mxu0 %v7207
    %7864 = vmatprep.subr.bf16.mxu0 %v7216
    %7865 = vmatpush1.bf16.msra.mxu0 %v7215
    %7866 = vmatprep.subr.bf16.mxu0 %v7224
    %7867 = vmatpush1.bf16.msra.mxu0 %v7223
    %7868 = vmatprep.subr.bf16.mxu0 %v7232
    %7869 = vmatpush1.bf16.msra.mxu0 %v7231
    %7870 = vmatprep.subr.bf16.mxu0 %v7240
    %7871 = vmatpush1.bf16.msra.mxu0 %v7239
    %7872 = vmatprep.subr.bf16.mxu0 %v7248
    %7873 = vmatpush1.bf16.msra.mxu0 %v7247
    %7874 = vmatprep.subr.bf16.mxu0 %v7256
    %7875 = vmatpush1.bf16.msra.mxu0 %v7255
    %7876 = vmatprep.subr.bf16.mxu0 %v7264
    %7877 = vmatpush1.bf16.msra.mxu0 %v7263
    %7878 = vmatprep.subr.bf16.mxu0 %v7272
    %7879 = vmatpush1.bf16.msra.mxu0 %v7271
    %7880 = vmatprep.subr.bf16.mxu0 %v7280
    %7881 = vmatpush1.bf16.msra.mxu0 %v7279
    %7882 = vmatprep.subr.bf16.mxu0 %v7288
    %7883 = vmatpush1.bf16.msra.mxu0 %v7287
    %7884 = vmatprep.subr.bf16.mxu0 %v7296
    %7885 = vmatpush1.bf16.msra.mxu0 %v7295
    %7886 = vmatprep.mubr.bf16.mxu0 %v2492
    %7887 = vmatmul.mubr.bf16.gmra.mrb[0].mxu0 %v2491
    %v7888 = vpop.f32.mrb[0].mxu0
    %v7889 = vadd.f32 %v7846, %v7888
    %v7890 = vpop.f32.mrb[0].mxu0
    %v7891 = vadd.f32 %v7848, %v7890
    %v7892 = vpop.f32.mrb[0].mxu0
    %v7893 = vadd.f32 %v7850, %v7892
    %v7894 = vpop.f32.mrb[0].mxu0
    %v7895 = vadd.f32 %v7852, %v7894
    %7896 = vdwg.mxu0
    %v7897 = vld [vmem:[#allocation13] sm:$0xf]
    %v7899 = vlaneseq
    %v7900 = vshrl.u32 %v7899, 7
    %v7901 = vsub.s32 0, %v7900
    %v7902 = vrot.slane %v7897, %v7901
    %v7903 = vlaneseq
    %v7904 = vshrl.u32 %v7903, 7
    %v7905 = vsub.s32 1, %v7904
    %v7906 = vrot.slane %v7897, %v7905
    %v7907 = vlaneseq
    %v7908 = vshrl.u32 %v7907, 7
    %v7909 = vsub.s32 2, %v7908
    %v7910 = vrot.slane %v7897, %v7909
    %v7911 = vlaneseq
    %v7912 = vshrl.u32 %v7911, 7
    %v7913 = vsub.s32 3, %v7912
    %v7914 = vrot.slane %v7897, %v7913
    %v7919 = vadd.f32 %v7631, %v7902
    %v7920 = vadd.f32 %v7633, %v7906
    %v7921 = vadd.f32 %v7717, %v7910
    %v7922 = vadd.f32 %v7719, %v7914
    %v7923 = vadd.f32 %v7635, %v7902
    %v7924 = vadd.f32 %v7637, %v7906
    %v7925 = vadd.f32 %v7721, %v7910
    %v7926 = vadd.f32 %v7723, %v7914
    %v7927 = vmax.f32 %v7919, 0.0
    %v7928 = vmax.f32 %v7920, 0.0
    %v7929 = vmax.f32 %v7921, 0.0
    %v7930 = vmax.f32 %v7922, 0.0
    %v7931 = vmax.f32 %v7923, 0.0
    %v7932 = vmax.f32 %v7924, 0.0
    %v7933 = vmax.f32 %v7925, 0.0
    %v7934 = vmax.f32 %v7926, 0.0
    %v7935 = vpack.c.bf16 %v6016, %v6015
    %v7936 = vld [vmem:[#allocation35] sm:$0xff]
    %v7937 = vld [vmem:[#allocation35 + $0x8] sm:$0xff]
    %v7938 = vld [vmem:[#allocation35 + $0x10] sm:$0xff]
    %v7939 = vld [vmem:[#allocation35 + $0x18] sm:$0xff]
    %v7940 = vld [vmem:[#allocation35 + $0x20] sm:$0xff]
    %v7941 = vld [vmem:[#allocation35 + $0x28] sm:$0xff]
    %v7942 = vld [vmem:[#allocation35 + $0x30] sm:$0xff]
    %v7943 = vld [vmem:[#allocation35 + $0x38] sm:$0xff]
    %v7944 = vld [vmem:[#allocation35 + $0x40] sm:$0xff]
    %v7945 = vld [vmem:[#allocation35 + $0x48] sm:$0xff]
    %v7946 = vld [vmem:[#allocation35 + $0x50] sm:$0xff]
    %v7947 = vld [vmem:[#allocation35 + $0x58] sm:$0xff]
    %v7948 = vld [vmem:[#allocation35 + $0x60] sm:$0xff]
    %v7949 = vld [vmem:[#allocation35 + $0x68] sm:$0xff]
    %v7950 = vld [vmem:[#allocation35 + $0x70] sm:$0xff]
    %v7951 = vld [vmem:[#allocation35 + $0x78] sm:$0xff]
    %v7952 = vld [vmem:[#allocation35 + $0x80] sm:$0xff]
    %v7953 = vld [vmem:[#allocation35 + $0x88] sm:$0xff]
    %v7954 = vld [vmem:[#allocation35 + $0x90] sm:$0xff]
    %v7955 = vld [vmem:[#allocation35 + $0x98] sm:$0xff]
    %v7956 = vld [vmem:[#allocation35 + $0xa0] sm:$0xff]
    %v7957 = vld [vmem:[#allocation35 + $0xa8] sm:$0xff]
    %v7958 = vld [vmem:[#allocation35 + $0xb0] sm:$0xff]
    %v7959 = vld [vmem:[#allocation35 + $0xb8] sm:$0xff]
    %v7960 = vld [vmem:[#allocation35 + $0xc0] sm:$0xff]
    %v7961 = vld [vmem:[#allocation35 + $0xc8] sm:$0xff]
    %v7962 = vld [vmem:[#allocation35 + $0xd0] sm:$0xff]
    %v7963 = vld [vmem:[#allocation35 + $0xd8] sm:$0xff]
    %v7964 = vld [vmem:[#allocation35 + $0xe0] sm:$0xff]
    %v7965 = vld [vmem:[#allocation35 + $0xe8] sm:$0xff]
    %v7966 = vld [vmem:[#allocation35 + $0xf0] sm:$0xff]
    %v7967 = vld [vmem:[#allocation35 + $0xf8] sm:$0xff]
    %v8000 = vunpack.c.l.b16 %v7936
    %v8001 = vunpack.c.h.b16 %v7936
    %v8002 = vunpack.c.l.b16 %v7937
    %v8003 = vunpack.c.h.b16 %v7937
    %v8004 = vunpack.c.l.b16 %v7938
    %v8005 = vunpack.c.h.b16 %v7938
    %v8006 = vunpack.c.l.b16 %v7939
    %v8007 = vunpack.c.h.b16 %v7939
    %v8008 = vunpack.c.l.b16 %v7940
    %v8009 = vunpack.c.h.b16 %v7940
    %v8010 = vunpack.c.l.b16 %v7941
    %v8011 = vunpack.c.h.b16 %v7941
    %v8012 = vunpack.c.l.b16 %v7942
    %v8013 = vunpack.c.h.b16 %v7942
    %v8014 = vunpack.c.l.b16 %v7943
    %v8015 = vunpack.c.h.b16 %v7943
    %v8016 = vunpack.c.l.b16 %v7944
    %v8017 = vunpack.c.h.b16 %v7944
    %v8018 = vunpack.c.l.b16 %v7945
    %v8019 = vunpack.c.h.b16 %v7945
    %v8020 = vunpack.c.l.b16 %v7946
    %v8021 = vunpack.c.h.b16 %v7946
    %v8022 = vunpack.c.l.b16 %v7947
    %v8023 = vunpack.c.h.b16 %v7947
    %v8024 = vunpack.c.l.b16 %v7948
    %v8025 = vunpack.c.h.b16 %v7948
    %v8026 = vunpack.c.l.b16 %v7949
    %v8027 = vunpack.c.h.b16 %v7949
    %v8028 = vunpack.c.l.b16 %v7950
    %v8029 = vunpack.c.h.b16 %v7950
    %v8030 = vunpack.c.l.b16 %v7951
    %v8031 = vunpack.c.h.b16 %v7951
    %v8032 = vunpack.c.l.b16 %v7952
    %v8033 = vunpack.c.h.b16 %v7952
    %v8034 = vunpack.c.l.b16 %v7953
    %v8035 = vunpack.c.h.b16 %v7953
    %v8036 = vunpack.c.l.b16 %v7954
    %v8037 = vunpack.c.h.b16 %v7954
    %v8038 = vunpack.c.l.b16 %v7955
    %v8039 = vunpack.c.h.b16 %v7955
    %v8040 = vunpack.c.l.b16 %v7956
    %v8041 = vunpack.c.h.b16 %v7956
    %v8042 = vunpack.c.l.b16 %v7957
    %v8043 = vunpack.c.h.b16 %v7957
    %v8044 = vunpack.c.l.b16 %v7958
    %v8045 = vunpack.c.h.b16 %v7958
    %v8046 = vunpack.c.l.b16 %v7959
    %v8047 = vunpack.c.h.b16 %v7959
    %v8048 = vunpack.c.l.b16 %v7960
    %v8049 = vunpack.c.h.b16 %v7960
    %v8050 = vunpack.c.l.b16 %v7961
    %v8051 = vunpack.c.h.b16 %v7961
    %v8052 = vunpack.c.l.b16 %v7962
    %v8053 = vunpack.c.h.b16 %v7962
    %v8054 = vunpack.c.l.b16 %v7963
    %v8055 = vunpack.c.h.b16 %v7963
    %v8056 = vunpack.c.l.b16 %v7964
    %v8057 = vunpack.c.h.b16 %v7964
    %v8058 = vunpack.c.l.b16 %v7965
    %v8059 = vunpack.c.h.b16 %v7965
    %v8060 = vunpack.c.l.b16 %v7966
    %v8061 = vunpack.c.h.b16 %v7966
    %v8062 = vunpack.c.l.b16 %v7967
    %v8063 = vunpack.c.h.b16 %v7967
    %v8064 = vpack.c.b16 %v8004, %v8000
    %v8065 = vpack.c.b16 %v8005, %v8001
    %v8066 = vpack.c.b16 %v8006, %v8002
    %v8067 = vpack.c.b16 %v8007, %v8003
    %v8068 = vpack.c.b16 %v8012, %v8008
    %v8069 = vpack.c.b16 %v8013, %v8009
    %v8070 = vpack.c.b16 %v8014, %v8010
    %v8071 = vpack.c.b16 %v8015, %v8011
    %v8072 = vpack.c.b16 %v8020, %v8016
    %v8073 = vpack.c.b16 %v8021, %v8017
    %v8074 = vpack.c.b16 %v8022, %v8018
    %v8075 = vpack.c.b16 %v8023, %v8019
    %v8076 = vpack.c.b16 %v8028, %v8024
    %v8077 = vpack.c.b16 %v8029, %v8025
    %v8078 = vpack.c.b16 %v8030, %v8026
    %v8079 = vpack.c.b16 %v8031, %v8027
    %v8080 = vpack.c.b16 %v8036, %v8032
    %v8081 = vpack.c.b16 %v8037, %v8033
    %v8082 = vpack.c.b16 %v8038, %v8034
    %v8083 = vpack.c.b16 %v8039, %v8035
    %v8084 = vpack.c.b16 %v8044, %v8040
    %v8085 = vpack.c.b16 %v8045, %v8041
    %v8086 = vpack.c.b16 %v8046, %v8042
    %v8087 = vpack.c.b16 %v8047, %v8043
    %v8088 = vpack.c.b16 %v8052, %v8048
    %v8089 = vpack.c.b16 %v8053, %v8049
    %v8090 = vpack.c.b16 %v8054, %v8050
    %v8091 = vpack.c.b16 %v8055, %v8051
    %v8092 = vpack.c.b16 %v8060, %v8056
    %v8093 = vpack.c.b16 %v8061, %v8057
    %v8094 = vpack.c.b16 %v8062, %v8058
    %v8095 = vpack.c.b16 %v8063, %v8059
    %8128 = vmatprep.subr.bf16.mxu0 %v8065
    %8129 = vmatpush1.bf16.msra.mxu0 %v8064
    %8130 = vmatprep.subr.bf16.mxu0 %v8069
    %8131 = vmatpush1.bf16.msra.mxu0 %v8068
    %8132 = vmatprep.subr.bf16.mxu0 %v8073
    %8133 = vmatpush1.bf16.msra.mxu0 %v8072
    %8134 = vmatprep.subr.bf16.mxu0 %v8077
    %8135 = vmatpush1.bf16.msra.mxu0 %v8076
    %8136 = vmatprep.subr.bf16.mxu0 %v8081
    %8137 = vmatpush1.bf16.msra.mxu0 %v8080
    %8138 = vmatprep.subr.bf16.mxu0 %v8085
    %8139 = vmatpush1.bf16.msra.mxu0 %v8084
    %8140 = vmatprep.subr.bf16.mxu0 %v8089
    %8141 = vmatpush1.bf16.msra.mxu0 %v8088
    %8142 = vmatprep.subr.bf16.mxu0 %v8093
    %8143 = vmatpush1.bf16.msra.mxu0 %v8092
    %8144 = vmatprep.subr.bf16.mxu0 0
    %8145 = vmatpush1.bf16.msra.mxu0 0
    %8146 = vmatprep.subr.bf16.mxu0 0
    %8147 = vmatpush1.bf16.msra.mxu0 0
    %8148 = vmatprep.subr.bf16.mxu0 0
    %8149 = vmatpush1.bf16.msra.mxu0 0
    %8150 = vmatprep.subr.bf16.mxu0 0
    %8151 = vmatpush1.bf16.msra.mxu0 0
    %8152 = vmatprep.subr.bf16.mxu0 0
    %8153 = vmatpush1.bf16.msra.mxu0 0
    %8154 = vmatprep.subr.bf16.mxu0 0
    %8155 = vmatpush1.bf16.msra.mxu0 0
    %8156 = vmatprep.subr.bf16.mxu0 0
    %8157 = vmatpush1.bf16.msra.mxu0 0
    %8158 = vmatprep.subr.bf16.mxu0 0
    %8159 = vmatpush1.bf16.msra.mxu0 0
    %8160 = vmatprep.mubr.bf16.mxu0 0
    %8161 = vmatmul.mubr.bf16.gmra.mrb[0].mxu0 %v7935
    %v8162 = vpop.f32.mrb[0].mxu0
    %v8163 = vadd.f32 0.0, %v8162
    %v8164 = vpop.f32.mrb[0].mxu0
    %v8165 = vadd.f32 0.0, %v8164
    %v8166 = vpop.f32.mrb[0].mxu0
    %v8167 = vadd.f32 0.0, %v8166
    %v8168 = vpop.f32.mrb[0].mxu0
    %v8169 = vadd.f32 0.0, %v8168
    %8170 = vdwg.mxu0
    %8171 = vmatprep.subr.bf16.mxu0 %v8067
    %8172 = vmatpush1.bf16.msra.mxu0 %v8066
    %8173 = vmatprep.subr.bf16.mxu0 %v8071
    %8174 = vmatpush1.bf16.msra.mxu0 %v8070
    %8175 = vmatprep.subr.bf16.mxu0 %v8075
    %8176 = vmatpush1.bf16.msra.mxu0 %v8074
    %8177 = vmatprep.subr.bf16.mxu0 %v8079
    %8178 = vmatpush1.bf16.msra.mxu0 %v8078
    %8179 = vmatprep.subr.bf16.mxu0 %v8083
    %8180 = vmatpush1.bf16.msra.mxu0 %v8082
    %8181 = vmatprep.subr.bf16.mxu0 %v8087
    %8182 = vmatpush1.bf16.msra.mxu0 %v8086
    %8183 = vmatprep.subr.bf16.mxu0 %v8091
    %8184 = vmatpush1.bf16.msra.mxu0 %v8090
    %8185 = vmatprep.subr.bf16.mxu0 %v8095
    %8186 = vmatpush1.bf16.msra.mxu0 %v8094
    %8187 = vmatprep.subr.bf16.mxu0 0
    %8188 = vmatpush1.bf16.msra.mxu0 0
    %8189 = vmatprep.subr.bf16.mxu0 0
    %8190 = vmatpush1.bf16.msra.mxu0 0
    %8191 = vmatprep.subr.bf16.mxu0 0
    %8192 = vmatpush1.bf16.msra.mxu0 0
    %8193 = vmatprep.subr.bf16.mxu0 0
    %8194 = vmatpush1.bf16.msra.mxu0 0
    %8195 = vmatprep.subr.bf16.mxu0 0
    %8196 = vmatpush1.bf16.msra.mxu0 0
    %8197 = vmatprep.subr.bf16.mxu0 0
    %8198 = vmatpush1.bf16.msra.mxu0 0
    %8199 = vmatprep.subr.bf16.mxu0 0
    %8200 = vmatpush1.bf16.msra.mxu0 0
    %8201 = vmatprep.subr.bf16.mxu0 0
    %8202 = vmatpush1.bf16.msra.mxu0 0
    %8203 = vmatprep.mubr.bf16.mxu0 0
    %8204 = vmatmul.mubr.bf16.gmra.mrb[0].mxu0 %v7935
    %v8205 = vpop.f32.mrb[0].mxu0
    %v8206 = vadd.f32 0.0, %v8205
    %v8207 = vpop.f32.mrb[0].mxu0
    %v8208 = vadd.f32 0.0, %v8207
    %v8209 = vpop.f32.mrb[0].mxu0
    %v8210 = vadd.f32 0.0, %v8209
    %v8211 = vpop.f32.mrb[0].mxu0
    %v8212 = vadd.f32 0.0, %v8211
    %8213 = vdwg.mxu0
    %v8214 = vadd.f32 %v7803, %v8163
    %v8215 = vadd.f32 %v7805, %v8165
    %v8216 = vadd.f32 %v7889, %v8206
    %v8217 = vadd.f32 %v7891, %v8208
    %v8218 = vadd.f32 %v7807, %v8167
    %v8219 = vadd.f32 %v7809, %v8169
    %v8220 = vadd.f32 %v7893, %v8210
    %v8221 = vadd.f32 %v7895, %v8212
    %v8222 = vld [vmem:[#allocation37] sm:$0xf]
    %v8224 = vlaneseq
    %v8225 = vshrl.u32 %v8224, 7
    %v8226 = vsub.s32 0, %v8225
    %v8227 = vrot.slane %v8222, %v8226
    %v8228 = vlaneseq
    %v8229 = vshrl.u32 %v8228, 7
    %v8230 = vsub.s32 1, %v8229
    %v8231 = vrot.slane %v8222, %v8230
    %v8232 = vlaneseq
    %v8233 = vshrl.u32 %v8232, 7
    %v8234 = vsub.s32 2, %v8233
    %v8235 = vrot.slane %v8222, %v8234
    %v8236 = vlaneseq
    %v8237 = vshrl.u32 %v8236, 7
    %v8238 = vsub.s32 3, %v8237
    %v8239 = vrot.slane %v8222, %v8238
    %v8244 = vadd.f32 %v8214, %v8227
    %v8245 = vadd.f32 %v8215, %v8231
    %v8246 = vadd.f32 %v8216, %v8235
    %v8247 = vadd.f32 %v8217, %v8239
    %v8248 = vadd.f32 %v8218, %v8227
    %v8249 = vadd.f32 %v8219, %v8231
    %v8250 = vadd.f32 %v8220, %v8235
    %v8251 = vadd.f32 %v8221, %v8239
    %v8252 = vmax.f32 %v8244, 0.0
    %v8253 = vmax.f32 %v8245, 0.0
    %v8254 = vmax.f32 %v8246, 0.0
    %v8255 = vmax.f32 %v8247, 0.0
    %v8256 = vmax.f32 %v8248, 0.0
    %v8257 = vmax.f32 %v8249, 0.0
    %v8258 = vmax.f32 %v8250, 0.0
    %v8259 = vmax.f32 %v8251, 0.0
    %v8260 = vunpack.c.l.bf16 %v375
    %v8261 = vunpack.c.h.bf16 %v375
    %v8262 = vunpack.c.l.bf16 %v376
    %v8263 = vunpack.c.h.bf16 %v376
    %v8264 = vunpack.c.l.bf16 %v377
    %v8265 = vunpack.c.h.bf16 %v377
    %v8266 = vunpack.c.l.bf16 %v378
    %v8267 = vunpack.c.h.bf16 %v378
    %v8268 = vmul.f32 %v8260, %v7927
    %v8269 = vmul.f32 %v8261, %v7928
    %v8270 = vmul.f32 %v8262, %v7929
    %v8271 = vmul.f32 %v8263, %v7930
    %v8272 = vmul.f32 %v8264, %v7931
    %v8273 = vmul.f32 %v8265, %v7932
    %v8274 = vmul.f32 %v8266, %v7933
    %v8275 = vmul.f32 %v8267, %v7934
    %v8276 = vpack.c.bf16 %v8272, %v8268
    %v8277 = vpack.c.bf16 %v8273, %v8269
    %v8278 = vpack.c.bf16 %v8274, %v8270
    %v8279 = vpack.c.bf16 %v8275, %v8271
    %v8280 = vld [vmem:[#allocation23] sm:$0xff]
    %v8281 = vld [vmem:[#allocation23 + $0x8] sm:$0xff]
    %v8282 = vld [vmem:[#allocation23 + $0x10] sm:$0xff]
    %v8283 = vld [vmem:[#allocation23 + $0x18] sm:$0xff]
    %v8284 = vld [vmem:[#allocation23 + $0x20] sm:$0xff]
    %v8285 = vld [vmem:[#allocation23 + $0x28] sm:$0xff]
    %v8286 = vld [vmem:[#allocation23 + $0x30] sm:$0xff]
    %v8287 = vld [vmem:[#allocation23 + $0x38] sm:$0xff]
    %v8288 = vld [vmem:[#allocation23 + $0x40] sm:$0xff]
    %v8289 = vld [vmem:[#allocation23 + $0x48] sm:$0xff]
    %v8290 = vld [vmem:[#allocation23 + $0x50] sm:$0xff]
    %v8291 = vld [vmem:[#allocation23 + $0x58] sm:$0xff]
    %v8292 = vld [vmem:[#allocation23 + $0x60] sm:$0xff]
    %v8293 = vld [vmem:[#allocation23 + $0x68] sm:$0xff]
    %v8294 = vld [vmem:[#allocation23 + $0x70] sm:$0xff]
    %v8295 = vld [vmem:[#allocation23 + $0x78] sm:$0xff]
    %v8296 = vld [vmem:[#allocation23 + $0x80] sm:$0xff]
    %v8297 = vld [vmem:[#allocation23 + $0x88] sm:$0xff]
    %v8298 = vld [vmem:[#allocation23 + $0x90] sm:$0xff]
    %v8299 = vld [vmem:[#allocation23 + $0x98] sm:$0xff]
    %v8300 = vld [vmem:[#allocation23 + $0xa0] sm:$0xff]
    %v8301 = vld [vmem:[#allocation23 + $0xa8] sm:$0xff]
    %v8302 = vld [vmem:[#allocation23 + $0xb0] sm:$0xff]
    %v8303 = vld [vmem:[#allocation23 + $0xb8] sm:$0xff]
    %v8304 = vld [vmem:[#allocation23 + $0xc0] sm:$0xff]
    %v8305 = vld [vmem:[#allocation23 + $0xc8] sm:$0xff]
    %v8306 = vld [vmem:[#allocation23 + $0xd0] sm:$0xff]
    %v8307 = vld [vmem:[#allocation23 + $0xd8] sm:$0xff]
    %v8308 = vld [vmem:[#allocation23 + $0xe0] sm:$0xff]
    %v8309 = vld [vmem:[#allocation23 + $0xe8] sm:$0xff]
    %v8310 = vld [vmem:[#allocation23 + $0xf0] sm:$0xff]
    %v8311 = vld [vmem:[#allocation23 + $0xf8] sm:$0xff]
    %v8312 = vld [vmem:[#allocation23 + $0x100] sm:$0xff]
    %v8313 = vld [vmem:[#allocation23 + $0x108] sm:$0xff]
    %v8314 = vld [vmem:[#allocation23 + $0x110] sm:$0xff]
    %v8315 = vld [vmem:[#allocation23 + $0x118] sm:$0xff]
    %v8316 = vld [vmem:[#allocation23 + $0x120] sm:$0xff]
    %v8317 = vld [vmem:[#allocation23 + $0x128] sm:$0xff]
    %v8318 = vld [vmem:[#allocation23 + $0x130] sm:$0xff]
    %v8319 = vld [vmem:[#allocation23 + $0x138] sm:$0xff]
    %v8320 = vld [vmem:[#allocation23 + $0x140] sm:$0xff]
    %v8321 = vld [vmem:[#allocation23 + $0x148] sm:$0xff]
    %v8322 = vld [vmem:[#allocation23 + $0x150] sm:$0xff]
    %v8323 = vld [vmem:[#allocation23 + $0x158] sm:$0xff]
    %v8324 = vld [vmem:[#allocation23 + $0x160] sm:$0xff]
    %v8325 = vld [vmem:[#allocation23 + $0x168] sm:$0xff]
    %v8326 = vld [vmem:[#allocation23 + $0x170] sm:$0xff]
    %v8327 = vld [vmem:[#allocation23 + $0x178] sm:$0xff]
    %v8328 = vld [vmem:[#allocation23 + $0x180] sm:$0xff]
    %v8329 = vld [vmem:[#allocation23 + $0x188] sm:$0xff]
    %v8330 = vld [vmem:[#allocation23 + $0x190] sm:$0xff]
    %v8331 = vld [vmem:[#allocation23 + $0x198] sm:$0xff]
    %v8332 = vld [vmem:[#allocation23 + $0x1a0] sm:$0xff]
    %v8333 = vld [vmem:[#allocation23 + $0x1a8] sm:$0xff]
    %v8334 = vld [vmem:[#allocation23 + $0x1b0] sm:$0xff]
    %v8335 = vld [vmem:[#allocation23 + $0x1b8] sm:$0xff]
    %v8336 = vld [vmem:[#allocation23 + $0x1c0] sm:$0xff]
    %v8337 = vld [vmem:[#allocation23 + $0x1c8] sm:$0xff]
    %v8338 = vld [vmem:[#allocation23 + $0x1d0] sm:$0xff]
    %v8339 = vld [vmem:[#allocation23 + $0x1d8] sm:$0xff]
    %v8340 = vld [vmem:[#allocation23 + $0x1e0] sm:$0xff]
    %v8341 = vld [vmem:[#allocation23 + $0x1e8] sm:$0xff]
    %v8342 = vld [vmem:[#allocation23 + $0x1f0] sm:$0xff]
    %v8343 = vld [vmem:[#allocation23 + $0x1f8] sm:$0xff]
    %v8344 = vld [vmem:[#allocation23 + $0x200] sm:$0xff]
    %v8345 = vld [vmem:[#allocation23 + $0x208] sm:$0xff]
    %v8346 = vld [vmem:[#allocation23 + $0x210] sm:$0xff]
    %v8347 = vld [vmem:[#allocation23 + $0x218] sm:$0xff]
    %v8348 = vld [vmem:[#allocation23 + $0x220] sm:$0xff]
    %v8349 = vld [vmem:[#allocation23 + $0x228] sm:$0xff]
    %v8350 = vld [vmem:[#allocation23 + $0x230] sm:$0xff]
    %v8351 = vld [vmem:[#allocation23 + $0x238] sm:$0xff]
    %v8352 = vld [vmem:[#allocation23 + $0x240] sm:$0xff]
    %v8353 = vld [vmem:[#allocation23 + $0x248] sm:$0xff]
    %v8354 = vld [vmem:[#allocation23 + $0x250] sm:$0xff]
    %v8355 = vld [vmem:[#allocation23 + $0x258] sm:$0xff]
    %v8356 = vld [vmem:[#allocation23 + $0x260] sm:$0xff]
    %v8357 = vld [vmem:[#allocation23 + $0x268] sm:$0xff]
    %v8358 = vld [vmem:[#allocation23 + $0x270] sm:$0xff]
    %v8359 = vld [vmem:[#allocation23 + $0x278] sm:$0xff]
    %v8360 = vld [vmem:[#allocation23 + $0x280] sm:$0xff]
    %v8361 = vld [vmem:[#allocation23 + $0x288] sm:$0xff]
    %v8362 = vld [vmem:[#allocation23 + $0x290] sm:$0xff]
    %v8363 = vld [vmem:[#allocation23 + $0x298] sm:$0xff]
    %v8364 = vld [vmem:[#allocation23 + $0x2a0] sm:$0xff]
    %v8365 = vld [vmem:[#allocation23 + $0x2a8] sm:$0xff]
    %v8366 = vld [vmem:[#allocation23 + $0x2b0] sm:$0xff]
    %v8367 = vld [vmem:[#allocation23 + $0x2b8] sm:$0xff]
    %v8368 = vld [vmem:[#allocation23 + $0x2c0] sm:$0xff]
    %v8369 = vld [vmem:[#allocation23 + $0x2c8] sm:$0xff]
    %v8370 = vld [vmem:[#allocation23 + $0x2d0] sm:$0xff]
    %v8371 = vld [vmem:[#allocation23 + $0x2d8] sm:$0xff]
    %v8372 = vld [vmem:[#allocation23 + $0x2e0] sm:$0xff]
    %v8373 = vld [vmem:[#allocation23 + $0x2e8] sm:$0xff]
    %v8374 = vld [vmem:[#allocation23 + $0x2f0] sm:$0xff]
    %v8375 = vld [vmem:[#allocation23 + $0x2f8] sm:$0xff]
    %v8376 = vld [vmem:[#allocation23 + $0x300] sm:$0xff]
    %v8377 = vld [vmem:[#allocation23 + $0x308] sm:$0xff]
    %v8378 = vld [vmem:[#allocation23 + $0x310] sm:$0xff]
    %v8379 = vld [vmem:[#allocation23 + $0x318] sm:$0xff]
    %v8380 = vld [vmem:[#allocation23 + $0x320] sm:$0xff]
    %v8381 = vld [vmem:[#allocation23 + $0x328] sm:$0xff]
    %v8382 = vld [vmem:[#allocation23 + $0x330] sm:$0xff]
    %v8383 = vld [vmem:[#allocation23 + $0x338] sm:$0xff]
    %v8384 = vld [vmem:[#allocation23 + $0x340] sm:$0xff]
    %v8385 = vld [vmem:[#allocation23 + $0x348] sm:$0xff]
    %v8386 = vld [vmem:[#allocation23 + $0x350] sm:$0xff]
    %v8387 = vld [vmem:[#allocation23 + $0x358] sm:$0xff]
    %v8388 = vld [vmem:[#allocation23 + $0x360] sm:$0xff]
    %v8389 = vld [vmem:[#allocation23 + $0x368] sm:$0xff]
    %v8390 = vld [vmem:[#allocation23 + $0x370] sm:$0xff]
    %v8391 = vld [vmem:[#allocation23 + $0x378] sm:$0xff]
    %v8392 = vld [vmem:[#allocation23 + $0x380] sm:$0xff]
    %v8393 = vld [vmem:[#allocation23 + $0x388] sm:$0xff]
    %v8394 = vld [vmem:[#allocation23 + $0x390] sm:$0xff]
    %v8395 = vld [vmem:[#allocation23 + $0x398] sm:$0xff]
    %v8396 = vld [vmem:[#allocation23 + $0x3a0] sm:$0xff]
    %v8397 = vld [vmem:[#allocation23 + $0x3a8] sm:$0xff]
    %v8398 = vld [vmem:[#allocation23 + $0x3b0] sm:$0xff]
    %v8399 = vld [vmem:[#allocation23 + $0x3b8] sm:$0xff]
    %v8400 = vld [vmem:[#allocation23 + $0x3c0] sm:$0xff]
    %v8401 = vld [vmem:[#allocation23 + $0x3c8] sm:$0xff]
    %v8402 = vld [vmem:[#allocation23 + $0x3d0] sm:$0xff]
    %v8403 = vld [vmem:[#allocation23 + $0x3d8] sm:$0xff]
    %v8404 = vld [vmem:[#allocation23 + $0x3e0] sm:$0xff]
    %v8405 = vld [vmem:[#allocation23 + $0x3e8] sm:$0xff]
    %v8406 = vld [vmem:[#allocation23 + $0x3f0] sm:$0xff]
    %v8407 = vld [vmem:[#allocation23 + $0x3f8] sm:$0xff]
    %v8408 = vld [vmem:[#allocation23 + $0x400] sm:$0xff]
    %v8409 = vld [vmem:[#allocation23 + $0x408] sm:$0xff]
    %v8410 = vld [vmem:[#allocation23 + $0x410] sm:$0xff]
    %v8411 = vld [vmem:[#allocation23 + $0x418] sm:$0xff]
    %v8412 = vld [vmem:[#allocation23 + $0x420] sm:$0xff]
    %v8413 = vld [vmem:[#allocation23 + $0x428] sm:$0xff]
    %v8414 = vld [vmem:[#allocation23 + $0x430] sm:$0xff]
    %v8415 = vld [vmem:[#allocation23 + $0x438] sm:$0xff]
    %v8416 = vld [vmem:[#allocation23 + $0x440] sm:$0xff]
    %v8417 = vld [vmem:[#allocation23 + $0x448] sm:$0xff]
    %v8418 = vld [vmem:[#allocation23 + $0x450] sm:$0xff]
    %v8419 = vld [vmem:[#allocation23 + $0x458] sm:$0xff]
    %v8420 = vld [vmem:[#allocation23 + $0x460] sm:$0xff]
    %v8421 = vld [vmem:[#allocation23 + $0x468] sm:$0xff]
    %v8422 = vld [vmem:[#allocation23 + $0x470] sm:$0xff]
    %v8423 = vld [vmem:[#allocation23 + $0x478] sm:$0xff]
    %v8424 = vld [vmem:[#allocation23 + $0x480] sm:$0xff]
    %v8425 = vld [vmem:[#allocation23 + $0x488] sm:$0xff]
    %v8426 = vld [vmem:[#allocation23 + $0x490] sm:$0xff]
    %v8427 = vld [vmem:[#allocation23 + $0x498] sm:$0xff]
    %v8428 = vld [vmem:[#allocation23 + $0x4a0] sm:$0xff]
    %v8429 = vld [vmem:[#allocation23 + $0x4a8] sm:$0xff]
    %v8430 = vld [vmem:[#allocation23 + $0x4b0] sm:$0xff]
    %v8431 = vld [vmem:[#allocation23 + $0x4b8] sm:$0xff]
    %v8432 = vld [vmem:[#allocation23 + $0x4c0] sm:$0xff]
    %v8433 = vld [vmem:[#allocation23 + $0x4c8] sm:$0xff]
    %v8434 = vld [vmem:[#allocation23 + $0x4d0] sm:$0xff]
    %v8435 = vld [vmem:[#allocation23 + $0x4d8] sm:$0xff]
    %v8436 = vld [vmem:[#allocation23 + $0x4e0] sm:$0xff]
    %v8437 = vld [vmem:[#allocation23 + $0x4e8] sm:$0xff]
    %v8438 = vld [vmem:[#allocation23 + $0x4f0] sm:$0xff]
    %v8439 = vld [vmem:[#allocation23 + $0x4f8] sm:$0xff]
    %v8440 = vld [vmem:[#allocation23 + $0x500] sm:$0xff]
    %v8441 = vld [vmem:[#allocation23 + $0x508] sm:$0xff]
    %v8442 = vld [vmem:[#allocation23 + $0x510] sm:$0xff]
    %v8443 = vld [vmem:[#allocation23 + $0x518] sm:$0xff]
    %v8444 = vld [vmem:[#allocation23 + $0x520] sm:$0xff]
    %v8445 = vld [vmem:[#allocation23 + $0x528] sm:$0xff]
    %v8446 = vld [vmem:[#allocation23 + $0x530] sm:$0xff]
    %v8447 = vld [vmem:[#allocation23 + $0x538] sm:$0xff]
    %v8448 = vld [vmem:[#allocation23 + $0x540] sm:$0xff]
    %v8449 = vld [vmem:[#allocation23 + $0x548] sm:$0xff]
    %v8450 = vld [vmem:[#allocation23 + $0x550] sm:$0xff]
    %v8451 = vld [vmem:[#allocation23 + $0x558] sm:$0xff]
    %v8452 = vld [vmem:[#allocation23 + $0x560] sm:$0xff]
    %v8453 = vld [vmem:[#allocation23 + $0x568] sm:$0xff]
    %v8454 = vld [vmem:[#allocation23 + $0x570] sm:$0xff]
    %v8455 = vld [vmem:[#allocation23 + $0x578] sm:$0xff]
    %v8456 = vld [vmem:[#allocation23 + $0x580] sm:$0xff]
    %v8457 = vld [vmem:[#allocation23 + $0x588] sm:$0xff]
    %v8458 = vld [vmem:[#allocation23 + $0x590] sm:$0xff]
    %v8459 = vld [vmem:[#allocation23 + $0x598] sm:$0xff]
    %v8460 = vld [vmem:[#allocation23 + $0x5a0] sm:$0xff]
    %v8461 = vld [vmem:[#allocation23 + $0x5a8] sm:$0xff]
    %v8462 = vld [vmem:[#allocation23 + $0x5b0] sm:$0xff]
    %v8463 = vld [vmem:[#allocation23 + $0x5b8] sm:$0xff]
    %v8464 = vld [vmem:[#allocation23 + $0x5c0] sm:$0xff]
    %v8465 = vld [vmem:[#allocation23 + $0x5c8] sm:$0xff]
    %v8466 = vld [vmem:[#allocation23 + $0x5d0] sm:$0xff]
    %v8467 = vld [vmem:[#allocation23 + $0x5d8] sm:$0xff]
    %v8468 = vld [vmem:[#allocation23 + $0x5e0] sm:$0xff]
    %v8469 = vld [vmem:[#allocation23 + $0x5e8] sm:$0xff]
    %v8470 = vld [vmem:[#allocation23 + $0x5f0] sm:$0xff]
    %v8471 = vld [vmem:[#allocation23 + $0x5f8] sm:$0xff]
    %v8472 = vld [vmem:[#allocation23 + $0x600] sm:$0xff]
    %v8473 = vld [vmem:[#allocation23 + $0x608] sm:$0xff]
    %v8474 = vld [vmem:[#allocation23 + $0x610] sm:$0xff]
    %v8475 = vld [vmem:[#allocation23 + $0x618] sm:$0xff]
    %v8476 = vld [vmem:[#allocation23 + $0x620] sm:$0xff]
    %v8477 = vld [vmem:[#allocation23 + $0x628] sm:$0xff]
    %v8478 = vld [vmem:[#allocation23 + $0x630] sm:$0xff]
    %v8479 = vld [vmem:[#allocation23 + $0x638] sm:$0xff]
    %v8480 = vld [vmem:[#allocation23 + $0x640] sm:$0xff]
    %v8481 = vld [vmem:[#allocation23 + $0x648] sm:$0xff]
    %v8482 = vld [vmem:[#allocation23 + $0x650] sm:$0xff]
    %v8483 = vld [vmem:[#allocation23 + $0x658] sm:$0xff]
    %v8484 = vld [vmem:[#allocation23 + $0x660] sm:$0xff]
    %v8485 = vld [vmem:[#allocation23 + $0x668] sm:$0xff]
    %v8486 = vld [vmem:[#allocation23 + $0x670] sm:$0xff]
    %v8487 = vld [vmem:[#allocation23 + $0x678] sm:$0xff]
    %v8488 = vld [vmem:[#allocation23 + $0x680] sm:$0xff]
    %v8489 = vld [vmem:[#allocation23 + $0x688] sm:$0xff]
    %v8490 = vld [vmem:[#allocation23 + $0x690] sm:$0xff]
    %v8491 = vld [vmem:[#allocation23 + $0x698] sm:$0xff]
    %v8492 = vld [vmem:[#allocation23 + $0x6a0] sm:$0xff]
    %v8493 = vld [vmem:[#allocation23 + $0x6a8] sm:$0xff]
    %v8494 = vld [vmem:[#allocation23 + $0x6b0] sm:$0xff]
    %v8495 = vld [vmem:[#allocation23 + $0x6b8] sm:$0xff]
    %v8496 = vld [vmem:[#allocation23 + $0x6c0] sm:$0xff]
    %v8497 = vld [vmem:[#allocation23 + $0x6c8] sm:$0xff]
    %v8498 = vld [vmem:[#allocation23 + $0x6d0] sm:$0xff]
    %v8499 = vld [vmem:[#allocation23 + $0x6d8] sm:$0xff]
    %v8500 = vld [vmem:[#allocation23 + $0x6e0] sm:$0xff]
    %v8501 = vld [vmem:[#allocation23 + $0x6e8] sm:$0xff]
    %v8502 = vld [vmem:[#allocation23 + $0x6f0] sm:$0xff]
    %v8503 = vld [vmem:[#allocation23 + $0x6f8] sm:$0xff]
    %v8504 = vld [vmem:[#allocation23 + $0x700] sm:$0xff]
    %v8505 = vld [vmem:[#allocation23 + $0x708] sm:$0xff]
    %v8506 = vld [vmem:[#allocation23 + $0x710] sm:$0xff]
    %v8507 = vld [vmem:[#allocation23 + $0x718] sm:$0xff]
    %v8508 = vld [vmem:[#allocation23 + $0x720] sm:$0xff]
    %v8509 = vld [vmem:[#allocation23 + $0x728] sm:$0xff]
    %v8510 = vld [vmem:[#allocation23 + $0x730] sm:$0xff]
    %v8511 = vld [vmem:[#allocation23 + $0x738] sm:$0xff]
    %v8512 = vld [vmem:[#allocation23 + $0x740] sm:$0xff]
    %v8513 = vld [vmem:[#allocation23 + $0x748] sm:$0xff]
    %v8514 = vld [vmem:[#allocation23 + $0x750] sm:$0xff]
    %v8515 = vld [vmem:[#allocation23 + $0x758] sm:$0xff]
    %v8516 = vld [vmem:[#allocation23 + $0x760] sm:$0xff]
    %v8517 = vld [vmem:[#allocation23 + $0x768] sm:$0xff]
    %v8518 = vld [vmem:[#allocation23 + $0x770] sm:$0xff]
    %v8519 = vld [vmem:[#allocation23 + $0x778] sm:$0xff]
    %v8520 = vld [vmem:[#allocation23 + $0x780] sm:$0xff]
    %v8521 = vld [vmem:[#allocation23 + $0x788] sm:$0xff]
    %v8522 = vld [vmem:[#allocation23 + $0x790] sm:$0xff]
    %v8523 = vld [vmem:[#allocation23 + $0x798] sm:$0xff]
    %v8524 = vld [vmem:[#allocation23 + $0x7a0] sm:$0xff]
    %v8525 = vld [vmem:[#allocation23 + $0x7a8] sm:$0xff]
    %v8526 = vld [vmem:[#allocation23 + $0x7b0] sm:$0xff]
    %v8527 = vld [vmem:[#allocation23 + $0x7b8] sm:$0xff]
    %v8528 = vld [vmem:[#allocation23 + $0x7c0] sm:$0xff]
    %v8529 = vld [vmem:[#allocation23 + $0x7c8] sm:$0xff]
    %v8530 = vld [vmem:[#allocation23 + $0x7d0] sm:$0xff]
    %v8531 = vld [vmem:[#allocation23 + $0x7d8] sm:$0xff]
    %v8532 = vld [vmem:[#allocation23 + $0x7e0] sm:$0xff]
    %v8533 = vld [vmem:[#allocation23 + $0x7e8] sm:$0xff]
    %v8534 = vld [vmem:[#allocation23 + $0x7f0] sm:$0xff]
    %v8535 = vld [vmem:[#allocation23 + $0x7f8] sm:$0xff]
    %v8536 = vld [vmem:[#allocation23 + $0x800] sm:$0xff]
    %v8537 = vld [vmem:[#allocation23 + $0x808] sm:$0xff]
    %v8538 = vld [vmem:[#allocation23 + $0x810] sm:$0xff]
    %v8539 = vld [vmem:[#allocation23 + $0x818] sm:$0xff]
    %v8540 = vld [vmem:[#allocation23 + $0x820] sm:$0xff]
    %v8541 = vld [vmem:[#allocation23 + $0x828] sm:$0xff]
    %v8542 = vld [vmem:[#allocation23 + $0x830] sm:$0xff]
    %v8543 = vld [vmem:[#allocation23 + $0x838] sm:$0xff]
    %v8544 = vld [vmem:[#allocation23 + $0x840] sm:$0xff]
    %v8545 = vld [vmem:[#allocation23 + $0x848] sm:$0xff]
    %v8546 = vld [vmem:[#allocation23 + $0x850] sm:$0xff]
    %v8547 = vld [vmem:[#allocation23 + $0x858] sm:$0xff]
    %v8548 = vld [vmem:[#allocation23 + $0x860] sm:$0xff]
    %v8549 = vld [vmem:[#allocation23 + $0x868] sm:$0xff]
    %v8550 = vld [vmem:[#allocation23 + $0x870] sm:$0xff]
    %v8551 = vld [vmem:[#allocation23 + $0x878] sm:$0xff]
    %v8552 = vld [vmem:[#allocation23 + $0x880] sm:$0xff]
    %v8553 = vld [vmem:[#allocation23 + $0x888] sm:$0xff]
    %v8554 = vld [vmem:[#allocation23 + $0x890] sm:$0xff]
    %v8555 = vld [vmem:[#allocation23 + $0x898] sm:$0xff]
    %v8556 = vld [vmem:[#allocation23 + $0x8a0] sm:$0xff]
    %v8557 = vld [vmem:[#allocation23 + $0x8a8] sm:$0xff]
    %v8558 = vld [vmem:[#allocation23 + $0x8b0] sm:$0xff]
    %v8559 = vld [vmem:[#allocation23 + $0x8b8] sm:$0xff]
    %v8560 = vld [vmem:[#allocation23 + $0x8c0] sm:$0xff]
    %v8561 = vld [vmem:[#allocation23 + $0x8c8] sm:$0xff]
    %v8562 = vld [vmem:[#allocation23 + $0x8d0] sm:$0xff]
    %v8563 = vld [vmem:[#allocation23 + $0x8d8] sm:$0xff]
    %v8564 = vld [vmem:[#allocation23 + $0x8e0] sm:$0xff]
    %v8565 = vld [vmem:[#allocation23 + $0x8e8] sm:$0xff]
    %v8566 = vld [vmem:[#allocation23 + $0x8f0] sm:$0xff]
    %v8567 = vld [vmem:[#allocation23 + $0x8f8] sm:$0xff]
    %v8568 = vld [vmem:[#allocation23 + $0x900] sm:$0xff]
    %v8569 = vld [vmem:[#allocation23 + $0x908] sm:$0xff]
    %v8570 = vld [vmem:[#allocation23 + $0x910] sm:$0xff]
    %v8571 = vld [vmem:[#allocation23 + $0x918] sm:$0xff]
    %v8572 = vld [vmem:[#allocation23 + $0x920] sm:$0xff]
    %v8573 = vld [vmem:[#allocation23 + $0x928] sm:$0xff]
    %v8574 = vld [vmem:[#allocation23 + $0x930] sm:$0xff]
    %v8575 = vld [vmem:[#allocation23 + $0x938] sm:$0xff]
    %v8576 = vld [vmem:[#allocation23 + $0x940] sm:$0xff]
    %v8577 = vld [vmem:[#allocation23 + $0x948] sm:$0xff]
    %v8578 = vld [vmem:[#allocation23 + $0x950] sm:$0xff]
    %v8579 = vld [vmem:[#allocation23 + $0x958] sm:$0xff]
    %v8580 = vld [vmem:[#allocation23 + $0x960] sm:$0xff]
    %v8581 = vld [vmem:[#allocation23 + $0x968] sm:$0xff]
    %v8582 = vld [vmem:[#allocation23 + $0x970] sm:$0xff]
    %v8583 = vld [vmem:[#allocation23 + $0x978] sm:$0xff]
    %v8584 = vld [vmem:[#allocation23 + $0x980] sm:$0xff]
    %v8585 = vld [vmem:[#allocation23 + $0x988] sm:$0xff]
    %v8586 = vld [vmem:[#allocation23 + $0x990] sm:$0xff]
    %v8587 = vld [vmem:[#allocation23 + $0x998] sm:$0xff]
    %v8588 = vld [vmem:[#allocation23 + $0x9a0] sm:$0xff]
    %v8589 = vld [vmem:[#allocation23 + $0x9a8] sm:$0xff]
    %v8590 = vld [vmem:[#allocation23 + $0x9b0] sm:$0xff]
    %v8591 = vld [vmem:[#allocation23 + $0x9b8] sm:$0xff]
    %v8592 = vld [vmem:[#allocation23 + $0x9c0] sm:$0xff]
    %v8593 = vld [vmem:[#allocation23 + $0x9c8] sm:$0xff]
    %v8594 = vld [vmem:[#allocation23 + $0x9d0] sm:$0xff]
    %v8595 = vld [vmem:[#allocation23 + $0x9d8] sm:$0xff]
    %v8596 = vld [vmem:[#allocation23 + $0x9e0] sm:$0xff]
    %v8597 = vld [vmem:[#allocation23 + $0x9e8] sm:$0xff]
    %v8598 = vld [vmem:[#allocation23 + $0x9f0] sm:$0xff]
    %v8599 = vld [vmem:[#allocation23 + $0x9f8] sm:$0xff]
    %v8600 = vld [vmem:[#allocation23 + $0xa00] sm:$0xff]
    %v8601 = vld [vmem:[#allocation23 + $0xa08] sm:$0xff]
    %v8602 = vld [vmem:[#allocation23 + $0xa10] sm:$0xff]
    %v8603 = vld [vmem:[#allocation23 + $0xa18] sm:$0xff]
    %v8604 = vld [vmem:[#allocation23 + $0xa20] sm:$0xff]
    %v8605 = vld [vmem:[#allocation23 + $0xa28] sm:$0xff]
    %v8606 = vld [vmem:[#allocation23 + $0xa30] sm:$0xff]
    %v8607 = vld [vmem:[#allocation23 + $0xa38] sm:$0xff]
    %v8608 = vld [vmem:[#allocation23 + $0xa40] sm:$0xff]
    %v8609 = vld [vmem:[#allocation23 + $0xa48] sm:$0xff]
    %v8610 = vld [vmem:[#allocation23 + $0xa50] sm:$0xff]
    %v8611 = vld [vmem:[#allocation23 + $0xa58] sm:$0xff]
    %v8612 = vld [vmem:[#allocation23 + $0xa60] sm:$0xff]
    %v8613 = vld [vmem:[#allocation23 + $0xa68] sm:$0xff]
    %v8614 = vld [vmem:[#allocation23 + $0xa70] sm:$0xff]
    %v8615 = vld [vmem:[#allocation23 + $0xa78] sm:$0xff]
    %v8616 = vld [vmem:[#allocation23 + $0xa80] sm:$0xff]
    %v8617 = vld [vmem:[#allocation23 + $0xa88] sm:$0xff]
    %v8618 = vld [vmem:[#allocation23 + $0xa90] sm:$0xff]
    %v8619 = vld [vmem:[#allocation23 + $0xa98] sm:$0xff]
    %v8620 = vld [vmem:[#allocation23 + $0xaa0] sm:$0xff]
    %v8621 = vld [vmem:[#allocation23 + $0xaa8] sm:$0xff]
    %v8622 = vld [vmem:[#allocation23 + $0xab0] sm:$0xff]
    %v8623 = vld [vmem:[#allocation23 + $0xab8] sm:$0xff]
    %v8624 = vld [vmem:[#allocation23 + $0xac0] sm:$0xff]
    %v8625 = vld [vmem:[#allocation23 + $0xac8] sm:$0xff]
    %v8626 = vld [vmem:[#allocation23 + $0xad0] sm:$0xff]
    %v8627 = vld [vmem:[#allocation23 + $0xad8] sm:$0xff]
    %v8628 = vld [vmem:[#allocation23 + $0xae0] sm:$0xff]
    %v8629 = vld [vmem:[#allocation23 + $0xae8] sm:$0xff]
    %v8630 = vld [vmem:[#allocation23 + $0xaf0] sm:$0xff]
    %v8631 = vld [vmem:[#allocation23 + $0xaf8] sm:$0xff]
    %v8632 = vld [vmem:[#allocation23 + $0xb00] sm:$0xff]
    %v8633 = vld [vmem:[#allocation23 + $0xb08] sm:$0xff]
    %v8634 = vld [vmem:[#allocation23 + $0xb10] sm:$0xff]
    %v8635 = vld [vmem:[#allocation23 + $0xb18] sm:$0xff]
    %v8636 = vld [vmem:[#allocation23 + $0xb20] sm:$0xff]
    %v8637 = vld [vmem:[#allocation23 + $0xb28] sm:$0xff]
    %v8638 = vld [vmem:[#allocation23 + $0xb30] sm:$0xff]
    %v8639 = vld [vmem:[#allocation23 + $0xb38] sm:$0xff]
    %v8640 = vld [vmem:[#allocation23 + $0xb40] sm:$0xff]
    %v8641 = vld [vmem:[#allocation23 + $0xb48] sm:$0xff]
    %v8642 = vld [vmem:[#allocation23 + $0xb50] sm:$0xff]
    %v8643 = vld [vmem:[#allocation23 + $0xb58] sm:$0xff]
    %v8644 = vld [vmem:[#allocation23 + $0xb60] sm:$0xff]
    %v8645 = vld [vmem:[#allocation23 + $0xb68] sm:$0xff]
    %v8646 = vld [vmem:[#allocation23 + $0xb70] sm:$0xff]
    %v8647 = vld [vmem:[#allocation23 + $0xb78] sm:$0xff]
    %v8648 = vld [vmem:[#allocation23 + $0xb80] sm:$0xff]
    %v8649 = vld [vmem:[#allocation23 + $0xb88] sm:$0xff]
    %v8650 = vld [vmem:[#allocation23 + $0xb90] sm:$0xff]
    %v8651 = vld [vmem:[#allocation23 + $0xb98] sm:$0xff]
    %v8652 = vld [vmem:[#allocation23 + $0xba0] sm:$0xff]
    %v8653 = vld [vmem:[#allocation23 + $0xba8] sm:$0xff]
    %v8654 = vld [vmem:[#allocation23 + $0xbb0] sm:$0xff]
    %v8655 = vld [vmem:[#allocation23 + $0xbb8] sm:$0xff]
    %v8656 = vld [vmem:[#allocation23 + $0xbc0] sm:$0xff]
    %v8657 = vld [vmem:[#allocation23 + $0xbc8] sm:$0xff]
    %v8658 = vld [vmem:[#allocation23 + $0xbd0] sm:$0xff]
    %v8659 = vld [vmem:[#allocation23 + $0xbd8] sm:$0xff]
    %v8660 = vld [vmem:[#allocation23 + $0xbe0] sm:$0xff]
    %v8661 = vld [vmem:[#allocation23 + $0xbe8] sm:$0xff]
    %v8662 = vld [vmem:[#allocation23 + $0xbf0] sm:$0xff]
    %v8663 = vld [vmem:[#allocation23 + $0xbf8] sm:$0xff]
    %v8664 = vld [vmem:[#allocation25] sm:$0xf]
    %v8666 = vlaneseq
    %v8667 = vshrl.u32 %v8666, 7
    %v8668 = vsub.s32 0, %v8667
    %v8669 = vrot.slane %v8664, %v8668
    %v8670 = vlaneseq
    %v8671 = vshrl.u32 %v8670, 7
    %v8672 = vsub.s32 1, %v8671
    %v8673 = vrot.slane %v8664, %v8672
    %v8674 = vlaneseq
    %v8675 = vshrl.u32 %v8674, 7
    %v8676 = vsub.s32 2, %v8675
    %v8677 = vrot.slane %v8664, %v8676
    %v8678 = vlaneseq
    %v8679 = vshrl.u32 %v8678, 7
    %v8680 = vsub.s32 3, %v8679
    %v8681 = vrot.slane %v8664, %v8680
    %v9070 = vunpack.c.l.b16 %v8280
    %v9071 = vunpack.c.h.b16 %v8280
    %v9072 = vunpack.c.l.b16 %v8281
    %v9073 = vunpack.c.h.b16 %v8281
    %v9074 = vunpack.c.l.b16 %v8282
    %v9075 = vunpack.c.h.b16 %v8282
    %v9076 = vunpack.c.l.b16 %v8283
    %v9077 = vunpack.c.h.b16 %v8283
    %v9078 = vunpack.c.l.b16 %v8284
    %v9079 = vunpack.c.h.b16 %v8284
    %v9080 = vunpack.c.l.b16 %v8285
    %v9081 = vunpack.c.h.b16 %v8285
    %v9082 = vunpack.c.l.b16 %v8286
    %v9083 = vunpack.c.h.b16 %v8286
    %v9084 = vunpack.c.l.b16 %v8287
    %v9085 = vunpack.c.h.b16 %v8287
    %v9086 = vunpack.c.l.b16 %v8288
    %v9087 = vunpack.c.h.b16 %v8288
    %v9088 = vunpack.c.l.b16 %v8289
    %v9089 = vunpack.c.h.b16 %v8289
    %v9090 = vunpack.c.l.b16 %v8290
    %v9091 = vunpack.c.h.b16 %v8290
    %v9092 = vunpack.c.l.b16 %v8291
    %v9093 = vunpack.c.h.b16 %v8291
    %v9094 = vunpack.c.l.b16 %v8292
    %v9095 = vunpack.c.h.b16 %v8292
    %v9096 = vunpack.c.l.b16 %v8293
    %v9097 = vunpack.c.h.b16 %v8293
    %v9098 = vunpack.c.l.b16 %v8294
    %v9099 = vunpack.c.h.b16 %v8294
    %v9100 = vunpack.c.l.b16 %v8295
    %v9101 = vunpack.c.h.b16 %v8295
    %v9102 = vunpack.c.l.b16 %v8296
    %v9103 = vunpack.c.h.b16 %v8296
    %v9104 = vunpack.c.l.b16 %v8297
    %v9105 = vunpack.c.h.b16 %v8297
    %v9106 = vunpack.c.l.b16 %v8298
    %v9107 = vunpack.c.h.b16 %v8298
    %v9108 = vunpack.c.l.b16 %v8299
    %v9109 = vunpack.c.h.b16 %v8299
    %v9110 = vunpack.c.l.b16 %v8300
    %v9111 = vunpack.c.h.b16 %v8300
    %v9112 = vunpack.c.l.b16 %v8301
    %v9113 = vunpack.c.h.b16 %v8301
    %v9114 = vunpack.c.l.b16 %v8302
    %v9115 = vunpack.c.h.b16 %v8302
    %v9116 = vunpack.c.l.b16 %v8303
    %v9117 = vunpack.c.h.b16 %v8303
    %v9118 = vunpack.c.l.b16 %v8304
    %v9119 = vunpack.c.h.b16 %v8304
    %v9120 = vunpack.c.l.b16 %v8305
    %v9121 = vunpack.c.h.b16 %v8305
    %v9122 = vunpack.c.l.b16 %v8306
    %v9123 = vunpack.c.h.b16 %v8306
    %v9124 = vunpack.c.l.b16 %v8307
    %v9125 = vunpack.c.h.b16 %v8307
    %v9126 = vunpack.c.l.b16 %v8308
    %v9127 = vunpack.c.h.b16 %v8308
    %v9128 = vunpack.c.l.b16 %v8309
    %v9129 = vunpack.c.h.b16 %v8309
    %v9130 = vunpack.c.l.b16 %v8310
    %v9131 = vunpack.c.h.b16 %v8310
    %v9132 = vunpack.c.l.b16 %v8311
    %v9133 = vunpack.c.h.b16 %v8311
    %v9134 = vunpack.c.l.b16 %v8312
    %v9135 = vunpack.c.h.b16 %v8312
    %v9136 = vunpack.c.l.b16 %v8313
    %v9137 = vunpack.c.h.b16 %v8313
    %v9138 = vunpack.c.l.b16 %v8314
    %v9139 = vunpack.c.h.b16 %v8314
    %v9140 = vunpack.c.l.b16 %v8315
    %v9141 = vunpack.c.h.b16 %v8315
    %v9142 = vunpack.c.l.b16 %v8316
    %v9143 = vunpack.c.h.b16 %v8316
    %v9144 = vunpack.c.l.b16 %v8317
    %v9145 = vunpack.c.h.b16 %v8317
    %v9146 = vunpack.c.l.b16 %v8318
    %v9147 = vunpack.c.h.b16 %v8318
    %v9148 = vunpack.c.l.b16 %v8319
    %v9149 = vunpack.c.h.b16 %v8319
    %v9150 = vunpack.c.l.b16 %v8320
    %v9151 = vunpack.c.h.b16 %v8320
    %v9152 = vunpack.c.l.b16 %v8321
    %v9153 = vunpack.c.h.b16 %v8321
    %v9154 = vunpack.c.l.b16 %v8322
    %v9155 = vunpack.c.h.b16 %v8322
    %v9156 = vunpack.c.l.b16 %v8323
    %v9157 = vunpack.c.h.b16 %v8323
    %v9158 = vunpack.c.l.b16 %v8324
    %v9159 = vunpack.c.h.b16 %v8324
    %v9160 = vunpack.c.l.b16 %v8325
    %v9161 = vunpack.c.h.b16 %v8325
    %v9162 = vunpack.c.l.b16 %v8326
    %v9163 = vunpack.c.h.b16 %v8326
    %v9164 = vunpack.c.l.b16 %v8327
    %v9165 = vunpack.c.h.b16 %v8327
    %v9166 = vunpack.c.l.b16 %v8328
    %v9167 = vunpack.c.h.b16 %v8328
    %v9168 = vunpack.c.l.b16 %v8329
    %v9169 = vunpack.c.h.b16 %v8329
    %v9170 = vunpack.c.l.b16 %v8330
    %v9171 = vunpack.c.h.b16 %v8330
    %v9172 = vunpack.c.l.b16 %v8331
    %v9173 = vunpack.c.h.b16 %v8331
    %v9174 = vunpack.c.l.b16 %v8332
    %v9175 = vunpack.c.h.b16 %v8332
    %v9176 = vunpack.c.l.b16 %v8333
    %v9177 = vunpack.c.h.b16 %v8333
    %v9178 = vunpack.c.l.b16 %v8334
    %v9179 = vunpack.c.h.b16 %v8334
    %v9180 = vunpack.c.l.b16 %v8335
    %v9181 = vunpack.c.h.b16 %v8335
    %v9182 = vunpack.c.l.b16 %v8336
    %v9183 = vunpack.c.h.b16 %v8336
    %v9184 = vunpack.c.l.b16 %v8337
    %v9185 = vunpack.c.h.b16 %v8337
    %v9186 = vunpack.c.l.b16 %v8338
    %v9187 = vunpack.c.h.b16 %v8338
    %v9188 = vunpack.c.l.b16 %v8339
    %v9189 = vunpack.c.h.b16 %v8339
    %v9190 = vunpack.c.l.b16 %v8340
    %v9191 = vunpack.c.h.b16 %v8340
    %v9192 = vunpack.c.l.b16 %v8341
    %v9193 = vunpack.c.h.b16 %v8341
    %v9194 = vunpack.c.l.b16 %v8342
    %v9195 = vunpack.c.h.b16 %v8342
    %v9196 = vunpack.c.l.b16 %v8343
    %v9197 = vunpack.c.h.b16 %v8343
    %v9198 = vunpack.c.l.b16 %v8344
    %v9199 = vunpack.c.h.b16 %v8344
    %v9200 = vunpack.c.l.b16 %v8345
    %v9201 = vunpack.c.h.b16 %v8345
    %v9202 = vunpack.c.l.b16 %v8346
    %v9203 = vunpack.c.h.b16 %v8346
    %v9204 = vunpack.c.l.b16 %v8347
    %v9205 = vunpack.c.h.b16 %v8347
    %v9206 = vunpack.c.l.b16 %v8348
    %v9207 = vunpack.c.h.b16 %v8348
    %v9208 = vunpack.c.l.b16 %v8349
    %v9209 = vunpack.c.h.b16 %v8349
    %v9210 = vunpack.c.l.b16 %v8350
    %v9211 = vunpack.c.h.b16 %v8350
    %v9212 = vunpack.c.l.b16 %v8351
    %v9213 = vunpack.c.h.b16 %v8351
    %v9214 = vunpack.c.l.b16 %v8352
    %v9215 = vunpack.c.h.b16 %v8352
    %v9216 = vunpack.c.l.b16 %v8353
    %v9217 = vunpack.c.h.b16 %v8353
    %v9218 = vunpack.c.l.b16 %v8354
    %v9219 = vunpack.c.h.b16 %v8354
    %v9220 = vunpack.c.l.b16 %v8355
    %v9221 = vunpack.c.h.b16 %v8355
    %v9222 = vunpack.c.l.b16 %v8356
    %v9223 = vunpack.c.h.b16 %v8356
    %v9224 = vunpack.c.l.b16 %v8357
    %v9225 = vunpack.c.h.b16 %v8357
    %v9226 = vunpack.c.l.b16 %v8358
    %v9227 = vunpack.c.h.b16 %v8358
    %v9228 = vunpack.c.l.b16 %v8359
    %v9229 = vunpack.c.h.b16 %v8359
    %v9230 = vunpack.c.l.b16 %v8360
    %v9231 = vunpack.c.h.b16 %v8360
    %v9232 = vunpack.c.l.b16 %v8361
    %v9233 = vunpack.c.h.b16 %v8361
    %v9234 = vunpack.c.l.b16 %v8362
    %v9235 = vunpack.c.h.b16 %v8362
    %v9236 = vunpack.c.l.b16 %v8363
    %v9237 = vunpack.c.h.b16 %v8363
    %v9238 = vunpack.c.l.b16 %v8364
    %v9239 = vunpack.c.h.b16 %v8364
    %v9240 = vunpack.c.l.b16 %v8365
    %v9241 = vunpack.c.h.b16 %v8365
    %v9242 = vunpack.c.l.b16 %v8366
    %v9243 = vunpack.c.h.b16 %v8366
    %v9244 = vunpack.c.l.b16 %v8367
    %v9245 = vunpack.c.h.b16 %v8367
    %v9246 = vunpack.c.l.b16 %v8368
    %v9247 = vunpack.c.h.b16 %v8368
    %v9248 = vunpack.c.l.b16 %v8369
    %v9249 = vunpack.c.h.b16 %v8369
    %v9250 = vunpack.c.l.b16 %v8370
    %v9251 = vunpack.c.h.b16 %v8370
    %v9252 = vunpack.c.l.b16 %v8371
    %v9253 = vunpack.c.h.b16 %v8371
    %v9254 = vunpack.c.l.b16 %v8372
    %v9255 = vunpack.c.h.b16 %v8372
    %v9256 = vunpack.c.l.b16 %v8373
    %v9257 = vunpack.c.h.b16 %v8373
    %v9258 = vunpack.c.l.b16 %v8374
    %v9259 = vunpack.c.h.b16 %v8374
    %v9260 = vunpack.c.l.b16 %v8375
    %v9261 = vunpack.c.h.b16 %v8375
    %v9262 = vunpack.c.l.b16 %v8376
    %v9263 = vunpack.c.h.b16 %v8376
    %v9264 = vunpack.c.l.b16 %v8377
    %v9265 = vunpack.c.h.b16 %v8377
    %v9266 = vunpack.c.l.b16 %v8378
    %v9267 = vunpack.c.h.b16 %v8378
    %v9268 = vunpack.c.l.b16 %v8379
    %v9269 = vunpack.c.h.b16 %v8379
    %v9270 = vunpack.c.l.b16 %v8380
    %v9271 = vunpack.c.h.b16 %v8380
    %v9272 = vunpack.c.l.b16 %v8381
    %v9273 = vunpack.c.h.b16 %v8381
    %v9274 = vunpack.c.l.b16 %v8382
    %v9275 = vunpack.c.h.b16 %v8382
    %v9276 = vunpack.c.l.b16 %v8383
    %v9277 = vunpack.c.h.b16 %v8383
    %v9278 = vunpack.c.l.b16 %v8384
    %v9279 = vunpack.c.h.b16 %v8384
    %v9280 = vunpack.c.l.b16 %v8385
    %v9281 = vunpack.c.h.b16 %v8385
    %v9282 = vunpack.c.l.b16 %v8386
    %v9283 = vunpack.c.h.b16 %v8386
    %v9284 = vunpack.c.l.b16 %v8387
    %v9285 = vunpack.c.h.b16 %v8387
    %v9286 = vunpack.c.l.b16 %v8388
    %v9287 = vunpack.c.h.b16 %v8388
    %v9288 = vunpack.c.l.b16 %v8389
    %v9289 = vunpack.c.h.b16 %v8389
    %v9290 = vunpack.c.l.b16 %v8390
    %v9291 = vunpack.c.h.b16 %v8390
    %v9292 = vunpack.c.l.b16 %v8391
    %v9293 = vunpack.c.h.b16 %v8391
    %v9294 = vunpack.c.l.b16 %v8392
    %v9295 = vunpack.c.h.b16 %v8392
    %v9296 = vunpack.c.l.b16 %v8393
    %v9297 = vunpack.c.h.b16 %v8393
    %v9298 = vunpack.c.l.b16 %v8394
    %v9299 = vunpack.c.h.b16 %v8394
    %v9300 = vunpack.c.l.b16 %v8395
    %v9301 = vunpack.c.h.b16 %v8395
    %v9302 = vunpack.c.l.b16 %v8396
    %v9303 = vunpack.c.h.b16 %v8396
    %v9304 = vunpack.c.l.b16 %v8397
    %v9305 = vunpack.c.h.b16 %v8397
    %v9306 = vunpack.c.l.b16 %v8398
    %v9307 = vunpack.c.h.b16 %v8398
    %v9308 = vunpack.c.l.b16 %v8399
    %v9309 = vunpack.c.h.b16 %v8399
    %v9310 = vunpack.c.l.b16 %v8400
    %v9311 = vunpack.c.h.b16 %v8400
    %v9312 = vunpack.c.l.b16 %v8401
    %v9313 = vunpack.c.h.b16 %v8401
    %v9314 = vunpack.c.l.b16 %v8402
    %v9315 = vunpack.c.h.b16 %v8402
    %v9316 = vunpack.c.l.b16 %v8403
    %v9317 = vunpack.c.h.b16 %v8403
    %v9318 = vunpack.c.l.b16 %v8404
    %v9319 = vunpack.c.h.b16 %v8404
    %v9320 = vunpack.c.l.b16 %v8405
    %v9321 = vunpack.c.h.b16 %v8405
    %v9322 = vunpack.c.l.b16 %v8406
    %v9323 = vunpack.c.h.b16 %v8406
    %v9324 = vunpack.c.l.b16 %v8407
    %v9325 = vunpack.c.h.b16 %v8407
    %v9326 = vunpack.c.l.b16 %v8408
    %v9327 = vunpack.c.h.b16 %v8408
    %v9328 = vunpack.c.l.b16 %v8409
    %v9329 = vunpack.c.h.b16 %v8409
    %v9330 = vunpack.c.l.b16 %v8410
    %v9331 = vunpack.c.h.b16 %v8410
    %v9332 = vunpack.c.l.b16 %v8411
    %v9333 = vunpack.c.h.b16 %v8411
    %v9334 = vunpack.c.l.b16 %v8412
    %v9335 = vunpack.c.h.b16 %v8412
    %v9336 = vunpack.c.l.b16 %v8413
    %v9337 = vunpack.c.h.b16 %v8413
    %v9338 = vunpack.c.l.b16 %v8414
    %v9339 = vunpack.c.h.b16 %v8414
    %v9340 = vunpack.c.l.b16 %v8415
    %v9341 = vunpack.c.h.b16 %v8415
    %v9342 = vunpack.c.l.b16 %v8416
    %v9343 = vunpack.c.h.b16 %v8416
    %v9344 = vunpack.c.l.b16 %v8417
    %v9345 = vunpack.c.h.b16 %v8417
    %v9346 = vunpack.c.l.b16 %v8418
    %v9347 = vunpack.c.h.b16 %v8418
    %v9348 = vunpack.c.l.b16 %v8419
    %v9349 = vunpack.c.h.b16 %v8419
    %v9350 = vunpack.c.l.b16 %v8420
    %v9351 = vunpack.c.h.b16 %v8420
    %v9352 = vunpack.c.l.b16 %v8421
    %v9353 = vunpack.c.h.b16 %v8421
    %v9354 = vunpack.c.l.b16 %v8422
    %v9355 = vunpack.c.h.b16 %v8422
    %v9356 = vunpack.c.l.b16 %v8423
    %v9357 = vunpack.c.h.b16 %v8423
    %v9358 = vunpack.c.l.b16 %v8424
    %v9359 = vunpack.c.h.b16 %v8424
    %v9360 = vunpack.c.l.b16 %v8425
    %v9361 = vunpack.c.h.b16 %v8425
    %v9362 = vunpack.c.l.b16 %v8426
    %v9363 = vunpack.c.h.b16 %v8426
    %v9364 = vunpack.c.l.b16 %v8427
    %v9365 = vunpack.c.h.b16 %v8427
    %v9366 = vunpack.c.l.b16 %v8428
    %v9367 = vunpack.c.h.b16 %v8428
    %v9368 = vunpack.c.l.b16 %v8429
    %v9369 = vunpack.c.h.b16 %v8429
    %v9370 = vunpack.c.l.b16 %v8430
    %v9371 = vunpack.c.h.b16 %v8430
    %v9372 = vunpack.c.l.b16 %v8431
    %v9373 = vunpack.c.h.b16 %v8431
    %v9374 = vunpack.c.l.b16 %v8432
    %v9375 = vunpack.c.h.b16 %v8432
    %v9376 = vunpack.c.l.b16 %v8433
    %v9377 = vunpack.c.h.b16 %v8433
    %v9378 = vunpack.c.l.b16 %v8434
    %v9379 = vunpack.c.h.b16 %v8434
    %v9380 = vunpack.c.l.b16 %v8435
    %v9381 = vunpack.c.h.b16 %v8435
    %v9382 = vunpack.c.l.b16 %v8436
    %v9383 = vunpack.c.h.b16 %v8436
    %v9384 = vunpack.c.l.b16 %v8437
    %v9385 = vunpack.c.h.b16 %v8437
    %v9386 = vunpack.c.l.b16 %v8438
    %v9387 = vunpack.c.h.b16 %v8438
    %v9388 = vunpack.c.l.b16 %v8439
    %v9389 = vunpack.c.h.b16 %v8439
    %v9390 = vunpack.c.l.b16 %v8440
    %v9391 = vunpack.c.h.b16 %v8440
    %v9392 = vunpack.c.l.b16 %v8441
    %v9393 = vunpack.c.h.b16 %v8441
    %v9394 = vunpack.c.l.b16 %v8442
    %v9395 = vunpack.c.h.b16 %v8442
    %v9396 = vunpack.c.l.b16 %v8443
    %v9397 = vunpack.c.h.b16 %v8443
    %v9398 = vunpack.c.l.b16 %v8444
    %v9399 = vunpack.c.h.b16 %v8444
    %v9400 = vunpack.c.l.b16 %v8445
    %v9401 = vunpack.c.h.b16 %v8445
    %v9402 = vunpack.c.l.b16 %v8446
    %v9403 = vunpack.c.h.b16 %v8446
    %v9404 = vunpack.c.l.b16 %v8447
    %v9405 = vunpack.c.h.b16 %v8447
    %v9406 = vunpack.c.l.b16 %v8448
    %v9407 = vunpack.c.h.b16 %v8448
    %v9408 = vunpack.c.l.b16 %v8449
    %v9409 = vunpack.c.h.b16 %v8449
    %v9410 = vunpack.c.l.b16 %v8450
    %v9411 = vunpack.c.h.b16 %v8450
    %v9412 = vunpack.c.l.b16 %v8451
    %v9413 = vunpack.c.h.b16 %v8451
    %v9414 = vunpack.c.l.b16 %v8452
    %v9415 = vunpack.c.h.b16 %v8452
    %v9416 = vunpack.c.l.b16 %v8453
    %v9417 = vunpack.c.h.b16 %v8453
    %v9418 = vunpack.c.l.b16 %v8454
    %v9419 = vunpack.c.h.b16 %v8454
    %v9420 = vunpack.c.l.b16 %v8455
    %v9421 = vunpack.c.h.b16 %v8455
    %v9422 = vunpack.c.l.b16 %v8456
    %v9423 = vunpack.c.h.b16 %v8456
    %v9424 = vunpack.c.l.b16 %v8457
    %v9425 = vunpack.c.h.b16 %v8457
    %v9426 = vunpack.c.l.b16 %v8458
    %v9427 = vunpack.c.h.b16 %v8458
    %v9428 = vunpack.c.l.b16 %v8459
    %v9429 = vunpack.c.h.b16 %v8459
    %v9430 = vunpack.c.l.b16 %v8460
    %v9431 = vunpack.c.h.b16 %v8460
    %v9432 = vunpack.c.l.b16 %v8461
    %v9433 = vunpack.c.h.b16 %v8461
    %v9434 = vunpack.c.l.b16 %v8462
    %v9435 = vunpack.c.h.b16 %v8462
    %v9436 = vunpack.c.l.b16 %v8463
    %v9437 = vunpack.c.h.b16 %v8463
    %v9438 = vunpack.c.l.b16 %v8464
    %v9439 = vunpack.c.h.b16 %v8464
    %v9440 = vunpack.c.l.b16 %v8465
    %v9441 = vunpack.c.h.b16 %v8465
    %v9442 = vunpack.c.l.b16 %v8466
    %v9443 = vunpack.c.h.b16 %v8466
    %v9444 = vunpack.c.l.b16 %v8467
    %v9445 = vunpack.c.h.b16 %v8467
    %v9446 = vunpack.c.l.b16 %v8468
    %v9447 = vunpack.c.h.b16 %v8468
    %v9448 = vunpack.c.l.b16 %v8469
    %v9449 = vunpack.c.h.b16 %v8469
    %v9450 = vunpack.c.l.b16 %v8470
    %v9451 = vunpack.c.h.b16 %v8470
    %v9452 = vunpack.c.l.b16 %v8471
    %v9453 = vunpack.c.h.b16 %v8471
    %v9454 = vunpack.c.l.b16 %v8472
    %v9455 = vunpack.c.h.b16 %v8472
    %v9456 = vunpack.c.l.b16 %v8473
    %v9457 = vunpack.c.h.b16 %v8473
    %v9458 = vunpack.c.l.b16 %v8474
    %v9459 = vunpack.c.h.b16 %v8474
    %v9460 = vunpack.c.l.b16 %v8475
    %v9461 = vunpack.c.h.b16 %v8475
    %v9462 = vunpack.c.l.b16 %v8476
    %v9463 = vunpack.c.h.b16 %v8476
    %v9464 = vunpack.c.l.b16 %v8477
    %v9465 = vunpack.c.h.b16 %v8477
    %v9466 = vunpack.c.l.b16 %v8478
    %v9467 = vunpack.c.h.b16 %v8478
    %v9468 = vunpack.c.l.b16 %v8479
    %v9469 = vunpack.c.h.b16 %v8479
    %v9470 = vunpack.c.l.b16 %v8480
    %v9471 = vunpack.c.h.b16 %v8480
    %v9472 = vunpack.c.l.b16 %v8481
    %v9473 = vunpack.c.h.b16 %v8481
    %v9474 = vunpack.c.l.b16 %v8482
    %v9475 = vunpack.c.h.b16 %v8482
    %v9476 = vunpack.c.l.b16 %v8483
    %v9477 = vunpack.c.h.b16 %v8483
    %v9478 = vunpack.c.l.b16 %v8484
    %v9479 = vunpack.c.h.b16 %v8484
    %v9480 = vunpack.c.l.b16 %v8485
    %v9481 = vunpack.c.h.b16 %v8485
    %v9482 = vunpack.c.l.b16 %v8486
    %v9483 = vunpack.c.h.b16 %v8486
    %v9484 = vunpack.c.l.b16 %v8487
    %v9485 = vunpack.c.h.b16 %v8487
    %v9486 = vunpack.c.l.b16 %v8488
    %v9487 = vunpack.c.h.b16 %v8488
    %v9488 = vunpack.c.l.b16 %v8489
    %v9489 = vunpack.c.h.b16 %v8489
    %v9490 = vunpack.c.l.b16 %v8490
    %v9491 = vunpack.c.h.b16 %v8490
    %v9492 = vunpack.c.l.b16 %v8491
    %v9493 = vunpack.c.h.b16 %v8491
    %v9494 = vunpack.c.l.b16 %v8492
    %v9495 = vunpack.c.h.b16 %v8492
    %v9496 = vunpack.c.l.b16 %v8493
    %v9497 = vunpack.c.h.b16 %v8493
    %v9498 = vunpack.c.l.b16 %v8494
    %v9499 = vunpack.c.h.b16 %v8494
    %v9500 = vunpack.c.l.b16 %v8495
    %v9501 = vunpack.c.h.b16 %v8495
    %v9502 = vunpack.c.l.b16 %v8496
    %v9503 = vunpack.c.h.b16 %v8496
    %v9504 = vunpack.c.l.b16 %v8497
    %v9505 = vunpack.c.h.b16 %v8497
    %v9506 = vunpack.c.l.b16 %v8498
    %v9507 = vunpack.c.h.b16 %v8498
    %v9508 = vunpack.c.l.b16 %v8499
    %v9509 = vunpack.c.h.b16 %v8499
    %v9510 = vunpack.c.l.b16 %v8500
    %v9511 = vunpack.c.h.b16 %v8500
    %v9512 = vunpack.c.l.b16 %v8501
    %v9513 = vunpack.c.h.b16 %v8501
    %v9514 = vunpack.c.l.b16 %v8502
    %v9515 = vunpack.c.h.b16 %v8502
    %v9516 = vunpack.c.l.b16 %v8503
    %v9517 = vunpack.c.h.b16 %v8503
    %v9518 = vunpack.c.l.b16 %v8504
    %v9519 = vunpack.c.h.b16 %v8504
    %v9520 = vunpack.c.l.b16 %v8505
    %v9521 = vunpack.c.h.b16 %v8505
    %v9522 = vunpack.c.l.b16 %v8506
    %v9523 = vunpack.c.h.b16 %v8506
    %v9524 = vunpack.c.l.b16 %v8507
    %v9525 = vunpack.c.h.b16 %v8507
    %v9526 = vunpack.c.l.b16 %v8508
    %v9527 = vunpack.c.h.b16 %v8508
    %v9528 = vunpack.c.l.b16 %v8509
    %v9529 = vunpack.c.h.b16 %v8509
    %v9530 = vunpack.c.l.b16 %v8510
    %v9531 = vunpack.c.h.b16 %v8510
    %v9532 = vunpack.c.l.b16 %v8511
    %v9533 = vunpack.c.h.b16 %v8511
    %v9534 = vunpack.c.l.b16 %v8512
    %v9535 = vunpack.c.h.b16 %v8512
    %v9536 = vunpack.c.l.b16 %v8513
    %v9537 = vunpack.c.h.b16 %v8513
    %v9538 = vunpack.c.l.b16 %v8514
    %v9539 = vunpack.c.h.b16 %v8514
    %v9540 = vunpack.c.l.b16 %v8515
    %v9541 = vunpack.c.h.b16 %v8515
    %v9542 = vunpack.c.l.b16 %v8516
    %v9543 = vunpack.c.h.b16 %v8516
    %v9544 = vunpack.c.l.b16 %v8517
    %v9545 = vunpack.c.h.b16 %v8517
    %v9546 = vunpack.c.l.b16 %v8518
    %v9547 = vunpack.c.h.b16 %v8518
    %v9548 = vunpack.c.l.b16 %v8519
    %v9549 = vunpack.c.h.b16 %v8519
    %v9550 = vunpack.c.l.b16 %v8520
    %v9551 = vunpack.c.h.b16 %v8520
    %v9552 = vunpack.c.l.b16 %v8521
    %v9553 = vunpack.c.h.b16 %v8521
    %v9554 = vunpack.c.l.b16 %v8522
    %v9555 = vunpack.c.h.b16 %v8522
    %v9556 = vunpack.c.l.b16 %v8523
    %v9557 = vunpack.c.h.b16 %v8523
    %v9558 = vunpack.c.l.b16 %v8524
    %v9559 = vunpack.c.h.b16 %v8524
    %v9560 = vunpack.c.l.b16 %v8525
    %v9561 = vunpack.c.h.b16 %v8525
    %v9562 = vunpack.c.l.b16 %v8526
    %v9563 = vunpack.c.h.b16 %v8526
    %v9564 = vunpack.c.l.b16 %v8527
    %v9565 = vunpack.c.h.b16 %v8527
    %v9566 = vunpack.c.l.b16 %v8528
    %v9567 = vunpack.c.h.b16 %v8528
    %v9568 = vunpack.c.l.b16 %v8529
    %v9569 = vunpack.c.h.b16 %v8529
    %v9570 = vunpack.c.l.b16 %v8530
    %v9571 = vunpack.c.h.b16 %v8530
    %v9572 = vunpack.c.l.b16 %v8531
    %v9573 = vunpack.c.h.b16 %v8531
    %v9574 = vunpack.c.l.b16 %v8532
    %v9575 = vunpack.c.h.b16 %v8532
    %v9576 = vunpack.c.l.b16 %v8533
    %v9577 = vunpack.c.h.b16 %v8533
    %v9578 = vunpack.c.l.b16 %v8534
    %v9579 = vunpack.c.h.b16 %v8534
    %v9580 = vunpack.c.l.b16 %v8535
    %v9581 = vunpack.c.h.b16 %v8535
    %v9582 = vunpack.c.l.b16 %v8536
    %v9583 = vunpack.c.h.b16 %v8536
    %v9584 = vunpack.c.l.b16 %v8537
    %v9585 = vunpack.c.h.b16 %v8537
    %v9586 = vunpack.c.l.b16 %v8538
    %v9587 = vunpack.c.h.b16 %v8538
    %v9588 = vunpack.c.l.b16 %v8539
    %v9589 = vunpack.c.h.b16 %v8539
    %v9590 = vunpack.c.l.b16 %v8540
    %v9591 = vunpack.c.h.b16 %v8540
    %v9592 = vunpack.c.l.b16 %v8541
    %v9593 = vunpack.c.h.b16 %v8541
    %v9594 = vunpack.c.l.b16 %v8542
    %v9595 = vunpack.c.h.b16 %v8542
    %v9596 = vunpack.c.l.b16 %v8543
    %v9597 = vunpack.c.h.b16 %v8543
    %v9598 = vunpack.c.l.b16 %v8544
    %v9599 = vunpack.c.h.b16 %v8544
    %v9600 = vunpack.c.l.b16 %v8545
    %v9601 = vunpack.c.h.b16 %v8545
    %v9602 = vunpack.c.l.b16 %v8546
    %v9603 = vunpack.c.h.b16 %v8546
    %v9604 = vunpack.c.l.b16 %v8547
    %v9605 = vunpack.c.h.b16 %v8547
    %v9606 = vunpack.c.l.b16 %v8548
    %v9607 = vunpack.c.h.b16 %v8548
    %v9608 = vunpack.c.l.b16 %v8549
    %v9609 = vunpack.c.h.b16 %v8549
    %v9610 = vunpack.c.l.b16 %v8550
    %v9611 = vunpack.c.h.b16 %v8550
    %v9612 = vunpack.c.l.b16 %v8551
    %v9613 = vunpack.c.h.b16 %v8551
    %v9614 = vunpack.c.l.b16 %v8552
    %v9615 = vunpack.c.h.b16 %v8552
    %v9616 = vunpack.c.l.b16 %v8553
    %v9617 = vunpack.c.h.b16 %v8553
    %v9618 = vunpack.c.l.b16 %v8554
    %v9619 = vunpack.c.h.b16 %v8554
    %v9620 = vunpack.c.l.b16 %v8555
    %v9621 = vunpack.c.h.b16 %v8555
    %v9622 = vunpack.c.l.b16 %v8556
    %v9623 = vunpack.c.h.b16 %v8556
    %v9624 = vunpack.c.l.b16 %v8557
    %v9625 = vunpack.c.h.b16 %v8557
    %v9626 = vunpack.c.l.b16 %v8558
    %v9627 = vunpack.c.h.b16 %v8558
    %v9628 = vunpack.c.l.b16 %v8559
    %v9629 = vunpack.c.h.b16 %v8559
    %v9630 = vunpack.c.l.b16 %v8560
    %v9631 = vunpack.c.h.b16 %v8560
    %v9632 = vunpack.c.l.b16 %v8561
    %v9633 = vunpack.c.h.b16 %v8561
    %v9634 = vunpack.c.l.b16 %v8562
    %v9635 = vunpack.c.h.b16 %v8562
    %v9636 = vunpack.c.l.b16 %v8563
    %v9637 = vunpack.c.h.b16 %v8563
    %v9638 = vunpack.c.l.b16 %v8564
    %v9639 = vunpack.c.h.b16 %v8564
    %v9640 = vunpack.c.l.b16 %v8565
    %v9641 = vunpack.c.h.b16 %v8565
    %v9642 = vunpack.c.l.b16 %v8566
    %v9643 = vunpack.c.h.b16 %v8566
    %v9644 = vunpack.c.l.b16 %v8567
    %v9645 = vunpack.c.h.b16 %v8567
    %v9646 = vunpack.c.l.b16 %v8568
    %v9647 = vunpack.c.h.b16 %v8568
    %v9648 = vunpack.c.l.b16 %v8569
    %v9649 = vunpack.c.h.b16 %v8569
    %v9650 = vunpack.c.l.b16 %v8570
    %v9651 = vunpack.c.h.b16 %v8570
    %v9652 = vunpack.c.l.b16 %v8571
    %v9653 = vunpack.c.h.b16 %v8571
    %v9654 = vunpack.c.l.b16 %v8572
    %v9655 = vunpack.c.h.b16 %v8572
    %v9656 = vunpack.c.l.b16 %v8573
    %v9657 = vunpack.c.h.b16 %v8573
    %v9658 = vunpack.c.l.b16 %v8574
    %v9659 = vunpack.c.h.b16 %v8574
    %v9660 = vunpack.c.l.b16 %v8575
    %v9661 = vunpack.c.h.b16 %v8575
    %v9662 = vunpack.c.l.b16 %v8576
    %v9663 = vunpack.c.h.b16 %v8576
    %v9664 = vunpack.c.l.b16 %v8577
    %v9665 = vunpack.c.h.b16 %v8577
    %v9666 = vunpack.c.l.b16 %v8578
    %v9667 = vunpack.c.h.b16 %v8578
    %v9668 = vunpack.c.l.b16 %v8579
    %v9669 = vunpack.c.h.b16 %v8579
    %v9670 = vunpack.c.l.b16 %v8580
    %v9671 = vunpack.c.h.b16 %v8580
    %v9672 = vunpack.c.l.b16 %v8581
    %v9673 = vunpack.c.h.b16 %v8581
    %v9674 = vunpack.c.l.b16 %v8582
    %v9675 = vunpack.c.h.b16 %v8582
    %v9676 = vunpack.c.l.b16 %v8583
    %v9677 = vunpack.c.h.b16 %v8583
    %v9678 = vunpack.c.l.b16 %v8584
    %v9679 = vunpack.c.h.b16 %v8584
    %v9680 = vunpack.c.l.b16 %v8585
    %v9681 = vunpack.c.h.b16 %v8585
    %v9682 = vunpack.c.l.b16 %v8586
    %v9683 = vunpack.c.h.b16 %v8586
    %v9684 = vunpack.c.l.b16 %v8587
    %v9685 = vunpack.c.h.b16 %v8587
    %v9686 = vunpack.c.l.b16 %v8588
    %v9687 = vunpack.c.h.b16 %v8588
    %v9688 = vunpack.c.l.b16 %v8589
    %v9689 = vunpack.c.h.b16 %v8589
    %v9690 = vunpack.c.l.b16 %v8590
    %v9691 = vunpack.c.h.b16 %v8590
    %v9692 = vunpack.c.l.b16 %v8591
    %v9693 = vunpack.c.h.b16 %v8591
    %v9694 = vunpack.c.l.b16 %v8592
    %v9695 = vunpack.c.h.b16 %v8592
    %v9696 = vunpack.c.l.b16 %v8593
    %v9697 = vunpack.c.h.b16 %v8593
    %v9698 = vunpack.c.l.b16 %v8594
    %v9699 = vunpack.c.h.b16 %v8594
    %v9700 = vunpack.c.l.b16 %v8595
    %v9701 = vunpack.c.h.b16 %v8595
    %v9702 = vunpack.c.l.b16 %v8596
    %v9703 = vunpack.c.h.b16 %v8596
    %v9704 = vunpack.c.l.b16 %v8597
    %v9705 = vunpack.c.h.b16 %v8597
    %v9706 = vunpack.c.l.b16 %v8598
    %v9707 = vunpack.c.h.b16 %v8598
    %v9708 = vunpack.c.l.b16 %v8599
    %v9709 = vunpack.c.h.b16 %v8599
    %v9710 = vunpack.c.l.b16 %v8600
    %v9711 = vunpack.c.h.b16 %v8600
    %v9712 = vunpack.c.l.b16 %v8601
    %v9713 = vunpack.c.h.b16 %v8601
    %v9714 = vunpack.c.l.b16 %v8602
    %v9715 = vunpack.c.h.b16 %v8602
    %v9716 = vunpack.c.l.b16 %v8603
    %v9717 = vunpack.c.h.b16 %v8603
    %v9718 = vunpack.c.l.b16 %v8604
    %v9719 = vunpack.c.h.b16 %v8604
    %v9720 = vunpack.c.l.b16 %v8605
    %v9721 = vunpack.c.h.b16 %v8605
    %v9722 = vunpack.c.l.b16 %v8606
    %v9723 = vunpack.c.h.b16 %v8606
    %v9724 = vunpack.c.l.b16 %v8607
    %v9725 = vunpack.c.h.b16 %v8607
    %v9726 = vunpack.c.l.b16 %v8608
    %v9727 = vunpack.c.h.b16 %v8608
    %v9728 = vunpack.c.l.b16 %v8609
    %v9729 = vunpack.c.h.b16 %v8609
    %v9730 = vunpack.c.l.b16 %v8610
    %v9731 = vunpack.c.h.b16 %v8610
    %v9732 = vunpack.c.l.b16 %v8611
    %v9733 = vunpack.c.h.b16 %v8611
    %v9734 = vunpack.c.l.b16 %v8612
    %v9735 = vunpack.c.h.b16 %v8612
    %v9736 = vunpack.c.l.b16 %v8613
    %v9737 = vunpack.c.h.b16 %v8613
    %v9738 = vunpack.c.l.b16 %v8614
    %v9739 = vunpack.c.h.b16 %v8614
    %v9740 = vunpack.c.l.b16 %v8615
    %v9741 = vunpack.c.h.b16 %v8615
    %v9742 = vunpack.c.l.b16 %v8616
    %v9743 = vunpack.c.h.b16 %v8616
    %v9744 = vunpack.c.l.b16 %v8617
    %v9745 = vunpack.c.h.b16 %v8617
    %v9746 = vunpack.c.l.b16 %v8618
    %v9747 = vunpack.c.h.b16 %v8618
    %v9748 = vunpack.c.l.b16 %v8619
    %v9749 = vunpack.c.h.b16 %v8619
    %v9750 = vunpack.c.l.b16 %v8620
    %v9751 = vunpack.c.h.b16 %v8620
    %v9752 = vunpack.c.l.b16 %v8621
    %v9753 = vunpack.c.h.b16 %v8621
    %v9754 = vunpack.c.l.b16 %v8622
    %v9755 = vunpack.c.h.b16 %v8622
    %v9756 = vunpack.c.l.b16 %v8623
    %v9757 = vunpack.c.h.b16 %v8623
    %v9758 = vunpack.c.l.b16 %v8624
    %v9759 = vunpack.c.h.b16 %v8624
    %v9760 = vunpack.c.l.b16 %v8625
    %v9761 = vunpack.c.h.b16 %v8625
    %v9762 = vunpack.c.l.b16 %v8626
    %v9763 = vunpack.c.h.b16 %v8626
    %v9764 = vunpack.c.l.b16 %v8627
    %v9765 = vunpack.c.h.b16 %v8627
    %v9766 = vunpack.c.l.b16 %v8628
    %v9767 = vunpack.c.h.b16 %v8628
    %v9768 = vunpack.c.l.b16 %v8629
    %v9769 = vunpack.c.h.b16 %v8629
    %v9770 = vunpack.c.l.b16 %v8630
    %v9771 = vunpack.c.h.b16 %v8630
    %v9772 = vunpack.c.l.b16 %v8631
    %v9773 = vunpack.c.h.b16 %v8631
    %v9774 = vunpack.c.l.b16 %v8632
    %v9775 = vunpack.c.h.b16 %v8632
    %v9776 = vunpack.c.l.b16 %v8633
    %v9777 = vunpack.c.h.b16 %v8633
    %v9778 = vunpack.c.l.b16 %v8634
    %v9779 = vunpack.c.h.b16 %v8634
    %v9780 = vunpack.c.l.b16 %v8635
    %v9781 = vunpack.c.h.b16 %v8635
    %v9782 = vunpack.c.l.b16 %v8636
    %v9783 = vunpack.c.h.b16 %v8636
    %v9784 = vunpack.c.l.b16 %v8637
    %v9785 = vunpack.c.h.b16 %v8637
    %v9786 = vunpack.c.l.b16 %v8638
    %v9787 = vunpack.c.h.b16 %v8638
    %v9788 = vunpack.c.l.b16 %v8639
    %v9789 = vunpack.c.h.b16 %v8639
    %v9790 = vunpack.c.l.b16 %v8640
    %v9791 = vunpack.c.h.b16 %v8640
    %v9792 = vunpack.c.l.b16 %v8641
    %v9793 = vunpack.c.h.b16 %v8641
    %v9794 = vunpack.c.l.b16 %v8642
    %v9795 = vunpack.c.h.b16 %v8642
    %v9796 = vunpack.c.l.b16 %v8643
    %v9797 = vunpack.c.h.b16 %v8643
    %v9798 = vunpack.c.l.b16 %v8644
    %v9799 = vunpack.c.h.b16 %v8644
    %v9800 = vunpack.c.l.b16 %v8645
    %v9801 = vunpack.c.h.b16 %v8645
    %v9802 = vunpack.c.l.b16 %v8646
    %v9803 = vunpack.c.h.b16 %v8646
    %v9804 = vunpack.c.l.b16 %v8647
    %v9805 = vunpack.c.h.b16 %v8647
    %v9806 = vunpack.c.l.b16 %v8648
    %v9807 = vunpack.c.h.b16 %v8648
    %v9808 = vunpack.c.l.b16 %v8649
    %v9809 = vunpack.c.h.b16 %v8649
    %v9810 = vunpack.c.l.b16 %v8650
    %v9811 = vunpack.c.h.b16 %v8650
    %v9812 = vunpack.c.l.b16 %v8651
    %v9813 = vunpack.c.h.b16 %v8651
    %v9814 = vunpack.c.l.b16 %v8652
    %v9815 = vunpack.c.h.b16 %v8652
    %v9816 = vunpack.c.l.b16 %v8653
    %v9817 = vunpack.c.h.b16 %v8653
    %v9818 = vunpack.c.l.b16 %v8654
    %v9819 = vunpack.c.h.b16 %v8654
    %v9820 = vunpack.c.l.b16 %v8655
    %v9821 = vunpack.c.h.b16 %v8655
    %v9822 = vunpack.c.l.b16 %v8656
    %v9823 = vunpack.c.h.b16 %v8656
    %v9824 = vunpack.c.l.b16 %v8657
    %v9825 = vunpack.c.h.b16 %v8657
    %v9826 = vunpack.c.l.b16 %v8658
    %v9827 = vunpack.c.h.b16 %v8658
    %v9828 = vunpack.c.l.b16 %v8659
    %v9829 = vunpack.c.h.b16 %v8659
    %v9830 = vunpack.c.l.b16 %v8660
    %v9831 = vunpack.c.h.b16 %v8660
    %v9832 = vunpack.c.l.b16 %v8661
    %v9833 = vunpack.c.h.b16 %v8661
    %v9834 = vunpack.c.l.b16 %v8662
    %v9835 = vunpack.c.h.b16 %v8662
    %v9836 = vunpack.c.l.b16 %v8663
    %v9837 = vunpack.c.h.b16 %v8663
    %v9838 = vpack.c.b16 %v9074, %v9070
    %v9839 = vpack.c.b16 %v9075, %v9071
    %v9840 = vpack.c.b16 %v9076, %v9072
    %v9841 = vpack.c.b16 %v9077, %v9073
    %v9842 = vpack.c.b16 %v9082, %v9078
    %v9843 = vpack.c.b16 %v9083, %v9079
    %v9844 = vpack.c.b16 %v9084, %v9080
    %v9845 = vpack.c.b16 %v9085, %v9081
    %v9846 = vpack.c.b16 %v9090, %v9086
    %v9847 = vpack.c.b16 %v9091, %v9087
    %v9848 = vpack.c.b16 %v9092, %v9088
    %v9849 = vpack.c.b16 %v9093, %v9089
    %v9850 = vpack.c.b16 %v9098, %v9094
    %v9851 = vpack.c.b16 %v9099, %v9095
    %v9852 = vpack.c.b16 %v9100, %v9096
    %v9853 = vpack.c.b16 %v9101, %v9097
    %v9854 = vpack.c.b16 %v9106, %v9102
    %v9855 = vpack.c.b16 %v9107, %v9103
    %v9856 = vpack.c.b16 %v9108, %v9104
    %v9857 = vpack.c.b16 %v9109, %v9105
    %v9858 = vpack.c.b16 %v9114, %v9110
    %v9859 = vpack.c.b16 %v9115, %v9111
    %v9860 = vpack.c.b16 %v9116, %v9112
    %v9861 = vpack.c.b16 %v9117, %v9113
    %v9862 = vpack.c.b16 %v9122, %v9118
    %v9863 = vpack.c.b16 %v9123, %v9119
    %v9864 = vpack.c.b16 %v9124, %v9120
    %v9865 = vpack.c.b16 %v9125, %v9121
    %v9866 = vpack.c.b16 %v9130, %v9126
    %v9867 = vpack.c.b16 %v9131, %v9127
    %v9868 = vpack.c.b16 %v9132, %v9128
    %v9869 = vpack.c.b16 %v9133, %v9129
    %v9870 = vpack.c.b16 %v9138, %v9134
    %v9871 = vpack.c.b16 %v9139, %v9135
    %v9872 = vpack.c.b16 %v9140, %v9136
    %v9873 = vpack.c.b16 %v9141, %v9137
    %v9874 = vpack.c.b16 %v9146, %v9142
    %v9875 = vpack.c.b16 %v9147, %v9143
    %v9876 = vpack.c.b16 %v9148, %v9144
    %v9877 = vpack.c.b16 %v9149, %v9145
    %v9878 = vpack.c.b16 %v9154, %v9150
    %v9879 = vpack.c.b16 %v9155, %v9151
    %v9880 = vpack.c.b16 %v9156, %v9152
    %v9881 = vpack.c.b16 %v9157, %v9153
    %v9882 = vpack.c.b16 %v9162, %v9158
    %v9883 = vpack.c.b16 %v9163, %v9159
    %v9884 = vpack.c.b16 %v9164, %v9160
    %v9885 = vpack.c.b16 %v9165, %v9161
    %v9886 = vpack.c.b16 %v9170, %v9166
    %v9887 = vpack.c.b16 %v9171, %v9167
    %v9888 = vpack.c.b16 %v9172, %v9168
    %v9889 = vpack.c.b16 %v9173, %v9169
    %v9890 = vpack.c.b16 %v9178, %v9174
    %v9891 = vpack.c.b16 %v9179, %v9175
    %v9892 = vpack.c.b16 %v9180, %v9176
    %v9893 = vpack.c.b16 %v9181, %v9177
    %v9894 = vpack.c.b16 %v9186, %v9182
    %v9895 = vpack.c.b16 %v9187, %v9183
    %v9896 = vpack.c.b16 %v9188, %v9184
    %v9897 = vpack.c.b16 %v9189, %v9185
    %v9898 = vpack.c.b16 %v9194, %v9190
    %v9899 = vpack.c.b16 %v9195, %v9191
    %v9900 = vpack.c.b16 %v9196, %v9192
    %v9901 = vpack.c.b16 %v9197, %v9193
    %v9902 = vpack.c.b16 %v9202, %v9198
    %v9903 = vpack.c.b16 %v9203, %v9199
    %v9904 = vpack.c.b16 %v9204, %v9200
    %v9905 = vpack.c.b16 %v9205, %v9201
    %v9906 = vpack.c.b16 %v9210, %v9206
    %v9907 = vpack.c.b16 %v9211, %v9207
    %v9908 = vpack.c.b16 %v9212, %v9208
    %v9909 = vpack.c.b16 %v9213, %v9209
    %v9910 = vpack.c.b16 %v9218, %v9214
    %v9911 = vpack.c.b16 %v9219, %v9215
    %v9912 = vpack.c.b16 %v9220, %v9216
    %v9913 = vpack.c.b16 %v9221, %v9217
    %v9914 = vpack.c.b16 %v9226, %v9222
    %v9915 = vpack.c.b16 %v9227, %v9223
    %v9916 = vpack.c.b16 %v9228, %v9224
    %v9917 = vpack.c.b16 %v9229, %v9225
    %v9918 = vpack.c.b16 %v9234, %v9230
    %v9919 = vpack.c.b16 %v9235, %v9231
    %v9920 = vpack.c.b16 %v9236, %v9232
    %v9921 = vpack.c.b16 %v9237, %v9233
    %v9922 = vpack.c.b16 %v9242, %v9238
    %v9923 = vpack.c.b16 %v9243, %v9239
    %v9924 = vpack.c.b16 %v9244, %v9240
    %v9925 = vpack.c.b16 %v9245, %v9241
    %v9926 = vpack.c.b16 %v9250, %v9246
    %v9927 = vpack.c.b16 %v9251, %v9247
    %v9928 = vpack.c.b16 %v9252, %v9248
    %v9929 = vpack.c.b16 %v9253, %v9249
    %v9930 = vpack.c.b16 %v9258, %v9254
    %v9931 = vpack.c.b16 %v9259, %v9255
    %v9932 = vpack.c.b16 %v9260, %v9256
    %v9933 = vpack.c.b16 %v9261, %v9257
    %v9934 = vpack.c.b16 %v9266, %v9262
    %v9935 = vpack.c.b16 %v9267, %v9263
    %v9936 = vpack.c.b16 %v9268, %v9264
    %v9937 = vpack.c.b16 %v9269, %v9265
    %v9938 = vpack.c.b16 %v9274, %v9270
    %v9939 = vpack.c.b16 %v9275, %v9271
    %v9940 = vpack.c.b16 %v9276, %v9272
    %v9941 = vpack.c.b16 %v9277, %v9273
    %v9942 = vpack.c.b16 %v9282, %v9278
    %v9943 = vpack.c.b16 %v9283, %v9279
    %v9944 = vpack.c.b16 %v9284, %v9280
    %v9945 = vpack.c.b16 %v9285, %v9281
    %v9946 = vpack.c.b16 %v9290, %v9286
    %v9947 = vpack.c.b16 %v9291, %v9287
    %v9948 = vpack.c.b16 %v9292, %v9288
    %v9949 = vpack.c.b16 %v9293, %v9289
    %v9950 = vpack.c.b16 %v9298, %v9294
    %v9951 = vpack.c.b16 %v9299, %v9295
    %v9952 = vpack.c.b16 %v9300, %v9296
    %v9953 = vpack.c.b16 %v9301, %v9297
    %v9954 = vpack.c.b16 %v9306, %v9302
    %v9955 = vpack.c.b16 %v9307, %v9303
    %v9956 = vpack.c.b16 %v9308, %v9304
    %v9957 = vpack.c.b16 %v9309, %v9305
    %v9958 = vpack.c.b16 %v9314, %v9310
    %v9959 = vpack.c.b16 %v9315, %v9311
    %v9960 = vpack.c.b16 %v9316, %v9312
    %v9961 = vpack.c.b16 %v9317, %v9313
    %v9962 = vpack.c.b16 %v9322, %v9318
    %v9963 = vpack.c.b16 %v9323, %v9319
    %v9964 = vpack.c.b16 %v9324, %v9320
    %v9965 = vpack.c.b16 %v9325, %v9321
    %v9966 = vpack.c.b16 %v9330, %v9326
    %v9967 = vpack.c.b16 %v9331, %v9327
    %v9968 = vpack.c.b16 %v9332, %v9328
    %v9969 = vpack.c.b16 %v9333, %v9329
    %v9970 = vpack.c.b16 %v9338, %v9334
    %v9971 = vpack.c.b16 %v9339, %v9335
    %v9972 = vpack.c.b16 %v9340, %v9336
    %v9973 = vpack.c.b16 %v9341, %v9337
    %v9974 = vpack.c.b16 %v9346, %v9342
    %v9975 = vpack.c.b16 %v9347, %v9343
    %v9976 = vpack.c.b16 %v9348, %v9344
    %v9977 = vpack.c.b16 %v9349, %v9345
    %v9978 = vpack.c.b16 %v9354, %v9350
    %v9979 = vpack.c.b16 %v9355, %v9351
    %v9980 = vpack.c.b16 %v9356, %v9352
    %v9981 = vpack.c.b16 %v9357, %v9353
    %v9982 = vpack.c.b16 %v9362, %v9358
    %v9983 = vpack.c.b16 %v9363, %v9359
    %v9984 = vpack.c.b16 %v9364, %v9360
    %v9985 = vpack.c.b16 %v9365, %v9361
    %v9986 = vpack.c.b16 %v9370, %v9366
    %v9987 = vpack.c.b16 %v9371, %v9367
    %v9988 = vpack.c.b16 %v9372, %v9368
    %v9989 = vpack.c.b16 %v9373, %v9369
    %v9990 = vpack.c.b16 %v9378, %v9374
    %v9991 = vpack.c.b16 %v9379, %v9375
    %v9992 = vpack.c.b16 %v9380, %v9376
    %v9993 = vpack.c.b16 %v9381, %v9377
    %v9994 = vpack.c.b16 %v9386, %v9382
    %v9995 = vpack.c.b16 %v9387, %v9383
    %v9996 = vpack.c.b16 %v9388, %v9384
    %v9997 = vpack.c.b16 %v9389, %v9385
    %v9998 = vpack.c.b16 %v9394, %v9390
    %v9999 = vpack.c.b16 %v9395, %v9391
    %v10000 = vpack.c.b16 %v9396, %v9392
    %v10001 = vpack.c.b16 %v9397, %v9393
    %v10002 = vpack.c.b16 %v9402, %v9398
    %v10003 = vpack.c.b16 %v9403, %v9399
    %v10004 = vpack.c.b16 %v9404, %v9400
    %v10005 = vpack.c.b16 %v9405, %v9401
    %v10006 = vpack.c.b16 %v9410, %v9406
    %v10007 = vpack.c.b16 %v9411, %v9407
    %v10008 = vpack.c.b16 %v9412, %v9408
    %v10009 = vpack.c.b16 %v9413, %v9409
    %v10010 = vpack.c.b16 %v9418, %v9414
    %v10011 = vpack.c.b16 %v9419, %v9415
    %v10012 = vpack.c.b16 %v9420, %v9416
    %v10013 = vpack.c.b16 %v9421, %v9417
    %v10014 = vpack.c.b16 %v9426, %v9422
    %v10015 = vpack.c.b16 %v9427, %v9423
    %v10016 = vpack.c.b16 %v9428, %v9424
    %v10017 = vpack.c.b16 %v9429, %v9425
    %v10018 = vpack.c.b16 %v9434, %v9430
    %v10019 = vpack.c.b16 %v9435, %v9431
    %v10020 = vpack.c.b16 %v9436, %v9432
    %v10021 = vpack.c.b16 %v9437, %v9433
    %v10022 = vpack.c.b16 %v9442, %v9438
    %v10023 = vpack.c.b16 %v9443, %v9439
    %v10024 = vpack.c.b16 %v9444, %v9440
    %v10025 = vpack.c.b16 %v9445, %v9441
    %v10026 = vpack.c.b16 %v9450, %v9446
    %v10027 = vpack.c.b16 %v9451, %v9447
    %v10028 = vpack.c.b16 %v9452, %v9448
    %v10029 = vpack.c.b16 %v9453, %v9449
    %v10030 = vpack.c.b16 %v9458, %v9454
    %v10031 = vpack.c.b16 %v9459, %v9455
    %v10032 = vpack.c.b16 %v9460, %v9456
    %v10033 = vpack.c.b16 %v9461, %v9457
    %v10034 = vpack.c.b16 %v9466, %v9462
    %v10035 = vpack.c.b16 %v9467, %v9463
    %v10036 = vpack.c.b16 %v9468, %v9464
    %v10037 = vpack.c.b16 %v9469, %v9465
    %v10038 = vpack.c.b16 %v9474, %v9470
    %v10039 = vpack.c.b16 %v9475, %v9471
    %v10040 = vpack.c.b16 %v9476, %v9472
    %v10041 = vpack.c.b16 %v9477, %v9473
    %v10042 = vpack.c.b16 %v9482, %v9478
    %v10043 = vpack.c.b16 %v9483, %v9479
    %v10044 = vpack.c.b16 %v9484, %v9480
    %v10045 = vpack.c.b16 %v9485, %v9481
    %v10046 = vpack.c.b16 %v9490, %v9486
    %v10047 = vpack.c.b16 %v9491, %v9487
    %v10048 = vpack.c.b16 %v9492, %v9488
    %v10049 = vpack.c.b16 %v9493, %v9489
    %v10050 = vpack.c.b16 %v9498, %v9494
    %v10051 = vpack.c.b16 %v9499, %v9495
    %v10052 = vpack.c.b16 %v9500, %v9496
    %v10053 = vpack.c.b16 %v9501, %v9497
    %v10054 = vpack.c.b16 %v9506, %v9502
    %v10055 = vpack.c.b16 %v9507, %v9503
    %v10056 = vpack.c.b16 %v9508, %v9504
    %v10057 = vpack.c.b16 %v9509, %v9505
    %v10058 = vpack.c.b16 %v9514, %v9510
    %v10059 = vpack.c.b16 %v9515, %v9511
    %v10060 = vpack.c.b16 %v9516, %v9512
    %v10061 = vpack.c.b16 %v9517, %v9513
    %v10062 = vpack.c.b16 %v9522, %v9518
    %v10063 = vpack.c.b16 %v9523, %v9519
    %v10064 = vpack.c.b16 %v9524, %v9520
    %v10065 = vpack.c.b16 %v9525, %v9521
    %v10066 = vpack.c.b16 %v9530, %v9526
    %v10067 = vpack.c.b16 %v9531, %v9527
    %v10068 = vpack.c.b16 %v9532, %v9528
    %v10069 = vpack.c.b16 %v9533, %v9529
    %v10070 = vpack.c.b16 %v9538, %v9534
    %v10071 = vpack.c.b16 %v9539, %v9535
    %v10072 = vpack.c.b16 %v9540, %v9536
    %v10073 = vpack.c.b16 %v9541, %v9537
    %v10074 = vpack.c.b16 %v9546, %v9542
    %v10075 = vpack.c.b16 %v9547, %v9543
    %v10076 = vpack.c.b16 %v9548, %v9544
    %v10077 = vpack.c.b16 %v9549, %v9545
    %v10078 = vpack.c.b16 %v9554, %v9550
    %v10079 = vpack.c.b16 %v9555, %v9551
    %v10080 = vpack.c.b16 %v9556, %v9552
    %v10081 = vpack.c.b16 %v9557, %v9553
    %v10082 = vpack.c.b16 %v9562, %v9558
    %v10083 = vpack.c.b16 %v9563, %v9559
    %v10084 = vpack.c.b16 %v9564, %v9560
    %v10085 = vpack.c.b16 %v9565, %v9561
    %v10086 = vpack.c.b16 %v9570, %v9566
    %v10087 = vpack.c.b16 %v9571, %v9567
    %v10088 = vpack.c.b16 %v9572, %v9568
    %v10089 = vpack.c.b16 %v9573, %v9569
    %v10090 = vpack.c.b16 %v9578, %v9574
    %v10091 = vpack.c.b16 %v9579, %v9575
    %v10092 = vpack.c.b16 %v9580, %v9576
    %v10093 = vpack.c.b16 %v9581, %v9577
    %v10094 = vpack.c.b16 %v9586, %v9582
    %v10095 = vpack.c.b16 %v9587, %v9583
    %v10096 = vpack.c.b16 %v9588, %v9584
    %v10097 = vpack.c.b16 %v9589, %v9585
    %v10098 = vpack.c.b16 %v9594, %v9590
    %v10099 = vpack.c.b16 %v9595, %v9591
    %v10100 = vpack.c.b16 %v9596, %v9592
    %v10101 = vpack.c.b16 %v9597, %v9593
    %v10102 = vpack.c.b16 %v9602, %v9598
    %v10103 = vpack.c.b16 %v9603, %v9599
    %v10104 = vpack.c.b16 %v9604, %v9600
    %v10105 = vpack.c.b16 %v9605, %v9601
    %v10106 = vpack.c.b16 %v9610, %v9606
    %v10107 = vpack.c.b16 %v9611, %v9607
    %v10108 = vpack.c.b16 %v9612, %v9608
    %v10109 = vpack.c.b16 %v9613, %v9609
    %v10110 = vpack.c.b16 %v9618, %v9614
    %v10111 = vpack.c.b16 %v9619, %v9615
    %v10112 = vpack.c.b16 %v9620, %v9616
    %v10113 = vpack.c.b16 %v9621, %v9617
    %v10114 = vpack.c.b16 %v9626, %v9622
    %v10115 = vpack.c.b16 %v9627, %v9623
    %v10116 = vpack.c.b16 %v9628, %v9624
    %v10117 = vpack.c.b16 %v9629, %v9625
    %v10118 = vpack.c.b16 %v9634, %v9630
    %v10119 = vpack.c.b16 %v9635, %v9631
    %v10120 = vpack.c.b16 %v9636, %v9632
    %v10121 = vpack.c.b16 %v9637, %v9633
    %v10122 = vpack.c.b16 %v9642, %v9638
    %v10123 = vpack.c.b16 %v9643, %v9639
    %v10124 = vpack.c.b16 %v9644, %v9640
    %v10125 = vpack.c.b16 %v9645, %v9641
    %v10126 = vpack.c.b16 %v9650, %v9646
    %v10127 = vpack.c.b16 %v9651, %v9647
    %v10128 = vpack.c.b16 %v9652, %v9648
    %v10129 = vpack.c.b16 %v9653, %v9649
    %v10130 = vpack.c.b16 %v9658, %v9654
    %v10131 = vpack.c.b16 %v9659, %v9655
    %v10132 = vpack.c.b16 %v9660, %v9656
    %v10133 = vpack.c.b16 %v9661, %v9657
    %v10134 = vpack.c.b16 %v9666, %v9662
    %v10135 = vpack.c.b16 %v9667, %v9663
    %v10136 = vpack.c.b16 %v9668, %v9664
    %v10137 = vpack.c.b16 %v9669, %v9665
    %v10138 = vpack.c.b16 %v9674, %v9670
    %v10139 = vpack.c.b16 %v9675, %v9671
    %v10140 = vpack.c.b16 %v9676, %v9672
    %v10141 = vpack.c.b16 %v9677, %v9673
    %v10142 = vpack.c.b16 %v9682, %v9678
    %v10143 = vpack.c.b16 %v9683, %v9679
    %v10144 = vpack.c.b16 %v9684, %v9680
    %v10145 = vpack.c.b16 %v9685, %v9681
    %v10146 = vpack.c.b16 %v9690, %v9686
    %v10147 = vpack.c.b16 %v9691, %v9687
    %v10148 = vpack.c.b16 %v9692, %v9688
    %v10149 = vpack.c.b16 %v9693, %v9689
    %v10150 = vpack.c.b16 %v9698, %v9694
    %v10151 = vpack.c.b16 %v9699, %v9695
    %v10152 = vpack.c.b16 %v9700, %v9696
    %v10153 = vpack.c.b16 %v9701, %v9697
    %v10154 = vpack.c.b16 %v9706, %v9702
    %v10155 = vpack.c.b16 %v9707, %v9703
    %v10156 = vpack.c.b16 %v9708, %v9704
    %v10157 = vpack.c.b16 %v9709, %v9705
    %v10158 = vpack.c.b16 %v9714, %v9710
    %v10159 = vpack.c.b16 %v9715, %v9711
    %v10160 = vpack.c.b16 %v9716, %v9712
    %v10161 = vpack.c.b16 %v9717, %v9713
    %v10162 = vpack.c.b16 %v9722, %v9718
    %v10163 = vpack.c.b16 %v9723, %v9719
    %v10164 = vpack.c.b16 %v9724, %v9720
    %v10165 = vpack.c.b16 %v9725, %v9721
    %v10166 = vpack.c.b16 %v9730, %v9726
    %v10167 = vpack.c.b16 %v9731, %v9727
    %v10168 = vpack.c.b16 %v9732, %v9728
    %v10169 = vpack.c.b16 %v9733, %v9729
    %v10170 = vpack.c.b16 %v9738, %v9734
    %v10171 = vpack.c.b16 %v9739, %v9735
    %v10172 = vpack.c.b16 %v9740, %v9736
    %v10173 = vpack.c.b16 %v9741, %v9737
    %v10174 = vpack.c.b16 %v9746, %v9742
    %v10175 = vpack.c.b16 %v9747, %v9743
    %v10176 = vpack.c.b16 %v9748, %v9744
    %v10177 = vpack.c.b16 %v9749, %v9745
    %v10178 = vpack.c.b16 %v9754, %v9750
    %v10179 = vpack.c.b16 %v9755, %v9751
    %v10180 = vpack.c.b16 %v9756, %v9752
    %v10181 = vpack.c.b16 %v9757, %v9753
    %v10182 = vpack.c.b16 %v9762, %v9758
    %v10183 = vpack.c.b16 %v9763, %v9759
    %v10184 = vpack.c.b16 %v9764, %v9760
    %v10185 = vpack.c.b16 %v9765, %v9761
    %v10186 = vpack.c.b16 %v9770, %v9766
    %v10187 = vpack.c.b16 %v9771, %v9767
    %v10188 = vpack.c.b16 %v9772, %v9768
    %v10189 = vpack.c.b16 %v9773, %v9769
    %v10190 = vpack.c.b16 %v9778, %v9774
    %v10191 = vpack.c.b16 %v9779, %v9775
    %v10192 = vpack.c.b16 %v9780, %v9776
    %v10193 = vpack.c.b16 %v9781, %v9777
    %v10194 = vpack.c.b16 %v9786, %v9782
    %v10195 = vpack.c.b16 %v9787, %v9783
    %v10196 = vpack.c.b16 %v9788, %v9784
    %v10197 = vpack.c.b16 %v9789, %v9785
    %v10198 = vpack.c.b16 %v9794, %v9790
    %v10199 = vpack.c.b16 %v9795, %v9791
    %v10200 = vpack.c.b16 %v9796, %v9792
    %v10201 = vpack.c.b16 %v9797, %v9793
    %v10202 = vpack.c.b16 %v9802, %v9798
    %v10203 = vpack.c.b16 %v9803, %v9799
    %v10204 = vpack.c.b16 %v9804, %v9800
    %v10205 = vpack.c.b16 %v9805, %v9801
    %v10206 = vpack.c.b16 %v9810, %v9806
    %v10207 = vpack.c.b16 %v9811, %v9807
    %v10208 = vpack.c.b16 %v9812, %v9808
    %v10209 = vpack.c.b16 %v9813, %v9809
    %v10210 = vpack.c.b16 %v9818, %v9814
    %v10211 = vpack.c.b16 %v9819, %v9815
    %v10212 = vpack.c.b16 %v9820, %v9816
    %v10213 = vpack.c.b16 %v9821, %v9817
    %v10214 = vpack.c.b16 %v9826, %v9822
    %v10215 = vpack.c.b16 %v9827, %v9823
    %v10216 = vpack.c.b16 %v9828, %v9824
    %v10217 = vpack.c.b16 %v9829, %v9825
    %v10218 = vpack.c.b16 %v9834, %v9830
    %v10219 = vpack.c.b16 %v9835, %v9831
    %v10220 = vpack.c.b16 %v9836, %v9832
    %v10221 = vpack.c.b16 %v9837, %v9833
    %10606 = vmatprep.subr.bf16.mxu0 %v9839
    %10607 = vmatpush1.bf16.msra.mxu0 %v9838
    %10608 = vmatprep.subr.bf16.mxu0 %v9843
    %10609 = vmatpush1.bf16.msra.mxu0 %v9842
    %10610 = vmatprep.subr.bf16.mxu0 %v9847
    %10611 = vmatpush1.bf16.msra.mxu0 %v9846
    %10612 = vmatprep.subr.bf16.mxu0 %v9851
    %10613 = vmatpush1.bf16.msra.mxu0 %v9850
    %10614 = vmatprep.subr.bf16.mxu0 %v9855
    %10615 = vmatpush1.bf16.msra.mxu0 %v9854
    %10616 = vmatprep.subr.bf16.mxu0 %v9859
    %10617 = vmatpush1.bf16.msra.mxu0 %v9858
    %10618 = vmatprep.subr.bf16.mxu0 %v9863
    %10619 = vmatpush1.bf16.msra.mxu0 %v9862
    %10620 = vmatprep.subr.bf16.mxu0 %v9867
    %10621 = vmatpush1.bf16.msra.mxu0 %v9866
    %10622 = vmatprep.subr.bf16.mxu0 %v9871
    %10623 = vmatpush1.bf16.msra.mxu0 %v9870
    %10624 = vmatprep.subr.bf16.mxu0 %v9875
    %10625 = vmatpush1.bf16.msra.mxu0 %v9874
    %10626 = vmatprep.subr.bf16.mxu0 %v9879
    %10627 = vmatpush1.bf16.msra.mxu0 %v9878
    %10628 = vmatprep.subr.bf16.mxu0 %v9883
    %10629 = vmatpush1.bf16.msra.mxu0 %v9882
    %10630 = vmatprep.subr.bf16.mxu0 %v9887
    %10631 = vmatpush1.bf16.msra.mxu0 %v9886
    %10632 = vmatprep.subr.bf16.mxu0 %v9891
    %10633 = vmatpush1.bf16.msra.mxu0 %v9890
    %10634 = vmatprep.subr.bf16.mxu0 %v9895
    %10635 = vmatpush1.bf16.msra.mxu0 %v9894
    %10636 = vmatprep.subr.bf16.mxu0 %v9899
    %10637 = vmatpush1.bf16.msra.mxu0 %v9898
    %10638 = vmatprep.mubr.bf16.mxu0 %v396
    %10639 = vmatmul.mubr.bf16.gmra.mrb[0].mxu0 %v395
    %v10640 = vpop.f32.mrb[0].mxu0
    %v10641 = vadd.f32 %v8669, %v10640
    %v10642 = vpop.f32.mrb[0].mxu0
    %v10643 = vadd.f32 %v8673, %v10642
    %v10644 = vpop.f32.mrb[0].mxu0
    %v10645 = vadd.f32 %v8669, %v10644
    %v10646 = vpop.f32.mrb[0].mxu0
    %v10647 = vadd.f32 %v8673, %v10646
    %10648 = vdwg.mxu0
    %10649 = vmatprep.subr.bf16.mxu0 %v9903
    %10650 = vmatpush1.bf16.msra.mxu0 %v9902
    %10651 = vmatprep.subr.bf16.mxu0 %v9907
    %10652 = vmatpush1.bf16.msra.mxu0 %v9906
    %10653 = vmatprep.subr.bf16.mxu0 %v9911
    %10654 = vmatpush1.bf16.msra.mxu0 %v9910
    %10655 = vmatprep.subr.bf16.mxu0 %v9915
    %10656 = vmatpush1.bf16.msra.mxu0 %v9914
    %10657 = vmatprep.subr.bf16.mxu0 %v9919
    %10658 = vmatpush1.bf16.msra.mxu0 %v9918
    %10659 = vmatprep.subr.bf16.mxu0 %v9923
    %10660 = vmatpush1.bf16.msra.mxu0 %v9922
    %10661 = vmatprep.subr.bf16.mxu0 %v9927
    %10662 = vmatpush1.bf16.msra.mxu0 %v9926
    %10663 = vmatprep.subr.bf16.mxu0 %v9931
    %10664 = vmatpush1.bf16.msra.mxu0 %v9930
    %10665 = vmatprep.subr.bf16.mxu0 %v9935
    %10666 = vmatpush1.bf16.msra.mxu0 %v9934
    %10667 = vmatprep.subr.bf16.mxu0 %v9939
    %10668 = vmatpush1.bf16.msra.mxu0 %v9938
    %10669 = vmatprep.subr.bf16.mxu0 %v9943
    %10670 = vmatpush1.bf16.msra.mxu0 %v9942
    %10671 = vmatprep.subr.bf16.mxu0 %v9947
    %10672 = vmatpush1.bf16.msra.mxu0 %v9946
    %10673 = vmatprep.subr.bf16.mxu0 %v9951
    %10674 = vmatpush1.bf16.msra.mxu0 %v9950
    %10675 = vmatprep.subr.bf16.mxu0 %v9955
    %10676 = vmatpush1.bf16.msra.mxu0 %v9954
    %10677 = vmatprep.subr.bf16.mxu0 %v9959
    %10678 = vmatpush1.bf16.msra.mxu0 %v9958
    %10679 = vmatprep.subr.bf16.mxu0 %v9963
    %10680 = vmatpush1.bf16.msra.mxu0 %v9962
    %10681 = vmatprep.mubr.bf16.mxu0 %v398
    %10682 = vmatmul.mubr.bf16.gmra.mrb[0].mxu0 %v397
    %v10683 = vpop.f32.mrb[0].mxu0
    %v10684 = vadd.f32 %v10641, %v10683
    %v10685 = vpop.f32.mrb[0].mxu0
    %v10686 = vadd.f32 %v10643, %v10685
    %v10687 = vpop.f32.mrb[0].mxu0
    %v10688 = vadd.f32 %v10645, %v10687
    %v10689 = vpop.f32.mrb[0].mxu0
    %v10690 = vadd.f32 %v10647, %v10689
    %10691 = vdwg.mxu0
    %10692 = vmatprep.subr.bf16.mxu0 %v9967
    %10693 = vmatpush1.bf16.msra.mxu0 %v9966
    %10694 = vmatprep.subr.bf16.mxu0 %v9971
    %10695 = vmatpush1.bf16.msra.mxu0 %v9970
    %10696 = vmatprep.subr.bf16.mxu0 %v9975
    %10697 = vmatpush1.bf16.msra.mxu0 %v9974
    %10698 = vmatprep.subr.bf16.mxu0 %v9979
    %10699 = vmatpush1.bf16.msra.mxu0 %v9978
    %10700 = vmatprep.subr.bf16.mxu0 %v9983
    %10701 = vmatpush1.bf16.msra.mxu0 %v9982
    %10702 = vmatprep.subr.bf16.mxu0 %v9987
    %10703 = vmatpush1.bf16.msra.mxu0 %v9986
    %10704 = vmatprep.subr.bf16.mxu0 %v9991
    %10705 = vmatpush1.bf16.msra.mxu0 %v9990
    %10706 = vmatprep.subr.bf16.mxu0 %v9995
    %10707 = vmatpush1.bf16.msra.mxu0 %v9994
    %10708 = vmatprep.subr.bf16.mxu0 %v9999
    %10709 = vmatpush1.bf16.msra.mxu0 %v9998
    %10710 = vmatprep.subr.bf16.mxu0 %v10003
    %10711 = vmatpush1.bf16.msra.mxu0 %v10002
    %10712 = vmatprep.subr.bf16.mxu0 %v10007
    %10713 = vmatpush1.bf16.msra.mxu0 %v10006
    %10714 = vmatprep.subr.bf16.mxu0 %v10011
    %10715 = vmatpush1.bf16.msra.mxu0 %v10010
    %10716 = vmatprep.subr.bf16.mxu0 %v10015
    %10717 = vmatpush1.bf16.msra.mxu0 %v10014
    %10718 = vmatprep.subr.bf16.mxu0 %v10019
    %10719 = vmatpush1.bf16.msra.mxu0 %v10018
    %10720 = vmatprep.subr.bf16.mxu0 %v10023
    %10721 = vmatpush1.bf16.msra.mxu0 %v10022
    %10722 = vmatprep.subr.bf16.mxu0 %v10027
    %10723 = vmatpush1.bf16.msra.mxu0 %v10026
    %10724 = vmatprep.mubr.bf16.mxu0 %v8277
    %10725 = vmatmul.mubr.bf16.gmra.mrb[0].mxu0 %v8276
    %v10726 = vpop.f32.mrb[0].mxu0
    %v10727 = vadd.f32 %v10684, %v10726
    %v10728 = vpop.f32.mrb[0].mxu0
    %v10729 = vadd.f32 %v10686, %v10728
    %v10730 = vpop.f32.mrb[0].mxu0
    %v10731 = vadd.f32 %v10688, %v10730
    %v10732 = vpop.f32.mrb[0].mxu0
    %v10733 = vadd.f32 %v10690, %v10732
    %10734 = vdwg.mxu0
    %10735 = vmatprep.subr.bf16.mxu0 %v10031
    %10736 = vmatpush1.bf16.msra.mxu0 %v10030
    %10737 = vmatprep.subr.bf16.mxu0 %v10035
    %10738 = vmatpush1.bf16.msra.mxu0 %v10034
    %10739 = vmatprep.subr.bf16.mxu0 %v10039
    %10740 = vmatpush1.bf16.msra.mxu0 %v10038
    %10741 = vmatprep.subr.bf16.mxu0 %v10043
    %10742 = vmatpush1.bf16.msra.mxu0 %v10042
    %10743 = vmatprep.subr.bf16.mxu0 %v10047
    %10744 = vmatpush1.bf16.msra.mxu0 %v10046
    %10745 = vmatprep.subr.bf16.mxu0 %v10051
    %10746 = vmatpush1.bf16.msra.mxu0 %v10050
    %10747 = vmatprep.subr.bf16.mxu0 %v10055
    %10748 = vmatpush1.bf16.msra.mxu0 %v10054
    %10749 = vmatprep.subr.bf16.mxu0 %v10059
    %10750 = vmatpush1.bf16.msra.mxu0 %v10058
    %10751 = vmatprep.subr.bf16.mxu0 %v10063
    %10752 = vmatpush1.bf16.msra.mxu0 %v10062
    %10753 = vmatprep.subr.bf16.mxu0 %v10067
    %10754 = vmatpush1.bf16.msra.mxu0 %v10066
    %10755 = vmatprep.subr.bf16.mxu0 %v10071
    %10756 = vmatpush1.bf16.msra.mxu0 %v10070
    %10757 = vmatprep.subr.bf16.mxu0 %v10075
    %10758 = vmatpush1.bf16.msra.mxu0 %v10074
    %10759 = vmatprep.subr.bf16.mxu0 %v10079
    %10760 = vmatpush1.bf16.msra.mxu0 %v10078
    %10761 = vmatprep.subr.bf16.mxu0 %v10083
    %10762 = vmatpush1.bf16.msra.mxu0 %v10082
    %10763 = vmatprep.subr.bf16.mxu0 %v10087
    %10764 = vmatpush1.bf16.msra.mxu0 %v10086
    %10765 = vmatprep.subr.bf16.mxu0 %v10091
    %10766 = vmatpush1.bf16.msra.mxu0 %v10090
    %10767 = vmatprep.mubr.bf16.mxu0 %v8279
    %10768 = vmatmul.mubr.bf16.gmra.mrb[0].mxu0 %v8278
    %v10769 = vpop.f32.mrb[0].mxu0
    %v10770 = vadd.f32 %v10727, %v10769
    %v10771 = vpop.f32.mrb[0].mxu0
    %v10772 = vadd.f32 %v10729, %v10771
    %v10773 = vpop.f32.mrb[0].mxu0
    %v10774 = vadd.f32 %v10731, %v10773
    %v10775 = vpop.f32.mrb[0].mxu0
    %v10776 = vadd.f32 %v10733, %v10775
    %10777 = vdwg.mxu0
    %10778 = vmatprep.subr.bf16.mxu0 %v10095
    %10779 = vmatpush1.bf16.msra.mxu0 %v10094
    %10780 = vmatprep.subr.bf16.mxu0 %v10099
    %10781 = vmatpush1.bf16.msra.mxu0 %v10098
    %10782 = vmatprep.subr.bf16.mxu0 %v10103
    %10783 = vmatpush1.bf16.msra.mxu0 %v10102
    %10784 = vmatprep.subr.bf16.mxu0 %v10107
    %10785 = vmatpush1.bf16.msra.mxu0 %v10106
    %10786 = vmatprep.subr.bf16.mxu0 %v10111
    %10787 = vmatpush1.bf16.msra.mxu0 %v10110
    %10788 = vmatprep.subr.bf16.mxu0 %v10115
    %10789 = vmatpush1.bf16.msra.mxu0 %v10114
    %10790 = vmatprep.subr.bf16.mxu0 %v10119
    %10791 = vmatpush1.bf16.msra.mxu0 %v10118
    %10792 = vmatprep.subr.bf16.mxu0 %v10123
    %10793 = vmatpush1.bf16.msra.mxu0 %v10122
    %10794 = vmatprep.subr.bf16.mxu0 %v10127
    %10795 = vmatpush1.bf16.msra.mxu0 %v10126
    %10796 = vmatprep.subr.bf16.mxu0 %v10131
    %10797 = vmatpush1.bf16.msra.mxu0 %v10130
    %10798 = vmatprep.subr.bf16.mxu0 %v10135
    %10799 = vmatpush1.bf16.msra.mxu0 %v10134
    %10800 = vmatprep.subr.bf16.mxu0 %v10139
    %10801 = vmatpush1.bf16.msra.mxu0 %v10138
    %10802 = vmatprep.subr.bf16.mxu0 %v10143
    %10803 = vmatpush1.bf16.msra.mxu0 %v10142
    %10804 = vmatprep.subr.bf16.mxu0 %v10147
    %10805 = vmatpush1.bf16.msra.mxu0 %v10146
    %10806 = vmatprep.subr.bf16.mxu0 %v10151
    %10807 = vmatpush1.bf16.msra.mxu0 %v10150
    %10808 = vmatprep.subr.bf16.mxu0 %v10155
    %10809 = vmatpush1.bf16.msra.mxu0 %v10154
    %10810 = vmatprep.mubr.bf16.mxu0 %v416
    %10811 = vmatmul.mubr.bf16.gmra.mrb[0].mxu0 %v415
    %v10812 = vpop.f32.mrb[0].mxu0
    %v10813 = vadd.f32 %v10770, %v10812
    %v10814 = vpop.f32.mrb[0].mxu0
    %v10815 = vadd.f32 %v10772, %v10814
    %v10816 = vpop.f32.mrb[0].mxu0
    %v10817 = vadd.f32 %v10774, %v10816
    %v10818 = vpop.f32.mrb[0].mxu0
    %v10819 = vadd.f32 %v10776, %v10818
    %10820 = vdwg.mxu0
    %10821 = vmatprep.subr.bf16.mxu0 %v10159
    %10822 = vmatpush1.bf16.msra.mxu0 %v10158
    %10823 = vmatprep.subr.bf16.mxu0 %v10163
    %10824 = vmatpush1.bf16.msra.mxu0 %v10162
    %10825 = vmatprep.subr.bf16.mxu0 %v10167
    %10826 = vmatpush1.bf16.msra.mxu0 %v10166
    %10827 = vmatprep.subr.bf16.mxu0 %v10171
    %10828 = vmatpush1.bf16.msra.mxu0 %v10170
    %10829 = vmatprep.subr.bf16.mxu0 %v10175
    %10830 = vmatpush1.bf16.msra.mxu0 %v10174
    %10831 = vmatprep.subr.bf16.mxu0 %v10179
    %10832 = vmatpush1.bf16.msra.mxu0 %v10178
    %10833 = vmatprep.subr.bf16.mxu0 %v10183
    %10834 = vmatpush1.bf16.msra.mxu0 %v10182
    %10835 = vmatprep.subr.bf16.mxu0 %v10187
    %10836 = vmatpush1.bf16.msra.mxu0 %v10186
    %10837 = vmatprep.subr.bf16.mxu0 %v10191
    %10838 = vmatpush1.bf16.msra.mxu0 %v10190
    %10839 = vmatprep.subr.bf16.mxu0 %v10195
    %10840 = vmatpush1.bf16.msra.mxu0 %v10194
    %10841 = vmatprep.subr.bf16.mxu0 %v10199
    %10842 = vmatpush1.bf16.msra.mxu0 %v10198
    %10843 = vmatprep.subr.bf16.mxu0 %v10203
    %10844 = vmatpush1.bf16.msra.mxu0 %v10202
    %10845 = vmatprep.subr.bf16.mxu0 %v10207
    %10846 = vmatpush1.bf16.msra.mxu0 %v10206
    %10847 = vmatprep.subr.bf16.mxu0 %v10211
    %10848 = vmatpush1.bf16.msra.mxu0 %v10210
    %10849 = vmatprep.subr.bf16.mxu0 %v10215
    %10850 = vmatpush1.bf16.msra.mxu0 %v10214
    %10851 = vmatprep.subr.bf16.mxu0 %v10219
    %10852 = vmatpush1.bf16.msra.mxu0 %v10218
    %10853 = vmatprep.mubr.bf16.mxu0 %v418
    %10854 = vmatmul.mubr.bf16.gmra.mrb[0].mxu0 %v417
    %v10855 = vpop.f32.mrb[0].mxu0
    %v10856 = vadd.f32 %v10813, %v10855
    %v10857 = vpop.f32.mrb[0].mxu0
    %v10858 = vadd.f32 %v10815, %v10857
    %v10859 = vpop.f32.mrb[0].mxu0
    %v10860 = vadd.f32 %v10817, %v10859
    %v10861 = vpop.f32.mrb[0].mxu0
    %v10862 = vadd.f32 %v10819, %v10861
    %10863 = vdwg.mxu0
    %10864 = vmatprep.subr.bf16.mxu0 %v9841
    %10865 = vmatpush1.bf16.msra.mxu0 %v9840
    %10866 = vmatprep.subr.bf16.mxu0 %v9845
    %10867 = vmatpush1.bf16.msra.mxu0 %v9844
    %10868 = vmatprep.subr.bf16.mxu0 %v9849
    %10869 = vmatpush1.bf16.msra.mxu0 %v9848
    %10870 = vmatprep.subr.bf16.mxu0 %v9853
    %10871 = vmatpush1.bf16.msra.mxu0 %v9852
    %10872 = vmatprep.subr.bf16.mxu0 %v9857
    %10873 = vmatpush1.bf16.msra.mxu0 %v9856
    %10874 = vmatprep.subr.bf16.mxu0 %v9861
    %10875 = vmatpush1.bf16.msra.mxu0 %v9860
    %10876 = vmatprep.subr.bf16.mxu0 %v9865
    %10877 = vmatpush1.bf16.msra.mxu0 %v9864
    %10878 = vmatprep.subr.bf16.mxu0 %v9869
    %10879 = vmatpush1.bf16.msra.mxu0 %v9868
    %10880 = vmatprep.subr.bf16.mxu0 %v9873
    %10881 = vmatpush1.bf16.msra.mxu0 %v9872
    %10882 = vmatprep.subr.bf16.mxu0 %v9877
    %10883 = vmatpush1.bf16.msra.mxu0 %v9876
    %10884 = vmatprep.subr.bf16.mxu0 %v9881
    %10885 = vmatpush1.bf16.msra.mxu0 %v9880
    %10886 = vmatprep.subr.bf16.mxu0 %v9885
    %10887 = vmatpush1.bf16.msra.mxu0 %v9884
    %10888 = vmatprep.subr.bf16.mxu0 %v9889
    %10889 = vmatpush1.bf16.msra.mxu0 %v9888
    %10890 = vmatprep.subr.bf16.mxu0 %v9893
    %10891 = vmatpush1.bf16.msra.mxu0 %v9892
    %10892 = vmatprep.subr.bf16.mxu0 %v9897
    %10893 = vmatpush1.bf16.msra.mxu0 %v9896
    %10894 = vmatprep.subr.bf16.mxu0 %v9901
    %10895 = vmatpush1.bf16.msra.mxu0 %v9900
    %10896 = vmatprep.mubr.bf16.mxu0 %v396
    %10897 = vmatmul.mubr.bf16.gmra.mrb[0].mxu0 %v395
    %v10898 = vpop.f32.mrb[0].mxu0
    %v10899 = vadd.f32 %v8677, %v10898
    %v10900 = vpop.f32.mrb[0].mxu0
    %v10901 = vadd.f32 %v8681, %v10900
    %v10902 = vpop.f32.mrb[0].mxu0
    %v10903 = vadd.f32 %v8677, %v10902
    %v10904 = vpop.f32.mrb[0].mxu0
    %v10905 = vadd.f32 %v8681, %v10904
    %10906 = vdwg.mxu0
    %10907 = vmatprep.subr.bf16.mxu0 %v9905
    %10908 = vmatpush1.bf16.msra.mxu0 %v9904
    %10909 = vmatprep.subr.bf16.mxu0 %v9909
    %10910 = vmatpush1.bf16.msra.mxu0 %v9908
    %10911 = vmatprep.subr.bf16.mxu0 %v9913
    %10912 = vmatpush1.bf16.msra.mxu0 %v9912
    %10913 = vmatprep.subr.bf16.mxu0 %v9917
    %10914 = vmatpush1.bf16.msra.mxu0 %v9916
    %10915 = vmatprep.subr.bf16.mxu0 %v9921
    %10916 = vmatpush1.bf16.msra.mxu0 %v9920
    %10917 = vmatprep.subr.bf16.mxu0 %v9925
    %10918 = vmatpush1.bf16.msra.mxu0 %v9924
    %10919 = vmatprep.subr.bf16.mxu0 %v9929
    %10920 = vmatpush1.bf16.msra.mxu0 %v9928
    %10921 = vmatprep.subr.bf16.mxu0 %v9933
    %10922 = vmatpush1.bf16.msra.mxu0 %v9932
    %10923 = vmatprep.subr.bf16.mxu0 %v9937
    %10924 = vmatpush1.bf16.msra.mxu0 %v9936
    %10925 = vmatprep.subr.bf16.mxu0 %v9941
    %10926 = vmatpush1.bf16.msra.mxu0 %v9940
    %10927 = vmatprep.subr.bf16.mxu0 %v9945
    %10928 = vmatpush1.bf16.msra.mxu0 %v9944
    %10929 = vmatprep.subr.bf16.mxu0 %v9949
    %10930 = vmatpush1.bf16.msra.mxu0 %v9948
    %10931 = vmatprep.subr.bf16.mxu0 %v9953
    %10932 = vmatpush1.bf16.msra.mxu0 %v9952
    %10933 = vmatprep.subr.bf16.mxu0 %v9957
    %10934 = vmatpush1.bf16.msra.mxu0 %v9956
    %10935 = vmatprep.subr.bf16.mxu0 %v9961
    %10936 = vmatpush1.bf16.msra.mxu0 %v9960
    %10937 = vmatprep.subr.bf16.mxu0 %v9965
    %10938 = vmatpush1.bf16.msra.mxu0 %v9964
    %10939 = vmatprep.mubr.bf16.mxu0 %v398
    %10940 = vmatmul.mubr.bf16.gmra.mrb[0].mxu0 %v397
    %v10941 = vpop.f32.mrb[0].mxu0
    %v10942 = vadd.f32 %v10899, %v10941
    %v10943 = vpop.f32.mrb[0].mxu0
    %v10944 = vadd.f32 %v10901, %v10943
    %v10945 = vpop.f32.mrb[0].mxu0
    %v10946 = vadd.f32 %v10903, %v10945
    %v10947 = vpop.f32.mrb[0].mxu0
    %v10948 = vadd.f32 %v10905, %v10947
    %10949 = vdwg.mxu0
    %10950 = vmatprep.subr.bf16.mxu0 %v9969
    %10951 = vmatpush1.bf16.msra.mxu0 %v9968
    %10952 = vmatprep.subr.bf16.mxu0 %v9973
    %10953 = vmatpush1.bf16.msra.mxu0 %v9972
    %10954 = vmatprep.subr.bf16.mxu0 %v9977
    %10955 = vmatpush1.bf16.msra.mxu0 %v9976
    %10956 = vmatprep.subr.bf16.mxu0 %v9981
    %10957 = vmatpush1.bf16.msra.mxu0 %v9980
    %10958 = vmatprep.subr.bf16.mxu0 %v9985
    %10959 = vmatpush1.bf16.msra.mxu0 %v9984
    %10960 = vmatprep.subr.bf16.mxu0 %v9989
    %10961 = vmatpush1.bf16.msra.mxu0 %v9988
    %10962 = vmatprep.subr.bf16.mxu0 %v9993
    %10963 = vmatpush1.bf16.msra.mxu0 %v9992
    %10964 = vmatprep.subr.bf16.mxu0 %v9997
    %10965 = vmatpush1.bf16.msra.mxu0 %v9996
    %10966 = vmatprep.subr.bf16.mxu0 %v10001
    %10967 = vmatpush1.bf16.msra.mxu0 %v10000
    %10968 = vmatprep.subr.bf16.mxu0 %v10005
    %10969 = vmatpush1.bf16.msra.mxu0 %v10004
    %10970 = vmatprep.subr.bf16.mxu0 %v10009
    %10971 = vmatpush1.bf16.msra.mxu0 %v10008
    %10972 = vmatprep.subr.bf16.mxu0 %v10013
    %10973 = vmatpush1.bf16.msra.mxu0 %v10012
    %10974 = vmatprep.subr.bf16.mxu0 %v10017
    %10975 = vmatpush1.bf16.msra.mxu0 %v10016
    %10976 = vmatprep.subr.bf16.mxu0 %v10021
    %10977 = vmatpush1.bf16.msra.mxu0 %v10020
    %10978 = vmatprep.subr.bf16.mxu0 %v10025
    %10979 = vmatpush1.bf16.msra.mxu0 %v10024
    %10980 = vmatprep.subr.bf16.mxu0 %v10029
    %10981 = vmatpush1.bf16.msra.mxu0 %v10028
    %10982 = vmatprep.mubr.bf16.mxu0 %v8277
    %10983 = vmatmul.mubr.bf16.gmra.mrb[0].mxu0 %v8276
    %v10984 = vpop.f32.mrb[0].mxu0
    %v10985 = vadd.f32 %v10942, %v10984
    %v10986 = vpop.f32.mrb[0].mxu0
    %v10987 = vadd.f32 %v10944, %v10986
    %v10988 = vpop.f32.mrb[0].mxu0
    %v10989 = vadd.f32 %v10946, %v10988
    %v10990 = vpop.f32.mrb[0].mxu0
    %v10991 = vadd.f32 %v10948, %v10990
    %10992 = vdwg.mxu0
    %10993 = vmatprep.subr.bf16.mxu0 %v10033
    %10994 = vmatpush1.bf16.msra.mxu0 %v10032
    %10995 = vmatprep.subr.bf16.mxu0 %v10037
    %10996 = vmatpush1.bf16.msra.mxu0 %v10036
    %10997 = vmatprep.subr.bf16.mxu0 %v10041
    %10998 = vmatpush1.bf16.msra.mxu0 %v10040
    %10999 = vmatprep.subr.bf16.mxu0 %v10045
    %11000 = vmatpush1.bf16.msra.mxu0 %v10044
    %11001 = vmatprep.subr.bf16.mxu0 %v10049
    %11002 = vmatpush1.bf16.msra.mxu0 %v10048
    %11003 = vmatprep.subr.bf16.mxu0 %v10053
    %11004 = vmatpush1.bf16.msra.mxu0 %v10052
    %11005 = vmatprep.subr.bf16.mxu0 %v10057
    %11006 = vmatpush1.bf16.msra.mxu0 %v10056
    %11007 = vmatprep.subr.bf16.mxu0 %v10061
    %11008 = vmatpush1.bf16.msra.mxu0 %v10060
    %11009 = vmatprep.subr.bf16.mxu0 %v10065
    %11010 = vmatpush1.bf16.msra.mxu0 %v10064
    %11011 = vmatprep.subr.bf16.mxu0 %v10069
    %11012 = vmatpush1.bf16.msra.mxu0 %v10068
    %11013 = vmatprep.subr.bf16.mxu0 %v10073
    %11014 = vmatpush1.bf16.msra.mxu0 %v10072
    %11015 = vmatprep.subr.bf16.mxu0 %v10077
    %11016 = vmatpush1.bf16.msra.mxu0 %v10076
    %11017 = vmatprep.subr.bf16.mxu0 %v10081
    %11018 = vmatpush1.bf16.msra.mxu0 %v10080
    %11019 = vmatprep.subr.bf16.mxu0 %v10085
    %11020 = vmatpush1.bf16.msra.mxu0 %v10084
    %11021 = vmatprep.subr.bf16.mxu0 %v10089
    %11022 = vmatpush1.bf16.msra.mxu0 %v10088
    %11023 = vmatprep.subr.bf16.mxu0 %v10093
    %11024 = vmatpush1.bf16.msra.mxu0 %v10092
    %11025 = vmatprep.mubr.bf16.mxu0 %v8279
    %11026 = vmatmul.mubr.bf16.gmra.mrb[0].mxu0 %v8278
    %v11027 = vpop.f32.mrb[0].mxu0
    %v11028 = vadd.f32 %v10985, %v11027
    %v11029 = vpop.f32.mrb[0].mxu0
    %v11030 = vadd.f32 %v10987, %v11029
    %v11031 = vpop.f32.mrb[0].mxu0
    %v11032 = vadd.f32 %v10989, %v11031
    %v11033 = vpop.f32.mrb[0].mxu0
    %v11034 = vadd.f32 %v10991, %v11033
    %11035 = vdwg.mxu0
    %11036 = vmatprep.subr.bf16.mxu0 %v10097
    %11037 = vmatpush1.bf16.msra.mxu0 %v10096
    %11038 = vmatprep.subr.bf16.mxu0 %v10101
    %11039 = vmatpush1.bf16.msra.mxu0 %v10100
    %11040 = vmatprep.subr.bf16.mxu0 %v10105
    %11041 = vmatpush1.bf16.msra.mxu0 %v10104
    %11042 = vmatprep.subr.bf16.mxu0 %v10109
    %11043 = vmatpush1.bf16.msra.mxu0 %v10108
    %11044 = vmatprep.subr.bf16.mxu0 %v10113
    %11045 = vmatpush1.bf16.msra.mxu0 %v10112
    %11046 = vmatprep.subr.bf16.mxu0 %v10117
    %11047 = vmatpush1.bf16.msra.mxu0 %v10116
    %11048 = vmatprep.subr.bf16.mxu0 %v10121
    %11049 = vmatpush1.bf16.msra.mxu0 %v10120
    %11050 = vmatprep.subr.bf16.mxu0 %v10125
    %11051 = vmatpush1.bf16.msra.mxu0 %v10124
    %11052 = vmatprep.subr.bf16.mxu0 %v10129
    %11053 = vmatpush1.bf16.msra.mxu0 %v10128
    %11054 = vmatprep.subr.bf16.mxu0 %v10133
    %11055 = vmatpush1.bf16.msra.mxu0 %v10132
    %11056 = vmatprep.subr.bf16.mxu0 %v10137
    %11057 = vmatpush1.bf16.msra.mxu0 %v10136
    %11058 = vmatprep.subr.bf16.mxu0 %v10141
    %11059 = vmatpush1.bf16.msra.mxu0 %v10140
    %11060 = vmatprep.subr.bf16.mxu0 %v10145
    %11061 = vmatpush1.bf16.msra.mxu0 %v10144
    %11062 = vmatprep.subr.bf16.mxu0 %v10149
    %11063 = vmatpush1.bf16.msra.mxu0 %v10148
    %11064 = vmatprep.subr.bf16.mxu0 %v10153
    %11065 = vmatpush1.bf16.msra.mxu0 %v10152
    %11066 = vmatprep.subr.bf16.mxu0 %v10157
    %11067 = vmatpush1.bf16.msra.mxu0 %v10156
    %11068 = vmatprep.mubr.bf16.mxu0 %v416
    %11069 = vmatmul.mubr.bf16.gmra.mrb[0].mxu0 %v415
    %v11070 = vpop.f32.mrb[0].mxu0
    %v11071 = vadd.f32 %v11028, %v11070
    %v11072 = vpop.f32.mrb[0].mxu0
    %v11073 = vadd.f32 %v11030, %v11072
    %v11074 = vpop.f32.mrb[0].mxu0
    %v11075 = vadd.f32 %v11032, %v11074
    %v11076 = vpop.f32.mrb[0].mxu0
    %v11077 = vadd.f32 %v11034, %v11076
    %11078 = vdwg.mxu0
    %11079 = vmatprep.subr.bf16.mxu0 %v10161
    %11080 = vmatpush1.bf16.msra.mxu0 %v10160
    %11081 = vmatprep.subr.bf16.mxu0 %v10165
    %11082 = vmatpush1.bf16.msra.mxu0 %v10164
    %11083 = vmatprep.subr.bf16.mxu0 %v10169
    %11084 = vmatpush1.bf16.msra.mxu0 %v10168
    %11085 = vmatprep.subr.bf16.mxu0 %v10173
    %11086 = vmatpush1.bf16.msra.mxu0 %v10172
    %11087 = vmatprep.subr.bf16.mxu0 %v10177
    %11088 = vmatpush1.bf16.msra.mxu0 %v10176
    %11089 = vmatprep.subr.bf16.mxu0 %v10181
    %11090 = vmatpush1.bf16.msra.mxu0 %v10180
    %11091 = vmatprep.subr.bf16.mxu0 %v10185
    %11092 = vmatpush1.bf16.msra.mxu0 %v10184
    %11093 = vmatprep.subr.bf16.mxu0 %v10189
    %11094 = vmatpush1.bf16.msra.mxu0 %v10188
    %11095 = vmatprep.subr.bf16.mxu0 %v10193
    %11096 = vmatpush1.bf16.msra.mxu0 %v10192
    %11097 = vmatprep.subr.bf16.mxu0 %v10197
    %11098 = vmatpush1.bf16.msra.mxu0 %v10196
    %11099 = vmatprep.subr.bf16.mxu0 %v10201
    %11100 = vmatpush1.bf16.msra.mxu0 %v10200
    %11101 = vmatprep.subr.bf16.mxu0 %v10205
    %11102 = vmatpush1.bf16.msra.mxu0 %v10204
    %11103 = vmatprep.subr.bf16.mxu0 %v10209
    %11104 = vmatpush1.bf16.msra.mxu0 %v10208
    %11105 = vmatprep.subr.bf16.mxu0 %v10213
    %11106 = vmatpush1.bf16.msra.mxu0 %v10212
    %11107 = vmatprep.subr.bf16.mxu0 %v10217
    %11108 = vmatpush1.bf16.msra.mxu0 %v10216
    %11109 = vmatprep.subr.bf16.mxu0 %v10221
    %11110 = vmatpush1.bf16.msra.mxu0 %v10220
    %11111 = vmatprep.mubr.bf16.mxu0 %v418
    %11112 = vmatmul.mubr.bf16.gmra.mrb[0].mxu0 %v417
    %v11113 = vpop.f32.mrb[0].mxu0
    %v11114 = vadd.f32 %v11071, %v11113
    %v11115 = vpop.f32.mrb[0].mxu0
    %v11116 = vadd.f32 %v11073, %v11115
    %v11117 = vpop.f32.mrb[0].mxu0
    %v11118 = vadd.f32 %v11075, %v11117
    %v11119 = vpop.f32.mrb[0].mxu0
    %v11120 = vadd.f32 %v11077, %v11119
    %11121 = vdwg.mxu0
    %v11122 = vmax.f32 %v10856, 0.0
    %v11123 = vmax.f32 %v10858, 0.0
    %v11124 = vmax.f32 %v11114, 0.0
    %v11125 = vmax.f32 %v11116, 0.0
    %v11126 = vmax.f32 %v10860, 0.0
    %v11127 = vmax.f32 %v10862, 0.0
    %v11128 = vmax.f32 %v11118, 0.0
    %v11129 = vmax.f32 %v11120, 0.0
    %v11130 = vpack.c.bf16 %v11126, %v11122
    %v11131 = vpack.c.bf16 %v11127, %v11123
    %v11132 = vpack.c.bf16 %v11128, %v11124
    %v11133 = vpack.c.bf16 %v11129, %v11125
    %v11134 = vld [vmem:[#allocation26] sm:$0xff]
    %v11135 = vld [vmem:[#allocation26 + $0x8] sm:$0xff]
    %v11136 = vld [vmem:[#allocation26 + $0x10] sm:$0xff]
    %v11137 = vld [vmem:[#allocation26 + $0x18] sm:$0xff]
    %v11138 = vld [vmem:[#allocation26 + $0x20] sm:$0xff]
    %v11139 = vld [vmem:[#allocation26 + $0x28] sm:$0xff]
    %v11140 = vld [vmem:[#allocation26 + $0x30] sm:$0xff]
    %v11141 = vld [vmem:[#allocation26 + $0x38] sm:$0xff]
    %v11142 = vld [vmem:[#allocation26 + $0x40] sm:$0xff]
    %v11143 = vld [vmem:[#allocation26 + $0x48] sm:$0xff]
    %v11144 = vld [vmem:[#allocation26 + $0x50] sm:$0xff]
    %v11145 = vld [vmem:[#allocation26 + $0x58] sm:$0xff]
    %v11146 = vld [vmem:[#allocation26 + $0x60] sm:$0xff]
    %v11147 = vld [vmem:[#allocation26 + $0x68] sm:$0xff]
    %v11148 = vld [vmem:[#allocation26 + $0x70] sm:$0xff]
    %v11149 = vld [vmem:[#allocation26 + $0x78] sm:$0xff]
    %v11150 = vld [vmem:[#allocation26 + $0x80] sm:$0xff]
    %v11151 = vld [vmem:[#allocation26 + $0x88] sm:$0xff]
    %v11152 = vld [vmem:[#allocation26 + $0x90] sm:$0xff]
    %v11153 = vld [vmem:[#allocation26 + $0x98] sm:$0xff]
    %v11154 = vld [vmem:[#allocation26 + $0xa0] sm:$0xff]
    %v11155 = vld [vmem:[#allocation26 + $0xa8] sm:$0xff]
    %v11156 = vld [vmem:[#allocation26 + $0xb0] sm:$0xff]
    %v11157 = vld [vmem:[#allocation26 + $0xb8] sm:$0xff]
    %v11158 = vld [vmem:[#allocation26 + $0xc0] sm:$0xff]
    %v11159 = vld [vmem:[#allocation26 + $0xc8] sm:$0xff]
    %v11160 = vld [vmem:[#allocation26 + $0xd0] sm:$0xff]
    %v11161 = vld [vmem:[#allocation26 + $0xd8] sm:$0xff]
    %v11162 = vld [vmem:[#allocation26 + $0xe0] sm:$0xff]
    %v11163 = vld [vmem:[#allocation26 + $0xe8] sm:$0xff]
    %v11164 = vld [vmem:[#allocation26 + $0xf0] sm:$0xff]
    %v11165 = vld [vmem:[#allocation26 + $0xf8] sm:$0xff]
    %v11166 = vld [vmem:[#allocation26 + $0x100] sm:$0xff]
    %v11167 = vld [vmem:[#allocation26 + $0x108] sm:$0xff]
    %v11168 = vld [vmem:[#allocation26 + $0x110] sm:$0xff]
    %v11169 = vld [vmem:[#allocation26 + $0x118] sm:$0xff]
    %v11170 = vld [vmem:[#allocation26 + $0x120] sm:$0xff]
    %v11171 = vld [vmem:[#allocation26 + $0x128] sm:$0xff]
    %v11172 = vld [vmem:[#allocation26 + $0x130] sm:$0xff]
    %v11173 = vld [vmem:[#allocation26 + $0x138] sm:$0xff]
    %v11174 = vld [vmem:[#allocation26 + $0x140] sm:$0xff]
    %v11175 = vld [vmem:[#allocation26 + $0x148] sm:$0xff]
    %v11176 = vld [vmem:[#allocation26 + $0x150] sm:$0xff]
    %v11177 = vld [vmem:[#allocation26 + $0x158] sm:$0xff]
    %v11178 = vld [vmem:[#allocation26 + $0x160] sm:$0xff]
    %v11179 = vld [vmem:[#allocation26 + $0x168] sm:$0xff]
    %v11180 = vld [vmem:[#allocation26 + $0x170] sm:$0xff]
    %v11181 = vld [vmem:[#allocation26 + $0x178] sm:$0xff]
    %v11182 = vld [vmem:[#allocation26 + $0x180] sm:$0xff]
    %v11183 = vld [vmem:[#allocation26 + $0x188] sm:$0xff]
    %v11184 = vld [vmem:[#allocation26 + $0x190] sm:$0xff]
    %v11185 = vld [vmem:[#allocation26 + $0x198] sm:$0xff]
    %v11186 = vld [vmem:[#allocation26 + $0x1a0] sm:$0xff]
    %v11187 = vld [vmem:[#allocation26 + $0x1a8] sm:$0xff]
    %v11188 = vld [vmem:[#allocation26 + $0x1b0] sm:$0xff]
    %v11189 = vld [vmem:[#allocation26 + $0x1b8] sm:$0xff]
    %v11190 = vld [vmem:[#allocation26 + $0x1c0] sm:$0xff]
    %v11191 = vld [vmem:[#allocation26 + $0x1c8] sm:$0xff]
    %v11192 = vld [vmem:[#allocation26 + $0x1d0] sm:$0xff]
    %v11193 = vld [vmem:[#allocation26 + $0x1d8] sm:$0xff]
    %v11194 = vld [vmem:[#allocation26 + $0x1e0] sm:$0xff]
    %v11195 = vld [vmem:[#allocation26 + $0x1e8] sm:$0xff]
    %v11196 = vld [vmem:[#allocation26 + $0x1f0] sm:$0xff]
    %v11197 = vld [vmem:[#allocation26 + $0x1f8] sm:$0xff]
    %v11198 = vld [vmem:[#allocation28] sm:$0x3]
    %v11200 = vlaneseq
    %v11201 = vshrl.u32 %v11200, 7
    %v11202 = vsub.s32 0, %v11201
    %v11203 = vrot.slane %v11198, %v11202
    %v11204 = vlaneseq
    %v11205 = vshrl.u32 %v11204, 7
    %v11206 = vsub.s32 1, %v11205
    %v11207 = vrot.slane %v11198, %v11206
    %v11274 = vunpack.c.l.b16 %v11134
    %v11275 = vunpack.c.h.b16 %v11134
    %v11276 = vunpack.c.l.b16 %v11135
    %v11277 = vunpack.c.h.b16 %v11135
    %v11278 = vunpack.c.l.b16 %v11136
    %v11279 = vunpack.c.h.b16 %v11136
    %v11280 = vunpack.c.l.b16 %v11137
    %v11281 = vunpack.c.h.b16 %v11137
    %v11282 = vunpack.c.l.b16 %v11138
    %v11283 = vunpack.c.h.b16 %v11138
    %v11284 = vunpack.c.l.b16 %v11139
    %v11285 = vunpack.c.h.b16 %v11139
    %v11286 = vunpack.c.l.b16 %v11140
    %v11287 = vunpack.c.h.b16 %v11140
    %v11288 = vunpack.c.l.b16 %v11141
    %v11289 = vunpack.c.h.b16 %v11141
    %v11290 = vunpack.c.l.b16 %v11142
    %v11291 = vunpack.c.h.b16 %v11142
    %v11292 = vunpack.c.l.b16 %v11143
    %v11293 = vunpack.c.h.b16 %v11143
    %v11294 = vunpack.c.l.b16 %v11144
    %v11295 = vunpack.c.h.b16 %v11144
    %v11296 = vunpack.c.l.b16 %v11145
    %v11297 = vunpack.c.h.b16 %v11145
    %v11298 = vunpack.c.l.b16 %v11146
    %v11299 = vunpack.c.h.b16 %v11146
    %v11300 = vunpack.c.l.b16 %v11147
    %v11301 = vunpack.c.h.b16 %v11147
    %v11302 = vunpack.c.l.b16 %v11148
    %v11303 = vunpack.c.h.b16 %v11148
    %v11304 = vunpack.c.l.b16 %v11149
    %v11305 = vunpack.c.h.b16 %v11149
    %v11306 = vunpack.c.l.b16 %v11150
    %v11307 = vunpack.c.h.b16 %v11150
    %v11308 = vunpack.c.l.b16 %v11151
    %v11309 = vunpack.c.h.b16 %v11151
    %v11310 = vunpack.c.l.b16 %v11152
    %v11311 = vunpack.c.h.b16 %v11152
    %v11312 = vunpack.c.l.b16 %v11153
    %v11313 = vunpack.c.h.b16 %v11153
    %v11314 = vunpack.c.l.b16 %v11154
    %v11315 = vunpack.c.h.b16 %v11154
    %v11316 = vunpack.c.l.b16 %v11155
    %v11317 = vunpack.c.h.b16 %v11155
    %v11318 = vunpack.c.l.b16 %v11156
    %v11319 = vunpack.c.h.b16 %v11156
    %v11320 = vunpack.c.l.b16 %v11157
    %v11321 = vunpack.c.h.b16 %v11157
    %v11322 = vunpack.c.l.b16 %v11158
    %v11323 = vunpack.c.h.b16 %v11158
    %v11324 = vunpack.c.l.b16 %v11159
    %v11325 = vunpack.c.h.b16 %v11159
    %v11326 = vunpack.c.l.b16 %v11160
    %v11327 = vunpack.c.h.b16 %v11160
    %v11328 = vunpack.c.l.b16 %v11161
    %v11329 = vunpack.c.h.b16 %v11161
    %v11330 = vunpack.c.l.b16 %v11162
    %v11331 = vunpack.c.h.b16 %v11162
    %v11332 = vunpack.c.l.b16 %v11163
    %v11333 = vunpack.c.h.b16 %v11163
    %v11334 = vunpack.c.l.b16 %v11164
    %v11335 = vunpack.c.h.b16 %v11164
    %v11336 = vunpack.c.l.b16 %v11165
    %v11337 = vunpack.c.h.b16 %v11165
    %v11338 = vunpack.c.l.b16 %v11166
    %v11339 = vunpack.c.h.b16 %v11166
    %v11340 = vunpack.c.l.b16 %v11167
    %v11341 = vunpack.c.h.b16 %v11167
    %v11342 = vunpack.c.l.b16 %v11168
    %v11343 = vunpack.c.h.b16 %v11168
    %v11344 = vunpack.c.l.b16 %v11169
    %v11345 = vunpack.c.h.b16 %v11169
    %v11346 = vunpack.c.l.b16 %v11170
    %v11347 = vunpack.c.h.b16 %v11170
    %v11348 = vunpack.c.l.b16 %v11171
    %v11349 = vunpack.c.h.b16 %v11171
    %v11350 = vunpack.c.l.b16 %v11172
    %v11351 = vunpack.c.h.b16 %v11172
    %v11352 = vunpack.c.l.b16 %v11173
    %v11353 = vunpack.c.h.b16 %v11173
    %v11354 = vunpack.c.l.b16 %v11174
    %v11355 = vunpack.c.h.b16 %v11174
    %v11356 = vunpack.c.l.b16 %v11175
    %v11357 = vunpack.c.h.b16 %v11175
    %v11358 = vunpack.c.l.b16 %v11176
    %v11359 = vunpack.c.h.b16 %v11176
    %v11360 = vunpack.c.l.b16 %v11177
    %v11361 = vunpack.c.h.b16 %v11177
    %v11362 = vunpack.c.l.b16 %v11178
    %v11363 = vunpack.c.h.b16 %v11178
    %v11364 = vunpack.c.l.b16 %v11179
    %v11365 = vunpack.c.h.b16 %v11179
    %v11366 = vunpack.c.l.b16 %v11180
    %v11367 = vunpack.c.h.b16 %v11180
    %v11368 = vunpack.c.l.b16 %v11181
    %v11369 = vunpack.c.h.b16 %v11181
    %v11370 = vunpack.c.l.b16 %v11182
    %v11371 = vunpack.c.h.b16 %v11182
    %v11372 = vunpack.c.l.b16 %v11183
    %v11373 = vunpack.c.h.b16 %v11183
    %v11374 = vunpack.c.l.b16 %v11184
    %v11375 = vunpack.c.h.b16 %v11184
    %v11376 = vunpack.c.l.b16 %v11185
    %v11377 = vunpack.c.h.b16 %v11185
    %v11378 = vunpack.c.l.b16 %v11186
    %v11379 = vunpack.c.h.b16 %v11186
    %v11380 = vunpack.c.l.b16 %v11187
    %v11381 = vunpack.c.h.b16 %v11187
    %v11382 = vunpack.c.l.b16 %v11188
    %v11383 = vunpack.c.h.b16 %v11188
    %v11384 = vunpack.c.l.b16 %v11189
    %v11385 = vunpack.c.h.b16 %v11189
    %v11386 = vunpack.c.l.b16 %v11190
    %v11387 = vunpack.c.h.b16 %v11190
    %v11388 = vunpack.c.l.b16 %v11191
    %v11389 = vunpack.c.h.b16 %v11191
    %v11390 = vunpack.c.l.b16 %v11192
    %v11391 = vunpack.c.h.b16 %v11192
    %v11392 = vunpack.c.l.b16 %v11193
    %v11393 = vunpack.c.h.b16 %v11193
    %v11394 = vunpack.c.l.b16 %v11194
    %v11395 = vunpack.c.h.b16 %v11194
    %v11396 = vunpack.c.l.b16 %v11195
    %v11397 = vunpack.c.h.b16 %v11195
    %v11398 = vunpack.c.l.b16 %v11196
    %v11399 = vunpack.c.h.b16 %v11196
    %v11400 = vunpack.c.l.b16 %v11197
    %v11401 = vunpack.c.h.b16 %v11197
    %v11402 = vpack.c.b16 %v11276, %v11274
    %v11403 = vpack.c.b16 %v11277, %v11275
    %v11404 = vpack.c.b16 %v11280, %v11278
    %v11405 = vpack.c.b16 %v11281, %v11279
    %v11406 = vpack.c.b16 %v11284, %v11282
    %v11407 = vpack.c.b16 %v11285, %v11283
    %v11408 = vpack.c.b16 %v11288, %v11286
    %v11409 = vpack.c.b16 %v11289, %v11287
    %v11410 = vpack.c.b16 %v11292, %v11290
    %v11411 = vpack.c.b16 %v11293, %v11291
    %v11412 = vpack.c.b16 %v11296, %v11294
    %v11413 = vpack.c.b16 %v11297, %v11295
    %v11414 = vpack.c.b16 %v11300, %v11298
    %v11415 = vpack.c.b16 %v11301, %v11299
    %v11416 = vpack.c.b16 %v11304, %v11302
    %v11417 = vpack.c.b16 %v11305, %v11303
    %v11418 = vpack.c.b16 %v11308, %v11306
    %v11419 = vpack.c.b16 %v11309, %v11307
    %v11420 = vpack.c.b16 %v11312, %v11310
    %v11421 = vpack.c.b16 %v11313, %v11311
    %v11422 = vpack.c.b16 %v11316, %v11314
    %v11423 = vpack.c.b16 %v11317, %v11315
    %v11424 = vpack.c.b16 %v11320, %v11318
    %v11425 = vpack.c.b16 %v11321, %v11319
    %v11426 = vpack.c.b16 %v11324, %v11322
    %v11427 = vpack.c.b16 %v11325, %v11323
    %v11428 = vpack.c.b16 %v11328, %v11326
    %v11429 = vpack.c.b16 %v11329, %v11327
    %v11430 = vpack.c.b16 %v11332, %v11330
    %v11431 = vpack.c.b16 %v11333, %v11331
    %v11432 = vpack.c.b16 %v11336, %v11334
    %v11433 = vpack.c.b16 %v11337, %v11335
    %v11434 = vpack.c.b16 %v11340, %v11338
    %v11435 = vpack.c.b16 %v11341, %v11339
    %v11436 = vpack.c.b16 %v11344, %v11342
    %v11437 = vpack.c.b16 %v11345, %v11343
    %v11438 = vpack.c.b16 %v11348, %v11346
    %v11439 = vpack.c.b16 %v11349, %v11347
    %v11440 = vpack.c.b16 %v11352, %v11350
    %v11441 = vpack.c.b16 %v11353, %v11351
    %v11442 = vpack.c.b16 %v11356, %v11354
    %v11443 = vpack.c.b16 %v11357, %v11355
    %v11444 = vpack.c.b16 %v11360, %v11358
    %v11445 = vpack.c.b16 %v11361, %v11359
    %v11446 = vpack.c.b16 %v11364, %v11362
    %v11447 = vpack.c.b16 %v11365, %v11363
    %v11448 = vpack.c.b16 %v11368, %v11366
    %v11449 = vpack.c.b16 %v11369, %v11367
    %v11450 = vpack.c.b16 %v11372, %v11370
    %v11451 = vpack.c.b16 %v11373, %v11371
    %v11452 = vpack.c.b16 %v11376, %v11374
    %v11453 = vpack.c.b16 %v11377, %v11375
    %v11454 = vpack.c.b16 %v11380, %v11378
    %v11455 = vpack.c.b16 %v11381, %v11379
    %v11456 = vpack.c.b16 %v11384, %v11382
    %v11457 = vpack.c.b16 %v11385, %v11383
    %v11458 = vpack.c.b16 %v11388, %v11386
    %v11459 = vpack.c.b16 %v11389, %v11387
    %v11460 = vpack.c.b16 %v11392, %v11390
    %v11461 = vpack.c.b16 %v11393, %v11391
    %v11462 = vpack.c.b16 %v11396, %v11394
    %v11463 = vpack.c.b16 %v11397, %v11395
    %v11464 = vpack.c.b16 %v11400, %v11398
    %v11465 = vpack.c.b16 %v11401, %v11399
    %11530 = vmatprep.subr.bf16.mxu0 %v11403
    %11531 = vmatpush1.bf16.msra.mxu0 %v11402
    %11532 = vmatprep.subr.bf16.mxu0 %v11405
    %11533 = vmatpush1.bf16.msra.mxu0 %v11404
    %11534 = vmatprep.subr.bf16.mxu0 %v11407
    %11535 = vmatpush1.bf16.msra.mxu0 %v11406
    %11536 = vmatprep.subr.bf16.mxu0 %v11409
    %11537 = vmatpush1.bf16.msra.mxu0 %v11408
    %11538 = vmatprep.subr.bf16.mxu0 %v11411
    %11539 = vmatpush1.bf16.msra.mxu0 %v11410
    %11540 = vmatprep.subr.bf16.mxu0 %v11413
    %11541 = vmatpush1.bf16.msra.mxu0 %v11412
    %11542 = vmatprep.subr.bf16.mxu0 %v11415
    %11543 = vmatpush1.bf16.msra.mxu0 %v11414
    %11544 = vmatprep.subr.bf16.mxu0 %v11417
    %11545 = vmatpush1.bf16.msra.mxu0 %v11416
    %11546 = vmatprep.subr.bf16.mxu0 %v11419
    %11547 = vmatpush1.bf16.msra.mxu0 %v11418
    %11548 = vmatprep.subr.bf16.mxu0 %v11421
    %11549 = vmatpush1.bf16.msra.mxu0 %v11420
    %11550 = vmatprep.subr.bf16.mxu0 %v11423
    %11551 = vmatpush1.bf16.msra.mxu0 %v11422
    %11552 = vmatprep.subr.bf16.mxu0 %v11425
    %11553 = vmatpush1.bf16.msra.mxu0 %v11424
    %11554 = vmatprep.subr.bf16.mxu0 %v11427
    %11555 = vmatpush1.bf16.msra.mxu0 %v11426
    %11556 = vmatprep.subr.bf16.mxu0 %v11429
    %11557 = vmatpush1.bf16.msra.mxu0 %v11428
    %11558 = vmatprep.subr.bf16.mxu0 %v11431
    %11559 = vmatpush1.bf16.msra.mxu0 %v11430
    %11560 = vmatprep.subr.bf16.mxu0 %v11433
    %11561 = vmatpush1.bf16.msra.mxu0 %v11432
    %11562 = vmatprep.mubr.bf16.mxu0 %v11131
    %11563 = vmatmul.mubr.bf16.gmra.mrb[0].mxu0 %v11130
    %v11564 = vpop.f32.mrb[0].mxu0
    %v11565 = vadd.f32 %v11203, %v11564
    %v11566 = vpop.f32.mrb[0].mxu0
    %v11567 = vadd.f32 %v11207, %v11566
    %v11568 = vpop.f32.mrb[0].mxu0
    %v11569 = vadd.f32 %v11203, %v11568
    %v11570 = vpop.f32.mrb[0].mxu0
    %v11571 = vadd.f32 %v11207, %v11570
    %11572 = vdwg.mxu0
    %11573 = vmatprep.subr.bf16.mxu0 %v11435
    %11574 = vmatpush1.bf16.msra.mxu0 %v11434
    %11575 = vmatprep.subr.bf16.mxu0 %v11437
    %11576 = vmatpush1.bf16.msra.mxu0 %v11436
    %11577 = vmatprep.subr.bf16.mxu0 %v11439
    %11578 = vmatpush1.bf16.msra.mxu0 %v11438
    %11579 = vmatprep.subr.bf16.mxu0 %v11441
    %11580 = vmatpush1.bf16.msra.mxu0 %v11440
    %11581 = vmatprep.subr.bf16.mxu0 %v11443
    %11582 = vmatpush1.bf16.msra.mxu0 %v11442
    %11583 = vmatprep.subr.bf16.mxu0 %v11445
    %11584 = vmatpush1.bf16.msra.mxu0 %v11444
    %11585 = vmatprep.subr.bf16.mxu0 %v11447
    %11586 = vmatpush1.bf16.msra.mxu0 %v11446
    %11587 = vmatprep.subr.bf16.mxu0 %v11449
    %11588 = vmatpush1.bf16.msra.mxu0 %v11448
    %11589 = vmatprep.subr.bf16.mxu0 %v11451
    %11590 = vmatpush1.bf16.msra.mxu0 %v11450
    %11591 = vmatprep.subr.bf16.mxu0 %v11453
    %11592 = vmatpush1.bf16.msra.mxu0 %v11452
    %11593 = vmatprep.subr.bf16.mxu0 %v11455
    %11594 = vmatpush1.bf16.msra.mxu0 %v11454
    %11595 = vmatprep.subr.bf16.mxu0 %v11457
    %11596 = vmatpush1.bf16.msra.mxu0 %v11456
    %11597 = vmatprep.subr.bf16.mxu0 %v11459
    %11598 = vmatpush1.bf16.msra.mxu0 %v11458
    %11599 = vmatprep.subr.bf16.mxu0 %v11461
    %11600 = vmatpush1.bf16.msra.mxu0 %v11460
    %11601 = vmatprep.subr.bf16.mxu0 %v11463
    %11602 = vmatpush1.bf16.msra.mxu0 %v11462
    %11603 = vmatprep.subr.bf16.mxu0 %v11465
    %11604 = vmatpush1.bf16.msra.mxu0 %v11464
    %11605 = vmatprep.mubr.bf16.mxu0 %v11133
    %11606 = vmatmul.mubr.bf16.gmra.mrb[0].mxu0 %v11132
    %v11607 = vpop.f32.mrb[0].mxu0
    %v11608 = vadd.f32 %v11565, %v11607
    %v11609 = vpop.f32.mrb[0].mxu0
    %v11610 = vadd.f32 %v11567, %v11609
    %v11611 = vpop.f32.mrb[0].mxu0
    %v11612 = vadd.f32 %v11569, %v11611
    %v11613 = vpop.f32.mrb[0].mxu0
    %v11614 = vadd.f32 %v11571, %v11613
    %11615 = vdwg.mxu0
    %v11616 = vmax.f32 %v11608, 0.0
    %v11617 = vmax.f32 %v11610, 0.0
    %v11618 = vmax.f32 %v11612, 0.0
    %v11619 = vmax.f32 %v11614, 0.0
    %v11620 = vpack.c.bf16 %v11618, %v11616
    %v11621 = vpack.c.bf16 %v11619, %v11617
    %v11622 = vld [vmem:[#allocation29] sm:$0xf]
    %v11623 = vld [vmem:[#allocation29 + $0x4] sm:$0xf]
    %v11624 = vld [vmem:[#allocation29 + $0x8] sm:$0xf]
    %v11625 = vld [vmem:[#allocation29 + $0xc] sm:$0xf]
    %v11626 = vld [vmem:[#allocation29 + $0x10] sm:$0xf]
    %v11627 = vld [vmem:[#allocation29 + $0x14] sm:$0xf]
    %v11628 = vld [vmem:[#allocation29 + $0x18] sm:$0xf]
    %v11629 = vld [vmem:[#allocation29 + $0x1c] sm:$0xf]
    %v11630 = vld [vmem:[#allocation29 + $0x20] sm:$0xf]
    %v11631 = vld [vmem:[#allocation29 + $0x24] sm:$0xf]
    %v11632 = vld [vmem:[#allocation29 + $0x28] sm:$0xf]
    %v11633 = vld [vmem:[#allocation29 + $0x2c] sm:$0xf]
    %v11634 = vld [vmem:[#allocation29 + $0x30] sm:$0xf]
    %v11635 = vld [vmem:[#allocation29 + $0x34] sm:$0xf]
    %v11636 = vld [vmem:[#allocation29 + $0x38] sm:$0xf]
    %v11637 = vld [vmem:[#allocation29 + $0x3c] sm:$0xf]
    %v11638 = vld [vmem:[#allocation29 + $0x40] sm:$0xf]
    %v11639 = vld [vmem:[#allocation29 + $0x44] sm:$0xf]
    %v11640 = vld [vmem:[#allocation29 + $0x48] sm:$0xf]
    %v11641 = vld [vmem:[#allocation29 + $0x4c] sm:$0xf]
    %v11642 = vld [vmem:[#allocation29 + $0x50] sm:$0xf]
    %v11643 = vld [vmem:[#allocation29 + $0x54] sm:$0xf]
    %v11644 = vld [vmem:[#allocation29 + $0x58] sm:$0xf]
    %v11645 = vld [vmem:[#allocation29 + $0x5c] sm:$0xf]
    %v11646 = vld [vmem:[#allocation29 + $0x60] sm:$0xf]
    %v11647 = vld [vmem:[#allocation29 + $0x64] sm:$0xf]
    %v11648 = vld [vmem:[#allocation29 + $0x68] sm:$0xf]
    %v11649 = vld [vmem:[#allocation29 + $0x6c] sm:$0xf]
    %v11650 = vld [vmem:[#allocation29 + $0x70] sm:$0xf]
    %v11651 = vld [vmem:[#allocation29 + $0x74] sm:$0xf]
    %v11652 = vld [vmem:[#allocation29 + $0x78] sm:$0xf]
    %v11653 = vld [vmem:[#allocation29 + $0x7c] sm:$0xf]
    %v11654 = vld [vmem:[#allocation31] sm:$0x1]
    %v11656 = vlaneseq
    %v11657 = vshrl.u32 %v11656, 7
    %v11658 = vsub.s32 0, %v11657
    %v11659 = vrot.slane %v11654, %v11658
    %v11693 = vunpack.c.l.b16 %v11622
    %v11694 = vunpack.c.l.b16 %v11623
    %v11695 = vunpack.c.l.b16 %v11624
    %v11696 = vunpack.c.l.b16 %v11625
    %v11697 = vunpack.c.l.b16 %v11626
    %v11698 = vunpack.c.l.b16 %v11627
    %v11699 = vunpack.c.l.b16 %v11628
    %v11700 = vunpack.c.l.b16 %v11629
    %v11701 = vunpack.c.l.b16 %v11630
    %v11702 = vunpack.c.l.b16 %v11631
    %v11703 = vunpack.c.l.b16 %v11632
    %v11704 = vunpack.c.l.b16 %v11633
    %v11705 = vunpack.c.l.b16 %v11634
    %v11706 = vunpack.c.l.b16 %v11635
    %v11707 = vunpack.c.l.b16 %v11636
    %v11708 = vunpack.c.l.b16 %v11637
    %v11709 = vunpack.c.l.b16 %v11638
    %v11710 = vunpack.c.l.b16 %v11639
    %v11711 = vunpack.c.l.b16 %v11640
    %v11712 = vunpack.c.l.b16 %v11641
    %v11713 = vunpack.c.l.b16 %v11642
    %v11714 = vunpack.c.l.b16 %v11643
    %v11715 = vunpack.c.l.b16 %v11644
    %v11716 = vunpack.c.l.b16 %v11645
    %v11717 = vunpack.c.l.b16 %v11646
    %v11718 = vunpack.c.l.b16 %v11647
    %v11719 = vunpack.c.l.b16 %v11648
    %v11720 = vunpack.c.l.b16 %v11649
    %v11721 = vunpack.c.l.b16 %v11650
    %v11722 = vunpack.c.l.b16 %v11651
    %v11723 = vunpack.c.l.b16 %v11652
    %v11724 = vunpack.c.l.b16 %v11653
    %v11725 = vpack.c.b16 %v11694, %v11693
    %v11726 = vpack.c.b16 %v11696, %v11695
    %v11727 = vpack.c.b16 %v11698, %v11697
    %v11728 = vpack.c.b16 %v11700, %v11699
    %v11729 = vpack.c.b16 %v11702, %v11701
    %v11730 = vpack.c.b16 %v11704, %v11703
    %v11731 = vpack.c.b16 %v11706, %v11705
    %v11732 = vpack.c.b16 %v11708, %v11707
    %v11733 = vpack.c.b16 %v11710, %v11709
    %v11734 = vpack.c.b16 %v11712, %v11711
    %v11735 = vpack.c.b16 %v11714, %v11713
    %v11736 = vpack.c.b16 %v11716, %v11715
    %v11737 = vpack.c.b16 %v11718, %v11717
    %v11738 = vpack.c.b16 %v11720, %v11719
    %v11739 = vpack.c.b16 %v11722, %v11721
    %v11740 = vpack.c.b16 %v11724, %v11723
    %11757 = vmatprep.subr.bf16.mxu0 0
    %11758 = vmatpush1.bf16.msra.mxu0 %v11725
    %11759 = vmatprep.subr.bf16.mxu0 0
    %11760 = vmatpush1.bf16.msra.mxu0 %v11726
    %11761 = vmatprep.subr.bf16.mxu0 0
    %11762 = vmatpush1.bf16.msra.mxu0 %v11727
    %11763 = vmatprep.subr.bf16.mxu0 0
    %11764 = vmatpush1.bf16.msra.mxu0 %v11728
    %11765 = vmatprep.subr.bf16.mxu0 0
    %11766 = vmatpush1.bf16.msra.mxu0 %v11729
    %11767 = vmatprep.subr.bf16.mxu0 0
    %11768 = vmatpush1.bf16.msra.mxu0 %v11730
    %11769 = vmatprep.subr.bf16.mxu0 0
    %11770 = vmatpush1.bf16.msra.mxu0 %v11731
    %11771 = vmatprep.subr.bf16.mxu0 0
    %11772 = vmatpush1.bf16.msra.mxu0 %v11732
    %11773 = vmatprep.subr.bf16.mxu0 0
    %11774 = vmatpush1.bf16.msra.mxu0 %v11733
    %11775 = vmatprep.subr.bf16.mxu0 0
    %11776 = vmatpush1.bf16.msra.mxu0 %v11734
    %11777 = vmatprep.subr.bf16.mxu0 0
    %11778 = vmatpush1.bf16.msra.mxu0 %v11735
    %11779 = vmatprep.subr.bf16.mxu0 0
    %11780 = vmatpush1.bf16.msra.mxu0 %v11736
    %11781 = vmatprep.subr.bf16.mxu0 0
    %11782 = vmatpush1.bf16.msra.mxu0 %v11737
    %11783 = vmatprep.subr.bf16.mxu0 0
    %11784 = vmatpush1.bf16.msra.mxu0 %v11738
    %11785 = vmatprep.subr.bf16.mxu0 0
    %11786 = vmatpush1.bf16.msra.mxu0 %v11739
    %11787 = vmatprep.subr.bf16.mxu0 0
    %11788 = vmatpush1.bf16.msra.mxu0 %v11740
    %11789 = vmatprep.mubr.bf16.mxu0 %v11621
    %11790 = vmatmul.mubr.bf16.gmra.mrb[0].mxu0 %v11620
    %v11791 = vpop.f32.mrb[0].mxu0
    %v11792 = vadd.f32 %v11659, %v11791
    %v11793 = vpop.f32.mrb[0].mxu0
    %v11794 = vpop.f32.mrb[0].mxu0
    %v11795 = vadd.f32 %v11659, %v11794
    %v11796 = vpop.f32.mrb[0].mxu0
    %11797 = vdwg.mxu0
    %v11798 = vmax.f32 %v11792, 0.0
    %v11799 = vmax.f32 %v11795, 0.0
    %v11800 = vpack.c.bf16 %v11799, %v11798
    %v11801 = vld [vmem:[#allocation32] sm:$0xff]
    %v11802 = vld [vmem:[#allocation32 + $0x8] sm:$0xff]
    %v11803 = vld [vmem:[#allocation32 + $0x10] sm:$0xff]
    %v11804 = vld [vmem:[#allocation32 + $0x18] sm:$0xff]
    %v11805 = vld [vmem:[#allocation32 + $0x20] sm:$0xff]
    %v11806 = vld [vmem:[#allocation32 + $0x28] sm:$0xff]
    %v11807 = vld [vmem:[#allocation32 + $0x30] sm:$0xff]
    %v11808 = vld [vmem:[#allocation32 + $0x38] sm:$0xff]
    %v11809 = vld [vmem:[#allocation32 + $0x40] sm:$0xff]
    %v11810 = vld [vmem:[#allocation32 + $0x48] sm:$0xff]
    %v11811 = vld [vmem:[#allocation32 + $0x50] sm:$0xff]
    %v11812 = vld [vmem:[#allocation32 + $0x58] sm:$0xff]
    %v11813 = vld [vmem:[#allocation32 + $0x60] sm:$0xff]
    %v11814 = vld [vmem:[#allocation32 + $0x68] sm:$0xff]
    %v11815 = vld [vmem:[#allocation32 + $0x70] sm:$0xff]
    %v11816 = vld [vmem:[#allocation32 + $0x78] sm:$0xff]
    %v11817 = vld [vmem:[#allocation32 + $0x80] sm:$0xff]
    %v11818 = vld [vmem:[#allocation32 + $0x88] sm:$0xff]
    %v11819 = vld [vmem:[#allocation32 + $0x90] sm:$0xff]
    %v11820 = vld [vmem:[#allocation32 + $0x98] sm:$0xff]
    %v11821 = vld [vmem:[#allocation32 + $0xa0] sm:$0xff]
    %v11822 = vld [vmem:[#allocation32 + $0xa8] sm:$0xff]
    %v11823 = vld [vmem:[#allocation32 + $0xb0] sm:$0xff]
    %v11824 = vld [vmem:[#allocation32 + $0xb8] sm:$0xff]
    %v11825 = vld [vmem:[#allocation32 + $0xc0] sm:$0xff]
    %v11826 = vld [vmem:[#allocation32 + $0xc8] sm:$0xff]
    %v11827 = vld [vmem:[#allocation32 + $0xd0] sm:$0xff]
    %v11828 = vld [vmem:[#allocation32 + $0xd8] sm:$0xff]
    %v11829 = vld [vmem:[#allocation32 + $0xe0] sm:$0xff]
    %v11830 = vld [vmem:[#allocation32 + $0xe8] sm:$0xff]
    %v11831 = vld [vmem:[#allocation32 + $0xf0] sm:$0xff]
    %v11832 = vld [vmem:[#allocation32 + $0xf8] sm:$0xff]
    %v11833 = vld [vmem:[#allocation34] sm:$0xf]
    %v11835 = vlaneseq
    %v11836 = vshrl.u32 %v11835, 7
    %v11837 = vsub.s32 0, %v11836
    %v11838 = vrot.slane %v11833, %v11837
    %v11839 = vlaneseq
    %v11840 = vshrl.u32 %v11839, 7
    %v11841 = vsub.s32 1, %v11840
    %v11842 = vrot.slane %v11833, %v11841
    %v11843 = vlaneseq
    %v11844 = vshrl.u32 %v11843, 7
    %v11845 = vsub.s32 2, %v11844
    %v11846 = vrot.slane %v11833, %v11845
    %v11847 = vlaneseq
    %v11848 = vshrl.u32 %v11847, 7
    %v11849 = vsub.s32 3, %v11848
    %v11850 = vrot.slane %v11833, %v11849
    %v11887 = vunpack.c.l.b16 %v11801
    %v11888 = vunpack.c.h.b16 %v11801
    %v11889 = vunpack.c.l.b16 %v11802
    %v11890 = vunpack.c.h.b16 %v11802
    %v11891 = vunpack.c.l.b16 %v11803
    %v11892 = vunpack.c.h.b16 %v11803
    %v11893 = vunpack.c.l.b16 %v11804
    %v11894 = vunpack.c.h.b16 %v11804
    %v11895 = vunpack.c.l.b16 %v11805
    %v11896 = vunpack.c.h.b16 %v11805
    %v11897 = vunpack.c.l.b16 %v11806
    %v11898 = vunpack.c.h.b16 %v11806
    %v11899 = vunpack.c.l.b16 %v11807
    %v11900 = vunpack.c.h.b16 %v11807
    %v11901 = vunpack.c.l.b16 %v11808
    %v11902 = vunpack.c.h.b16 %v11808
    %v11903 = vunpack.c.l.b16 %v11809
    %v11904 = vunpack.c.h.b16 %v11809
    %v11905 = vunpack.c.l.b16 %v11810
    %v11906 = vunpack.c.h.b16 %v11810
    %v11907 = vunpack.c.l.b16 %v11811
    %v11908 = vunpack.c.h.b16 %v11811
    %v11909 = vunpack.c.l.b16 %v11812
    %v11910 = vunpack.c.h.b16 %v11812
    %v11911 = vunpack.c.l.b16 %v11813
    %v11912 = vunpack.c.h.b16 %v11813
    %v11913 = vunpack.c.l.b16 %v11814
    %v11914 = vunpack.c.h.b16 %v11814
    %v11915 = vunpack.c.l.b16 %v11815
    %v11916 = vunpack.c.h.b16 %v11815
    %v11917 = vunpack.c.l.b16 %v11816
    %v11918 = vunpack.c.h.b16 %v11816
    %v11919 = vunpack.c.l.b16 %v11817
    %v11920 = vunpack.c.h.b16 %v11817
    %v11921 = vunpack.c.l.b16 %v11818
    %v11922 = vunpack.c.h.b16 %v11818
    %v11923 = vunpack.c.l.b16 %v11819
    %v11924 = vunpack.c.h.b16 %v11819
    %v11925 = vunpack.c.l.b16 %v11820
    %v11926 = vunpack.c.h.b16 %v11820
    %v11927 = vunpack.c.l.b16 %v11821
    %v11928 = vunpack.c.h.b16 %v11821
    %v11929 = vunpack.c.l.b16 %v11822
    %v11930 = vunpack.c.h.b16 %v11822
    %v11931 = vunpack.c.l.b16 %v11823
    %v11932 = vunpack.c.h.b16 %v11823
    %v11933 = vunpack.c.l.b16 %v11824
    %v11934 = vunpack.c.h.b16 %v11824
    %v11935 = vunpack.c.l.b16 %v11825
    %v11936 = vunpack.c.h.b16 %v11825
    %v11937 = vunpack.c.l.b16 %v11826
    %v11938 = vunpack.c.h.b16 %v11826
    %v11939 = vunpack.c.l.b16 %v11827
    %v11940 = vunpack.c.h.b16 %v11827
    %v11941 = vunpack.c.l.b16 %v11828
    %v11942 = vunpack.c.h.b16 %v11828
    %v11943 = vunpack.c.l.b16 %v11829
    %v11944 = vunpack.c.h.b16 %v11829
    %v11945 = vunpack.c.l.b16 %v11830
    %v11946 = vunpack.c.h.b16 %v11830
    %v11947 = vunpack.c.l.b16 %v11831
    %v11948 = vunpack.c.h.b16 %v11831
    %v11949 = vunpack.c.l.b16 %v11832
    %v11950 = vunpack.c.h.b16 %v11832
    %v11951 = vpack.c.b16 %v11891, %v11887
    %v11952 = vpack.c.b16 %v11892, %v11888
    %v11953 = vpack.c.b16 %v11893, %v11889
    %v11954 = vpack.c.b16 %v11894, %v11890
    %v11955 = vpack.c.b16 %v11899, %v11895
    %v11956 = vpack.c.b16 %v11900, %v11896
    %v11957 = vpack.c.b16 %v11901, %v11897
    %v11958 = vpack.c.b16 %v11902, %v11898
    %v11959 = vpack.c.b16 %v11907, %v11903
    %v11960 = vpack.c.b16 %v11908, %v11904
    %v11961 = vpack.c.b16 %v11909, %v11905
    %v11962 = vpack.c.b16 %v11910, %v11906
    %v11963 = vpack.c.b16 %v11915, %v11911
    %v11964 = vpack.c.b16 %v11916, %v11912
    %v11965 = vpack.c.b16 %v11917, %v11913
    %v11966 = vpack.c.b16 %v11918, %v11914
    %v11967 = vpack.c.b16 %v11923, %v11919
    %v11968 = vpack.c.b16 %v11924, %v11920
    %v11969 = vpack.c.b16 %v11925, %v11921
    %v11970 = vpack.c.b16 %v11926, %v11922
    %v11971 = vpack.c.b16 %v11931, %v11927
    %v11972 = vpack.c.b16 %v11932, %v11928
    %v11973 = vpack.c.b16 %v11933, %v11929
    %v11974 = vpack.c.b16 %v11934, %v11930
    %v11975 = vpack.c.b16 %v11939, %v11935
    %v11976 = vpack.c.b16 %v11940, %v11936
    %v11977 = vpack.c.b16 %v11941, %v11937
    %v11978 = vpack.c.b16 %v11942, %v11938
    %v11979 = vpack.c.b16 %v11947, %v11943
    %v11980 = vpack.c.b16 %v11948, %v11944
    %v11981 = vpack.c.b16 %v11949, %v11945
    %v11982 = vpack.c.b16 %v11950, %v11946
    %12015 = vmatprep.subr.bf16.mxu0 %v11952
    %12016 = vmatpush1.bf16.msra.mxu0 %v11951
    %12017 = vmatprep.subr.bf16.mxu0 %v11956
    %12018 = vmatpush1.bf16.msra.mxu0 %v11955
    %12019 = vmatprep.subr.bf16.mxu0 %v11960
    %12020 = vmatpush1.bf16.msra.mxu0 %v11959
    %12021 = vmatprep.subr.bf16.mxu0 %v11964
    %12022 = vmatpush1.bf16.msra.mxu0 %v11963
    %12023 = vmatprep.subr.bf16.mxu0 %v11968
    %12024 = vmatpush1.bf16.msra.mxu0 %v11967
    %12025 = vmatprep.subr.bf16.mxu0 %v11972
    %12026 = vmatpush1.bf16.msra.mxu0 %v11971
    %12027 = vmatprep.subr.bf16.mxu0 %v11976
    %12028 = vmatpush1.bf16.msra.mxu0 %v11975
    %12029 = vmatprep.subr.bf16.mxu0 %v11980
    %12030 = vmatpush1.bf16.msra.mxu0 %v11979
    %12031 = vmatprep.subr.bf16.mxu0 0
    %12032 = vmatpush1.bf16.msra.mxu0 0
    %12033 = vmatprep.subr.bf16.mxu0 0
    %12034 = vmatpush1.bf16.msra.mxu0 0
    %12035 = vmatprep.subr.bf16.mxu0 0
    %12036 = vmatpush1.bf16.msra.mxu0 0
    %12037 = vmatprep.subr.bf16.mxu0 0
    %12038 = vmatpush1.bf16.msra.mxu0 0
    %12039 = vmatprep.subr.bf16.mxu0 0
    %12040 = vmatpush1.bf16.msra.mxu0 0
    %12041 = vmatprep.subr.bf16.mxu0 0
    %12042 = vmatpush1.bf16.msra.mxu0 0
    %12043 = vmatprep.subr.bf16.mxu0 0
    %12044 = vmatpush1.bf16.msra.mxu0 0
    %12045 = vmatprep.subr.bf16.mxu0 0
    %12046 = vmatpush1.bf16.msra.mxu0 0
    %12047 = vmatprep.mubr.bf16.mxu0 0
    %12048 = vmatmul.mubr.bf16.gmra.mrb[0].mxu0 %v11800
    %v12049 = vpop.f32.mrb[0].mxu0
    %v12050 = vadd.f32 %v11838, %v12049
    %v12051 = vpop.f32.mrb[0].mxu0
    %v12052 = vadd.f32 %v11842, %v12051
    %v12053 = vpop.f32.mrb[0].mxu0
    %v12054 = vadd.f32 %v11838, %v12053
    %v12055 = vpop.f32.mrb[0].mxu0
    %v12056 = vadd.f32 %v11842, %v12055
    %12057 = vdwg.mxu0
    %12058 = vmatprep.subr.bf16.mxu0 %v11954
    %12059 = vmatpush1.bf16.msra.mxu0 %v11953
    %12060 = vmatprep.subr.bf16.mxu0 %v11958
    %12061 = vmatpush1.bf16.msra.mxu0 %v11957
    %12062 = vmatprep.subr.bf16.mxu0 %v11962
    %12063 = vmatpush1.bf16.msra.mxu0 %v11961
    %12064 = vmatprep.subr.bf16.mxu0 %v11966
    %12065 = vmatpush1.bf16.msra.mxu0 %v11965
    %12066 = vmatprep.subr.bf16.mxu0 %v11970
    %12067 = vmatpush1.bf16.msra.mxu0 %v11969
    %12068 = vmatprep.subr.bf16.mxu0 %v11974
    %12069 = vmatpush1.bf16.msra.mxu0 %v11973
    %12070 = vmatprep.subr.bf16.mxu0 %v11978
    %12071 = vmatpush1.bf16.msra.mxu0 %v11977
    %12072 = vmatprep.subr.bf16.mxu0 %v11982
    %12073 = vmatpush1.bf16.msra.mxu0 %v11981
    %12074 = vmatprep.subr.bf16.mxu0 0
    %12075 = vmatpush1.bf16.msra.mxu0 0
    %12076 = vmatprep.subr.bf16.mxu0 0
    %12077 = vmatpush1.bf16.msra.mxu0 0
    %12078 = vmatprep.subr.bf16.mxu0 0
    %12079 = vmatpush1.bf16.msra.mxu0 0
    %12080 = vmatprep.subr.bf16.mxu0 0
    %12081 = vmatpush1.bf16.msra.mxu0 0
    %12082 = vmatprep.subr.bf16.mxu0 0
    %12083 = vmatpush1.bf16.msra.mxu0 0
    %12084 = vmatprep.subr.bf16.mxu0 0
    %12085 = vmatpush1.bf16.msra.mxu0 0
    %12086 = vmatprep.subr.bf16.mxu0 0
    %12087 = vmatpush1.bf16.msra.mxu0 0
    %12088 = vmatprep.subr.bf16.mxu0 0
    %12089 = vmatpush1.bf16.msra.mxu0 0
    %12090 = vmatprep.mubr.bf16.mxu0 0
    %12091 = vmatmul.mubr.bf16.gmra.mrb[0].mxu0 %v11800
    %v12092 = vpop.f32.mrb[0].mxu0
    %v12093 = vadd.f32 %v11846, %v12092
    %v12094 = vpop.f32.mrb[0].mxu0
    %v12095 = vadd.f32 %v11850, %v12094
    %v12096 = vpop.f32.mrb[0].mxu0
    %v12097 = vadd.f32 %v11846, %v12096
    %v12098 = vpop.f32.mrb[0].mxu0
    %v12099 = vadd.f32 %v11850, %v12098
    %12100 = vdwg.mxu0
    %v12101 = vadd.f32 %v2259, %v12050
    %v12102 = vadd.f32 %v2261, %v12052
    %v12103 = vadd.f32 %v2365, %v12093
    %v12104 = vadd.f32 %v2367, %v12095
    %v12105 = vadd.f32 %v2263, %v12054
    %v12106 = vadd.f32 %v2265, %v12056
    %v12107 = vadd.f32 %v2369, %v12097
    %v12108 = vadd.f32 %v2371, %v12099
    %v12109 = vmax.f32 %v12101, 0.0
    %v12110 = vmax.f32 %v12102, 0.0
    %v12111 = vmax.f32 %v12103, 0.0
    %v12112 = vmax.f32 %v12104, 0.0
    %v12113 = vmax.f32 %v12105, 0.0
    %v12114 = vmax.f32 %v12106, 0.0
    %v12115 = vmax.f32 %v12107, 0.0
    %v12116 = vmax.f32 %v12108, 0.0
    %v12117 = vadd.f32 %v2269, %v12050
    %v12118 = vadd.f32 %v2271, %v12052
    %v12119 = vadd.f32 %v2375, %v12093
    %v12120 = vadd.f32 %v2377, %v12095
    %v12121 = vadd.f32 %v2273, %v12054
    %v12122 = vadd.f32 %v2275, %v12056
    %v12123 = vadd.f32 %v2379, %v12097
    %v12124 = vadd.f32 %v2381, %v12099
    %v12125 = vmax.f32 %v12117, 0.0
    %v12126 = vmax.f32 %v12118, 0.0
    %v12127 = vmax.f32 %v12119, 0.0
    %v12128 = vmax.f32 %v12120, 0.0
    %v12129 = vmax.f32 %v12121, 0.0
    %v12130 = vmax.f32 %v12122, 0.0
    %v12131 = vmax.f32 %v12123, 0.0
    %v12132 = vmax.f32 %v12124, 0.0
    %12133 = vst [vmem:[#allocation38] sm:$0xff] %v12109
    %12134 = vst [vmem:[#allocation38 + $0x8] sm:$0xff] %v12110
    %12135 = vst [vmem:[#allocation38 + $0x10] sm:$0xff] %v12111
    %12136 = vst [vmem:[#allocation38 + $0x18] sm:$0xff] %v12112
    %12137 = vst [vmem:[#allocation38 + $0x20] sm:$0xff] %v12113
    %12138 = vst [vmem:[#allocation38 + $0x28] sm:$0xff] %v12114
    %12139 = vst [vmem:[#allocation38 + $0x30] sm:$0xff] %v12115
    %12140 = vst [vmem:[#allocation38 + $0x38] sm:$0xff] %v12116
    %12141 = vst [vmem:[#allocation39] sm:$0xff] %v8252
    %12142 = vst [vmem:[#allocation39 + $0x8] sm:$0xff] %v8253
    %12143 = vst [vmem:[#allocation39 + $0x10] sm:$0xff] %v8254
    %12144 = vst [vmem:[#allocation39 + $0x18] sm:$0xff] %v8255
    %12145 = vst [vmem:[#allocation39 + $0x20] sm:$0xff] %v8256
    %12146 = vst [vmem:[#allocation39 + $0x28] sm:$0xff] %v8257
    %12147 = vst [vmem:[#allocation39 + $0x30] sm:$0xff] %v8258
    %12148 = vst [vmem:[#allocation39 + $0x38] sm:$0xff] %v8259
    %12149 = vst [vmem:[#allocation41] sm:$0xff] %v12125
    %12150 = vst [vmem:[#allocation41 + $0x8] sm:$0xff] %v12126
    %12151 = vst [vmem:[#allocation41 + $0x10] sm:$0xff] %v12127
    %12152 = vst [vmem:[#allocation41 + $0x18] sm:$0xff] %v12128
    %12153 = vst [vmem:[#allocation41 + $0x20] sm:$0xff] %v12129
    %12154 = vst [vmem:[#allocation41 + $0x28] sm:$0xff] %v12130
    %12155 = vst [vmem:[#allocation41 + $0x30] sm:$0xff] %v12131
    %12156 = vst [vmem:[#allocation41 + $0x38] sm:$0xff] %v12132
    // Predicated region
    $region186: #{tpu_custom_call.1} parent=1 // pred_check
      _
    $region187: #{tpu_custom_call.1} parent=1 // pred_check_branch
      %12158 = sbr.rel (0) target = $region189
    $region188: #{tpu_custom_call.1} parent=1 // pred_region
      %s12160 = ssub.s32 1024, 1024
      %12161 = vsyncadd [#allocation4], %s12160
      %s12162 = sshll.u32 [#allocation38], 4
      %s12163 = int_to_ptr.vmem [resolvable:$true] %s12162
      %12168 = dma.vmem_to_hbm [thread:$0]  %s12163, 1024, %s23, [#allocation4], 512, 512, 32
    $region189: #{tpu_custom_call.1} parent=1 // pred_fallthru
      _
    // Predicated region
    $region190: #{tpu_custom_call.1} parent=1 // pred_check
      _
    $region191: #{tpu_custom_call.1} parent=1 // pred_check_branch
      %12170 = sbr.rel (0) target = $region193
    $region192: #{tpu_custom_call.1} parent=1 // pred_region
      %s12172 = ssub.s32 1024, 1024
      %12173 = vsyncadd [#allocation40], %s12172
      %s12174 = sshll.u32 [#allocation39], 4
      %s12175 = int_to_ptr.vmem [resolvable:$true] %s12174
      %12180 = dma.vmem_to_hbm [thread:$0]  %s12175, 1024, %s24, [#allocation40], 512, 512, 32
    $region193: #{tpu_custom_call.1} parent=1 // pred_fallthru
      _
    // Predicated region
    $region194: #{tpu_custom_call.1} parent=1 // pred_check
      _
    $region195: #{tpu_custom_call.1} parent=1 // pred_check_branch
      %12182 = sbr.rel (0) target = $region197
    $region196: #{tpu_custom_call.1} parent=1 // pred_region
      %s12184 = ssub.s32 1024, 1024
      %12185 = vsyncadd [#allocation40], %s12184
      %s12186 = sshll.u32 [#allocation41], 4
      %s12187 = int_to_ptr.vmem [resolvable:$true] %s12186
      %12192 = dma.vmem_to_hbm [thread:$0]  %s12187, 1024, %s25, [#allocation40], 512, 512, 32
    $region197: #{tpu_custom_call.1} parent=1 // pred_fallthru
      _
    // Predicated region
    $region198: #{tpu_custom_call.1} parent=1 // pred_check
      _
    $region199: #{tpu_custom_call.1} parent=1 // pred_check_branch
      %12194 = sbr.rel (0) target = $region201
    $region200: #{tpu_custom_call.1} parent=1 // pred_region
      %12195 = dma.done [#allocation4], 1024
    $region201: #{tpu_custom_call.1} parent=1 // pred_fallthru
      _
    // Predicated region
    $region202: #{tpu_custom_call.1} parent=1 // pred_check
      _
    $region203: #{tpu_custom_call.1} parent=1 // pred_check_branch
      %12197 = sbr.rel (0) target = $region205
    $region204: #{tpu_custom_call.1} parent=1 // pred_region
      %12198 = dma.done [#allocation40], 1024
    $region205: #{tpu_custom_call.1} parent=1 // pred_fallthru
      _
    // Predicated region
    $region206: #{tpu_custom_call.1} parent=1 // pred_check
      _
    $region207: #{tpu_custom_call.1} parent=1 // pred_check_branch
      %12200 = sbr.rel (0) target = $region209
    $region208: #{tpu_custom_call.1} parent=1 // pred_region
      %12201 = dma.done [#allocation40], 1024
    $region209: #{tpu_custom_call.1} parent=1 // pred_fallthru
      _
    %12202 = vsyncpa [#allocation3], 1
    %12203 = vsyncpa [#allocation6], 1
    %12204 = vsyncpa [#allocation9], 1
    %12205 = vsyncpa [#allocation12], 1
    %12206 = vsyncpa [#allocation15], 1
    %12207 = vsyncpa [#allocation18], 1
    %12208 = vsyncpa [#allocation21], 1
    %12209 = vsyncpa [#allocation24], 1
    %12210 = vsyncpa [#allocation27], 1
    %12211 = vsyncpa [#allocation30], 1
    %12212 = vsyncpa [#allocation33], 1
    %12213 = vsyncpa [#allocation36], 1
    %12214 = vsyncpa [#allocation4], 1
    %12215 = vsyncpa [#allocation40], 1

</llo_original>
